<compile_context>
chip_gen: v5e
topology: v5e:2x2
jax: 0.10.0
libtpu: 0.0.40
codegen_flags: <defaults>
</compile_context>

<pallas_src>
import math
import functools

import jax
import jax.numpy as jnp
from jax.experimental import pallas as pl
from jax.experimental.pallas import tpu as pltpu

_VMEM_LIMIT = 8 * 1024 * 1024     # tiny blocks; well under v5e/v6e/v7x VMEM


# ----------------------------------------------------------------------------
# Pallas kernels
# ----------------------------------------------------------------------------
def _apply_act(y, act):
    if act == "leaky_relu":
        return jnp.where(y >= 0.0, y, 0.2 * y)
    if act == "relu":
        return jnp.maximum(y, 0.0)
    if act == "tanh":
        return jnp.tanh(y)
    return y                                  # act == "none"


def _conv_flat_kernel(*refs, M, Wx, Wo, starts, act_in, has_affine,
                      act_out, compute_stats):
    """Fused conv-as-GEMM kernel over a flattened (rows, K) input.

    grid = (batch,); one grid step processes one whole image.

      x_ref     : (1, R, K)      bf16  flattened padded (s2d) input
      w_ref     : (G, T, K, C)   bf16  per-phase / per-tap weight slabs
      b_ref     : (1, C)         f32   bias
      scale_ref : (1, K)         f32   fused input-BN scale  (optional)
      shift_ref : (1, K)         f32   fused input-BN shift  (optional)
      y_ref     : (1, M, G*C)    bf16/f32 output rows (phases packed in lanes)
      s_ref     : (1, 1, C)      f32   per-image channel sum   (optional)
      q_ref     : (1, 1, C)      f32   per-image channel sumsq (optional)

    Output row t maps to spatial (i, j) = (t // Wx, t mod Wx); rows with
    j >= Wo are over-compute junk that the wrapper slices away (and that
    `vmask` excludes from the BN statistics).
    """
    it = iter(refs)
    x_ref = next(it)
    w_ref = next(it)
    b_ref = next(it)
    scale_ref = shift_ref = None
    if has_affine:
        scale_ref = next(it)
        shift_ref = next(it)
    y_ref = next(it)
    s_ref = q_ref = None
    if compute_stats:
        s_ref = next(it)
        q_ref = next(it)

    x = x_ref[0]                                          # (R, K) bf16
    # Previous layer's BN affine + activation, applied once per block (f32).
    if has_affine:
        xf = x.astype(jnp.float32) * scale_ref[...] + shift_ref[...]
        x = _apply_act(xf, act_in).astype(jnp.bfloat16)
    elif act_in != "none":
        x = _apply_act(x.astype(jnp.float32), act_in).astype(jnp.bfloat16)

    bias = b_ref[...]                                     # (1, C) f32
    C = bias.shape[-1]

    if compute_stats:
        rows = jax.lax.broadcasted_iota(jnp.int32, (M, 1), 0)
        vmask = ((rows % Wx) < Wo).astype(jnp.float32)
        s_acc = jnp.zeros((1, C), jnp.float32)
        q_acc = jnp.zeros((1, C), jnp.float32)

    for g, g_starts in enumerate(starts):
        acc = None
        for t, st in enumerate(g_starts):
            d = jnp.dot(x[st:st + M, :], w_ref[g, t],
                        preferred_element_type=jnp.float32)
            acc = d if acc is None else acc + d
        y = acc + bias                                    # (M, C) f32
        if compute_stats:
            ym = y * vmask
            s_acc = s_acc + jnp.sum(ym, axis=0, keepdims=True)
            q_acc = q_acc + jnp.sum(y * ym, axis=0, keepdims=True)
        y_ref[0, :, g * C:(g + 1) * C] = _apply_act(y, act_out).astype(y_ref.dtype)

    if compute_stats:
        s_ref[0] = s_acc
        q_ref[0] = q_acc


def _blend_kernel(x_ref, ini_ref, m_ref, o_ref):
    # T = (x + 1)/2 ; out = T*(1-mask) + ini*mask
    t = (x_ref[...] + 1.0) * 0.5
    m = m_ref[...]
    o_ref[...] = t * (1.0 - m) + ini_ref[...] * m


# ----------------------------------------------------------------------------
# Pallas wrappers
# ----------------------------------------------------------------------------
def _conv_call(xflat, w_taps, bias, scale_in, shift_in, *, Wx, Wo, Ho, starts,
               act_in, act_out, compute_stats, out_dtype):
    N, R, K = xflat.shape
    G, T, Kw, C = w_taps.shape
    assert Kw == K and G == len(starts) and T == len(starts[0])
    M = (Ho - 1) * Wx + Wo
    has_affine = scale_in is not None

    kern = functools.partial(
        _conv_flat_kernel, M=M, Wx=Wx, Wo=Wo, starts=starts, act_in=act_in,
        has_affine=has_affine, act_out=act_out, compute_stats=compute_stats)

    in_specs = [
        pl.BlockSpec((1, R, K), lambda n: (n, 0, 0)),
        pl.BlockSpec((G, T, K, C), lambda n: (0, 0, 0, 0)),
        pl.BlockSpec((1, C), lambda n: (0, 0)),
    ]
    inputs = [xflat.astype(jnp.bfloat16), w_taps.astype(jnp.bfloat16),
              bias.reshape(1, C).astype(jnp.float32)]
    if has_affine:
        in_specs += [pl.BlockSpec((1, K), lambda n: (0, 0)),
                     pl.BlockSpec((1, K), lambda n: (0, 0))]
        inputs += [scale_in.reshape(1, K).astype(jnp.float32),
                   shift_in.reshape(1, K).astype(jnp.float32)]

    out_specs = [pl.BlockSpec((1, M, G * C), lambda n: (n, 0, 0))]
    out_shape = [jax.ShapeDtypeStruct((N, M, G * C), out_dtype)]
    if compute_stats:
        out_specs += [pl.BlockSpec((1, 1, C), lambda n: (n, 0, 0)),
                      pl.BlockSpec((1, 1, C), lambda n: (n, 0, 0))]
        out_shape += [jax.ShapeDtypeStruct((N, 1, C), jnp.float32)] * 2

    res = pl.pallas_call(
        kern,
        grid=(N,),
        in_specs=in_specs,
        out_specs=tuple(out_specs),
        out_shape=tuple(out_shape),
        compiler_params=pltpu.CompilerParams(
            dimension_semantics=("parallel",),
            vmem_limit_bytes=_VMEM_LIMIT),
    )(*inputs)

    if compute_stats:
        y, s, q = res
        return y, s, q
    y = res[0] if isinstance(res, (tuple, list)) else res
    return y, None, None


def blend(x_flat, ini_flat, mask_flat):
    N, _, HW = x_flat.shape
    return pl.pallas_call(
        _blend_kernel,
        grid=(N,),
        in_specs=[pl.BlockSpec((1, 1, HW), lambda n: (n, 0, 0)),
                  pl.BlockSpec((1, 1, HW), lambda n: (n, 0, 0)),
                  pl.BlockSpec((1, 1, HW), lambda n: (0, 0, 0))],
        out_specs=pl.BlockSpec((1, 1, HW), lambda n: (n, 0, 0)),
        out_shape=jax.ShapeDtypeStruct((N, 1, HW), jnp.float32),
        compiler_params=pltpu.CompilerParams(
            dimension_semantics=("parallel",),
            vmem_limit_bytes=_VMEM_LIMIT),
    )(x_flat, ini_flat, mask_flat)


# ----------------------------------------------------------------------------
# XLA-side layout helpers (tiny, KB-scale glue)
# ----------------------------------------------------------------------------
def _pad_ring(x, pad_val):
    """Pad 1 pixel per spatial side; pad value is per channel (None -> 0).

    The pad value -shift/scale makes act(scale*pad + shift) == 0 inside the
    consumer kernel, preserving the reference conv's zero padding.
    """
    N, H, W, C = x.shape
    if pad_val is None:
        return jnp.pad(x, ((0, 0), (1, 1), (1, 1), (0, 0)))
    base = jnp.broadcast_to(pad_val.astype(x.dtype).reshape(1, 1, 1, C),
                            (N, H + 2, W + 2, C))
    return jax.lax.dynamic_update_slice(base, x, (0, 1, 1, 0))


def _space_to_depth(xp):
    """(N, 2u, 2v, C) -> (N, u, v, 4C), channel order (ph, pw, c)."""
    N, H2, W2, C = xp.shape
    x2 = xp.reshape(N, H2 // 2, 2, W2 // 2, 2, C)
    x2 = x2.transpose(0, 1, 3, 2, 4, 5)
    return x2.reshape(N, H2 // 2, W2 // 2, 4 * C)


def _extract_valid(y, N, Ho, Wo, Wx, G, C):
    """(N, M, G*C) flat-row kernel output -> (N, Ho, Wo, G, C)."""
    M = y.shape[1]
    y = jnp.pad(y, ((0, 0), (0, Ho * Wx - M), (0, 0)))
    return y.reshape(N, Ho, Wx, G, C)[:, :, :Wo]


def _phase_to_space(y5):
    """(N, H, W, 4 phases [r*2+s], C) -> (N, 2H, 2W, C)."""
    N, H, W, _, C = y5.shape
    y = y5.reshape(N, H, W, 2, 2, C).transpose(0, 1, 3, 2, 4, 5)
    return y.reshape(N, 2 * H, 2 * W, C)


def _bn_affine(s, q, count, gamma, beta, eps=1e-5):
    """Training-mode BN -> per-channel (scale, shift, pad value)."""
    ssum = jnp.sum(s, axis=(0, 1))
    qsum = jnp.sum(q, axis=(0, 1))
    mean = ssum / count
    var = jnp.maximum(qsum / count - mean * mean, 0.0)   # clamp cancellation
    scale = gamma * jax.lax.rsqrt(var + eps)
    shift = beta - mean * scale
    safe = jnp.where(scale != 0.0, scale, 1.0)
    padv = jnp.where(scale != 0.0, -shift / safe, 0.0)
    return scale, shift, padv


# ----------------------------------------------------------------------------
# Conv / ConvTranspose layer wrappers (NHWC, bf16 activations)
# ----------------------------------------------------------------------------
def conv_down(x_nhwc, w, b, *, scale_in=None, shift_in=None, pad_val=None,
              act_in="none", act_out="none", compute_stats=False,
              out_dtype=jnp.bfloat16):
    """Conv2d(k=4, s=2, p=1); previous layer's BN affine + act fused in."""
    N, H, W, Cin = x_nhwc.shape
    Cout = w.shape[0]
    Ho, Wo = H // 2, W // 2
    Wx = Wo + 1
    K = 4 * Cin
    xp = _pad_ring(x_nhwc, pad_val)
    x2 = _space_to_depth(xp)                              # (N, Ho+1, Wo+1, K)
    xflat = x2.reshape(N, (Ho + 1) * Wx, K)
    # (Cout, Cin, 4, 4) -> (1 group, 4 taps [a*2+b], K=(ph,pw,ci), Cout)
    w2 = w.reshape(Cout, Cin, 2, 2, 2, 2).transpose(2, 4, 3, 5, 1, 0)
    w2 = w2.reshape(1, 4, K, Cout)
    starts = (tuple(a * Wx + bb for a in range(2) for bb in range(2)),)
    sc = None if scale_in is None else jnp.tile(scale_in, 4)
    sh = None if shift_in is None else jnp.tile(shift_in, 4)
    y, s, q = _conv_call(xflat, w2, b, sc, sh, Wx=Wx, Wo=Wo, Ho=Ho,
                         starts=starts, act_in=act_in, act_out=act_out,
                         compute_stats=compute_stats, out_dtype=out_dtype)
    yo = _extract_valid(y, N, Ho, Wo, Wx, 1, Cout)[:, :, :, 0, :]
    return yo, s, q


def conv_up(x_nhwc, w, b, *, scale_in=None, shift_in=None, pad_val=None,
            act_in="relu", act_out="none", compute_stats=False,
            out_dtype=jnp.bfloat16):
    """ConvTranspose2d(k=4, s=2, p=1) via 4-phase sub-pixel decomposition."""
    N, H, W, Cin = x_nhwc.shape
    Cout = w.shape[1]
    Wx = W + 2
    xp = _pad_ring(x_nhwc, pad_val)                        # (N, H+2, W+2, Cin)
    xflat = xp.reshape(N, (H + 2) * Wx, Cin)
    # (Cin, Cout, 4, 4) -> (4 phases [r*2+s], 4 taps [a*2+b], Cin, Cout)
    wf = w[:, :, ::-1, ::-1]                               # flipped kernel
    w2 = wf.reshape(Cin, Cout, 2, 2, 2, 2).transpose(3, 5, 2, 4, 0, 1)
    w2 = w2.reshape(4, 4, Cin, Cout)
    starts = tuple(tuple((r + a) * Wx + (s + bb)
                         for a in range(2) for bb in range(2))
                   for r in range(2) for s in range(2))
    y, st, q = _conv_call(xflat, w2, b, scale_in, shift_in, Wx=Wx, Wo=W, Ho=H,
                          starts=starts, act_in=act_in, act_out=act_out,
                          compute_stats=compute_stats, out_dtype=out_dtype)
    y5 = _extract_valid(y, N, H, W, Wx, 4, Cout)           # (N, H, W, 4, C)
    return _phase_to_space(y5), st, q


# ----------------------------------------------------------------------------
# Parameter init (deterministic, mirrors UNet.__init__ shapes)
# ----------------------------------------------------------------------------
def init_params(key, img_size, filters):
    layers = int(math.log2(img_size))
    params = {"enc_w": [], "enc_b": [], "enc_bn_g": [], "enc_bn_b": [],
              "dec_w": [], "dec_b": [], "dec_bn_g": [], "dec_bn_b": []}
    keys = jax.random.split(key, 4 * layers)
    ki = 0
    for i in range(layers):
        if i == 0:
            cin, cout = 1, filters
        else:
            cin = min(2 ** (i - 1), 8) * filters
            cout = min(2 ** i, 8) * filters
        params["enc_w"].append(
            0.05 * jax.random.normal(keys[ki], (cout, cin, 4, 4), jnp.float32)); ki += 1
        params["enc_b"].append(
            0.01 * jax.random.normal(keys[ki], (cout,), jnp.float32)); ki += 1
        bn_c = min(2 ** i * filters, 8 * filters)
        params["enc_bn_g"].append(jnp.ones((bn_c,), jnp.float32))
        params["enc_bn_b"].append(jnp.zeros((bn_c,), jnp.float32))
    for i in range(layers)[::-1]:
        if i == layers - 1:
            cin = min(2 ** i * filters, 8 * filters)
            cout = min(2 ** (i - 1) * filters, 8 * filters)
        elif i == 0:
            cin, cout = filters * 2, 1
        else:
            cin = min(2 ** i * filters, 8 * filters) * 2
            cout = min(2 ** (i - 1) * filters, 8 * filters)
        params["dec_w"].append(
            0.05 * jax.random.normal(keys[ki], (cin, cout, 4, 4), jnp.float32)); ki += 1
        params["dec_b"].append(
            0.01 * jax.random.normal(keys[ki], (cout,), jnp.float32)); ki += 1
        bn_c = int(min(max(2 ** (i - 1), 1) * filters, 8 * filters))
        params["dec_bn_g"].append(jnp.ones((bn_c,), jnp.float32))
        params["dec_bn_b"].append(jnp.zeros((bn_c,), jnp.float32))
    return params


# ----------------------------------------------------------------------------
# Forward pass
# ----------------------------------------------------------------------------
def build_mask(H, W, isNeum):
    # the PyTorch reference only consults isNeum[0] (static Python bool here)
    m = jnp.zeros((H, W), jnp.float32)
    m = m.at[:, 0:2].set(1.0)
    m = m.at[0:2, :].set(1.0)
    m = m.at[:, W - 2:].set(1.0)
    m = m.at[H - 2:, :].set(1.0)
    if isNeum[0]:
        m = m.at[2:H - 2, 1].set(0.0)
    return m


def unet_forward(x, params, isNeum=(False, False, False, False)):
    N, _, H, W = x.shape
    layers = int(math.log2(H))
    ini_state = x.astype(jnp.float32)

    cur = jnp.transpose(x, (0, 2, 3, 1)).astype(jnp.bfloat16)   # NHWC bf16
    # Deferred (BN affine, act) the NEXT encoder layer must apply to `cur`.
    cur_scale = cur_shift = cur_padv = None
    cur_act = "none"
    # Skip records: (raw value, scale, shift, pad value); scale None => value
    # is already final (no pending BN affine).
    skips = []

    # ------------------------------- encoder -------------------------------
    for i in range(layers):
        w, b = params["enc_w"][i], params["enc_b"][i]
        has_bn = 0 < i < layers - 1
        y, s, q = conv_down(
            cur, w, b,
            scale_in=cur_scale, shift_in=cur_shift, pad_val=cur_padv,
            act_in=cur_act,
            act_out=("leaky_relu" if i == 0 else "none"),
            compute_stats=has_bn)
        n, ho, wo, _ = y.shape
        if has_bn:
            cur_scale, cur_shift, cur_padv = _bn_affine(
                s, q, float(n * ho * wo),
                params["enc_bn_g"][i], params["enc_bn_b"][i])
            cur_act = "leaky_relu"
        else:
            cur_scale = cur_shift = cur_padv = None
            cur_act = "none"
        cur = y
        if i < layers - 1:
            skips.append((y, cur_scale, cur_shift, cur_padv))
    # `cur` is now the raw bottleneck (no BN / activation pending).

    # ------------------------------- decoder -------------------------------
    dec_scale = dec_shift = dec_padv = None
    for j in range(layers):
        w, b = params["dec_w"][j], params["dec_b"][j]
        last = j == layers - 1
        if j == 0:
            inp = cur
            sc_in = sh_in = pv_in = None
        else:
            skip_v, sk_sc, sk_sh, sk_pv = skips[layers - 1 - j]
            inp = jnp.concatenate([cur, skip_v], axis=-1)
            cs = skip_v.shape[-1]
            sc_in = jnp.concatenate([
                dec_scale,
                sk_sc if sk_sc is not None else jnp.ones((cs,), jnp.float32)])
            sh_in = jnp.concatenate([
                dec_shift,
                sk_sh if sk_sh is not None else jnp.zeros((cs,), jnp.float32)])
            pv_in = jnp.concatenate([
                dec_padv,
                sk_pv if sk_pv is not None else jnp.zeros((cs,), jnp.float32)])
        # relu(leaky_relu(t)) == relu(t), so a single fused relu after the
        # (deferred) BN affine reproduces the reference exactly.
        y, s, q = conv_up(
            inp, w, b,
            scale_in=sc_in, shift_in=sh_in, pad_val=pv_in,
            act_in="relu",
            act_out=("tanh" if last else "none"),
            compute_stats=not last,
            out_dtype=(jnp.float32 if last else jnp.bfloat16))
        if not last:
            n, h2, w2, _ = y.shape
            dec_scale, dec_shift, dec_padv = _bn_affine(
                s, q, float(n * h2 * w2),
                params["dec_bn_g"][j], params["dec_bn_b"][j])
        cur = y

    # --------------------------- boundary blend ----------------------------
    mask = build_mask(H, W, isNeum).reshape(1, 1, H * W)
    out = blend(cur.reshape(N, 1, H * W),
                ini_state.reshape(N, 1, H * W),
                mask)
    return out.reshape(N, 1, H, W)


# ----------------------------------------------------------------------------
if __name__ == "__main__":
    img_size = 16   # layers = log2(16) = 4
    filters = 8
    batch = 2

    key = jax.random.PRNGKey(0)
    kp, kx = jax.random.split(key)
    params = init_params(kp, img_size, filters)
    x = jax.random.uniform(kx, (batch, 1, img_size, img_size), jnp.float32)

    fwd = jax.jit(unet_forward)
    out = fwd(x, params)
    jax.block_until_ready(out)
    assert out.shape == (batch, 1, img_size, img_size)
    assert out.dtype == jnp.float32
    print("KERNEL_OK")
</pallas_src>

<mosaic_0001>
module attributes {stable_mosaic.version = 11 : i64} {
  func.func @_conv_flat_kernel(%arg0: i32, %arg1: memref<1x81x4xbf16, #tpu.memory_space<vmem>>, %arg2: memref<1x4x4x8xbf16, #tpu.memory_space<vmem>>, %arg3: memref<1x8xf32, #tpu.memory_space<vmem>>, %arg4: memref<1x71x8xbf16, #tpu.memory_space<vmem>>) attributes {dimension_semantics = [#tpu.dimension_semantics<parallel>], iteration_bounds = array<i64: 2>, scalar_prefetch = 0 : i64, scratch_operands = 0 : i64, tpu.core_type = #tpu.core_type<tc>, window_params = [{transform_indices = @transform_0, window_bounds = array<i64: 1, 81, 4>}, {pipeline_mode = #tpu.pipeline_mode<synchronous>, transform_indices = @transform_1, window_bounds = array<i64: 1, 4, 4, 8>}, {pipeline_mode = #tpu.pipeline_mode<synchronous>, transform_indices = @transform_2, window_bounds = array<i64: 1, 8>}, {transform_indices = @transform_3, window_bounds = array<i64: 1, 71, 8>}]} {
    %c0 = arith.constant 0 : index
    %c0_0 = arith.constant 0 : index
    %c0_1 = arith.constant 0 : index
    %0 = vector.load %arg1[%c0, %c0_0, %c0_1] : memref<1x81x4xbf16, #tpu.memory_space<vmem>>, vector<1x81x4xbf16>
    %1 = vector.shape_cast %0 : vector<1x81x4xbf16> to vector<81x4xbf16>
    %c0_2 = arith.constant 0 : index
    %c0_3 = arith.constant 0 : index
    %2 = vector.load %arg3[%c0_2, %c0_3] : memref<1x8xf32, #tpu.memory_space<vmem>>, vector<1x8xf32>
    %3 = vector.extract_strided_slice %1 {offsets = [0, 0], sizes = [71, 4], strides = [1, 1]} : vector<81x4xbf16> to vector<71x4xbf16>
    %c0_4 = arith.constant 0 : index
    %c0_5 = arith.constant 0 : index
    %c0_6 = arith.constant 0 : index
    %c0_7 = arith.constant 0 : index
    %4 = vector.load %arg2[%c0_4, %c0_5, %c0_6, %c0_7] : memref<1x4x4x8xbf16, #tpu.memory_space<vmem>>, vector<1x1x4x8xbf16>
    %5 = vector.shape_cast %4 : vector<1x1x4x8xbf16> to vector<4x8xbf16>
    %cst = arith.constant dense<0.000000e+00> : vector<71x8xf32>
    %6 = tpu.matmul %3, %5, %cst {dimension_numbers = #tpu.dot_dimension_numbers<[1], [0], [0], [1], [0, 0, 1, 1], [], []>} : vector<71x4xbf16>, vector<4x8xbf16>, vector<71x8xf32> -> vector<71x8xf32>
    %7 = vector.extract_strided_slice %1 {offsets = [1, 0], sizes = [71, 4], strides = [1, 1]} : vector<81x4xbf16> to vector<71x4xbf16>
    %c0_8 = arith.constant 0 : index
    %c1 = arith.constant 1 : index
    %c0_9 = arith.constant 0 : index
    %c0_10 = arith.constant 0 : index
    %8 = vector.load %arg2[%c0_8, %c1, %c0_9, %c0_10] : memref<1x4x4x8xbf16, #tpu.memory_space<vmem>>, vector<1x1x4x8xbf16>
    %9 = vector.shape_cast %8 : vector<1x1x4x8xbf16> to vector<4x8xbf16>
    %cst_11 = arith.constant dense<0.000000e+00> : vector<71x8xf32>
    %10 = tpu.matmul %7, %9, %cst_11 {dimension_numbers = #tpu.dot_dimension_numbers<[1], [0], [0], [1], [0, 0, 1, 1], [], []>} : vector<71x4xbf16>, vector<4x8xbf16>, vector<71x8xf32> -> vector<71x8xf32>
    %11 = arith.addf %6, %10 : vector<71x8xf32>
    %12 = vector.extract_strided_slice %1 {offsets = [9, 0], sizes = [71, 4], strides = [1, 1]} : vector<81x4xbf16> to vector<71x4xbf16>
    %c0_12 = arith.constant 0 : index
    %c2 = arith.constant 2 : index
    %c0_13 = arith.constant 0 : index
    %c0_14 = arith.constant 0 : index
    %13 = vector.load %arg2[%c0_12, %c2, %c0_13, %c0_14] : memref<1x4x4x8xbf16, #tpu.memory_space<vmem>>, vector<1x1x4x8xbf16>
    %14 = vector.shape_cast %13 : vector<1x1x4x8xbf16> to vector<4x8xbf16>
    %cst_15 = arith.constant dense<0.000000e+00> : vector<71x8xf32>
    %15 = tpu.matmul %12, %14, %cst_15 {dimension_numbers = #tpu.dot_dimension_numbers<[1], [0], [0], [1], [0, 0, 1, 1], [], []>} : vector<71x4xbf16>, vector<4x8xbf16>, vector<71x8xf32> -> vector<71x8xf32>
    %16 = arith.addf %11, %15 : vector<71x8xf32>
    %17 = vector.extract_strided_slice %1 {offsets = [10, 0], sizes = [71, 4], strides = [1, 1]} : vector<81x4xbf16> to vector<71x4xbf16>
    %c0_16 = arith.constant 0 : index
    %c3 = arith.constant 3 : index
    %c0_17 = arith.constant 0 : index
    %c0_18 = arith.constant 0 : index
    %18 = vector.load %arg2[%c0_16, %c3, %c0_17, %c0_18] : memref<1x4x4x8xbf16, #tpu.memory_space<vmem>>, vector<1x1x4x8xbf16>
    %19 = vector.shape_cast %18 : vector<1x1x4x8xbf16> to vector<4x8xbf16>
    %cst_19 = arith.constant dense<0.000000e+00> : vector<71x8xf32>
    %20 = tpu.matmul %17, %19, %cst_19 {dimension_numbers = #tpu.dot_dimension_numbers<[1], [0], [0], [1], [0, 0, 1, 1], [], []>} : vector<71x4xbf16>, vector<4x8xbf16>, vector<71x8xf32> -> vector<71x8xf32>
    %21 = arith.addf %16, %20 : vector<71x8xf32>
    %22 = vector.broadcast %2 : vector<1x8xf32> to vector<71x8xf32>
    %23 = arith.addf %21, %22 : vector<71x8xf32>
    %cst_20 = arith.constant 0.000000e+00 : f32
    %24 = vector.broadcast %cst_20 : f32 to vector<71x8xf32>
    %25 = arith.cmpf oge, %23, %24 : vector<71x8xf32>
    %cst_21 = arith.constant 2.000000e-01 : f32
    %26 = vector.broadcast %cst_21 : f32 to vector<71x8xf32>
    %27 = arith.mulf %26, %23 : vector<71x8xf32>
    %28 = arith.select %25, %23, %27 : vector<71x8xi1>, vector<71x8xf32>
    %29 = arith.truncf %28 : vector<71x8xf32> to vector<71x8xbf16>
    %c0_22 = arith.constant 0 : index
    %c0_23 = arith.constant 0 : index
    %c0_24 = arith.constant 0 : index
    %30 = vector.load %arg4[%c0_22, %c0_23, %c0_24] : memref<1x71x8xbf16, #tpu.memory_space<vmem>>, vector<1x71x8xbf16>
    %31 = vector.shape_cast %30 : vector<1x71x8xbf16> to vector<71x8xbf16>
    %32 = vector.shape_cast %29 : vector<71x8xbf16> to vector<1x71x8xbf16>
    tpu.vector_store %arg4[%c0_22, %c0_23, %c0_24], %32 {strides = array<i32>} : memref<1x71x8xbf16, #tpu.memory_space<vmem>>, vector<1x71x8xbf16>,
    return
  }
  func.func @transform_0(%arg0: i32) -> (i32, i32, i32) {
    %c0_i32 = arith.constant 0 : i32
    %c0_i32_0 = arith.constant 0 : i32
    %c0_i32_1 = arith.constant 0 : i32
    return %arg0, %c0_i32, %c0_i32_0 : i32, i32, i32
  }
  func.func @transform_1(%arg0: i32) -> (i32, i32, i32, i32) {
    %c0_i32 = arith.constant 0 : i32
    %c0_i32_0 = arith.constant 0 : i32
    %c0_i32_1 = arith.constant 0 : i32
    %c0_i32_2 = arith.constant 0 : i32
    %c0_i32_3 = arith.constant 0 : i32
    return %c0_i32, %c0_i32_0, %c0_i32_1, %c0_i32_2 : i32, i32, i32, i32
  }
  func.func @transform_2(%arg0: i32) -> (i32, i32) {
    %c0_i32 = arith.constant 0 : i32
    %c0_i32_0 = arith.constant 0 : i32
    %c0_i32_1 = arith.constant 0 : i32
    return %c0_i32, %c0_i32_0 : i32, i32
  }
  func.func @transform_3(%arg0: i32) -> (i32, i32, i32) {
    %c0_i32 = arith.constant 0 : i32
    %c0_i32_0 = arith.constant 0 : i32
    %c0_i32_1 = arith.constant 0 : i32
    return %arg0, %c0_i32, %c0_i32_0 : i32, i32, i32
  }
}

module attributes {stable_mosaic.version = 11 : i64} {
  func.func @_conv_flat_kernel(%arg0: i32, %arg1: memref<1x25x32xbf16, #tpu.memory_space<vmem>>, %arg2: memref<1x4x32x16xbf16, #tpu.memory_space<vmem>>, %arg3: memref<1x16xf32, #tpu.memory_space<vmem>>, %arg4: memref<1x19x16xbf16, #tpu.memory_space<vmem>>, %arg5: memref<1x1x16xf32, #tpu.memory_space<vmem>>, %arg6: memref<1x1x16xf32, #tpu.memory_space<vmem>>) attributes {dimension_semantics = [#tpu.dimension_semantics<parallel>], iteration_bounds = array<i64: 2>, scalar_prefetch = 0 : i64, scratch_operands = 0 : i64, tpu.core_type = #tpu.core_type<tc>, window_params = [{transform_indices = @transform_0, window_bounds = array<i64: 1, 25, 32>}, {pipeline_mode = #tpu.pipeline_mode<synchronous>, transform_indices = @transform_1, window_bounds = array<i64: 1, 4, 32, 16>}, {pipeline_mode = #tpu.pipeline_mode<synchronous>, transform_indices = @transform_2, window_bounds = array<i64: 1, 16>}, {transform_indices = @transform_3, window_bounds = array<i64: 1, 19, 16>}, {transform_indices = @transform_4, window_bounds = array<i64: 1, 1, 16>}, {transform_indices = @transform_5, window_bounds = array<i64: 1, 1, 16>}]} {
    %c0 = arith.constant 0 : index
    %c0_0 = arith.constant 0 : index
    %c0_1 = arith.constant 0 : index
    %0 = vector.load %arg1[%c0, %c0_0, %c0_1] : memref<1x25x32xbf16, #tpu.memory_space<vmem>>, vector<1x25x32xbf16>
    %1 = vector.shape_cast %0 : vector<1x25x32xbf16> to vector<25x32xbf16>
    %c0_2 = arith.constant 0 : index
    %c0_3 = arith.constant 0 : index
    %2 = vector.load %arg3[%c0_2, %c0_3] : memref<1x16xf32, #tpu.memory_space<vmem>>, vector<1x16xf32>
    %3 = tpu.iota {dimensions = array<i32: 0>} : vector<19x1xi32>
    %c5_i32 = arith.constant 5 : i32
    %c0_i32 = arith.constant 0 : i32
    %4 = arith.cmpi eq, %c5_i32, %c0_i32 : i32
    %c1_i32 = arith.constant 1 : i32
    %5 = arith.select %4, %c1_i32, %c5_i32 : i32
    %6 = vector.broadcast %5 : i32 to vector<19x1xi32>
    %7 = arith.remsi %3, %6 : vector<19x1xi32>
    %c0_i32_4 = arith.constant 0 : i32
    %8 = vector.broadcast %c0_i32_4 : i32 to vector<19x1xi32>
    %9 = arith.cmpi ne, %7, %8 : vector<19x1xi32>
    %c0_i32_5 = arith.constant 0 : i32
    %10 = vector.broadcast %c0_i32_5 : i32 to vector<19x1xi32>
    %11 = arith.cmpi slt, %7, %10 : vector<19x1xi32>
    %c0_i32_6 = arith.constant 0 : i32
    %12 = arith.cmpi slt, %5, %c0_i32_6 : i32
    %13 = vector.broadcast %12 : i1 to vector<19x1xi1>
    %14 = vector.broadcast %13 : vector<19x1xi1> to vector<19x1xi1>
    %15 = arith.xori %11, %14 : vector<19x1xi1>
    %16 = arith.andi %15, %9 : vector<19x1xi1>
    %17 = vector.broadcast %5 : i32 to vector<19x1xi32>
    %18 = arith.addi %7, %17 : vector<19x1xi32>
    %19 = arith.select %16, %18, %7 : vector<19x1xi1>, vector<19x1xi32>
    %c4_i32 = arith.constant 4 : i32
    %20 = vector.broadcast %c4_i32 : i32 to vector<19x1xi32>
    %21 = arith.cmpi slt, %19, %20 : vector<19x1xi32>
    %22 = arith.extui %21 : vector<19x1xi1> to vector<19x1xi32>
    %23 = arith.sitofp %22 : vector<19x1xi32> to vector<19x1xf32>
    %cst = arith.constant 0.000000e+00 : f32
    %24 = vector.broadcast %cst : f32 to vector<1x16xf32>
    %cst_7 = arith.constant 0.000000e+00 : f32
    %25 = vector.broadcast %cst_7 : f32 to vector<1x16xf32>
    %26 = vector.extract_strided_slice %1 {offsets = [0, 0], sizes = [19, 32], strides = [1, 1]} : vector<25x32xbf16> to vector<19x32xbf16>
    %c0_8 = arith.constant 0 : index
    %c0_9 = arith.constant 0 : index
    %c0_10 = arith.constant 0 : index
    %c0_11 = arith.constant 0 : index
    %27 = vector.load %arg2[%c0_8, %c0_9, %c0_10, %c0_11] : memref<1x4x32x16xbf16, #tpu.memory_space<vmem>>, vector<1x1x32x16xbf16>
    %28 = vector.shape_cast %27 : vector<1x1x32x16xbf16> to vector<32x16xbf16>
    %cst_12 = arith.constant dense<0.000000e+00> : vector<19x16xf32>
    %29 = tpu.matmul %26, %28, %cst_12 {dimension_numbers = #tpu.dot_dimension_numbers<[1], [0], [0], [1], [0, 0, 1, 1], [], []>} : vector<19x32xbf16>, vector<32x16xbf16>, vector<19x16xf32> -> vector<19x16xf32>
    %30 = vector.extract_strided_slice %1 {offsets = [1, 0], sizes = [19, 32], strides = [1, 1]} : vector<25x32xbf16> to vector<19x32xbf16>
    %c0_13 = arith.constant 0 : index
    %c1 = arith.constant 1 : index
    %c0_14 = arith.constant 0 : index
    %c0_15 = arith.constant 0 : index
    %31 = vector.load %arg2[%c0_13, %c1, %c0_14, %c0_15] : memref<1x4x32x16xbf16, #tpu.memory_space<vmem>>, vector<1x1x32x16xbf16>
    %32 = vector.shape_cast %31 : vector<1x1x32x16xbf16> to vector<32x16xbf16>
    %cst_16 = arith.constant dense<0.000000e+00> : vector<19x16xf32>
    %33 = tpu.matmul %30, %32, %cst_16 {dimension_numbers = #tpu.dot_dimension_numbers<[1], [0], [0], [1], [0, 0, 1, 1], [], []>} : vector<19x32xbf16>, vector<32x16xbf16>, vector<19x16xf32> -> vector<19x16xf32>
    %34 = arith.addf %29, %33 : vector<19x16xf32>
    %35 = vector.extract_strided_slice %1 {offsets = [5, 0], sizes = [19, 32], strides = [1, 1]} : vector<25x32xbf16> to vector<19x32xbf16>
    %c0_17 = arith.constant 0 : index
    %c2 = arith.constant 2 : index
    %c0_18 = arith.constant 0 : index
    %c0_19 = arith.constant 0 : index
    %36 = vector.load %arg2[%c0_17, %c2, %c0_18, %c0_19] : memref<1x4x32x16xbf16, #tpu.memory_space<vmem>>, vector<1x1x32x16xbf16>
    %37 = vector.shape_cast %36 : vector<1x1x32x16xbf16> to vector<32x16xbf16>
    %cst_20 = arith.constant dense<0.000000e+00> : vector<19x16xf32>
    %38 = tpu.matmul %35, %37, %cst_20 {dimension_numbers = #tpu.dot_dimension_numbers<[1], [0], [0], [1], [0, 0, 1, 1], [], []>} : vector<19x32xbf16>, vector<32x16xbf16>, vector<19x16xf32> -> vector<19x16xf32>
    %39 = arith.addf %34, %38 : vector<19x16xf32>
    %40 = vector.extract_strided_slice %1 {offsets = [6, 0], sizes = [19, 32], strides = [1, 1]} : vector<25x32xbf16> to vector<19x32xbf16>
    %c0_21 = arith.constant 0 : index
    %c3 = arith.constant 3 : index
    %c0_22 = arith.constant 0 : index
    %c0_23 = arith.constant 0 : index
    %41 = vector.load %arg2[%c0_21, %c3, %c0_22, %c0_23] : memref<1x4x32x16xbf16, #tpu.memory_space<vmem>>, vector<1x1x32x16xbf16>
    %42 = vector.shape_cast %41 : vector<1x1x32x16xbf16> to vector<32x16xbf16>
    %cst_24 = arith.constant dense<0.000000e+00> : vector<19x16xf32>
    %43 = tpu.matmul %40, %42, %cst_24 {dimension_numbers = #tpu.dot_dimension_numbers<[1], [0], [0], [1], [0, 0, 1, 1], [], []>} : vector<19x32xbf16>, vector<32x16xbf16>, vector<19x16xf32> -> vector<19x16xf32>
    %44 = arith.addf %39, %43 : vector<19x16xf32>
    %45 = vector.broadcast %2 : vector<1x16xf32> to vector<19x16xf32>
    %46 = arith.addf %44, %45 : vector<19x16xf32>
    %47 = vector.broadcast %23 : vector<19x1xf32> to vector<19x16xf32>
    %48 = arith.mulf %46, %47 : vector<19x16xf32>
    %cst_25 = arith.constant dense<0.000000e+00> : vector<16xf32>
    %49 = vector.multi_reduction <add>, %48, %cst_25 [0] : vector<19x16xf32> to vector<16xf32>
    %50 = vector.shape_cast %49 : vector<16xf32> to vector<1x16xf32>
    %51 = arith.addf %24, %50 : vector<1x16xf32>
    %52 = arith.mulf %46, %48 : vector<19x16xf32>
    %cst_26 = arith.constant dense<0.000000e+00> : vector<16xf32>
    %53 = vector.multi_reduction <add>, %52, %cst_26 [0] : vector<19x16xf32> to vector<16xf32>
    %54 = vector.shape_cast %53 : vector<16xf32> to vector<1x16xf32>
    %55 = arith.addf %25, %54 : vector<1x16xf32>
    %56 = arith.truncf %46 : vector<19x16xf32> to vector<19x16xbf16>
    %c0_27 = arith.constant 0 : index
    %c0_28 = arith.constant 0 : index
    %c0_29 = arith.constant 0 : index
    %57 = vector.load %arg4[%c0_27, %c0_28, %c0_29] : memref<1x19x16xbf16, #tpu.memory_space<vmem>>, vector<1x19x16xbf16>
    %58 = vector.shape_cast %57 : vector<1x19x16xbf16> to vector<19x16xbf16>
    %59 = vector.shape_cast %56 : vector<19x16xbf16> to vector<1x19x16xbf16>
    tpu.vector_store %arg4[%c0_27, %c0_28, %c0_29], %59 {strides = array<i32>} : memref<1x19x16xbf16, #tpu.memory_space<vmem>>, vector<1x19x16xbf16>,
    %c0_30 = arith.constant 0 : index
    %c0_31 = arith.constant 0 : index
    %c0_32 = arith.constant 0 : index
    %60 = vector.load %arg5[%c0_30, %c0_31, %c0_32] : memref<1x1x16xf32, #tpu.memory_space<vmem>>, vector<1x1x16xf32>
    %61 = vector.shape_cast %60 : vector<1x1x16xf32> to vector<1x16xf32>
    %62 = vector.shape_cast %51 : vector<1x16xf32> to vector<1x1x16xf32>
    tpu.vector_store %arg5[%c0_30, %c0_31, %c0_32], %62 {strides = array<i32>} : memref<1x1x16xf32, #tpu.memory_space<vmem>>, vector<1x1x16xf32>,
    %c0_33 = arith.constant 0 : index
    %c0_34 = arith.constant 0 : index
    %c0_35 = arith.constant 0 : index
    %63 = vector.load %arg6[%c0_33, %c0_34, %c0_35] : memref<1x1x16xf32, #tpu.memory_space<vmem>>, vector<1x1x16xf32>
    %64 = vector.shape_cast %63 : vector<1x1x16xf32> to vector<1x16xf32>
    %65 = vector.shape_cast %55 : vector<1x16xf32> to vector<1x1x16xf32>
    tpu.vector_store %arg6[%c0_33, %c0_34, %c0_35], %65 {strides = array<i32>} : memref<1x1x16xf32, #tpu.memory_space<vmem>>, vector<1x1x16xf32>,
    return
  }
  func.func @transform_0(%arg0: i32) -> (i32, i32, i32) {
    %c0_i32 = arith.constant 0 : i32
    %c0_i32_0 = arith.constant 0 : i32
    %c0_i32_1 = arith.constant 0 : i32
    return %arg0, %c0_i32, %c0_i32_0 : i32, i32, i32
  }
  func.func @transform_1(%arg0: i32) -> (i32, i32, i32, i32) {
    %c0_i32 = arith.constant 0 : i32
    %c0_i32_0 = arith.constant 0 : i32
    %c0_i32_1 = arith.constant 0 : i32
    %c0_i32_2 = arith.constant 0 : i32
    %c0_i32_3 = arith.constant 0 : i32
    return %c0_i32, %c0_i32_0, %c0_i32_1, %c0_i32_2 : i32, i32, i32, i32
  }
  func.func @transform_2(%arg0: i32) -> (i32, i32) {
    %c0_i32 = arith.constant 0 : i32
    %c0_i32_0 = arith.constant 0 : i32
    %c0_i32_1 = arith.constant 0 : i32
    return %c0_i32, %c0_i32_0 : i32, i32
  }
  func.func @transform_3(%arg0: i32) -> (i32, i32, i32) {
    %c0_i32 = arith.constant 0 : i32
    %c0_i32_0 = arith.constant 0 : i32
    %c0_i32_1 = arith.constant 0 : i32
    return %arg0, %c0_i32, %c0_i32_0 : i32, i32, i32
  }
  func.func @transform_4(%arg0: i32) -> (i32, i32, i32) {
    %c0_i32 = arith.constant 0 : i32
    %c0_i32_0 = arith.constant 0 : i32
    %c0_i32_1 = arith.constant 0 : i32
    return %arg0, %c0_i32, %c0_i32_0 : i32, i32, i32
  }
  func.func @transform_5(%arg0: i32) -> (i32, i32, i32) {
    %c0_i32 = arith.constant 0 : i32
    %c0_i32_0 = arith.constant 0 : i32
    %c0_i32_1 = arith.constant 0 : i32
    return %arg0, %c0_i32, %c0_i32_0 : i32, i32, i32
  }
}

module attributes {stable_mosaic.version = 11 : i64} {
  func.func @_conv_flat_kernel(%arg0: i32, %arg1: memref<1x9x64xbf16, #tpu.memory_space<vmem>>, %arg2: memref<1x4x64x32xbf16, #tpu.memory_space<vmem>>, %arg3: memref<1x32xf32, #tpu.memory_space<vmem>>, %arg4: memref<1x64xf32, #tpu.memory_space<vmem>>, %arg5: memref<1x64xf32, #tpu.memory_space<vmem>>, %arg6: memref<1x5x32xbf16, #tpu.memory_space<vmem>>, %arg7: memref<1x1x32xf32, #tpu.memory_space<vmem>>, %arg8: memref<1x1x32xf32, #tpu.memory_space<vmem>>) attributes {dimension_semantics = [#tpu.dimension_semantics<parallel>], iteration_bounds = array<i64: 2>, scalar_prefetch = 0 : i64, scratch_operands = 0 : i64, tpu.core_type = #tpu.core_type<tc>, window_params = [{transform_indices = @transform_0, window_bounds = array<i64: 1, 9, 64>}, {pipeline_mode = #tpu.pipeline_mode<synchronous>, transform_indices = @transform_1, window_bounds = array<i64: 1, 4, 64, 32>}, {pipeline_mode = #tpu.pipeline_mode<synchronous>, transform_indices = @transform_2, window_bounds = array<i64: 1, 32>}, {pipeline_mode = #tpu.pipeline_mode<synchronous>, transform_indices = @transform_3, window_bounds = array<i64: 1, 64>}, {pipeline_mode = #tpu.pipeline_mode<synchronous>, transform_indices = @transform_4, window_bounds = array<i64: 1, 64>}, {transform_indices = @transform_5, window_bounds = array<i64: 1, 5, 32>}, {transform_indices = @transform_6, window_bounds = array<i64: 1, 1, 32>}, {transform_indices = @transform_7, window_bounds = array<i64: 1, 1, 32>}]} {
    %c0 = arith.constant 0 : index
    %c0_0 = arith.constant 0 : index
    %c0_1 = arith.constant 0 : index
    %0 = vector.load %arg1[%c0, %c0_0, %c0_1] : memref<1x9x64xbf16, #tpu.memory_space<vmem>>, vector<1x9x64xbf16>
    %1 = vector.shape_cast %0 : vector<1x9x64xbf16> to vector<9x64xbf16>
    %2 = arith.extf %1 : vector<9x64xbf16> to vector<9x64xf32>
    %c0_2 = arith.constant 0 : index
    %c0_3 = arith.constant 0 : index
    %3 = vector.load %arg4[%c0_2, %c0_3] : memref<1x64xf32, #tpu.memory_space<vmem>>, vector<1x64xf32>
    %4 = vector.broadcast %3 : vector<1x64xf32> to vector<9x64xf32>
    %5 = arith.mulf %2, %4 : vector<9x64xf32>
    %c0_4 = arith.constant 0 : index
    %c0_5 = arith.constant 0 : index
    %6 = vector.load %arg5[%c0_4, %c0_5] : memref<1x64xf32, #tpu.memory_space<vmem>>, vector<1x64xf32>
    %7 = vector.broadcast %6 : vector<1x64xf32> to vector<9x64xf32>
    %8 = arith.addf %5, %7 : vector<9x64xf32>
    %cst = arith.constant 0.000000e+00 : f32
    %9 = vector.broadcast %cst : f32 to vector<9x64xf32>
    %10 = arith.cmpf oge, %8, %9 : vector<9x64xf32>
    %cst_6 = arith.constant 2.000000e-01 : f32
    %11 = vector.broadcast %cst_6 : f32 to vector<9x64xf32>
    %12 = arith.mulf %11, %8 : vector<9x64xf32>
    %13 = arith.select %10, %8, %12 : vector<9x64xi1>, vector<9x64xf32>
    %14 = arith.truncf %13 : vector<9x64xf32> to vector<9x64xbf16>
    %c0_7 = arith.constant 0 : index
    %c0_8 = arith.constant 0 : index
    %15 = vector.load %arg3[%c0_7, %c0_8] : memref<1x32xf32, #tpu.memory_space<vmem>>, vector<1x32xf32>
    %16 = tpu.iota {dimensions = array<i32: 0>} : vector<5x1xi32>
    %c3_i32 = arith.constant 3 : i32
    %c0_i32 = arith.constant 0 : i32
    %17 = arith.cmpi eq, %c3_i32, %c0_i32 : i32
    %c1_i32 = arith.constant 1 : i32
    %18 = arith.select %17, %c1_i32, %c3_i32 : i32
    %19 = vector.broadcast %18 : i32 to vector<5x1xi32>
    %20 = arith.remsi %16, %19 : vector<5x1xi32>
    %c0_i32_9 = arith.constant 0 : i32
    %21 = vector.broadcast %c0_i32_9 : i32 to vector<5x1xi32>
    %22 = arith.cmpi ne, %20, %21 : vector<5x1xi32>
    %c0_i32_10 = arith.constant 0 : i32
    %23 = vector.broadcast %c0_i32_10 : i32 to vector<5x1xi32>
    %24 = arith.cmpi slt, %20, %23 : vector<5x1xi32>
    %c0_i32_11 = arith.constant 0 : i32
    %25 = arith.cmpi slt, %18, %c0_i32_11 : i32
    %26 = vector.broadcast %25 : i1 to vector<5x1xi1>
    %27 = vector.broadcast %26 : vector<5x1xi1> to vector<5x1xi1>
    %28 = arith.xori %24, %27 : vector<5x1xi1>
    %29 = arith.andi %28, %22 : vector<5x1xi1>
    %30 = vector.broadcast %18 : i32 to vector<5x1xi32>
    %31 = arith.addi %20, %30 : vector<5x1xi32>
    %32 = arith.select %29, %31, %20 : vector<5x1xi1>, vector<5x1xi32>
    %c2_i32 = arith.constant 2 : i32
    %33 = vector.broadcast %c2_i32 : i32 to vector<5x1xi32>
    %34 = arith.cmpi slt, %32, %33 : vector<5x1xi32>
    %35 = arith.extui %34 : vector<5x1xi1> to vector<5x1xi32>
    %36 = arith.sitofp %35 : vector<5x1xi32> to vector<5x1xf32>
    %cst_12 = arith.constant 0.000000e+00 : f32
    %37 = vector.broadcast %cst_12 : f32 to vector<1x32xf32>
    %cst_13 = arith.constant 0.000000e+00 : f32
    %38 = vector.broadcast %cst_13 : f32 to vector<1x32xf32>
    %39 = vector.extract_strided_slice %14 {offsets = [0, 0], sizes = [5, 64], strides = [1, 1]} : vector<9x64xbf16> to vector<5x64xbf16>
    %c0_14 = arith.constant 0 : index
    %c0_15 = arith.constant 0 : index
    %c0_16 = arith.constant 0 : index
    %c0_17 = arith.constant 0 : index
    %40 = vector.load %arg2[%c0_14, %c0_15, %c0_16, %c0_17] : memref<1x4x64x32xbf16, #tpu.memory_space<vmem>>, vector<1x1x64x32xbf16>
    %41 = vector.shape_cast %40 : vector<1x1x64x32xbf16> to vector<64x32xbf16>
    %cst_18 = arith.constant dense<0.000000e+00> : vector<5x32xf32>
    %42 = tpu.matmul %39, %41, %cst_18 {dimension_numbers = #tpu.dot_dimension_numbers<[1], [0], [0], [1], [0, 0, 1, 1], [], []>} : vector<5x64xbf16>, vector<64x32xbf16>, vector<5x32xf32> -> vector<5x32xf32>
    %43 = vector.extract_strided_slice %14 {offsets = [1, 0], sizes = [5, 64], strides = [1, 1]} : vector<9x64xbf16> to vector<5x64xbf16>
    %c0_19 = arith.constant 0 : index
    %c1 = arith.constant 1 : index
    %c0_20 = arith.constant 0 : index
    %c0_21 = arith.constant 0 : index
    %44 = vector.load %arg2[%c0_19, %c1, %c0_20, %c0_21] : memref<1x4x64x32xbf16, #tpu.memory_space<vmem>>, vector<1x1x64x32xbf16>
    %45 = vector.shape_cast %44 : vector<1x1x64x32xbf16> to vector<64x32xbf16>
    %cst_22 = arith.constant dense<0.000000e+00> : vector<5x32xf32>
    %46 = tpu.matmul %43, %45, %cst_22 {dimension_numbers = #tpu.dot_dimension_numbers<[1], [0], [0], [1], [0, 0, 1, 1], [], []>} : vector<5x64xbf16>, vector<64x32xbf16>, vector<5x32xf32> -> vector<5x32xf32>
    %47 = arith.addf %42, %46 : vector<5x32xf32>
    %48 = vector.extract_strided_slice %14 {offsets = [3, 0], sizes = [5, 64], strides = [1, 1]} : vector<9x64xbf16> to vector<5x64xbf16>
    %c0_23 = arith.constant 0 : index
    %c2 = arith.constant 2 : index
    %c0_24 = arith.constant 0 : index
    %c0_25 = arith.constant 0 : index
    %49 = vector.load %arg2[%c0_23, %c2, %c0_24, %c0_25] : memref<1x4x64x32xbf16, #tpu.memory_space<vmem>>, vector<1x1x64x32xbf16>
    %50 = vector.shape_cast %49 : vector<1x1x64x32xbf16> to vector<64x32xbf16>
    %cst_26 = arith.constant dense<0.000000e+00> : vector<5x32xf32>
    %51 = tpu.matmul %48, %50, %cst_26 {dimension_numbers = #tpu.dot_dimension_numbers<[1], [0], [0], [1], [0, 0, 1, 1], [], []>} : vector<5x64xbf16>, vector<64x32xbf16>, vector<5x32xf32> -> vector<5x32xf32>
    %52 = arith.addf %47, %51 : vector<5x32xf32>
    %53 = vector.extract_strided_slice %14 {offsets = [4, 0], sizes = [5, 64], strides = [1, 1]} : vector<9x64xbf16> to vector<5x64xbf16>
    %c0_27 = arith.constant 0 : index
    %c3 = arith.constant 3 : index
    %c0_28 = arith.constant 0 : index
    %c0_29 = arith.constant 0 : index
    %54 = vector.load %arg2[%c0_27, %c3, %c0_28, %c0_29] : memref<1x4x64x32xbf16, #tpu.memory_space<vmem>>, vector<1x1x64x32xbf16>
    %55 = vector.shape_cast %54 : vector<1x1x64x32xbf16> to vector<64x32xbf16>
    %cst_30 = arith.constant dense<0.000000e+00> : vector<5x32xf32>
    %56 = tpu.matmul %53, %55, %cst_30 {dimension_numbers = #tpu.dot_dimension_numbers<[1], [0], [0], [1], [0, 0, 1, 1], [], []>} : vector<5x64xbf16>, vector<64x32xbf16>, vector<5x32xf32> -> vector<5x32xf32>
    %57 = arith.addf %52, %56 : vector<5x32xf32>
    %58 = vector.broadcast %15 : vector<1x32xf32> to vector<5x32xf32>
    %59 = arith.addf %57, %58 : vector<5x32xf32>
    %60 = vector.broadcast %36 : vector<5x1xf32> to vector<5x32xf32>
    %61 = arith.mulf %59, %60 : vector<5x32xf32>
    %cst_31 = arith.constant dense<0.000000e+00> : vector<32xf32>
    %62 = vector.multi_reduction <add>, %61, %cst_31 [0] : vector<5x32xf32> to vector<32xf32>
    %63 = vector.shape_cast %62 : vector<32xf32> to vector<1x32xf32>
    %64 = arith.addf %37, %63 : vector<1x32xf32>
    %65 = arith.mulf %59, %61 : vector<5x32xf32>
    %cst_32 = arith.constant dense<0.000000e+00> : vector<32xf32>
    %66 = vector.multi_reduction <add>, %65, %cst_32 [0] : vector<5x32xf32> to vector<32xf32>
    %67 = vector.shape_cast %66 : vector<32xf32> to vector<1x32xf32>
    %68 = arith.addf %38, %67 : vector<1x32xf32>
    %69 = arith.truncf %59 : vector<5x32xf32> to vector<5x32xbf16>
    %c0_33 = arith.constant 0 : index
    %c0_34 = arith.constant 0 : index
    %c0_35 = arith.constant 0 : index
    %70 = vector.load %arg6[%c0_33, %c0_34, %c0_35] : memref<1x5x32xbf16, #tpu.memory_space<vmem>>, vector<1x5x32xbf16>
    %71 = vector.shape_cast %70 : vector<1x5x32xbf16> to vector<5x32xbf16>
    %72 = vector.shape_cast %69 : vector<5x32xbf16> to vector<1x5x32xbf16>
    tpu.vector_store %arg6[%c0_33, %c0_34, %c0_35], %72 {strides = array<i32>} : memref<1x5x32xbf16, #tpu.memory_space<vmem>>, vector<1x5x32xbf16>,
    %c0_36 = arith.constant 0 : index
    %c0_37 = arith.constant 0 : index
    %c0_38 = arith.constant 0 : index
    %73 = vector.load %arg7[%c0_36, %c0_37, %c0_38] : memref<1x1x32xf32, #tpu.memory_space<vmem>>, vector<1x1x32xf32>
    %74 = vector.shape_cast %73 : vector<1x1x32xf32> to vector<1x32xf32>
    %75 = vector.shape_cast %64 : vector<1x32xf32> to vector<1x1x32xf32>
    tpu.vector_store %arg7[%c0_36, %c0_37, %c0_38], %75 {strides = array<i32>} : memref<1x1x32xf32, #tpu.memory_space<vmem>>, vector<1x1x32xf32>,
    %c0_39 = arith.constant 0 : index
    %c0_40 = arith.constant 0 : index
    %c0_41 = arith.constant 0 : index
    %76 = vector.load %arg8[%c0_39, %c0_40, %c0_41] : memref<1x1x32xf32, #tpu.memory_space<vmem>>, vector<1x1x32xf32>
    %77 = vector.shape_cast %76 : vector<1x1x32xf32> to vector<1x32xf32>
    %78 = vector.shape_cast %68 : vector<1x32xf32> to vector<1x1x32xf32>
    tpu.vector_store %arg8[%c0_39, %c0_40, %c0_41], %78 {strides = array<i32>} : memref<1x1x32xf32, #tpu.memory_space<vmem>>, vector<1x1x32xf32>,
    return
  }
  func.func @transform_0(%arg0: i32) -> (i32, i32, i32) {
    %c0_i32 = arith.constant 0 : i32
    %c0_i32_0 = arith.constant 0 : i32
    %c0_i32_1 = arith.constant 0 : i32
    return %arg0, %c0_i32, %c0_i32_0 : i32, i32, i32
  }
  func.func @transform_1(%arg0: i32) -> (i32, i32, i32, i32) {
    %c0_i32 = arith.constant 0 : i32
    %c0_i32_0 = arith.constant 0 : i32
    %c0_i32_1 = arith.constant 0 : i32
    %c0_i32_2 = arith.constant 0 : i32
    %c0_i32_3 = arith.constant 0 : i32
    return %c0_i32, %c0_i32_0, %c0_i32_1, %c0_i32_2 : i32, i32, i32, i32
  }
  func.func @transform_2(%arg0: i32) -> (i32, i32) {
    %c0_i32 = arith.constant 0 : i32
    %c0_i32_0 = arith.constant 0 : i32
    %c0_i32_1 = arith.constant 0 : i32
    return %c0_i32, %c0_i32_0 : i32, i32
  }
  func.func @transform_3(%arg0: i32) -> (i32, i32) {
    %c0_i32 = arith.constant 0 : i32
    %c0_i32_0 = arith.constant 0 : i32
    %c0_i32_1 = arith.constant 0 : i32
    return %c0_i32, %c0_i32_0 : i32, i32
  }
  func.func @transform_4(%arg0: i32) -> (i32, i32) {
    %c0_i32 = arith.constant 0 : i32
    %c0_i32_0 = arith.constant 0 : i32
    %c0_i32_1 = arith.constant 0 : i32
    return %c0_i32, %c0_i32_0 : i32, i32
  }
  func.func @transform_5(%arg0: i32) -> (i32, i32, i32) {
    %c0_i32 = arith.constant 0 : i32
    %c0_i32_0 = arith.constant 0 : i32
    %c0_i32_1 = arith.constant 0 : i32
    return %arg0, %c0_i32, %c0_i32_0 : i32, i32, i32
  }
  func.func @transform_6(%arg0: i32) -> (i32, i32, i32) {
    %c0_i32 = arith.constant 0 : i32
    %c0_i32_0 = arith.constant 0 : i32
    %c0_i32_1 = arith.constant 0 : i32
    return %arg0, %c0_i32, %c0_i32_0 : i32, i32, i32
  }
  func.func @transform_7(%arg0: i32) -> (i32, i32, i32) {
    %c0_i32 = arith.constant 0 : i32
    %c0_i32_0 = arith.constant 0 : i32
    %c0_i32_1 = arith.constant 0 : i32
    return %arg0, %c0_i32, %c0_i32_0 : i32, i32, i32
  }
}

module attributes {stable_mosaic.version = 11 : i64} {
  func.func @_conv_flat_kernel(%arg0: i32, %arg1: memref<1x4x128xbf16, #tpu.memory_space<vmem>>, %arg2: memref<1x4x128x64xbf16, #tpu.memory_space<vmem>>, %arg3: memref<1x64xf32, #tpu.memory_space<vmem>>, %arg4: memref<1x128xf32, #tpu.memory_space<vmem>>, %arg5: memref<1x128xf32, #tpu.memory_space<vmem>>, %arg6: memref<1x1x64xbf16, #tpu.memory_space<vmem>>) attributes {dimension_semantics = [#tpu.dimension_semantics<parallel>], iteration_bounds = array<i64: 2>, scalar_prefetch = 0 : i64, scratch_operands = 0 : i64, tpu.core_type = #tpu.core_type<tc>, window_params = [{transform_indices = @transform_0, window_bounds = array<i64: 1, 4, 128>}, {pipeline_mode = #tpu.pipeline_mode<synchronous>, transform_indices = @transform_1, window_bounds = array<i64: 1, 4, 128, 64>}, {pipeline_mode = #tpu.pipeline_mode<synchronous>, transform_indices = @transform_2, window_bounds = array<i64: 1, 64>}, {pipeline_mode = #tpu.pipeline_mode<synchronous>, transform_indices = @transform_3, window_bounds = array<i64: 1, 128>}, {pipeline_mode = #tpu.pipeline_mode<synchronous>, transform_indices = @transform_4, window_bounds = array<i64: 1, 128>}, {transform_indices = @transform_5, window_bounds = array<i64: 1, 1, 64>}]} {
    %c0 = arith.constant 0 : index
    %c0_0 = arith.constant 0 : index
    %c0_1 = arith.constant 0 : index
    %0 = vector.load %arg1[%c0, %c0_0, %c0_1] : memref<1x4x128xbf16, #tpu.memory_space<vmem>>, vector<1x4x128xbf16>
    %1 = vector.shape_cast %0 : vector<1x4x128xbf16> to vector<4x128xbf16>
    %2 = arith.extf %1 : vector<4x128xbf16> to vector<4x128xf32>
    %c0_2 = arith.constant 0 : index
    %c0_3 = arith.constant 0 : index
    %3 = vector.load %arg4[%c0_2, %c0_3] : memref<1x128xf32, #tpu.memory_space<vmem>>, vector<1x128xf32>
    %4 = vector.broadcast %3 : vector<1x128xf32> to vector<4x128xf32>
    %5 = arith.mulf %2, %4 : vector<4x128xf32>
    %c0_4 = arith.constant 0 : index
    %c0_5 = arith.constant 0 : index
    %6 = vector.load %arg5[%c0_4, %c0_5] : memref<1x128xf32, #tpu.memory_space<vmem>>, vector<1x128xf32>
    %7 = vector.broadcast %6 : vector<1x128xf32> to vector<4x128xf32>
    %8 = arith.addf %5, %7 : vector<4x128xf32>
    %cst = arith.constant 0.000000e+00 : f32
    %9 = vector.broadcast %cst : f32 to vector<4x128xf32>
    %10 = arith.cmpf oge, %8, %9 : vector<4x128xf32>
    %cst_6 = arith.constant 2.000000e-01 : f32
    %11 = vector.broadcast %cst_6 : f32 to vector<4x128xf32>
    %12 = arith.mulf %11, %8 : vector<4x128xf32>
    %13 = arith.select %10, %8, %12 : vector<4x128xi1>, vector<4x128xf32>
    %14 = arith.truncf %13 : vector<4x128xf32> to vector<4x128xbf16>
    %c0_7 = arith.constant 0 : index
    %c0_8 = arith.constant 0 : index
    %15 = vector.load %arg3[%c0_7, %c0_8] : memref<1x64xf32, #tpu.memory_space<vmem>>, vector<1x64xf32>
    %16 = vector.extract_strided_slice %14 {offsets = [0, 0], sizes = [1, 128], strides = [1, 1]} : vector<4x128xbf16> to vector<1x128xbf16>
    %c0_9 = arith.constant 0 : index
    %c0_10 = arith.constant 0 : index
    %c0_11 = arith.constant 0 : index
    %c0_12 = arith.constant 0 : index
    %17 = vector.load %arg2[%c0_9, %c0_10, %c0_11, %c0_12] : memref<1x4x128x64xbf16, #tpu.memory_space<vmem>>, vector<1x1x128x64xbf16>
    %18 = vector.shape_cast %17 : vector<1x1x128x64xbf16> to vector<128x64xbf16>
    %cst_13 = arith.constant dense<0.000000e+00> : vector<1x64xf32>
    %19 = tpu.matmul %16, %18, %cst_13 {dimension_numbers = #tpu.dot_dimension_numbers<[1], [0], [0], [1], [0, 0, 1, 1], [], []>} : vector<1x128xbf16>, vector<128x64xbf16>, vector<1x64xf32> -> vector<1x64xf32>
    %20 = vector.extract_strided_slice %14 {offsets = [1, 0], sizes = [1, 128], strides = [1, 1]} : vector<4x128xbf16> to vector<1x128xbf16>
    %c0_14 = arith.constant 0 : index
    %c1 = arith.constant 1 : index
    %c0_15 = arith.constant 0 : index
    %c0_16 = arith.constant 0 : index
    %21 = vector.load %arg2[%c0_14, %c1, %c0_15, %c0_16] : memref<1x4x128x64xbf16, #tpu.memory_space<vmem>>, vector<1x1x128x64xbf16>
    %22 = vector.shape_cast %21 : vector<1x1x128x64xbf16> to vector<128x64xbf16>
    %cst_17 = arith.constant dense<0.000000e+00> : vector<1x64xf32>
    %23 = tpu.matmul %20, %22, %cst_17 {dimension_numbers = #tpu.dot_dimension_numbers<[1], [0], [0], [1], [0, 0, 1, 1], [], []>} : vector<1x128xbf16>, vector<128x64xbf16>, vector<1x64xf32> -> vector<1x64xf32>
    %24 = arith.addf %19, %23 : vector<1x64xf32>
    %25 = vector.extract_strided_slice %14 {offsets = [2, 0], sizes = [1, 128], strides = [1, 1]} : vector<4x128xbf16> to vector<1x128xbf16>
    %c0_18 = arith.constant 0 : index
    %c2 = arith.constant 2 : index
    %c0_19 = arith.constant 0 : index
    %c0_20 = arith.constant 0 : index
    %26 = vector.load %arg2[%c0_18, %c2, %c0_19, %c0_20] : memref<1x4x128x64xbf16, #tpu.memory_space<vmem>>, vector<1x1x128x64xbf16>
    %27 = vector.shape_cast %26 : vector<1x1x128x64xbf16> to vector<128x64xbf16>
    %cst_21 = arith.constant dense<0.000000e+00> : vector<1x64xf32>
    %28 = tpu.matmul %25, %27, %cst_21 {dimension_numbers = #tpu.dot_dimension_numbers<[1], [0], [0], [1], [0, 0, 1, 1], [], []>} : vector<1x128xbf16>, vector<128x64xbf16>, vector<1x64xf32> -> vector<1x64xf32>
    %29 = arith.addf %24, %28 : vector<1x64xf32>
    %30 = vector.extract_strided_slice %14 {offsets = [3, 0], sizes = [1, 128], strides = [1, 1]} : vector<4x128xbf16> to vector<1x128xbf16>
    %c0_22 = arith.constant 0 : index
    %c3 = arith.constant 3 : index
    %c0_23 = arith.constant 0 : index
    %c0_24 = arith.constant 0 : index
    %31 = vector.load %arg2[%c0_22, %c3, %c0_23, %c0_24] : memref<1x4x128x64xbf16, #tpu.memory_space<vmem>>, vector<1x1x128x64xbf16>
    %32 = vector.shape_cast %31 : vector<1x1x128x64xbf16> to vector<128x64xbf16>
    %cst_25 = arith.constant dense<0.000000e+00> : vector<1x64xf32>
    %33 = tpu.matmul %30, %32, %cst_25 {dimension_numbers = #tpu.dot_dimension_numbers<[1], [0], [0], [1], [0, 0, 1, 1], [], []>} : vector<1x128xbf16>, vector<128x64xbf16>, vector<1x64xf32> -> vector<1x64xf32>
    %34 = arith.addf %29, %33 : vector<1x64xf32>
    %35 = arith.addf %34, %15 : vector<1x64xf32>
    %36 = arith.truncf %35 : vector<1x64xf32> to vector<1x64xbf16>
    %c0_26 = arith.constant 0 : index
    %c0_27 = arith.constant 0 : index
    %c0_28 = arith.constant 0 : index
    %37 = vector.load %arg6[%c0_26, %c0_27, %c0_28] : memref<1x1x64xbf16, #tpu.memory_space<vmem>>, vector<1x1x64xbf16>
    %38 = vector.shape_cast %37 : vector<1x1x64xbf16> to vector<1x64xbf16>
    %39 = vector.shape_cast %36 : vector<1x64xbf16> to vector<1x1x64xbf16>
    tpu.vector_store %arg6[%c0_26, %c0_27, %c0_28], %39 {strides = array<i32>} : memref<1x1x64xbf16, #tpu.memory_space<vmem>>, vector<1x1x64xbf16>,
    return
  }
  func.func @transform_0(%arg0: i32) -> (i32, i32, i32) {
    %c0_i32 = arith.constant 0 : i32
    %c0_i32_0 = arith.constant 0 : i32
    %c0_i32_1 = arith.constant 0 : i32
    return %arg0, %c0_i32, %c0_i32_0 : i32, i32, i32
  }
  func.func @transform_1(%arg0: i32) -> (i32, i32, i32, i32) {
    %c0_i32 = arith.constant 0 : i32
    %c0_i32_0 = arith.constant 0 : i32
    %c0_i32_1 = arith.constant 0 : i32
    %c0_i32_2 = arith.constant 0 : i32
    %c0_i32_3 = arith.constant 0 : i32
    return %c0_i32, %c0_i32_0, %c0_i32_1, %c0_i32_2 : i32, i32, i32, i32
  }
  func.func @transform_2(%arg0: i32) -> (i32, i32) {
    %c0_i32 = arith.constant 0 : i32
    %c0_i32_0 = arith.constant 0 : i32
    %c0_i32_1 = arith.constant 0 : i32
    return %c0_i32, %c0_i32_0 : i32, i32
  }
  func.func @transform_3(%arg0: i32) -> (i32, i32) {
    %c0_i32 = arith.constant 0 : i32
    %c0_i32_0 = arith.constant 0 : i32
    %c0_i32_1 = arith.constant 0 : i32
    return %c0_i32, %c0_i32_0 : i32, i32
  }
  func.func @transform_4(%arg0: i32) -> (i32, i32) {
    %c0_i32 = arith.constant 0 : i32
    %c0_i32_0 = arith.constant 0 : i32
    %c0_i32_1 = arith.constant 0 : i32
    return %c0_i32, %c0_i32_0 : i32, i32
  }
  func.func @transform_5(%arg0: i32) -> (i32, i32, i32) {
    %c0_i32 = arith.constant 0 : i32
    %c0_i32_0 = arith.constant 0 : i32
    %c0_i32_1 = arith.constant 0 : i32
    return %arg0, %c0_i32, %c0_i32_0 : i32, i32, i32
  }
}

module attributes {stable_mosaic.version = 11 : i64} {
  func.func @_conv_flat_kernel(%arg0: i32, %arg1: memref<1x9x64xbf16, #tpu.memory_space<vmem>>, %arg2: memref<4x4x64x32xbf16, #tpu.memory_space<vmem>>, %arg3: memref<1x32xf32, #tpu.memory_space<vmem>>, %arg4: memref<1x1x128xbf16, #tpu.memory_space<vmem>>, %arg5: memref<1x1x32xf32, #tpu.memory_space<vmem>>, %arg6: memref<1x1x32xf32, #tpu.memory_space<vmem>>) attributes {dimension_semantics = [#tpu.dimension_semantics<parallel>], iteration_bounds = array<i64: 2>, scalar_prefetch = 0 : i64, scratch_operands = 0 : i64, tpu.core_type = #tpu.core_type<tc>, window_params = [{transform_indices = @transform_0, window_bounds = array<i64: 1, 9, 64>}, {pipeline_mode = #tpu.pipeline_mode<synchronous>, transform_indices = @transform_1, window_bounds = array<i64: 4, 4, 64, 32>}, {pipeline_mode = #tpu.pipeline_mode<synchronous>, transform_indices = @transform_2, window_bounds = array<i64: 1, 32>}, {transform_indices = @transform_3, window_bounds = array<i64: 1, 1, 128>}, {transform_indices = @transform_4, window_bounds = array<i64: 1, 1, 32>}, {transform_indices = @transform_5, window_bounds = array<i64: 1, 1, 32>}]} {
    %c0 = arith.constant 0 : index
    %c0_0 = arith.constant 0 : index
    %c0_1 = arith.constant 0 : index
    %0 = vector.load %arg1[%c0, %c0_0, %c0_1] : memref<1x9x64xbf16, #tpu.memory_space<vmem>>, vector<1x9x64xbf16>
    %1 = vector.shape_cast %0 : vector<1x9x64xbf16> to vector<9x64xbf16>
    %2 = arith.extf %1 : vector<9x64xbf16> to vector<9x64xf32>
    %cst = arith.constant 0.000000e+00 : f32
    %3 = vector.broadcast %cst : f32 to vector<9x64xf32>
    %4 = arith.maximumf %2, %3 : vector<9x64xf32>
    %5 = arith.truncf %4 : vector<9x64xf32> to vector<9x64xbf16>
    %c0_2 = arith.constant 0 : index
    %c0_3 = arith.constant 0 : index
    %6 = vector.load %arg3[%c0_2, %c0_3] : memref<1x32xf32, #tpu.memory_space<vmem>>, vector<1x32xf32>
    %7 = tpu.iota {dimensions = array<i32: 0>} : vector<1x1xi32>
    %c3_i32 = arith.constant 3 : i32
    %c0_i32 = arith.constant 0 : i32
    %8 = arith.cmpi eq, %c3_i32, %c0_i32 : i32
    %c1_i32 = arith.constant 1 : i32
    %9 = arith.select %8, %c1_i32, %c3_i32 : i32
    %10 = vector.broadcast %9 : i32 to vector<1x1xi32>
    %11 = arith.remsi %7, %10 : vector<1x1xi32>
    %c0_i32_4 = arith.constant 0 : i32
    %12 = vector.broadcast %c0_i32_4 : i32 to vector<1x1xi32>
    %13 = arith.cmpi ne, %11, %12 : vector<1x1xi32>
    %c0_i32_5 = arith.constant 0 : i32
    %14 = vector.broadcast %c0_i32_5 : i32 to vector<1x1xi32>
    %15 = arith.cmpi slt, %11, %14 : vector<1x1xi32>
    %c0_i32_6 = arith.constant 0 : i32
    %16 = arith.cmpi slt, %9, %c0_i32_6 : i32
    %17 = vector.broadcast %16 : i1 to vector<1x1xi1>
    %18 = vector.broadcast %17 : vector<1x1xi1> to vector<1x1xi1>
    %19 = arith.xori %15, %18 : vector<1x1xi1>
    %20 = arith.andi %19, %13 : vector<1x1xi1>
    %21 = vector.broadcast %9 : i32 to vector<1x1xi32>
    %22 = arith.addi %11, %21 : vector<1x1xi32>
    %23 = arith.select %20, %22, %11 : vector<1x1xi1>, vector<1x1xi32>
    %c1_i32_7 = arith.constant 1 : i32
    %24 = vector.broadcast %c1_i32_7 : i32 to vector<1x1xi32>
    %25 = arith.cmpi slt, %23, %24 : vector<1x1xi32>
    %26 = arith.extui %25 : vector<1x1xi1> to vector<1x1xi32>
    %27 = arith.sitofp %26 : vector<1x1xi32> to vector<1x1xf32>
    %cst_8 = arith.constant 0.000000e+00 : f32
    %28 = vector.broadcast %cst_8 : f32 to vector<1x32xf32>
    %cst_9 = arith.constant 0.000000e+00 : f32
    %29 = vector.broadcast %cst_9 : f32 to vector<1x32xf32>
    %30 = vector.extract_strided_slice %5 {offsets = [0, 0], sizes = [1, 64], strides = [1, 1]} : vector<9x64xbf16> to vector<1x64xbf16>
    %c0_10 = arith.constant 0 : index
    %c0_11 = arith.constant 0 : index
    %c0_12 = arith.constant 0 : index
    %c0_13 = arith.constant 0 : index
    %31 = vector.load %arg2[%c0_10, %c0_11, %c0_12, %c0_13] : memref<4x4x64x32xbf16, #tpu.memory_space<vmem>>, vector<1x1x64x32xbf16>
    %32 = vector.shape_cast %31 : vector<1x1x64x32xbf16> to vector<64x32xbf16>
    %cst_14 = arith.constant dense<0.000000e+00> : vector<1x32xf32>
    %33 = tpu.matmul %30, %32, %cst_14 {dimension_numbers = #tpu.dot_dimension_numbers<[1], [0], [0], [1], [0, 0, 1, 1], [], []>} : vector<1x64xbf16>, vector<64x32xbf16>, vector<1x32xf32> -> vector<1x32xf32>
    %34 = vector.extract_strided_slice %5 {offsets = [1, 0], sizes = [1, 64], strides = [1, 1]} : vector<9x64xbf16> to vector<1x64xbf16>
    %c0_15 = arith.constant 0 : index
    %c1 = arith.constant 1 : index
    %c0_16 = arith.constant 0 : index
    %c0_17 = arith.constant 0 : index
    %35 = vector.load %arg2[%c0_15, %c1, %c0_16, %c0_17] : memref<4x4x64x32xbf16, #tpu.memory_space<vmem>>, vector<1x1x64x32xbf16>
    %36 = vector.shape_cast %35 : vector<1x1x64x32xbf16> to vector<64x32xbf16>
    %cst_18 = arith.constant dense<0.000000e+00> : vector<1x32xf32>
    %37 = tpu.matmul %34, %36, %cst_18 {dimension_numbers = #tpu.dot_dimension_numbers<[1], [0], [0], [1], [0, 0, 1, 1], [], []>} : vector<1x64xbf16>, vector<64x32xbf16>, vector<1x32xf32> -> vector<1x32xf32>
    %38 = arith.addf %33, %37 : vector<1x32xf32>
    %39 = vector.extract_strided_slice %5 {offsets = [3, 0], sizes = [1, 64], strides = [1, 1]} : vector<9x64xbf16> to vector<1x64xbf16>
    %c0_19 = arith.constant 0 : index
    %c2 = arith.constant 2 : index
    %c0_20 = arith.constant 0 : index
    %c0_21 = arith.constant 0 : index
    %40 = vector.load %arg2[%c0_19, %c2, %c0_20, %c0_21] : memref<4x4x64x32xbf16, #tpu.memory_space<vmem>>, vector<1x1x64x32xbf16>
    %41 = vector.shape_cast %40 : vector<1x1x64x32xbf16> to vector<64x32xbf16>
    %cst_22 = arith.constant dense<0.000000e+00> : vector<1x32xf32>
    %42 = tpu.matmul %39, %41, %cst_22 {dimension_numbers = #tpu.dot_dimension_numbers<[1], [0], [0], [1], [0, 0, 1, 1], [], []>} : vector<1x64xbf16>, vector<64x32xbf16>, vector<1x32xf32> -> vector<1x32xf32>
    %43 = arith.addf %38, %42 : vector<1x32xf32>
    %44 = vector.extract_strided_slice %5 {offsets = [4, 0], sizes = [1, 64], strides = [1, 1]} : vector<9x64xbf16> to vector<1x64xbf16>
    %c0_23 = arith.constant 0 : index
    %c3 = arith.constant 3 : index
    %c0_24 = arith.constant 0 : index
    %c0_25 = arith.constant 0 : index
    %45 = vector.load %arg2[%c0_23, %c3, %c0_24, %c0_25] : memref<4x4x64x32xbf16, #tpu.memory_space<vmem>>, vector<1x1x64x32xbf16>
    %46 = vector.shape_cast %45 : vector<1x1x64x32xbf16> to vector<64x32xbf16>
    %cst_26 = arith.constant dense<0.000000e+00> : vector<1x32xf32>
    %47 = tpu.matmul %44, %46, %cst_26 {dimension_numbers = #tpu.dot_dimension_numbers<[1], [0], [0], [1], [0, 0, 1, 1], [], []>} : vector<1x64xbf16>, vector<64x32xbf16>, vector<1x32xf32> -> vector<1x32xf32>
    %48 = arith.addf %43, %47 : vector<1x32xf32>
    %49 = arith.addf %48, %6 : vector<1x32xf32>
    %50 = vector.broadcast %27 : vector<1x1xf32> to vector<1x32xf32>
    %51 = arith.mulf %49, %50 : vector<1x32xf32>
    %cst_27 = arith.constant dense<0.000000e+00> : vector<32xf32>
    %52 = vector.multi_reduction <add>, %51, %cst_27 [0] : vector<1x32xf32> to vector<32xf32>
    %53 = vector.shape_cast %52 : vector<32xf32> to vector<1x32xf32>
    %54 = arith.addf %28, %53 : vector<1x32xf32>
    %55 = arith.mulf %49, %51 : vector<1x32xf32>
    %cst_28 = arith.constant dense<0.000000e+00> : vector<32xf32>
    %56 = vector.multi_reduction <add>, %55, %cst_28 [0] : vector<1x32xf32> to vector<32xf32>
    %57 = vector.shape_cast %56 : vector<32xf32> to vector<1x32xf32>
    %58 = arith.addf %29, %57 : vector<1x32xf32>
    %59 = arith.truncf %49 : vector<1x32xf32> to vector<1x32xbf16>
    %c0_29 = arith.constant 0 : index
    %c0_30 = arith.constant 0 : index
    %c0_31 = arith.constant 0 : index
    %60 = vector.load %arg4[%c0_29, %c0_30, %c0_31] : memref<1x1x128xbf16, #tpu.memory_space<vmem>>, vector<1x1x32xbf16>
    %61 = vector.shape_cast %60 : vector<1x1x32xbf16> to vector<1x32xbf16>
    %62 = vector.shape_cast %59 : vector<1x32xbf16> to vector<1x1x32xbf16>
    tpu.vector_store %arg4[%c0_29, %c0_30, %c0_31], %62 {strides = array<i32>} : memref<1x1x128xbf16, #tpu.memory_space<vmem>>, vector<1x1x32xbf16>,
    %63 = vector.extract_strided_slice %5 {offsets = [1, 0], sizes = [1, 64], strides = [1, 1]} : vector<9x64xbf16> to vector<1x64xbf16>
    %c1_32 = arith.constant 1 : index
    %c0_33 = arith.constant 0 : index
    %c0_34 = arith.constant 0 : index
    %c0_35 = arith.constant 0 : index
    %64 = vector.load %arg2[%c1_32, %c0_33, %c0_34, %c0_35] : memref<4x4x64x32xbf16, #tpu.memory_space<vmem>>, vector<1x1x64x32xbf16>
    %65 = vector.shape_cast %64 : vector<1x1x64x32xbf16> to vector<64x32xbf16>
    %cst_36 = arith.constant dense<0.000000e+00> : vector<1x32xf32>
    %66 = tpu.matmul %63, %65, %cst_36 {dimension_numbers = #tpu.dot_dimension_numbers<[1], [0], [0], [1], [0, 0, 1, 1], [], []>} : vector<1x64xbf16>, vector<64x32xbf16>, vector<1x32xf32> -> vector<1x32xf32>
    %67 = vector.extract_strided_slice %5 {offsets = [2, 0], sizes = [1, 64], strides = [1, 1]} : vector<9x64xbf16> to vector<1x64xbf16>
    %c1_37 = arith.constant 1 : index
    %c1_38 = arith.constant 1 : index
    %c0_39 = arith.constant 0 : index
    %c0_40 = arith.constant 0 : index
    %68 = vector.load %arg2[%c1_37, %c1_38, %c0_39, %c0_40] : memref<4x4x64x32xbf16, #tpu.memory_space<vmem>>, vector<1x1x64x32xbf16>
    %69 = vector.shape_cast %68 : vector<1x1x64x32xbf16> to vector<64x32xbf16>
    %cst_41 = arith.constant dense<0.000000e+00> : vector<1x32xf32>
    %70 = tpu.matmul %67, %69, %cst_41 {dimension_numbers = #tpu.dot_dimension_numbers<[1], [0], [0], [1], [0, 0, 1, 1], [], []>} : vector<1x64xbf16>, vector<64x32xbf16>, vector<1x32xf32> -> vector<1x32xf32>
    %71 = arith.addf %66, %70 : vector<1x32xf32>
    %72 = vector.extract_strided_slice %5 {offsets = [4, 0], sizes = [1, 64], strides = [1, 1]} : vector<9x64xbf16> to vector<1x64xbf16>
    %c1_42 = arith.constant 1 : index
    %c2_43 = arith.constant 2 : index
    %c0_44 = arith.constant 0 : index
    %c0_45 = arith.constant 0 : index
    %73 = vector.load %arg2[%c1_42, %c2_43, %c0_44, %c0_45] : memref<4x4x64x32xbf16, #tpu.memory_space<vmem>>, vector<1x1x64x32xbf16>
    %74 = vector.shape_cast %73 : vector<1x1x64x32xbf16> to vector<64x32xbf16>
    %cst_46 = arith.constant dense<0.000000e+00> : vector<1x32xf32>
    %75 = tpu.matmul %72, %74, %cst_46 {dimension_numbers = #tpu.dot_dimension_numbers<[1], [0], [0], [1], [0, 0, 1, 1], [], []>} : vector<1x64xbf16>, vector<64x32xbf16>, vector<1x32xf32> -> vector<1x32xf32>
    %76 = arith.addf %71, %75 : vector<1x32xf32>
    %77 = vector.extract_strided_slice %5 {offsets = [5, 0], sizes = [1, 64], strides = [1, 1]} : vector<9x64xbf16> to vector<1x64xbf16>
    %c1_47 = arith.constant 1 : index
    %c3_48 = arith.constant 3 : index
    %c0_49 = arith.constant 0 : index
    %c0_50 = arith.constant 0 : index
    %78 = vector.load %arg2[%c1_47, %c3_48, %c0_49, %c0_50] : memref<4x4x64x32xbf16, #tpu.memory_space<vmem>>, vector<1x1x64x32xbf16>
    %79 = vector.shape_cast %78 : vector<1x1x64x32xbf16> to vector<64x32xbf16>
    %cst_51 = arith.constant dense<0.000000e+00> : vector<1x32xf32>
    %80 = tpu.matmul %77, %79, %cst_51 {dimension_numbers = #tpu.dot_dimension_numbers<[1], [0], [0], [1], [0, 0, 1, 1], [], []>} : vector<1x64xbf16>, vector<64x32xbf16>, vector<1x32xf32> -> vector<1x32xf32>
    %81 = arith.addf %76, %80 : vector<1x32xf32>
    %82 = arith.addf %81, %6 : vector<1x32xf32>
    %83 = vector.broadcast %27 : vector<1x1xf32> to vector<1x32xf32>
    %84 = arith.mulf %82, %83 : vector<1x32xf32>
    %cst_52 = arith.constant dense<0.000000e+00> : vector<32xf32>
    %85 = vector.multi_reduction <add>, %84, %cst_52 [0] : vector<1x32xf32> to vector<32xf32>
    %86 = vector.shape_cast %85 : vector<32xf32> to vector<1x32xf32>
    %87 = arith.addf %54, %86 : vector<1x32xf32>
    %88 = arith.mulf %82, %84 : vector<1x32xf32>
    %cst_53 = arith.constant dense<0.000000e+00> : vector<32xf32>
    %89 = vector.multi_reduction <add>, %88, %cst_53 [0] : vector<1x32xf32> to vector<32xf32>
    %90 = vector.shape_cast %89 : vector<32xf32> to vector<1x32xf32>
    %91 = arith.addf %58, %90 : vector<1x32xf32>
    %92 = arith.truncf %82 : vector<1x32xf32> to vector<1x32xbf16>
    %c0_54 = arith.constant 0 : index
    %c0_55 = arith.constant 0 : index
    %c32 = arith.constant 32 : index
    %93 = vector.load %arg4[%c0_54, %c0_55, %c32] : memref<1x1x128xbf16, #tpu.memory_space<vmem>>, vector<1x1x32xbf16>
    %94 = vector.shape_cast %93 : vector<1x1x32xbf16> to vector<1x32xbf16>
    %95 = vector.shape_cast %92 : vector<1x32xbf16> to vector<1x1x32xbf16>
    tpu.vector_store %arg4[%c0_54, %c0_55, %c32], %95 {strides = array<i32>} : memref<1x1x128xbf16, #tpu.memory_space<vmem>>, vector<1x1x32xbf16>,
    %96 = vector.extract_strided_slice %5 {offsets = [3, 0], sizes = [1, 64], strides = [1, 1]} : vector<9x64xbf16> to vector<1x64xbf16>
    %c2_56 = arith.constant 2 : index
    %c0_57 = arith.constant 0 : index
    %c0_58 = arith.constant 0 : index
    %c0_59 = arith.constant 0 : index
    %97 = vector.load %arg2[%c2_56, %c0_57, %c0_58, %c0_59] : memref<4x4x64x32xbf16, #tpu.memory_space<vmem>>, vector<1x1x64x32xbf16>
    %98 = vector.shape_cast %97 : vector<1x1x64x32xbf16> to vector<64x32xbf16>
    %cst_60 = arith.constant dense<0.000000e+00> : vector<1x32xf32>
    %99 = tpu.matmul %96, %98, %cst_60 {dimension_numbers = #tpu.dot_dimension_numbers<[1], [0], [0], [1], [0, 0, 1, 1], [], []>} : vector<1x64xbf16>, vector<64x32xbf16>, vector<1x32xf32> -> vector<1x32xf32>
    %100 = vector.extract_strided_slice %5 {offsets = [4, 0], sizes = [1, 64], strides = [1, 1]} : vector<9x64xbf16> to vector<1x64xbf16>
    %c2_61 = arith.constant 2 : index
    %c1_62 = arith.constant 1 : index
    %c0_63 = arith.constant 0 : index
    %c0_64 = arith.constant 0 : index
    %101 = vector.load %arg2[%c2_61, %c1_62, %c0_63, %c0_64] : memref<4x4x64x32xbf16, #tpu.memory_space<vmem>>, vector<1x1x64x32xbf16>
    %102 = vector.shape_cast %101 : vector<1x1x64x32xbf16> to vector<64x32xbf16>
    %cst_65 = arith.constant dense<0.000000e+00> : vector<1x32xf32>
    %103 = tpu.matmul %100, %102, %cst_65 {dimension_numbers = #tpu.dot_dimension_numbers<[1], [0], [0], [1], [0, 0, 1, 1], [], []>} : vector<1x64xbf16>, vector<64x32xbf16>, vector<1x32xf32> -> vector<1x32xf32>
    %104 = arith.addf %99, %103 : vector<1x32xf32>
    %105 = vector.extract_strided_slice %5 {offsets = [6, 0], sizes = [1, 64], strides = [1, 1]} : vector<9x64xbf16> to vector<1x64xbf16>
    %c2_66 = arith.constant 2 : index
    %c2_67 = arith.constant 2 : index
    %c0_68 = arith.constant 0 : index
    %c0_69 = arith.constant 0 : index
    %106 = vector.load %arg2[%c2_66, %c2_67, %c0_68, %c0_69] : memref<4x4x64x32xbf16, #tpu.memory_space<vmem>>, vector<1x1x64x32xbf16>
    %107 = vector.shape_cast %106 : vector<1x1x64x32xbf16> to vector<64x32xbf16>
    %cst_70 = arith.constant dense<0.000000e+00> : vector<1x32xf32>
    %108 = tpu.matmul %105, %107, %cst_70 {dimension_numbers = #tpu.dot_dimension_numbers<[1], [0], [0], [1], [0, 0, 1, 1], [], []>} : vector<1x64xbf16>, vector<64x32xbf16>, vector<1x32xf32> -> vector<1x32xf32>
    %109 = arith.addf %104, %108 : vector<1x32xf32>
    %110 = vector.extract_strided_slice %5 {offsets = [7, 0], sizes = [1, 64], strides = [1, 1]} : vector<9x64xbf16> to vector<1x64xbf16>
    %c2_71 = arith.constant 2 : index
    %c3_72 = arith.constant 3 : index
    %c0_73 = arith.constant 0 : index
    %c0_74 = arith.constant 0 : index
    %111 = vector.load %arg2[%c2_71, %c3_72, %c0_73, %c0_74] : memref<4x4x64x32xbf16, #tpu.memory_space<vmem>>, vector<1x1x64x32xbf16>
    %112 = vector.shape_cast %111 : vector<1x1x64x32xbf16> to vector<64x32xbf16>
    %cst_75 = arith.constant dense<0.000000e+00> : vector<1x32xf32>
    %113 = tpu.matmul %110, %112, %cst_75 {dimension_numbers = #tpu.dot_dimension_numbers<[1], [0], [0], [1], [0, 0, 1, 1], [], []>} : vector<1x64xbf16>, vector<64x32xbf16>, vector<1x32xf32> -> vector<1x32xf32>
    %114 = arith.addf %109, %113 : vector<1x32xf32>
    %115 = arith.addf %114, %6 : vector<1x32xf32>
    %116 = vector.broadcast %27 : vector<1x1xf32> to vector<1x32xf32>
    %117 = arith.mulf %115, %116 : vector<1x32xf32>
    %cst_76 = arith.constant dense<0.000000e+00> : vector<32xf32>
    %118 = vector.multi_reduction <add>, %117, %cst_76 [0] : vector<1x32xf32> to vector<32xf32>
    %119 = vector.shape_cast %118 : vector<32xf32> to vector<1x32xf32>
    %120 = arith.addf %87, %119 : vector<1x32xf32>
    %121 = arith.mulf %115, %117 : vector<1x32xf32>
    %cst_77 = arith.constant dense<0.000000e+00> : vector<32xf32>
    %122 = vector.multi_reduction <add>, %121, %cst_77 [0] : vector<1x32xf32> to vector<32xf32>
    %123 = vector.shape_cast %122 : vector<32xf32> to vector<1x32xf32>
    %124 = arith.addf %91, %123 : vector<1x32xf32>
    %125 = arith.truncf %115 : vector<1x32xf32> to vector<1x32xbf16>
    %c0_78 = arith.constant 0 : index
    %c0_79 = arith.constant 0 : index
    %c64 = arith.constant 64 : index
    %126 = vector.load %arg4[%c0_78, %c0_79, %c64] : memref<1x1x128xbf16, #tpu.memory_space<vmem>>, vector<1x1x32xbf16>
    %127 = vector.shape_cast %126 : vector<1x1x32xbf16> to vector<1x32xbf16>
    %128 = vector.shape_cast %125 : vector<1x32xbf16> to vector<1x1x32xbf16>
    tpu.vector_store %arg4[%c0_78, %c0_79, %c64], %128 {strides = array<i32>} : memref<1x1x128xbf16, #tpu.memory_space<vmem>>, vector<1x1x32xbf16>,
    %129 = vector.extract_strided_slice %5 {offsets = [4, 0], sizes = [1, 64], strides = [1, 1]} : vector<9x64xbf16> to vector<1x64xbf16>
    %c3_80 = arith.constant 3 : index
    %c0_81 = arith.constant 0 : index
    %c0_82 = arith.constant 0 : index
    %c0_83 = arith.constant 0 : index
    %130 = vector.load %arg2[%c3_80, %c0_81, %c0_82, %c0_83] : memref<4x4x64x32xbf16, #tpu.memory_space<vmem>>, vector<1x1x64x32xbf16>
    %131 = vector.shape_cast %130 : vector<1x1x64x32xbf16> to vector<64x32xbf16>
    %cst_84 = arith.constant dense<0.000000e+00> : vector<1x32xf32>
    %132 = tpu.matmul %129, %131, %cst_84 {dimension_numbers = #tpu.dot_dimension_numbers<[1], [0], [0], [1], [0, 0, 1, 1], [], []>} : vector<1x64xbf16>, vector<64x32xbf16>, vector<1x32xf32> -> vector<1x32xf32>
    %133 = vector.extract_strided_slice %5 {offsets = [5, 0], sizes = [1, 64], strides = [1, 1]} : vector<9x64xbf16> to vector<1x64xbf16>
    %c3_85 = arith.constant 3 : index
    %c1_86 = arith.constant 1 : index
    %c0_87 = arith.constant 0 : index
    %c0_88 = arith.constant 0 : index
    %134 = vector.load %arg2[%c3_85, %c1_86, %c0_87, %c0_88] : memref<4x4x64x32xbf16, #tpu.memory_space<vmem>>, vector<1x1x64x32xbf16>
    %135 = vector.shape_cast %134 : vector<1x1x64x32xbf16> to vector<64x32xbf16>
    %cst_89 = arith.constant dense<0.000000e+00> : vector<1x32xf32>
    %136 = tpu.matmul %133, %135, %cst_89 {dimension_numbers = #tpu.dot_dimension_numbers<[1], [0], [0], [1], [0, 0, 1, 1], [], []>} : vector<1x64xbf16>, vector<64x32xbf16>, vector<1x32xf32> -> vector<1x32xf32>
    %137 = arith.addf %132, %136 : vector<1x32xf32>
    %138 = vector.extract_strided_slice %5 {offsets = [7, 0], sizes = [1, 64], strides = [1, 1]} : vector<9x64xbf16> to vector<1x64xbf16>
    %c3_90 = arith.constant 3 : index
    %c2_91 = arith.constant 2 : index
    %c0_92 = arith.constant 0 : index
    %c0_93 = arith.constant 0 : index
    %139 = vector.load %arg2[%c3_90, %c2_91, %c0_92, %c0_93] : memref<4x4x64x32xbf16, #tpu.memory_space<vmem>>, vector<1x1x64x32xbf16>
    %140 = vector.shape_cast %139 : vector<1x1x64x32xbf16> to vector<64x32xbf16>
    %cst_94 = arith.constant dense<0.000000e+00> : vector<1x32xf32>
    %141 = tpu.matmul %138, %140, %cst_94 {dimension_numbers = #tpu.dot_dimension_numbers<[1], [0], [0], [1], [0, 0, 1, 1], [], []>} : vector<1x64xbf16>, vector<64x32xbf16>, vector<1x32xf32> -> vector<1x32xf32>
    %142 = arith.addf %137, %141 : vector<1x32xf32>
    %143 = vector.extract_strided_slice %5 {offsets = [8, 0], sizes = [1, 64], strides = [1, 1]} : vector<9x64xbf16> to vector<1x64xbf16>
    %c3_95 = arith.constant 3 : index
    %c3_96 = arith.constant 3 : index
    %c0_97 = arith.constant 0 : index
    %c0_98 = arith.constant 0 : index
    %144 = vector.load %arg2[%c3_95, %c3_96, %c0_97, %c0_98] : memref<4x4x64x32xbf16, #tpu.memory_space<vmem>>, vector<1x1x64x32xbf16>
    %145 = vector.shape_cast %144 : vector<1x1x64x32xbf16> to vector<64x32xbf16>
    %cst_99 = arith.constant dense<0.000000e+00> : vector<1x32xf32>
    %146 = tpu.matmul %143, %145, %cst_99 {dimension_numbers = #tpu.dot_dimension_numbers<[1], [0], [0], [1], [0, 0, 1, 1], [], []>} : vector<1x64xbf16>, vector<64x32xbf16>, vector<1x32xf32> -> vector<1x32xf32>
    %147 = arith.addf %142, %146 : vector<1x32xf32>
    %148 = arith.addf %147, %6 : vector<1x32xf32>
    %149 = vector.broadcast %27 : vector<1x1xf32> to vector<1x32xf32>
    %150 = arith.mulf %148, %149 : vector<1x32xf32>
    %cst_100 = arith.constant dense<0.000000e+00> : vector<32xf32>
    %151 = vector.multi_reduction <add>, %150, %cst_100 [0] : vector<1x32xf32> to vector<32xf32>
    %152 = vector.shape_cast %151 : vector<32xf32> to vector<1x32xf32>
    %153 = arith.addf %120, %152 : vector<1x32xf32>
    %154 = arith.mulf %148, %150 : vector<1x32xf32>
    %cst_101 = arith.constant dense<0.000000e+00> : vector<32xf32>
    %155 = vector.multi_reduction <add>, %154, %cst_101 [0] : vector<1x32xf32> to vector<32xf32>
    %156 = vector.shape_cast %155 : vector<32xf32> to vector<1x32xf32>
    %157 = arith.addf %124, %156 : vector<1x32xf32>
    %158 = arith.truncf %148 : vector<1x32xf32> to vector<1x32xbf16>
    %c0_102 = arith.constant 0 : index
    %c0_103 = arith.constant 0 : index
    %c96 = arith.constant 96 : index
    %159 = vector.load %arg4[%c0_102, %c0_103, %c96] : memref<1x1x128xbf16, #tpu.memory_space<vmem>>, vector<1x1x32xbf16>
    %160 = vector.shape_cast %159 : vector<1x1x32xbf16> to vector<1x32xbf16>
    %161 = vector.shape_cast %158 : vector<1x32xbf16> to vector<1x1x32xbf16>
    tpu.vector_store %arg4[%c0_102, %c0_103, %c96], %161 {strides = array<i32>} : memref<1x1x128xbf16, #tpu.memory_space<vmem>>, vector<1x1x32xbf16>,
    %c0_104 = arith.constant 0 : index
    %c0_105 = arith.constant 0 : index
    %c0_106 = arith.constant 0 : index
    %162 = vector.load %arg5[%c0_104, %c0_105, %c0_106] : memref<1x1x32xf32, #tpu.memory_space<vmem>>, vector<1x1x32xf32>
    %163 = vector.shape_cast %162 : vector<1x1x32xf32> to vector<1x32xf32>
    %164 = vector.shape_cast %153 : vector<1x32xf32> to vector<1x1x32xf32>
    tpu.vector_store %arg5[%c0_104, %c0_105, %c0_106], %164 {strides = array<i32>} : memref<1x1x32xf32, #tpu.memory_space<vmem>>, vector<1x1x32xf32>,
    %c0_107 = arith.constant 0 : index
    %c0_108 = arith.constant 0 : index
    %c0_109 = arith.constant 0 : index
    %165 = vector.load %arg6[%c0_107, %c0_108, %c0_109] : memref<1x1x32xf32, #tpu.memory_space<vmem>>, vector<1x1x32xf32>
    %166 = vector.shape_cast %165 : vector<1x1x32xf32> to vector<1x32xf32>
    %167 = vector.shape_cast %157 : vector<1x32xf32> to vector<1x1x32xf32>
    tpu.vector_store %arg6[%c0_107, %c0_108, %c0_109], %167 {strides = array<i32>} : memref<1x1x32xf32, #tpu.memory_space<vmem>>, vector<1x1x32xf32>,
    return
  }
  func.func @transform_0(%arg0: i32) -> (i32, i32, i32) {
    %c0_i32 = arith.constant 0 : i32
    %c0_i32_0 = arith.constant 0 : i32
    %c0_i32_1 = arith.constant 0 : i32
    return %arg0, %c0_i32, %c0_i32_0 : i32, i32, i32
  }
  func.func @transform_1(%arg0: i32) -> (i32, i32, i32, i32) {
    %c0_i32 = arith.constant 0 : i32
    %c0_i32_0 = arith.constant 0 : i32
    %c0_i32_1 = arith.constant 0 : i32
    %c0_i32_2 = arith.constant 0 : i32
    %c0_i32_3 = arith.constant 0 : i32
    return %c0_i32, %c0_i32_0, %c0_i32_1, %c0_i32_2 : i32, i32, i32, i32
  }
  func.func @transform_2(%arg0: i32) -> (i32, i32) {
    %c0_i32 = arith.constant 0 : i32
    %c0_i32_0 = arith.constant 0 : i32
    %c0_i32_1 = arith.constant 0 : i32
    return %c0_i32, %c0_i32_0 : i32, i32
  }
  func.func @transform_3(%arg0: i32) -> (i32, i32, i32) {
    %c0_i32 = arith.constant 0 : i32
    %c0_i32_0 = arith.constant 0 : i32
    %c0_i32_1 = arith.constant 0 : i32
    return %arg0, %c0_i32, %c0_i32_0 : i32, i32, i32
  }
  func.func @transform_4(%arg0: i32) -> (i32, i32, i32) {
    %c0_i32 = arith.constant 0 : i32
    %c0_i32_0 = arith.constant 0 : i32
    %c0_i32_1 = arith.constant 0 : i32
    return %arg0, %c0_i32, %c0_i32_0 : i32, i32, i32
  }
  func.func @transform_5(%arg0: i32) -> (i32, i32, i32) {
    %c0_i32 = arith.constant 0 : i32
    %c0_i32_0 = arith.constant 0 : i32
    %c0_i32_1 = arith.constant 0 : i32
    return %arg0, %c0_i32, %c0_i32_0 : i32, i32, i32
  }
}

module attributes {stable_mosaic.version = 11 : i64} {
  func.func @_conv_flat_kernel(%arg0: i32, %arg1: memref<1x16x64xbf16, #tpu.memory_space<vmem>>, %arg2: memref<4x4x64x16xbf16, #tpu.memory_space<vmem>>, %arg3: memref<1x16xf32, #tpu.memory_space<vmem>>, %arg4: memref<1x64xf32, #tpu.memory_space<vmem>>, %arg5: memref<1x64xf32, #tpu.memory_space<vmem>>, %arg6: memref<1x6x64xbf16, #tpu.memory_space<vmem>>, %arg7: memref<1x1x16xf32, #tpu.memory_space<vmem>>, %arg8: memref<1x1x16xf32, #tpu.memory_space<vmem>>) attributes {dimension_semantics = [#tpu.dimension_semantics<parallel>], iteration_bounds = array<i64: 2>, scalar_prefetch = 0 : i64, scratch_operands = 0 : i64, tpu.core_type = #tpu.core_type<tc>, window_params = [{transform_indices = @transform_0, window_bounds = array<i64: 1, 16, 64>}, {pipeline_mode = #tpu.pipeline_mode<synchronous>, transform_indices = @transform_1, window_bounds = array<i64: 4, 4, 64, 16>}, {pipeline_mode = #tpu.pipeline_mode<synchronous>, transform_indices = @transform_2, window_bounds = array<i64: 1, 16>}, {pipeline_mode = #tpu.pipeline_mode<synchronous>, transform_indices = @transform_3, window_bounds = array<i64: 1, 64>}, {pipeline_mode = #tpu.pipeline_mode<synchronous>, transform_indices = @transform_4, window_bounds = array<i64: 1, 64>}, {transform_indices = @transform_5, window_bounds = array<i64: 1, 6, 64>}, {transform_indices = @transform_6, window_bounds = array<i64: 1, 1, 16>}, {transform_indices = @transform_7, window_bounds = array<i64: 1, 1, 16>}]} {
    %c0 = arith.constant 0 : index
    %c0_0 = arith.constant 0 : index
    %c0_1 = arith.constant 0 : index
    %0 = vector.load %arg1[%c0, %c0_0, %c0_1] : memref<1x16x64xbf16, #tpu.memory_space<vmem>>, vector<1x16x64xbf16>
    %1 = vector.shape_cast %0 : vector<1x16x64xbf16> to vector<16x64xbf16>
    %2 = arith.extf %1 : vector<16x64xbf16> to vector<16x64xf32>
    %c0_2 = arith.constant 0 : index
    %c0_3 = arith.constant 0 : index
    %3 = vector.load %arg4[%c0_2, %c0_3] : memref<1x64xf32, #tpu.memory_space<vmem>>, vector<1x64xf32>
    %4 = vector.broadcast %3 : vector<1x64xf32> to vector<16x64xf32>
    %5 = arith.mulf %2, %4 : vector<16x64xf32>
    %c0_4 = arith.constant 0 : index
    %c0_5 = arith.constant 0 : index
    %6 = vector.load %arg5[%c0_4, %c0_5] : memref<1x64xf32, #tpu.memory_space<vmem>>, vector<1x64xf32>
    %7 = vector.broadcast %6 : vector<1x64xf32> to vector<16x64xf32>
    %8 = arith.addf %5, %7 : vector<16x64xf32>
    %cst = arith.constant 0.000000e+00 : f32
    %9 = vector.broadcast %cst : f32 to vector<16x64xf32>
    %10 = arith.maximumf %8, %9 : vector<16x64xf32>
    %11 = arith.truncf %10 : vector<16x64xf32> to vector<16x64xbf16>
    %c0_6 = arith.constant 0 : index
    %c0_7 = arith.constant 0 : index
    %12 = vector.load %arg3[%c0_6, %c0_7] : memref<1x16xf32, #tpu.memory_space<vmem>>, vector<1x16xf32>
    %13 = tpu.iota {dimensions = array<i32: 0>} : vector<6x1xi32>
    %c4_i32 = arith.constant 4 : i32
    %c0_i32 = arith.constant 0 : i32
    %14 = arith.cmpi eq, %c4_i32, %c0_i32 : i32
    %c1_i32 = arith.constant 1 : i32
    %15 = arith.select %14, %c1_i32, %c4_i32 : i32
    %16 = vector.broadcast %15 : i32 to vector<6x1xi32>
    %17 = arith.remsi %13, %16 : vector<6x1xi32>
    %c0_i32_8 = arith.constant 0 : i32
    %18 = vector.broadcast %c0_i32_8 : i32 to vector<6x1xi32>
    %19 = arith.cmpi ne, %17, %18 : vector<6x1xi32>
    %c0_i32_9 = arith.constant 0 : i32
    %20 = vector.broadcast %c0_i32_9 : i32 to vector<6x1xi32>
    %21 = arith.cmpi slt, %17, %20 : vector<6x1xi32>
    %c0_i32_10 = arith.constant 0 : i32
    %22 = arith.cmpi slt, %15, %c0_i32_10 : i32
    %23 = vector.broadcast %22 : i1 to vector<6x1xi1>
    %24 = vector.broadcast %23 : vector<6x1xi1> to vector<6x1xi1>
    %25 = arith.xori %21, %24 : vector<6x1xi1>
    %26 = arith.andi %25, %19 : vector<6x1xi1>
    %27 = vector.broadcast %15 : i32 to vector<6x1xi32>
    %28 = arith.addi %17, %27 : vector<6x1xi32>
    %29 = arith.select %26, %28, %17 : vector<6x1xi1>, vector<6x1xi32>
    %c2_i32 = arith.constant 2 : i32
    %30 = vector.broadcast %c2_i32 : i32 to vector<6x1xi32>
    %31 = arith.cmpi slt, %29, %30 : vector<6x1xi32>
    %32 = arith.extui %31 : vector<6x1xi1> to vector<6x1xi32>
    %33 = arith.sitofp %32 : vector<6x1xi32> to vector<6x1xf32>
    %cst_11 = arith.constant 0.000000e+00 : f32
    %34 = vector.broadcast %cst_11 : f32 to vector<1x16xf32>
    %cst_12 = arith.constant 0.000000e+00 : f32
    %35 = vector.broadcast %cst_12 : f32 to vector<1x16xf32>
    %36 = vector.extract_strided_slice %11 {offsets = [0, 0], sizes = [6, 64], strides = [1, 1]} : vector<16x64xbf16> to vector<6x64xbf16>
    %c0_13 = arith.constant 0 : index
    %c0_14 = arith.constant 0 : index
    %c0_15 = arith.constant 0 : index
    %c0_16 = arith.constant 0 : index
    %37 = vector.load %arg2[%c0_13, %c0_14, %c0_15, %c0_16] : memref<4x4x64x16xbf16, #tpu.memory_space<vmem>>, vector<1x1x64x16xbf16>
    %38 = vector.shape_cast %37 : vector<1x1x64x16xbf16> to vector<64x16xbf16>
    %cst_17 = arith.constant dense<0.000000e+00> : vector<6x16xf32>
    %39 = tpu.matmul %36, %38, %cst_17 {dimension_numbers = #tpu.dot_dimension_numbers<[1], [0], [0], [1], [0, 0, 1, 1], [], []>} : vector<6x64xbf16>, vector<64x16xbf16>, vector<6x16xf32> -> vector<6x16xf32>
    %40 = vector.extract_strided_slice %11 {offsets = [1, 0], sizes = [6, 64], strides = [1, 1]} : vector<16x64xbf16> to vector<6x64xbf16>
    %c0_18 = arith.constant 0 : index
    %c1 = arith.constant 1 : index
    %c0_19 = arith.constant 0 : index
    %c0_20 = arith.constant 0 : index
    %41 = vector.load %arg2[%c0_18, %c1, %c0_19, %c0_20] : memref<4x4x64x16xbf16, #tpu.memory_space<vmem>>, vector<1x1x64x16xbf16>
    %42 = vector.shape_cast %41 : vector<1x1x64x16xbf16> to vector<64x16xbf16>
    %cst_21 = arith.constant dense<0.000000e+00> : vector<6x16xf32>
    %43 = tpu.matmul %40, %42, %cst_21 {dimension_numbers = #tpu.dot_dimension_numbers<[1], [0], [0], [1], [0, 0, 1, 1], [], []>} : vector<6x64xbf16>, vector<64x16xbf16>, vector<6x16xf32> -> vector<6x16xf32>
    %44 = arith.addf %39, %43 : vector<6x16xf32>
    %45 = vector.extract_strided_slice %11 {offsets = [4, 0], sizes = [6, 64], strides = [1, 1]} : vector<16x64xbf16> to vector<6x64xbf16>
    %c0_22 = arith.constant 0 : index
    %c2 = arith.constant 2 : index
    %c0_23 = arith.constant 0 : index
    %c0_24 = arith.constant 0 : index
    %46 = vector.load %arg2[%c0_22, %c2, %c0_23, %c0_24] : memref<4x4x64x16xbf16, #tpu.memory_space<vmem>>, vector<1x1x64x16xbf16>
    %47 = vector.shape_cast %46 : vector<1x1x64x16xbf16> to vector<64x16xbf16>
    %cst_25 = arith.constant dense<0.000000e+00> : vector<6x16xf32>
    %48 = tpu.matmul %45, %47, %cst_25 {dimension_numbers = #tpu.dot_dimension_numbers<[1], [0], [0], [1], [0, 0, 1, 1], [], []>} : vector<6x64xbf16>, vector<64x16xbf16>, vector<6x16xf32> -> vector<6x16xf32>
    %49 = arith.addf %44, %48 : vector<6x16xf32>
    %50 = vector.extract_strided_slice %11 {offsets = [5, 0], sizes = [6, 64], strides = [1, 1]} : vector<16x64xbf16> to vector<6x64xbf16>
    %c0_26 = arith.constant 0 : index
    %c3 = arith.constant 3 : index
    %c0_27 = arith.constant 0 : index
    %c0_28 = arith.constant 0 : index
    %51 = vector.load %arg2[%c0_26, %c3, %c0_27, %c0_28] : memref<4x4x64x16xbf16, #tpu.memory_space<vmem>>, vector<1x1x64x16xbf16>
    %52 = vector.shape_cast %51 : vector<1x1x64x16xbf16> to vector<64x16xbf16>
    %cst_29 = arith.constant dense<0.000000e+00> : vector<6x16xf32>
    %53 = tpu.matmul %50, %52, %cst_29 {dimension_numbers = #tpu.dot_dimension_numbers<[1], [0], [0], [1], [0, 0, 1, 1], [], []>} : vector<6x64xbf16>, vector<64x16xbf16>, vector<6x16xf32> -> vector<6x16xf32>
    %54 = arith.addf %49, %53 : vector<6x16xf32>
    %55 = vector.broadcast %12 : vector<1x16xf32> to vector<6x16xf32>
    %56 = arith.addf %54, %55 : vector<6x16xf32>
    %57 = vector.broadcast %33 : vector<6x1xf32> to vector<6x16xf32>
    %58 = arith.mulf %56, %57 : vector<6x16xf32>
    %cst_30 = arith.constant dense<0.000000e+00> : vector<16xf32>
    %59 = vector.multi_reduction <add>, %58, %cst_30 [0] : vector<6x16xf32> to vector<16xf32>
    %60 = vector.shape_cast %59 : vector<16xf32> to vector<1x16xf32>
    %61 = arith.addf %34, %60 : vector<1x16xf32>
    %62 = arith.mulf %56, %58 : vector<6x16xf32>
    %cst_31 = arith.constant dense<0.000000e+00> : vector<16xf32>
    %63 = vector.multi_reduction <add>, %62, %cst_31 [0] : vector<6x16xf32> to vector<16xf32>
    %64 = vector.shape_cast %63 : vector<16xf32> to vector<1x16xf32>
    %65 = arith.addf %35, %64 : vector<1x16xf32>
    %66 = arith.truncf %56 : vector<6x16xf32> to vector<6x16xbf16>
    %c0_32 = arith.constant 0 : index
    %c0_33 = arith.constant 0 : index
    %c0_34 = arith.constant 0 : index
    %67 = vector.load %arg6[%c0_32, %c0_33, %c0_34] : memref<1x6x64xbf16, #tpu.memory_space<vmem>>, vector<1x6x16xbf16>
    %68 = vector.shape_cast %67 : vector<1x6x16xbf16> to vector<6x16xbf16>
    %69 = vector.shape_cast %66 : vector<6x16xbf16> to vector<1x6x16xbf16>
    tpu.vector_store %arg6[%c0_32, %c0_33, %c0_34], %69 {strides = array<i32>} : memref<1x6x64xbf16, #tpu.memory_space<vmem>>, vector<1x6x16xbf16>,
    %70 = vector.extract_strided_slice %11 {offsets = [1, 0], sizes = [6, 64], strides = [1, 1]} : vector<16x64xbf16> to vector<6x64xbf16>
    %c1_35 = arith.constant 1 : index
    %c0_36 = arith.constant 0 : index
    %c0_37 = arith.constant 0 : index
    %c0_38 = arith.constant 0 : index
    %71 = vector.load %arg2[%c1_35, %c0_36, %c0_37, %c0_38] : memref<4x4x64x16xbf16, #tpu.memory_space<vmem>>, vector<1x1x64x16xbf16>
    %72 = vector.shape_cast %71 : vector<1x1x64x16xbf16> to vector<64x16xbf16>
    %cst_39 = arith.constant dense<0.000000e+00> : vector<6x16xf32>
    %73 = tpu.matmul %70, %72, %cst_39 {dimension_numbers = #tpu.dot_dimension_numbers<[1], [0], [0], [1], [0, 0, 1, 1], [], []>} : vector<6x64xbf16>, vector<64x16xbf16>, vector<6x16xf32> -> vector<6x16xf32>
    %74 = vector.extract_strided_slice %11 {offsets = [2, 0], sizes = [6, 64], strides = [1, 1]} : vector<16x64xbf16> to vector<6x64xbf16>
    %c1_40 = arith.constant 1 : index
    %c1_41 = arith.constant 1 : index
    %c0_42 = arith.constant 0 : index
    %c0_43 = arith.constant 0 : index
    %75 = vector.load %arg2[%c1_40, %c1_41, %c0_42, %c0_43] : memref<4x4x64x16xbf16, #tpu.memory_space<vmem>>, vector<1x1x64x16xbf16>
    %76 = vector.shape_cast %75 : vector<1x1x64x16xbf16> to vector<64x16xbf16>
    %cst_44 = arith.constant dense<0.000000e+00> : vector<6x16xf32>
    %77 = tpu.matmul %74, %76, %cst_44 {dimension_numbers = #tpu.dot_dimension_numbers<[1], [0], [0], [1], [0, 0, 1, 1], [], []>} : vector<6x64xbf16>, vector<64x16xbf16>, vector<6x16xf32> -> vector<6x16xf32>
    %78 = arith.addf %73, %77 : vector<6x16xf32>
    %79 = vector.extract_strided_slice %11 {offsets = [5, 0], sizes = [6, 64], strides = [1, 1]} : vector<16x64xbf16> to vector<6x64xbf16>
    %c1_45 = arith.constant 1 : index
    %c2_46 = arith.constant 2 : index
    %c0_47 = arith.constant 0 : index
    %c0_48 = arith.constant 0 : index
    %80 = vector.load %arg2[%c1_45, %c2_46, %c0_47, %c0_48] : memref<4x4x64x16xbf16, #tpu.memory_space<vmem>>, vector<1x1x64x16xbf16>
    %81 = vector.shape_cast %80 : vector<1x1x64x16xbf16> to vector<64x16xbf16>
    %cst_49 = arith.constant dense<0.000000e+00> : vector<6x16xf32>
    %82 = tpu.matmul %79, %81, %cst_49 {dimension_numbers = #tpu.dot_dimension_numbers<[1], [0], [0], [1], [0, 0, 1, 1], [], []>} : vector<6x64xbf16>, vector<64x16xbf16>, vector<6x16xf32> -> vector<6x16xf32>
    %83 = arith.addf %78, %82 : vector<6x16xf32>
    %84 = vector.extract_strided_slice %11 {offsets = [6, 0], sizes = [6, 64], strides = [1, 1]} : vector<16x64xbf16> to vector<6x64xbf16>
    %c1_50 = arith.constant 1 : index
    %c3_51 = arith.constant 3 : index
    %c0_52 = arith.constant 0 : index
    %c0_53 = arith.constant 0 : index
    %85 = vector.load %arg2[%c1_50, %c3_51, %c0_52, %c0_53] : memref<4x4x64x16xbf16, #tpu.memory_space<vmem>>, vector<1x1x64x16xbf16>
    %86 = vector.shape_cast %85 : vector<1x1x64x16xbf16> to vector<64x16xbf16>
    %cst_54 = arith.constant dense<0.000000e+00> : vector<6x16xf32>
    %87 = tpu.matmul %84, %86, %cst_54 {dimension_numbers = #tpu.dot_dimension_numbers<[1], [0], [0], [1], [0, 0, 1, 1], [], []>} : vector<6x64xbf16>, vector<64x16xbf16>, vector<6x16xf32> -> vector<6x16xf32>
    %88 = arith.addf %83, %87 : vector<6x16xf32>
    %89 = vector.broadcast %12 : vector<1x16xf32> to vector<6x16xf32>
    %90 = arith.addf %88, %89 : vector<6x16xf32>
    %91 = vector.broadcast %33 : vector<6x1xf32> to vector<6x16xf32>
    %92 = arith.mulf %90, %91 : vector<6x16xf32>
    %cst_55 = arith.constant dense<0.000000e+00> : vector<16xf32>
    %93 = vector.multi_reduction <add>, %92, %cst_55 [0] : vector<6x16xf32> to vector<16xf32>
    %94 = vector.shape_cast %93 : vector<16xf32> to vector<1x16xf32>
    %95 = arith.addf %61, %94 : vector<1x16xf32>
    %96 = arith.mulf %90, %92 : vector<6x16xf32>
    %cst_56 = arith.constant dense<0.000000e+00> : vector<16xf32>
    %97 = vector.multi_reduction <add>, %96, %cst_56 [0] : vector<6x16xf32> to vector<16xf32>
    %98 = vector.shape_cast %97 : vector<16xf32> to vector<1x16xf32>
    %99 = arith.addf %65, %98 : vector<1x16xf32>
    %100 = arith.truncf %90 : vector<6x16xf32> to vector<6x16xbf16>
    %c0_57 = arith.constant 0 : index
    %c0_58 = arith.constant 0 : index
    %c16 = arith.constant 16 : index
    %101 = vector.load %arg6[%c0_57, %c0_58, %c16] : memref<1x6x64xbf16, #tpu.memory_space<vmem>>, vector<1x6x16xbf16>
    %102 = vector.shape_cast %101 : vector<1x6x16xbf16> to vector<6x16xbf16>
    %103 = vector.shape_cast %100 : vector<6x16xbf16> to vector<1x6x16xbf16>
    tpu.vector_store %arg6[%c0_57, %c0_58, %c16], %103 {strides = array<i32>} : memref<1x6x64xbf16, #tpu.memory_space<vmem>>, vector<1x6x16xbf16>,
    %104 = vector.extract_strided_slice %11 {offsets = [4, 0], sizes = [6, 64], strides = [1, 1]} : vector<16x64xbf16> to vector<6x64xbf16>
    %c2_59 = arith.constant 2 : index
    %c0_60 = arith.constant 0 : index
    %c0_61 = arith.constant 0 : index
    %c0_62 = arith.constant 0 : index
    %105 = vector.load %arg2[%c2_59, %c0_60, %c0_61, %c0_62] : memref<4x4x64x16xbf16, #tpu.memory_space<vmem>>, vector<1x1x64x16xbf16>
    %106 = vector.shape_cast %105 : vector<1x1x64x16xbf16> to vector<64x16xbf16>
    %cst_63 = arith.constant dense<0.000000e+00> : vector<6x16xf32>
    %107 = tpu.matmul %104, %106, %cst_63 {dimension_numbers = #tpu.dot_dimension_numbers<[1], [0], [0], [1], [0, 0, 1, 1], [], []>} : vector<6x64xbf16>, vector<64x16xbf16>, vector<6x16xf32> -> vector<6x16xf32>
    %108 = vector.extract_strided_slice %11 {offsets = [5, 0], sizes = [6, 64], strides = [1, 1]} : vector<16x64xbf16> to vector<6x64xbf16>
    %c2_64 = arith.constant 2 : index
    %c1_65 = arith.constant 1 : index
    %c0_66 = arith.constant 0 : index
    %c0_67 = arith.constant 0 : index
    %109 = vector.load %arg2[%c2_64, %c1_65, %c0_66, %c0_67] : memref<4x4x64x16xbf16, #tpu.memory_space<vmem>>, vector<1x1x64x16xbf16>
    %110 = vector.shape_cast %109 : vector<1x1x64x16xbf16> to vector<64x16xbf16>
    %cst_68 = arith.constant dense<0.000000e+00> : vector<6x16xf32>
    %111 = tpu.matmul %108, %110, %cst_68 {dimension_numbers = #tpu.dot_dimension_numbers<[1], [0], [0], [1], [0, 0, 1, 1], [], []>} : vector<6x64xbf16>, vector<64x16xbf16>, vector<6x16xf32> -> vector<6x16xf32>
    %112 = arith.addf %107, %111 : vector<6x16xf32>
    %113 = vector.extract_strided_slice %11 {offsets = [8, 0], sizes = [6, 64], strides = [1, 1]} : vector<16x64xbf16> to vector<6x64xbf16>
    %c2_69 = arith.constant 2 : index
    %c2_70 = arith.constant 2 : index
    %c0_71 = arith.constant 0 : index
    %c0_72 = arith.constant 0 : index
    %114 = vector.load %arg2[%c2_69, %c2_70, %c0_71, %c0_72] : memref<4x4x64x16xbf16, #tpu.memory_space<vmem>>, vector<1x1x64x16xbf16>
    %115 = vector.shape_cast %114 : vector<1x1x64x16xbf16> to vector<64x16xbf16>
    %cst_73 = arith.constant dense<0.000000e+00> : vector<6x16xf32>
    %116 = tpu.matmul %113, %115, %cst_73 {dimension_numbers = #tpu.dot_dimension_numbers<[1], [0], [0], [1], [0, 0, 1, 1], [], []>} : vector<6x64xbf16>, vector<64x16xbf16>, vector<6x16xf32> -> vector<6x16xf32>
    %117 = arith.addf %112, %116 : vector<6x16xf32>
    %118 = vector.extract_strided_slice %11 {offsets = [9, 0], sizes = [6, 64], strides = [1, 1]} : vector<16x64xbf16> to vector<6x64xbf16>
    %c2_74 = arith.constant 2 : index
    %c3_75 = arith.constant 3 : index
    %c0_76 = arith.constant 0 : index
    %c0_77 = arith.constant 0 : index
    %119 = vector.load %arg2[%c2_74, %c3_75, %c0_76, %c0_77] : memref<4x4x64x16xbf16, #tpu.memory_space<vmem>>, vector<1x1x64x16xbf16>
    %120 = vector.shape_cast %119 : vector<1x1x64x16xbf16> to vector<64x16xbf16>
    %cst_78 = arith.constant dense<0.000000e+00> : vector<6x16xf32>
    %121 = tpu.matmul %118, %120, %cst_78 {dimension_numbers = #tpu.dot_dimension_numbers<[1], [0], [0], [1], [0, 0, 1, 1], [], []>} : vector<6x64xbf16>, vector<64x16xbf16>, vector<6x16xf32> -> vector<6x16xf32>
    %122 = arith.addf %117, %121 : vector<6x16xf32>
    %123 = vector.broadcast %12 : vector<1x16xf32> to vector<6x16xf32>
    %124 = arith.addf %122, %123 : vector<6x16xf32>
    %125 = vector.broadcast %33 : vector<6x1xf32> to vector<6x16xf32>
    %126 = arith.mulf %124, %125 : vector<6x16xf32>
    %cst_79 = arith.constant dense<0.000000e+00> : vector<16xf32>
    %127 = vector.multi_reduction <add>, %126, %cst_79 [0] : vector<6x16xf32> to vector<16xf32>
    %128 = vector.shape_cast %127 : vector<16xf32> to vector<1x16xf32>
    %129 = arith.addf %95, %128 : vector<1x16xf32>
    %130 = arith.mulf %124, %126 : vector<6x16xf32>
    %cst_80 = arith.constant dense<0.000000e+00> : vector<16xf32>
    %131 = vector.multi_reduction <add>, %130, %cst_80 [0] : vector<6x16xf32> to vector<16xf32>
    %132 = vector.shape_cast %131 : vector<16xf32> to vector<1x16xf32>
    %133 = arith.addf %99, %132 : vector<1x16xf32>
    %134 = arith.truncf %124 : vector<6x16xf32> to vector<6x16xbf16>
    %c0_81 = arith.constant 0 : index
    %c0_82 = arith.constant 0 : index
    %c32 = arith.constant 32 : index
    %135 = vector.load %arg6[%c0_81, %c0_82, %c32] : memref<1x6x64xbf16, #tpu.memory_space<vmem>>, vector<1x6x16xbf16>
    %136 = vector.shape_cast %135 : vector<1x6x16xbf16> to vector<6x16xbf16>
    %137 = vector.shape_cast %134 : vector<6x16xbf16> to vector<1x6x16xbf16>
    tpu.vector_store %arg6[%c0_81, %c0_82, %c32], %137 {strides = array<i32>} : memref<1x6x64xbf16, #tpu.memory_space<vmem>>, vector<1x6x16xbf16>,
    %138 = vector.extract_strided_slice %11 {offsets = [5, 0], sizes = [6, 64], strides = [1, 1]} : vector<16x64xbf16> to vector<6x64xbf16>
    %c3_83 = arith.constant 3 : index
    %c0_84 = arith.constant 0 : index
    %c0_85 = arith.constant 0 : index
    %c0_86 = arith.constant 0 : index
    %139 = vector.load %arg2[%c3_83, %c0_84, %c0_85, %c0_86] : memref<4x4x64x16xbf16, #tpu.memory_space<vmem>>, vector<1x1x64x16xbf16>
    %140 = vector.shape_cast %139 : vector<1x1x64x16xbf16> to vector<64x16xbf16>
    %cst_87 = arith.constant dense<0.000000e+00> : vector<6x16xf32>
    %141 = tpu.matmul %138, %140, %cst_87 {dimension_numbers = #tpu.dot_dimension_numbers<[1], [0], [0], [1], [0, 0, 1, 1], [], []>} : vector<6x64xbf16>, vector<64x16xbf16>, vector<6x16xf32> -> vector<6x16xf32>
    %142 = vector.extract_strided_slice %11 {offsets = [6, 0], sizes = [6, 64], strides = [1, 1]} : vector<16x64xbf16> to vector<6x64xbf16>
    %c3_88 = arith.constant 3 : index
    %c1_89 = arith.constant 1 : index
    %c0_90 = arith.constant 0 : index
    %c0_91 = arith.constant 0 : index
    %143 = vector.load %arg2[%c3_88, %c1_89, %c0_90, %c0_91] : memref<4x4x64x16xbf16, #tpu.memory_space<vmem>>, vector<1x1x64x16xbf16>
    %144 = vector.shape_cast %143 : vector<1x1x64x16xbf16> to vector<64x16xbf16>
    %cst_92 = arith.constant dense<0.000000e+00> : vector<6x16xf32>
    %145 = tpu.matmul %142, %144, %cst_92 {dimension_numbers = #tpu.dot_dimension_numbers<[1], [0], [0], [1], [0, 0, 1, 1], [], []>} : vector<6x64xbf16>, vector<64x16xbf16>, vector<6x16xf32> -> vector<6x16xf32>
    %146 = arith.addf %141, %145 : vector<6x16xf32>
    %147 = vector.extract_strided_slice %11 {offsets = [9, 0], sizes = [6, 64], strides = [1, 1]} : vector<16x64xbf16> to vector<6x64xbf16>
    %c3_93 = arith.constant 3 : index
    %c2_94 = arith.constant 2 : index
    %c0_95 = arith.constant 0 : index
    %c0_96 = arith.constant 0 : index
    %148 = vector.load %arg2[%c3_93, %c2_94, %c0_95, %c0_96] : memref<4x4x64x16xbf16, #tpu.memory_space<vmem>>, vector<1x1x64x16xbf16>
    %149 = vector.shape_cast %148 : vector<1x1x64x16xbf16> to vector<64x16xbf16>
    %cst_97 = arith.constant dense<0.000000e+00> : vector<6x16xf32>
    %150 = tpu.matmul %147, %149, %cst_97 {dimension_numbers = #tpu.dot_dimension_numbers<[1], [0], [0], [1], [0, 0, 1, 1], [], []>} : vector<6x64xbf16>, vector<64x16xbf16>, vector<6x16xf32> -> vector<6x16xf32>
    %151 = arith.addf %146, %150 : vector<6x16xf32>
    %152 = vector.extract_strided_slice %11 {offsets = [10, 0], sizes = [6, 64], strides = [1, 1]} : vector<16x64xbf16> to vector<6x64xbf16>
    %c3_98 = arith.constant 3 : index
    %c3_99 = arith.constant 3 : index
    %c0_100 = arith.constant 0 : index
    %c0_101 = arith.constant 0 : index
    %153 = vector.load %arg2[%c3_98, %c3_99, %c0_100, %c0_101] : memref<4x4x64x16xbf16, #tpu.memory_space<vmem>>, vector<1x1x64x16xbf16>
    %154 = vector.shape_cast %153 : vector<1x1x64x16xbf16> to vector<64x16xbf16>
    %cst_102 = arith.constant dense<0.000000e+00> : vector<6x16xf32>
    %155 = tpu.matmul %152, %154, %cst_102 {dimension_numbers = #tpu.dot_dimension_numbers<[1], [0], [0], [1], [0, 0, 1, 1], [], []>} : vector<6x64xbf16>, vector<64x16xbf16>, vector<6x16xf32> -> vector<6x16xf32>
    %156 = arith.addf %151, %155 : vector<6x16xf32>
    %157 = vector.broadcast %12 : vector<1x16xf32> to vector<6x16xf32>
    %158 = arith.addf %156, %157 : vector<6x16xf32>
    %159 = vector.broadcast %33 : vector<6x1xf32> to vector<6x16xf32>
    %160 = arith.mulf %158, %159 : vector<6x16xf32>
    %cst_103 = arith.constant dense<0.000000e+00> : vector<16xf32>
    %161 = vector.multi_reduction <add>, %160, %cst_103 [0] : vector<6x16xf32> to vector<16xf32>
    %162 = vector.shape_cast %161 : vector<16xf32> to vector<1x16xf32>
    %163 = arith.addf %129, %162 : vector<1x16xf32>
    %164 = arith.mulf %158, %160 : vector<6x16xf32>
    %cst_104 = arith.constant dense<0.000000e+00> : vector<16xf32>
    %165 = vector.multi_reduction <add>, %164, %cst_104 [0] : vector<6x16xf32> to vector<16xf32>
    %166 = vector.shape_cast %165 : vector<16xf32> to vector<1x16xf32>
    %167 = arith.addf %133, %166 : vector<1x16xf32>
    %168 = arith.truncf %158 : vector<6x16xf32> to vector<6x16xbf16>
    %c0_105 = arith.constant 0 : index
    %c0_106 = arith.constant 0 : index
    %c48 = arith.constant 48 : index
    %169 = vector.load %arg6[%c0_105, %c0_106, %c48] : memref<1x6x64xbf16, #tpu.memory_space<vmem>>, vector<1x6x16xbf16>
    %170 = vector.shape_cast %169 : vector<1x6x16xbf16> to vector<6x16xbf16>
    %171 = vector.shape_cast %168 : vector<6x16xbf16> to vector<1x6x16xbf16>
    tpu.vector_store %arg6[%c0_105, %c0_106, %c48], %171 {strides = array<i32>} : memref<1x6x64xbf16, #tpu.memory_space<vmem>>, vector<1x6x16xbf16>,
    %c0_107 = arith.constant 0 : index
    %c0_108 = arith.constant 0 : index
    %c0_109 = arith.constant 0 : index
    %172 = vector.load %arg7[%c0_107, %c0_108, %c0_109] : memref<1x1x16xf32, #tpu.memory_space<vmem>>, vector<1x1x16xf32>
    %173 = vector.shape_cast %172 : vector<1x1x16xf32> to vector<1x16xf32>
    %174 = vector.shape_cast %163 : vector<1x16xf32> to vector<1x1x16xf32>
    tpu.vector_store %arg7[%c0_107, %c0_108, %c0_109], %174 {strides = array<i32>} : memref<1x1x16xf32, #tpu.memory_space<vmem>>, vector<1x1x16xf32>,
    %c0_110 = arith.constant 0 : index
    %c0_111 = arith.constant 0 : index
    %c0_112 = arith.constant 0 : index
    %175 = vector.load %arg8[%c0_110, %c0_111, %c0_112] : memref<1x1x16xf32, #tpu.memory_space<vmem>>, vector<1x1x16xf32>
    %176 = vector.shape_cast %175 : vector<1x1x16xf32> to vector<1x16xf32>
    %177 = vector.shape_cast %167 : vector<1x16xf32> to vector<1x1x16xf32>
    tpu.vector_store %arg8[%c0_110, %c0_111, %c0_112], %177 {strides = array<i32>} : memref<1x1x16xf32, #tpu.memory_space<vmem>>, vector<1x1x16xf32>,
    return
  }
  func.func @transform_0(%arg0: i32) -> (i32, i32, i32) {
    %c0_i32 = arith.constant 0 : i32
    %c0_i32_0 = arith.constant 0 : i32
    %c0_i32_1 = arith.constant 0 : i32
    return %arg0, %c0_i32, %c0_i32_0 : i32, i32, i32
  }
  func.func @transform_1(%arg0: i32) -> (i32, i32, i32, i32) {
    %c0_i32 = arith.constant 0 : i32
    %c0_i32_0 = arith.constant 0 : i32
    %c0_i32_1 = arith.constant 0 : i32
    %c0_i32_2 = arith.constant 0 : i32
    %c0_i32_3 = arith.constant 0 : i32
    return %c0_i32, %c0_i32_0, %c0_i32_1, %c0_i32_2 : i32, i32, i32, i32
  }
  func.func @transform_2(%arg0: i32) -> (i32, i32) {
    %c0_i32 = arith.constant 0 : i32
    %c0_i32_0 = arith.constant 0 : i32
    %c0_i32_1 = arith.constant 0 : i32
    return %c0_i32, %c0_i32_0 : i32, i32
  }
  func.func @transform_3(%arg0: i32) -> (i32, i32) {
    %c0_i32 = arith.constant 0 : i32
    %c0_i32_0 = arith.constant 0 : i32
    %c0_i32_1 = arith.constant 0 : i32
    return %c0_i32, %c0_i32_0 : i32, i32
  }
  func.func @transform_4(%arg0: i32) -> (i32, i32) {
    %c0_i32 = arith.constant 0 : i32
    %c0_i32_0 = arith.constant 0 : i32
    %c0_i32_1 = arith.constant 0 : i32
    return %c0_i32, %c0_i32_0 : i32, i32
  }
  func.func @transform_5(%arg0: i32) -> (i32, i32, i32) {
    %c0_i32 = arith.constant 0 : i32
    %c0_i32_0 = arith.constant 0 : i32
    %c0_i32_1 = arith.constant 0 : i32
    return %arg0, %c0_i32, %c0_i32_0 : i32, i32, i32
  }
  func.func @transform_6(%arg0: i32) -> (i32, i32, i32) {
    %c0_i32 = arith.constant 0 : i32
    %c0_i32_0 = arith.constant 0 : i32
    %c0_i32_1 = arith.constant 0 : i32
    return %arg0, %c0_i32, %c0_i32_0 : i32, i32, i32
  }
  func.func @transform_7(%arg0: i32) -> (i32, i32, i32) {
    %c0_i32 = arith.constant 0 : i32
    %c0_i32_0 = arith.constant 0 : i32
    %c0_i32_1 = arith.constant 0 : i32
    return %arg0, %c0_i32, %c0_i32_0 : i32, i32, i32
  }
}

module attributes {stable_mosaic.version = 11 : i64} {
  func.func @_conv_flat_kernel(%arg0: i32, %arg1: memref<1x36x32xbf16, #tpu.memory_space<vmem>>, %arg2: memref<4x4x32x8xbf16, #tpu.memory_space<vmem>>, %arg3: memref<1x8xf32, #tpu.memory_space<vmem>>, %arg4: memref<1x32xf32, #tpu.memory_space<vmem>>, %arg5: memref<1x32xf32, #tpu.memory_space<vmem>>, %arg6: memref<1x22x32xbf16, #tpu.memory_space<vmem>>, %arg7: memref<1x1x8xf32, #tpu.memory_space<vmem>>, %arg8: memref<1x1x8xf32, #tpu.memory_space<vmem>>) attributes {dimension_semantics = [#tpu.dimension_semantics<parallel>], iteration_bounds = array<i64: 2>, scalar_prefetch = 0 : i64, scratch_operands = 0 : i64, tpu.core_type = #tpu.core_type<tc>, window_params = [{transform_indices = @transform_0, window_bounds = array<i64: 1, 36, 32>}, {pipeline_mode = #tpu.pipeline_mode<synchronous>, transform_indices = @transform_1, window_bounds = array<i64: 4, 4, 32, 8>}, {pipeline_mode = #tpu.pipeline_mode<synchronous>, transform_indices = @transform_2, window_bounds = array<i64: 1, 8>}, {pipeline_mode = #tpu.pipeline_mode<synchronous>, transform_indices = @transform_3, window_bounds = array<i64: 1, 32>}, {pipeline_mode = #tpu.pipeline_mode<synchronous>, transform_indices = @transform_4, window_bounds = array<i64: 1, 32>}, {transform_indices = @transform_5, window_bounds = array<i64: 1, 22, 32>}, {transform_indices = @transform_6, window_bounds = array<i64: 1, 1, 8>}, {transform_indices = @transform_7, window_bounds = array<i64: 1, 1, 8>}]} {
    %c0 = arith.constant 0 : index
    %c0_0 = arith.constant 0 : index
    %c0_1 = arith.constant 0 : index
    %0 = vector.load %arg1[%c0, %c0_0, %c0_1] : memref<1x36x32xbf16, #tpu.memory_space<vmem>>, vector<1x36x32xbf16>
    %1 = vector.shape_cast %0 : vector<1x36x32xbf16> to vector<36x32xbf16>
    %2 = arith.extf %1 : vector<36x32xbf16> to vector<36x32xf32>
    %c0_2 = arith.constant 0 : index
    %c0_3 = arith.constant 0 : index
    %3 = vector.load %arg4[%c0_2, %c0_3] : memref<1x32xf32, #tpu.memory_space<vmem>>, vector<1x32xf32>
    %4 = vector.broadcast %3 : vector<1x32xf32> to vector<36x32xf32>
    %5 = arith.mulf %2, %4 : vector<36x32xf32>
    %c0_4 = arith.constant 0 : index
    %c0_5 = arith.constant 0 : index
    %6 = vector.load %arg5[%c0_4, %c0_5] : memref<1x32xf32, #tpu.memory_space<vmem>>, vector<1x32xf32>
    %7 = vector.broadcast %6 : vector<1x32xf32> to vector<36x32xf32>
    %8 = arith.addf %5, %7 : vector<36x32xf32>
    %cst = arith.constant 0.000000e+00 : f32
    %9 = vector.broadcast %cst : f32 to vector<36x32xf32>
    %10 = arith.maximumf %8, %9 : vector<36x32xf32>
    %11 = arith.truncf %10 : vector<36x32xf32> to vector<36x32xbf16>
    %c0_6 = arith.constant 0 : index
    %c0_7 = arith.constant 0 : index
    %12 = vector.load %arg3[%c0_6, %c0_7] : memref<1x8xf32, #tpu.memory_space<vmem>>, vector<1x8xf32>
    %13 = tpu.iota {dimensions = array<i32: 0>} : vector<22x1xi32>
    %c6_i32 = arith.constant 6 : i32
    %c0_i32 = arith.constant 0 : i32
    %14 = arith.cmpi eq, %c6_i32, %c0_i32 : i32
    %c1_i32 = arith.constant 1 : i32
    %15 = arith.select %14, %c1_i32, %c6_i32 : i32
    %16 = vector.broadcast %15 : i32 to vector<22x1xi32>
    %17 = arith.remsi %13, %16 : vector<22x1xi32>
    %c0_i32_8 = arith.constant 0 : i32
    %18 = vector.broadcast %c0_i32_8 : i32 to vector<22x1xi32>
    %19 = arith.cmpi ne, %17, %18 : vector<22x1xi32>
    %c0_i32_9 = arith.constant 0 : i32
    %20 = vector.broadcast %c0_i32_9 : i32 to vector<22x1xi32>
    %21 = arith.cmpi slt, %17, %20 : vector<22x1xi32>
    %c0_i32_10 = arith.constant 0 : i32
    %22 = arith.cmpi slt, %15, %c0_i32_10 : i32
    %23 = vector.broadcast %22 : i1 to vector<22x1xi1>
    %24 = vector.broadcast %23 : vector<22x1xi1> to vector<22x1xi1>
    %25 = arith.xori %21, %24 : vector<22x1xi1>
    %26 = arith.andi %25, %19 : vector<22x1xi1>
    %27 = vector.broadcast %15 : i32 to vector<22x1xi32>
    %28 = arith.addi %17, %27 : vector<22x1xi32>
    %29 = arith.select %26, %28, %17 : vector<22x1xi1>, vector<22x1xi32>
    %c4_i32 = arith.constant 4 : i32
    %30 = vector.broadcast %c4_i32 : i32 to vector<22x1xi32>
    %31 = arith.cmpi slt, %29, %30 : vector<22x1xi32>
    %32 = arith.extui %31 : vector<22x1xi1> to vector<22x1xi32>
    %33 = arith.sitofp %32 : vector<22x1xi32> to vector<22x1xf32>
    %cst_11 = arith.constant 0.000000e+00 : f32
    %34 = vector.broadcast %cst_11 : f32 to vector<1x8xf32>
    %cst_12 = arith.constant 0.000000e+00 : f32
    %35 = vector.broadcast %cst_12 : f32 to vector<1x8xf32>
    %36 = vector.extract_strided_slice %11 {offsets = [0, 0], sizes = [22, 32], strides = [1, 1]} : vector<36x32xbf16> to vector<22x32xbf16>
    %c0_13 = arith.constant 0 : index
    %c0_14 = arith.constant 0 : index
    %c0_15 = arith.constant 0 : index
    %c0_16 = arith.constant 0 : index
    %37 = vector.load %arg2[%c0_13, %c0_14, %c0_15, %c0_16] : memref<4x4x32x8xbf16, #tpu.memory_space<vmem>>, vector<1x1x32x8xbf16>
    %38 = vector.shape_cast %37 : vector<1x1x32x8xbf16> to vector<32x8xbf16>
    %cst_17 = arith.constant dense<0.000000e+00> : vector<22x8xf32>
    %39 = tpu.matmul %36, %38, %cst_17 {dimension_numbers = #tpu.dot_dimension_numbers<[1], [0], [0], [1], [0, 0, 1, 1], [], []>} : vector<22x32xbf16>, vector<32x8xbf16>, vector<22x8xf32> -> vector<22x8xf32>
    %40 = vector.extract_strided_slice %11 {offsets = [1, 0], sizes = [22, 32], strides = [1, 1]} : vector<36x32xbf16> to vector<22x32xbf16>
    %c0_18 = arith.constant 0 : index
    %c1 = arith.constant 1 : index
    %c0_19 = arith.constant 0 : index
    %c0_20 = arith.constant 0 : index
    %41 = vector.load %arg2[%c0_18, %c1, %c0_19, %c0_20] : memref<4x4x32x8xbf16, #tpu.memory_space<vmem>>, vector<1x1x32x8xbf16>
    %42 = vector.shape_cast %41 : vector<1x1x32x8xbf16> to vector<32x8xbf16>
    %cst_21 = arith.constant dense<0.000000e+00> : vector<22x8xf32>
    %43 = tpu.matmul %40, %42, %cst_21 {dimension_numbers = #tpu.dot_dimension_numbers<[1], [0], [0], [1], [0, 0, 1, 1], [], []>} : vector<22x32xbf16>, vector<32x8xbf16>, vector<22x8xf32> -> vector<22x8xf32>
    %44 = arith.addf %39, %43 : vector<22x8xf32>
    %45 = vector.extract_strided_slice %11 {offsets = [6, 0], sizes = [22, 32], strides = [1, 1]} : vector<36x32xbf16> to vector<22x32xbf16>
    %c0_22 = arith.constant 0 : index
    %c2 = arith.constant 2 : index
    %c0_23 = arith.constant 0 : index
    %c0_24 = arith.constant 0 : index
    %46 = vector.load %arg2[%c0_22, %c2, %c0_23, %c0_24] : memref<4x4x32x8xbf16, #tpu.memory_space<vmem>>, vector<1x1x32x8xbf16>
    %47 = vector.shape_cast %46 : vector<1x1x32x8xbf16> to vector<32x8xbf16>
    %cst_25 = arith.constant dense<0.000000e+00> : vector<22x8xf32>
    %48 = tpu.matmul %45, %47, %cst_25 {dimension_numbers = #tpu.dot_dimension_numbers<[1], [0], [0], [1], [0, 0, 1, 1], [], []>} : vector<22x32xbf16>, vector<32x8xbf16>, vector<22x8xf32> -> vector<22x8xf32>
    %49 = arith.addf %44, %48 : vector<22x8xf32>
    %50 = vector.extract_strided_slice %11 {offsets = [7, 0], sizes = [22, 32], strides = [1, 1]} : vector<36x32xbf16> to vector<22x32xbf16>
    %c0_26 = arith.constant 0 : index
    %c3 = arith.constant 3 : index
    %c0_27 = arith.constant 0 : index
    %c0_28 = arith.constant 0 : index
    %51 = vector.load %arg2[%c0_26, %c3, %c0_27, %c0_28] : memref<4x4x32x8xbf16, #tpu.memory_space<vmem>>, vector<1x1x32x8xbf16>
    %52 = vector.shape_cast %51 : vector<1x1x32x8xbf16> to vector<32x8xbf16>
    %cst_29 = arith.constant dense<0.000000e+00> : vector<22x8xf32>
    %53 = tpu.matmul %50, %52, %cst_29 {dimension_numbers = #tpu.dot_dimension_numbers<[1], [0], [0], [1], [0, 0, 1, 1], [], []>} : vector<22x32xbf16>, vector<32x8xbf16>, vector<22x8xf32> -> vector<22x8xf32>
    %54 = arith.addf %49, %53 : vector<22x8xf32>
    %55 = vector.broadcast %12 : vector<1x8xf32> to vector<22x8xf32>
    %56 = arith.addf %54, %55 : vector<22x8xf32>
    %57 = vector.broadcast %33 : vector<22x1xf32> to vector<22x8xf32>
    %58 = arith.mulf %56, %57 : vector<22x8xf32>
    %cst_30 = arith.constant dense<0.000000e+00> : vector<8xf32>
    %59 = vector.multi_reduction <add>, %58, %cst_30 [0] : vector<22x8xf32> to vector<8xf32>
    %60 = vector.shape_cast %59 : vector<8xf32> to vector<1x8xf32>
    %61 = arith.addf %34, %60 : vector<1x8xf32>
    %62 = arith.mulf %56, %58 : vector<22x8xf32>
    %cst_31 = arith.constant dense<0.000000e+00> : vector<8xf32>
    %63 = vector.multi_reduction <add>, %62, %cst_31 [0] : vector<22x8xf32> to vector<8xf32>
    %64 = vector.shape_cast %63 : vector<8xf32> to vector<1x8xf32>
    %65 = arith.addf %35, %64 : vector<1x8xf32>
    %66 = arith.truncf %56 : vector<22x8xf32> to vector<22x8xbf16>
    %c0_32 = arith.constant 0 : index
    %c0_33 = arith.constant 0 : index
    %c0_34 = arith.constant 0 : index
    %67 = vector.load %arg6[%c0_32, %c0_33, %c0_34] : memref<1x22x32xbf16, #tpu.memory_space<vmem>>, vector<1x22x8xbf16>
    %68 = vector.shape_cast %67 : vector<1x22x8xbf16> to vector<22x8xbf16>
    %69 = vector.shape_cast %66 : vector<22x8xbf16> to vector<1x22x8xbf16>
    tpu.vector_store %arg6[%c0_32, %c0_33, %c0_34], %69 {strides = array<i32>} : memref<1x22x32xbf16, #tpu.memory_space<vmem>>, vector<1x22x8xbf16>,
    %70 = vector.extract_strided_slice %11 {offsets = [1, 0], sizes = [22, 32], strides = [1, 1]} : vector<36x32xbf16> to vector<22x32xbf16>
    %c1_35 = arith.constant 1 : index
    %c0_36 = arith.constant 0 : index
    %c0_37 = arith.constant 0 : index
    %c0_38 = arith.constant 0 : index
    %71 = vector.load %arg2[%c1_35, %c0_36, %c0_37, %c0_38] : memref<4x4x32x8xbf16, #tpu.memory_space<vmem>>, vector<1x1x32x8xbf16>
    %72 = vector.shape_cast %71 : vector<1x1x32x8xbf16> to vector<32x8xbf16>
    %cst_39 = arith.constant dense<0.000000e+00> : vector<22x8xf32>
    %73 = tpu.matmul %70, %72, %cst_39 {dimension_numbers = #tpu.dot_dimension_numbers<[1], [0], [0], [1], [0, 0, 1, 1], [], []>} : vector<22x32xbf16>, vector<32x8xbf16>, vector<22x8xf32> -> vector<22x8xf32>
    %74 = vector.extract_strided_slice %11 {offsets = [2, 0], sizes = [22, 32], strides = [1, 1]} : vector<36x32xbf16> to vector<22x32xbf16>
    %c1_40 = arith.constant 1 : index
    %c1_41 = arith.constant 1 : index
    %c0_42 = arith.constant 0 : index
    %c0_43 = arith.constant 0 : index
    %75 = vector.load %arg2[%c1_40, %c1_41, %c0_42, %c0_43] : memref<4x4x32x8xbf16, #tpu.memory_space<vmem>>, vector<1x1x32x8xbf16>
    %76 = vector.shape_cast %75 : vector<1x1x32x8xbf16> to vector<32x8xbf16>
    %cst_44 = arith.constant dense<0.000000e+00> : vector<22x8xf32>
    %77 = tpu.matmul %74, %76, %cst_44 {dimension_numbers = #tpu.dot_dimension_numbers<[1], [0], [0], [1], [0, 0, 1, 1], [], []>} : vector<22x32xbf16>, vector<32x8xbf16>, vector<22x8xf32> -> vector<22x8xf32>
    %78 = arith.addf %73, %77 : vector<22x8xf32>
    %79 = vector.extract_strided_slice %11 {offsets = [7, 0], sizes = [22, 32], strides = [1, 1]} : vector<36x32xbf16> to vector<22x32xbf16>
    %c1_45 = arith.constant 1 : index
    %c2_46 = arith.constant 2 : index
    %c0_47 = arith.constant 0 : index
    %c0_48 = arith.constant 0 : index
    %80 = vector.load %arg2[%c1_45, %c2_46, %c0_47, %c0_48] : memref<4x4x32x8xbf16, #tpu.memory_space<vmem>>, vector<1x1x32x8xbf16>
    %81 = vector.shape_cast %80 : vector<1x1x32x8xbf16> to vector<32x8xbf16>
    %cst_49 = arith.constant dense<0.000000e+00> : vector<22x8xf32>
    %82 = tpu.matmul %79, %81, %cst_49 {dimension_numbers = #tpu.dot_dimension_numbers<[1], [0], [0], [1], [0, 0, 1, 1], [], []>} : vector<22x32xbf16>, vector<32x8xbf16>, vector<22x8xf32> -> vector<22x8xf32>
    %83 = arith.addf %78, %82 : vector<22x8xf32>
    %84 = vector.extract_strided_slice %11 {offsets = [8, 0], sizes = [22, 32], strides = [1, 1]} : vector<36x32xbf16> to vector<22x32xbf16>
    %c1_50 = arith.constant 1 : index
    %c3_51 = arith.constant 3 : index
    %c0_52 = arith.constant 0 : index
    %c0_53 = arith.constant 0 : index
    %85 = vector.load %arg2[%c1_50, %c3_51, %c0_52, %c0_53] : memref<4x4x32x8xbf16, #tpu.memory_space<vmem>>, vector<1x1x32x8xbf16>
    %86 = vector.shape_cast %85 : vector<1x1x32x8xbf16> to vector<32x8xbf16>
    %cst_54 = arith.constant dense<0.000000e+00> : vector<22x8xf32>
    %87 = tpu.matmul %84, %86, %cst_54 {dimension_numbers = #tpu.dot_dimension_numbers<[1], [0], [0], [1], [0, 0, 1, 1], [], []>} : vector<22x32xbf16>, vector<32x8xbf16>, vector<22x8xf32> -> vector<22x8xf32>
    %88 = arith.addf %83, %87 : vector<22x8xf32>
    %89 = vector.broadcast %12 : vector<1x8xf32> to vector<22x8xf32>
    %90 = arith.addf %88, %89 : vector<22x8xf32>
    %91 = vector.broadcast %33 : vector<22x1xf32> to vector<22x8xf32>
    %92 = arith.mulf %90, %91 : vector<22x8xf32>
    %cst_55 = arith.constant dense<0.000000e+00> : vector<8xf32>
    %93 = vector.multi_reduction <add>, %92, %cst_55 [0] : vector<22x8xf32> to vector<8xf32>
    %94 = vector.shape_cast %93 : vector<8xf32> to vector<1x8xf32>
    %95 = arith.addf %61, %94 : vector<1x8xf32>
    %96 = arith.mulf %90, %92 : vector<22x8xf32>
    %cst_56 = arith.constant dense<0.000000e+00> : vector<8xf32>
    %97 = vector.multi_reduction <add>, %96, %cst_56 [0] : vector<22x8xf32> to vector<8xf32>
    %98 = vector.shape_cast %97 : vector<8xf32> to vector<1x8xf32>
    %99 = arith.addf %65, %98 : vector<1x8xf32>
    %100 = arith.truncf %90 : vector<22x8xf32> to vector<22x8xbf16>
    %c0_57 = arith.constant 0 : index
    %c0_58 = arith.constant 0 : index
    %c8 = arith.constant 8 : index
    %101 = vector.load %arg6[%c0_57, %c0_58, %c8] : memref<1x22x32xbf16, #tpu.memory_space<vmem>>, vector<1x22x8xbf16>
    %102 = vector.shape_cast %101 : vector<1x22x8xbf16> to vector<22x8xbf16>
    %103 = vector.shape_cast %100 : vector<22x8xbf16> to vector<1x22x8xbf16>
    tpu.vector_store %arg6[%c0_57, %c0_58, %c8], %103 {strides = array<i32>} : memref<1x22x32xbf16, #tpu.memory_space<vmem>>, vector<1x22x8xbf16>,
    %104 = vector.extract_strided_slice %11 {offsets = [6, 0], sizes = [22, 32], strides = [1, 1]} : vector<36x32xbf16> to vector<22x32xbf16>
    %c2_59 = arith.constant 2 : index
    %c0_60 = arith.constant 0 : index
    %c0_61 = arith.constant 0 : index
    %c0_62 = arith.constant 0 : index
    %105 = vector.load %arg2[%c2_59, %c0_60, %c0_61, %c0_62] : memref<4x4x32x8xbf16, #tpu.memory_space<vmem>>, vector<1x1x32x8xbf16>
    %106 = vector.shape_cast %105 : vector<1x1x32x8xbf16> to vector<32x8xbf16>
    %cst_63 = arith.constant dense<0.000000e+00> : vector<22x8xf32>
    %107 = tpu.matmul %104, %106, %cst_63 {dimension_numbers = #tpu.dot_dimension_numbers<[1], [0], [0], [1], [0, 0, 1, 1], [], []>} : vector<22x32xbf16>, vector<32x8xbf16>, vector<22x8xf32> -> vector<22x8xf32>
    %108 = vector.extract_strided_slice %11 {offsets = [7, 0], sizes = [22, 32], strides = [1, 1]} : vector<36x32xbf16> to vector<22x32xbf16>
    %c2_64 = arith.constant 2 : index
    %c1_65 = arith.constant 1 : index
    %c0_66 = arith.constant 0 : index
    %c0_67 = arith.constant 0 : index
    %109 = vector.load %arg2[%c2_64, %c1_65, %c0_66, %c0_67] : memref<4x4x32x8xbf16, #tpu.memory_space<vmem>>, vector<1x1x32x8xbf16>
    %110 = vector.shape_cast %109 : vector<1x1x32x8xbf16> to vector<32x8xbf16>
    %cst_68 = arith.constant dense<0.000000e+00> : vector<22x8xf32>
    %111 = tpu.matmul %108, %110, %cst_68 {dimension_numbers = #tpu.dot_dimension_numbers<[1], [0], [0], [1], [0, 0, 1, 1], [], []>} : vector<22x32xbf16>, vector<32x8xbf16>, vector<22x8xf32> -> vector<22x8xf32>
    %112 = arith.addf %107, %111 : vector<22x8xf32>
    %113 = vector.extract_strided_slice %11 {offsets = [12, 0], sizes = [22, 32], strides = [1, 1]} : vector<36x32xbf16> to vector<22x32xbf16>
    %c2_69 = arith.constant 2 : index
    %c2_70 = arith.constant 2 : index
    %c0_71 = arith.constant 0 : index
    %c0_72 = arith.constant 0 : index
    %114 = vector.load %arg2[%c2_69, %c2_70, %c0_71, %c0_72] : memref<4x4x32x8xbf16, #tpu.memory_space<vmem>>, vector<1x1x32x8xbf16>
    %115 = vector.shape_cast %114 : vector<1x1x32x8xbf16> to vector<32x8xbf16>
    %cst_73 = arith.constant dense<0.000000e+00> : vector<22x8xf32>
    %116 = tpu.matmul %113, %115, %cst_73 {dimension_numbers = #tpu.dot_dimension_numbers<[1], [0], [0], [1], [0, 0, 1, 1], [], []>} : vector<22x32xbf16>, vector<32x8xbf16>, vector<22x8xf32> -> vector<22x8xf32>
    %117 = arith.addf %112, %116 : vector<22x8xf32>
    %118 = vector.extract_strided_slice %11 {offsets = [13, 0], sizes = [22, 32], strides = [1, 1]} : vector<36x32xbf16> to vector<22x32xbf16>
    %c2_74 = arith.constant 2 : index
    %c3_75 = arith.constant 3 : index
    %c0_76 = arith.constant 0 : index
    %c0_77 = arith.constant 0 : index
    %119 = vector.load %arg2[%c2_74, %c3_75, %c0_76, %c0_77] : memref<4x4x32x8xbf16, #tpu.memory_space<vmem>>, vector<1x1x32x8xbf16>
    %120 = vector.shape_cast %119 : vector<1x1x32x8xbf16> to vector<32x8xbf16>
    %cst_78 = arith.constant dense<0.000000e+00> : vector<22x8xf32>
    %121 = tpu.matmul %118, %120, %cst_78 {dimension_numbers = #tpu.dot_dimension_numbers<[1], [0], [0], [1], [0, 0, 1, 1], [], []>} : vector<22x32xbf16>, vector<32x8xbf16>, vector<22x8xf32> -> vector<22x8xf32>
    %122 = arith.addf %117, %121 : vector<22x8xf32>
    %123 = vector.broadcast %12 : vector<1x8xf32> to vector<22x8xf32>
    %124 = arith.addf %122, %123 : vector<22x8xf32>
    %125 = vector.broadcast %33 : vector<22x1xf32> to vector<22x8xf32>
    %126 = arith.mulf %124, %125 : vector<22x8xf32>
    %cst_79 = arith.constant dense<0.000000e+00> : vector<8xf32>
    %127 = vector.multi_reduction <add>, %126, %cst_79 [0] : vector<22x8xf32> to vector<8xf32>
    %128 = vector.shape_cast %127 : vector<8xf32> to vector<1x8xf32>
    %129 = arith.addf %95, %128 : vector<1x8xf32>
    %130 = arith.mulf %124, %126 : vector<22x8xf32>
    %cst_80 = arith.constant dense<0.000000e+00> : vector<8xf32>
    %131 = vector.multi_reduction <add>, %130, %cst_80 [0] : vector<22x8xf32> to vector<8xf32>
    %132 = vector.shape_cast %131 : vector<8xf32> to vector<1x8xf32>
    %133 = arith.addf %99, %132 : vector<1x8xf32>
    %134 = arith.truncf %124 : vector<22x8xf32> to vector<22x8xbf16>
    %c0_81 = arith.constant 0 : index
    %c0_82 = arith.constant 0 : index
    %c16 = arith.constant 16 : index
    %135 = vector.load %arg6[%c0_81, %c0_82, %c16] : memref<1x22x32xbf16, #tpu.memory_space<vmem>>, vector<1x22x8xbf16>
    %136 = vector.shape_cast %135 : vector<1x22x8xbf16> to vector<22x8xbf16>
    %137 = vector.shape_cast %134 : vector<22x8xbf16> to vector<1x22x8xbf16>
    tpu.vector_store %arg6[%c0_81, %c0_82, %c16], %137 {strides = array<i32>} : memref<1x22x32xbf16, #tpu.memory_space<vmem>>, vector<1x22x8xbf16>,
    %138 = vector.extract_strided_slice %11 {offsets = [7, 0], sizes = [22, 32], strides = [1, 1]} : vector<36x32xbf16> to vector<22x32xbf16>
    %c3_83 = arith.constant 3 : index
    %c0_84 = arith.constant 0 : index
    %c0_85 = arith.constant 0 : index
    %c0_86 = arith.constant 0 : index
    %139 = vector.load %arg2[%c3_83, %c0_84, %c0_85, %c0_86] : memref<4x4x32x8xbf16, #tpu.memory_space<vmem>>, vector<1x1x32x8xbf16>
    %140 = vector.shape_cast %139 : vector<1x1x32x8xbf16> to vector<32x8xbf16>
    %cst_87 = arith.constant dense<0.000000e+00> : vector<22x8xf32>
    %141 = tpu.matmul %138, %140, %cst_87 {dimension_numbers = #tpu.dot_dimension_numbers<[1], [0], [0], [1], [0, 0, 1, 1], [], []>} : vector<22x32xbf16>, vector<32x8xbf16>, vector<22x8xf32> -> vector<22x8xf32>
    %142 = vector.extract_strided_slice %11 {offsets = [8, 0], sizes = [22, 32], strides = [1, 1]} : vector<36x32xbf16> to vector<22x32xbf16>
    %c3_88 = arith.constant 3 : index
    %c1_89 = arith.constant 1 : index
    %c0_90 = arith.constant 0 : index
    %c0_91 = arith.constant 0 : index
    %143 = vector.load %arg2[%c3_88, %c1_89, %c0_90, %c0_91] : memref<4x4x32x8xbf16, #tpu.memory_space<vmem>>, vector<1x1x32x8xbf16>
    %144 = vector.shape_cast %143 : vector<1x1x32x8xbf16> to vector<32x8xbf16>
    %cst_92 = arith.constant dense<0.000000e+00> : vector<22x8xf32>
    %145 = tpu.matmul %142, %144, %cst_92 {dimension_numbers = #tpu.dot_dimension_numbers<[1], [0], [0], [1], [0, 0, 1, 1], [], []>} : vector<22x32xbf16>, vector<32x8xbf16>, vector<22x8xf32> -> vector<22x8xf32>
    %146 = arith.addf %141, %145 : vector<22x8xf32>
    %147 = vector.extract_strided_slice %11 {offsets = [13, 0], sizes = [22, 32], strides = [1, 1]} : vector<36x32xbf16> to vector<22x32xbf16>
    %c3_93 = arith.constant 3 : index
    %c2_94 = arith.constant 2 : index
    %c0_95 = arith.constant 0 : index
    %c0_96 = arith.constant 0 : index
    %148 = vector.load %arg2[%c3_93, %c2_94, %c0_95, %c0_96] : memref<4x4x32x8xbf16, #tpu.memory_space<vmem>>, vector<1x1x32x8xbf16>
    %149 = vector.shape_cast %148 : vector<1x1x32x8xbf16> to vector<32x8xbf16>
    %cst_97 = arith.constant dense<0.000000e+00> : vector<22x8xf32>
    %150 = tpu.matmul %147, %149, %cst_97 {dimension_numbers = #tpu.dot_dimension_numbers<[1], [0], [0], [1], [0, 0, 1, 1], [], []>} : vector<22x32xbf16>, vector<32x8xbf16>, vector<22x8xf32> -> vector<22x8xf32>
    %151 = arith.addf %146, %150 : vector<22x8xf32>
    %152 = vector.extract_strided_slice %11 {offsets = [14, 0], sizes = [22, 32], strides = [1, 1]} : vector<36x32xbf16> to vector<22x32xbf16>
    %c3_98 = arith.constant 3 : index
    %c3_99 = arith.constant 3 : index
    %c0_100 = arith.constant 0 : index
    %c0_101 = arith.constant 0 : index
    %153 = vector.load %arg2[%c3_98, %c3_99, %c0_100, %c0_101] : memref<4x4x32x8xbf16, #tpu.memory_space<vmem>>, vector<1x1x32x8xbf16>
    %154 = vector.shape_cast %153 : vector<1x1x32x8xbf16> to vector<32x8xbf16>
    %cst_102 = arith.constant dense<0.000000e+00> : vector<22x8xf32>
    %155 = tpu.matmul %152, %154, %cst_102 {dimension_numbers = #tpu.dot_dimension_numbers<[1], [0], [0], [1], [0, 0, 1, 1], [], []>} : vector<22x32xbf16>, vector<32x8xbf16>, vector<22x8xf32> -> vector<22x8xf32>
    %156 = arith.addf %151, %155 : vector<22x8xf32>
    %157 = vector.broadcast %12 : vector<1x8xf32> to vector<22x8xf32>
    %158 = arith.addf %156, %157 : vector<22x8xf32>
    %159 = vector.broadcast %33 : vector<22x1xf32> to vector<22x8xf32>
    %160 = arith.mulf %158, %159 : vector<22x8xf32>
    %cst_103 = arith.constant dense<0.000000e+00> : vector<8xf32>
    %161 = vector.multi_reduction <add>, %160, %cst_103 [0] : vector<22x8xf32> to vector<8xf32>
    %162 = vector.shape_cast %161 : vector<8xf32> to vector<1x8xf32>
    %163 = arith.addf %129, %162 : vector<1x8xf32>
    %164 = arith.mulf %158, %160 : vector<22x8xf32>
    %cst_104 = arith.constant dense<0.000000e+00> : vector<8xf32>
    %165 = vector.multi_reduction <add>, %164, %cst_104 [0] : vector<22x8xf32> to vector<8xf32>
    %166 = vector.shape_cast %165 : vector<8xf32> to vector<1x8xf32>
    %167 = arith.addf %133, %166 : vector<1x8xf32>
    %168 = arith.truncf %158 : vector<22x8xf32> to vector<22x8xbf16>
    %c0_105 = arith.constant 0 : index
    %c0_106 = arith.constant 0 : index
    %c24 = arith.constant 24 : index
    %169 = vector.load %arg6[%c0_105, %c0_106, %c24] : memref<1x22x32xbf16, #tpu.memory_space<vmem>>, vector<1x22x8xbf16>
    %170 = vector.shape_cast %169 : vector<1x22x8xbf16> to vector<22x8xbf16>
    %171 = vector.shape_cast %168 : vector<22x8xbf16> to vector<1x22x8xbf16>
    tpu.vector_store %arg6[%c0_105, %c0_106, %c24], %171 {strides = array<i32>} : memref<1x22x32xbf16, #tpu.memory_space<vmem>>, vector<1x22x8xbf16>,
    %c0_107 = arith.constant 0 : index
    %c0_108 = arith.constant 0 : index
    %c0_109 = arith.constant 0 : index
    %172 = vector.load %arg7[%c0_107, %c0_108, %c0_109] : memref<1x1x8xf32, #tpu.memory_space<vmem>>, vector<1x1x8xf32>
    %173 = vector.shape_cast %172 : vector<1x1x8xf32> to vector<1x8xf32>
    %174 = vector.shape_cast %163 : vector<1x8xf32> to vector<1x1x8xf32>
    tpu.vector_store %arg7[%c0_107, %c0_108, %c0_109], %174 {strides = array<i32>} : memref<1x1x8xf32, #tpu.memory_space<vmem>>, vector<1x1x8xf32>,
    %c0_110 = arith.constant 0 : index
    %c0_111 = arith.constant 0 : index
    %c0_112 = arith.constant 0 : index
    %175 = vector.load %arg8[%c0_110, %c0_111, %c0_112] : memref<1x1x8xf32, #tpu.memory_space<vmem>>, vector<1x1x8xf32>
    %176 = vector.shape_cast %175 : vector<1x1x8xf32> to vector<1x8xf32>
    %177 = vector.shape_cast %167 : vector<1x8xf32> to vector<1x1x8xf32>
    tpu.vector_store %arg8[%c0_110, %c0_111, %c0_112], %177 {strides = array<i32>} : memref<1x1x8xf32, #tpu.memory_space<vmem>>, vector<1x1x8xf32>,
    return
  }
  func.func @transform_0(%arg0: i32) -> (i32, i32, i32) {
    %c0_i32 = arith.constant 0 : i32
    %c0_i32_0 = arith.constant 0 : i32
    %c0_i32_1 = arith.constant 0 : i32
    return %arg0, %c0_i32, %c0_i32_0 : i32, i32, i32
  }
  func.func @transform_1(%arg0: i32) -> (i32, i32, i32, i32) {
    %c0_i32 = arith.constant 0 : i32
    %c0_i32_0 = arith.constant 0 : i32
    %c0_i32_1 = arith.constant 0 : i32
    %c0_i32_2 = arith.constant 0 : i32
    %c0_i32_3 = arith.constant 0 : i32
    return %c0_i32, %c0_i32_0, %c0_i32_1, %c0_i32_2 : i32, i32, i32, i32
  }
  func.func @transform_2(%arg0: i32) -> (i32, i32) {
    %c0_i32 = arith.constant 0 : i32
    %c0_i32_0 = arith.constant 0 : i32
    %c0_i32_1 = arith.constant 0 : i32
    return %c0_i32, %c0_i32_0 : i32, i32
  }
  func.func @transform_3(%arg0: i32) -> (i32, i32) {
    %c0_i32 = arith.constant 0 : i32
    %c0_i32_0 = arith.constant 0 : i32
    %c0_i32_1 = arith.constant 0 : i32
    return %c0_i32, %c0_i32_0 : i32, i32
  }
  func.func @transform_4(%arg0: i32) -> (i32, i32) {
    %c0_i32 = arith.constant 0 : i32
    %c0_i32_0 = arith.constant 0 : i32
    %c0_i32_1 = arith.constant 0 : i32
    return %c0_i32, %c0_i32_0 : i32, i32
  }
  func.func @transform_5(%arg0: i32) -> (i32, i32, i32) {
    %c0_i32 = arith.constant 0 : i32
    %c0_i32_0 = arith.constant 0 : i32
    %c0_i32_1 = arith.constant 0 : i32
    return %arg0, %c0_i32, %c0_i32_0 : i32, i32, i32
  }
  func.func @transform_6(%arg0: i32) -> (i32, i32, i32) {
    %c0_i32 = arith.constant 0 : i32
    %c0_i32_0 = arith.constant 0 : i32
    %c0_i32_1 = arith.constant 0 : i32
    return %arg0, %c0_i32, %c0_i32_0 : i32, i32, i32
  }
  func.func @transform_7(%arg0: i32) -> (i32, i32, i32) {
    %c0_i32 = arith.constant 0 : i32
    %c0_i32_0 = arith.constant 0 : i32
    %c0_i32_1 = arith.constant 0 : i32
    return %arg0, %c0_i32, %c0_i32_0 : i32, i32, i32
  }
}

module attributes {stable_mosaic.version = 11 : i64} {
  func.func @_conv_flat_kernel(%arg0: i32, %arg1: memref<1x100x16xbf16, #tpu.memory_space<vmem>>, %arg2: memref<4x4x16x1xbf16, #tpu.memory_space<vmem>>, %arg3: memref<1x1xf32, #tpu.memory_space<vmem>>, %arg4: memref<1x16xf32, #tpu.memory_space<vmem>>, %arg5: memref<1x16xf32, #tpu.memory_space<vmem>>, %arg6: memref<1x78x4xf32, #tpu.memory_space<vmem>>) attributes {dimension_semantics = [#tpu.dimension_semantics<parallel>], iteration_bounds = array<i64: 2>, scalar_prefetch = 0 : i64, scratch_operands = 0 : i64, tpu.core_type = #tpu.core_type<tc>, window_params = [{transform_indices = @transform_0, window_bounds = array<i64: 1, 100, 16>}, {pipeline_mode = #tpu.pipeline_mode<synchronous>, transform_indices = @transform_1, window_bounds = array<i64: 4, 4, 16, 1>}, {pipeline_mode = #tpu.pipeline_mode<synchronous>, transform_indices = @transform_2, window_bounds = array<i64: 1, 1>}, {pipeline_mode = #tpu.pipeline_mode<synchronous>, transform_indices = @transform_3, window_bounds = array<i64: 1, 16>}, {pipeline_mode = #tpu.pipeline_mode<synchronous>, transform_indices = @transform_4, window_bounds = array<i64: 1, 16>}, {transform_indices = @transform_5, window_bounds = array<i64: 1, 78, 4>}]} {
    %c0 = arith.constant 0 : index
    %c0_0 = arith.constant 0 : index
    %c0_1 = arith.constant 0 : index
    %0 = vector.load %arg1[%c0, %c0_0, %c0_1] : memref<1x100x16xbf16, #tpu.memory_space<vmem>>, vector<1x100x16xbf16>
    %1 = vector.shape_cast %0 : vector<1x100x16xbf16> to vector<100x16xbf16>
    %2 = arith.extf %1 : vector<100x16xbf16> to vector<100x16xf32>
    %c0_2 = arith.constant 0 : index
    %c0_3 = arith.constant 0 : index
    %3 = vector.load %arg4[%c0_2, %c0_3] : memref<1x16xf32, #tpu.memory_space<vmem>>, vector<1x16xf32>
    %4 = vector.broadcast %3 : vector<1x16xf32> to vector<100x16xf32>
    %5 = arith.mulf %2, %4 : vector<100x16xf32>
    %c0_4 = arith.constant 0 : index
    %c0_5 = arith.constant 0 : index
    %6 = vector.load %arg5[%c0_4, %c0_5] : memref<1x16xf32, #tpu.memory_space<vmem>>, vector<1x16xf32>
    %7 = vector.broadcast %6 : vector<1x16xf32> to vector<100x16xf32>
    %8 = arith.addf %5, %7 : vector<100x16xf32>
    %cst = arith.constant 0.000000e+00 : f32
    %9 = vector.broadcast %cst : f32 to vector<100x16xf32>
    %10 = arith.maximumf %8, %9 : vector<100x16xf32>
    %11 = arith.truncf %10 : vector<100x16xf32> to vector<100x16xbf16>
    %c0_6 = arith.constant 0 : index
    %c0_7 = arith.constant 0 : index
    %12 = vector.load %arg3[%c0_6, %c0_7] : memref<1x1xf32, #tpu.memory_space<vmem>>, vector<1x1xf32>
    %13 = vector.extract_strided_slice %11 {offsets = [0, 0], sizes = [78, 16], strides = [1, 1]} : vector<100x16xbf16> to vector<78x16xbf16>
    %c0_8 = arith.constant 0 : index
    %c0_9 = arith.constant 0 : index
    %c0_10 = arith.constant 0 : index
    %c0_11 = arith.constant 0 : index
    %14 = vector.load %arg2[%c0_8, %c0_9, %c0_10, %c0_11] : memref<4x4x16x1xbf16, #tpu.memory_space<vmem>>, vector<1x1x16x1xbf16>
    %15 = vector.shape_cast %14 : vector<1x1x16x1xbf16> to vector<16x1xbf16>
    %cst_12 = arith.constant dense<0.000000e+00> : vector<78x1xf32>
    %16 = tpu.matmul %13, %15, %cst_12 {dimension_numbers = #tpu.dot_dimension_numbers<[1], [0], [0], [1], [0, 0, 1, 1], [], []>} : vector<78x16xbf16>, vector<16x1xbf16>, vector<78x1xf32> -> vector<78x1xf32>
    %17 = vector.extract_strided_slice %11 {offsets = [1, 0], sizes = [78, 16], strides = [1, 1]} : vector<100x16xbf16> to vector<78x16xbf16>
    %c0_13 = arith.constant 0 : index
    %c1 = arith.constant 1 : index
    %c0_14 = arith.constant 0 : index
    %c0_15 = arith.constant 0 : index
    %18 = vector.load %arg2[%c0_13, %c1, %c0_14, %c0_15] : memref<4x4x16x1xbf16, #tpu.memory_space<vmem>>, vector<1x1x16x1xbf16>
    %19 = vector.shape_cast %18 : vector<1x1x16x1xbf16> to vector<16x1xbf16>
    %cst_16 = arith.constant dense<0.000000e+00> : vector<78x1xf32>
    %20 = tpu.matmul %17, %19, %cst_16 {dimension_numbers = #tpu.dot_dimension_numbers<[1], [0], [0], [1], [0, 0, 1, 1], [], []>} : vector<78x16xbf16>, vector<16x1xbf16>, vector<78x1xf32> -> vector<78x1xf32>
    %21 = arith.addf %16, %20 : vector<78x1xf32>
    %22 = vector.extract_strided_slice %11 {offsets = [10, 0], sizes = [78, 16], strides = [1, 1]} : vector<100x16xbf16> to vector<78x16xbf16>
    %c0_17 = arith.constant 0 : index
    %c2 = arith.constant 2 : index
    %c0_18 = arith.constant 0 : index
    %c0_19 = arith.constant 0 : index
    %23 = vector.load %arg2[%c0_17, %c2, %c0_18, %c0_19] : memref<4x4x16x1xbf16, #tpu.memory_space<vmem>>, vector<1x1x16x1xbf16>
    %24 = vector.shape_cast %23 : vector<1x1x16x1xbf16> to vector<16x1xbf16>
    %cst_20 = arith.constant dense<0.000000e+00> : vector<78x1xf32>
    %25 = tpu.matmul %22, %24, %cst_20 {dimension_numbers = #tpu.dot_dimension_numbers<[1], [0], [0], [1], [0, 0, 1, 1], [], []>} : vector<78x16xbf16>, vector<16x1xbf16>, vector<78x1xf32> -> vector<78x1xf32>
    %26 = arith.addf %21, %25 : vector<78x1xf32>
    %27 = vector.extract_strided_slice %11 {offsets = [11, 0], sizes = [78, 16], strides = [1, 1]} : vector<100x16xbf16> to vector<78x16xbf16>
    %c0_21 = arith.constant 0 : index
    %c3 = arith.constant 3 : index
    %c0_22 = arith.constant 0 : index
    %c0_23 = arith.constant 0 : index
    %28 = vector.load %arg2[%c0_21, %c3, %c0_22, %c0_23] : memref<4x4x16x1xbf16, #tpu.memory_space<vmem>>, vector<1x1x16x1xbf16>
    %29 = vector.shape_cast %28 : vector<1x1x16x1xbf16> to vector<16x1xbf16>
    %cst_24 = arith.constant dense<0.000000e+00> : vector<78x1xf32>
    %30 = tpu.matmul %27, %29, %cst_24 {dimension_numbers = #tpu.dot_dimension_numbers<[1], [0], [0], [1], [0, 0, 1, 1], [], []>} : vector<78x16xbf16>, vector<16x1xbf16>, vector<78x1xf32> -> vector<78x1xf32>
    %31 = arith.addf %26, %30 : vector<78x1xf32>
    %32 = vector.broadcast %12 : vector<1x1xf32> to vector<78x1xf32>
    %33 = arith.addf %31, %32 : vector<78x1xf32>
    %34 = math.tanh %33 : vector<78x1xf32>
    %c0_25 = arith.constant 0 : index
    %c0_26 = arith.constant 0 : index
    %c0_27 = arith.constant 0 : index
    %35 = vector.load %arg6[%c0_25, %c0_26, %c0_27] : memref<1x78x4xf32, #tpu.memory_space<vmem>>, vector<1x78x1xf32>
    %36 = vector.shape_cast %35 : vector<1x78x1xf32> to vector<78x1xf32>
    %37 = vector.shape_cast %34 : vector<78x1xf32> to vector<1x78x1xf32>
    tpu.vector_store %arg6[%c0_25, %c0_26, %c0_27], %37 {strides = array<i32>} : memref<1x78x4xf32, #tpu.memory_space<vmem>>, vector<1x78x1xf32>,
    %38 = vector.extract_strided_slice %11 {offsets = [1, 0], sizes = [78, 16], strides = [1, 1]} : vector<100x16xbf16> to vector<78x16xbf16>
    %c1_28 = arith.constant 1 : index
    %c0_29 = arith.constant 0 : index
    %c0_30 = arith.constant 0 : index
    %c0_31 = arith.constant 0 : index
    %39 = vector.load %arg2[%c1_28, %c0_29, %c0_30, %c0_31] : memref<4x4x16x1xbf16, #tpu.memory_space<vmem>>, vector<1x1x16x1xbf16>
    %40 = vector.shape_cast %39 : vector<1x1x16x1xbf16> to vector<16x1xbf16>
    %cst_32 = arith.constant dense<0.000000e+00> : vector<78x1xf32>
    %41 = tpu.matmul %38, %40, %cst_32 {dimension_numbers = #tpu.dot_dimension_numbers<[1], [0], [0], [1], [0, 0, 1, 1], [], []>} : vector<78x16xbf16>, vector<16x1xbf16>, vector<78x1xf32> -> vector<78x1xf32>
    %42 = vector.extract_strided_slice %11 {offsets = [2, 0], sizes = [78, 16], strides = [1, 1]} : vector<100x16xbf16> to vector<78x16xbf16>
    %c1_33 = arith.constant 1 : index
    %c1_34 = arith.constant 1 : index
    %c0_35 = arith.constant 0 : index
    %c0_36 = arith.constant 0 : index
    %43 = vector.load %arg2[%c1_33, %c1_34, %c0_35, %c0_36] : memref<4x4x16x1xbf16, #tpu.memory_space<vmem>>, vector<1x1x16x1xbf16>
    %44 = vector.shape_cast %43 : vector<1x1x16x1xbf16> to vector<16x1xbf16>
    %cst_37 = arith.constant dense<0.000000e+00> : vector<78x1xf32>
    %45 = tpu.matmul %42, %44, %cst_37 {dimension_numbers = #tpu.dot_dimension_numbers<[1], [0], [0], [1], [0, 0, 1, 1], [], []>} : vector<78x16xbf16>, vector<16x1xbf16>, vector<78x1xf32> -> vector<78x1xf32>
    %46 = arith.addf %41, %45 : vector<78x1xf32>
    %47 = vector.extract_strided_slice %11 {offsets = [11, 0], sizes = [78, 16], strides = [1, 1]} : vector<100x16xbf16> to vector<78x16xbf16>
    %c1_38 = arith.constant 1 : index
    %c2_39 = arith.constant 2 : index
    %c0_40 = arith.constant 0 : index
    %c0_41 = arith.constant 0 : index
    %48 = vector.load %arg2[%c1_38, %c2_39, %c0_40, %c0_41] : memref<4x4x16x1xbf16, #tpu.memory_space<vmem>>, vector<1x1x16x1xbf16>
    %49 = vector.shape_cast %48 : vector<1x1x16x1xbf16> to vector<16x1xbf16>
    %cst_42 = arith.constant dense<0.000000e+00> : vector<78x1xf32>
    %50 = tpu.matmul %47, %49, %cst_42 {dimension_numbers = #tpu.dot_dimension_numbers<[1], [0], [0], [1], [0, 0, 1, 1], [], []>} : vector<78x16xbf16>, vector<16x1xbf16>, vector<78x1xf32> -> vector<78x1xf32>
    %51 = arith.addf %46, %50 : vector<78x1xf32>
    %52 = vector.extract_strided_slice %11 {offsets = [12, 0], sizes = [78, 16], strides = [1, 1]} : vector<100x16xbf16> to vector<78x16xbf16>
    %c1_43 = arith.constant 1 : index
    %c3_44 = arith.constant 3 : index
    %c0_45 = arith.constant 0 : index
    %c0_46 = arith.constant 0 : index
    %53 = vector.load %arg2[%c1_43, %c3_44, %c0_45, %c0_46] : memref<4x4x16x1xbf16, #tpu.memory_space<vmem>>, vector<1x1x16x1xbf16>
    %54 = vector.shape_cast %53 : vector<1x1x16x1xbf16> to vector<16x1xbf16>
    %cst_47 = arith.constant dense<0.000000e+00> : vector<78x1xf32>
    %55 = tpu.matmul %52, %54, %cst_47 {dimension_numbers = #tpu.dot_dimension_numbers<[1], [0], [0], [1], [0, 0, 1, 1], [], []>} : vector<78x16xbf16>, vector<16x1xbf16>, vector<78x1xf32> -> vector<78x1xf32>
    %56 = arith.addf %51, %55 : vector<78x1xf32>
    %57 = vector.broadcast %12 : vector<1x1xf32> to vector<78x1xf32>
    %58 = arith.addf %56, %57 : vector<78x1xf32>
    %59 = math.tanh %58 : vector<78x1xf32>
    %c0_48 = arith.constant 0 : index
    %c0_49 = arith.constant 0 : index
    %c1_50 = arith.constant 1 : index
    %60 = vector.load %arg6[%c0_48, %c0_49, %c1_50] : memref<1x78x4xf32, #tpu.memory_space<vmem>>, vector<1x78x1xf32>
    %61 = vector.shape_cast %60 : vector<1x78x1xf32> to vector<78x1xf32>
    %62 = vector.shape_cast %59 : vector<78x1xf32> to vector<1x78x1xf32>
    tpu.vector_store %arg6[%c0_48, %c0_49, %c1_50], %62 {strides = array<i32>} : memref<1x78x4xf32, #tpu.memory_space<vmem>>, vector<1x78x1xf32>,
    %63 = vector.extract_strided_slice %11 {offsets = [10, 0], sizes = [78, 16], strides = [1, 1]} : vector<100x16xbf16> to vector<78x16xbf16>
    %c2_51 = arith.constant 2 : index
    %c0_52 = arith.constant 0 : index
    %c0_53 = arith.constant 0 : index
    %c0_54 = arith.constant 0 : index
    %64 = vector.load %arg2[%c2_51, %c0_52, %c0_53, %c0_54] : memref<4x4x16x1xbf16, #tpu.memory_space<vmem>>, vector<1x1x16x1xbf16>
    %65 = vector.shape_cast %64 : vector<1x1x16x1xbf16> to vector<16x1xbf16>
    %cst_55 = arith.constant dense<0.000000e+00> : vector<78x1xf32>
    %66 = tpu.matmul %63, %65, %cst_55 {dimension_numbers = #tpu.dot_dimension_numbers<[1], [0], [0], [1], [0, 0, 1, 1], [], []>} : vector<78x16xbf16>, vector<16x1xbf16>, vector<78x1xf32> -> vector<78x1xf32>
    %67 = vector.extract_strided_slice %11 {offsets = [11, 0], sizes = [78, 16], strides = [1, 1]} : vector<100x16xbf16> to vector<78x16xbf16>
    %c2_56 = arith.constant 2 : index
    %c1_57 = arith.constant 1 : index
    %c0_58 = arith.constant 0 : index
    %c0_59 = arith.constant 0 : index
    %68 = vector.load %arg2[%c2_56, %c1_57, %c0_58, %c0_59] : memref<4x4x16x1xbf16, #tpu.memory_space<vmem>>, vector<1x1x16x1xbf16>
    %69 = vector.shape_cast %68 : vector<1x1x16x1xbf16> to vector<16x1xbf16>
    %cst_60 = arith.constant dense<0.000000e+00> : vector<78x1xf32>
    %70 = tpu.matmul %67, %69, %cst_60 {dimension_numbers = #tpu.dot_dimension_numbers<[1], [0], [0], [1], [0, 0, 1, 1], [], []>} : vector<78x16xbf16>, vector<16x1xbf16>, vector<78x1xf32> -> vector<78x1xf32>
    %71 = arith.addf %66, %70 : vector<78x1xf32>
    %72 = vector.extract_strided_slice %11 {offsets = [20, 0], sizes = [78, 16], strides = [1, 1]} : vector<100x16xbf16> to vector<78x16xbf16>
    %c2_61 = arith.constant 2 : index
    %c2_62 = arith.constant 2 : index
    %c0_63 = arith.constant 0 : index
    %c0_64 = arith.constant 0 : index
    %73 = vector.load %arg2[%c2_61, %c2_62, %c0_63, %c0_64] : memref<4x4x16x1xbf16, #tpu.memory_space<vmem>>, vector<1x1x16x1xbf16>
    %74 = vector.shape_cast %73 : vector<1x1x16x1xbf16> to vector<16x1xbf16>
    %cst_65 = arith.constant dense<0.000000e+00> : vector<78x1xf32>
    %75 = tpu.matmul %72, %74, %cst_65 {dimension_numbers = #tpu.dot_dimension_numbers<[1], [0], [0], [1], [0, 0, 1, 1], [], []>} : vector<78x16xbf16>, vector<16x1xbf16>, vector<78x1xf32> -> vector<78x1xf32>
    %76 = arith.addf %71, %75 : vector<78x1xf32>
    %77 = vector.extract_strided_slice %11 {offsets = [21, 0], sizes = [78, 16], strides = [1, 1]} : vector<100x16xbf16> to vector<78x16xbf16>
    %c2_66 = arith.constant 2 : index
    %c3_67 = arith.constant 3 : index
    %c0_68 = arith.constant 0 : index
    %c0_69 = arith.constant 0 : index
    %78 = vector.load %arg2[%c2_66, %c3_67, %c0_68, %c0_69] : memref<4x4x16x1xbf16, #tpu.memory_space<vmem>>, vector<1x1x16x1xbf16>
    %79 = vector.shape_cast %78 : vector<1x1x16x1xbf16> to vector<16x1xbf16>
    %cst_70 = arith.constant dense<0.000000e+00> : vector<78x1xf32>
    %80 = tpu.matmul %77, %79, %cst_70 {dimension_numbers = #tpu.dot_dimension_numbers<[1], [0], [0], [1], [0, 0, 1, 1], [], []>} : vector<78x16xbf16>, vector<16x1xbf16>, vector<78x1xf32> -> vector<78x1xf32>
    %81 = arith.addf %76, %80 : vector<78x1xf32>
    %82 = vector.broadcast %12 : vector<1x1xf32> to vector<78x1xf32>
    %83 = arith.addf %81, %82 : vector<78x1xf32>
    %84 = math.tanh %83 : vector<78x1xf32>
    %c0_71 = arith.constant 0 : index
    %c0_72 = arith.constant 0 : index
    %c2_73 = arith.constant 2 : index
    %85 = vector.load %arg6[%c0_71, %c0_72, %c2_73] : memref<1x78x4xf32, #tpu.memory_space<vmem>>, vector<1x78x1xf32>
    %86 = vector.shape_cast %85 : vector<1x78x1xf32> to vector<78x1xf32>
    %87 = vector.shape_cast %84 : vector<78x1xf32> to vector<1x78x1xf32>
    tpu.vector_store %arg6[%c0_71, %c0_72, %c2_73], %87 {strides = array<i32>} : memref<1x78x4xf32, #tpu.memory_space<vmem>>, vector<1x78x1xf32>,
    %88 = vector.extract_strided_slice %11 {offsets = [11, 0], sizes = [78, 16], strides = [1, 1]} : vector<100x16xbf16> to vector<78x16xbf16>
    %c3_74 = arith.constant 3 : index
    %c0_75 = arith.constant 0 : index
    %c0_76 = arith.constant 0 : index
    %c0_77 = arith.constant 0 : index
    %89 = vector.load %arg2[%c3_74, %c0_75, %c0_76, %c0_77] : memref<4x4x16x1xbf16, #tpu.memory_space<vmem>>, vector<1x1x16x1xbf16>
    %90 = vector.shape_cast %89 : vector<1x1x16x1xbf16> to vector<16x1xbf16>
    %cst_78 = arith.constant dense<0.000000e+00> : vector<78x1xf32>
    %91 = tpu.matmul %88, %90, %cst_78 {dimension_numbers = #tpu.dot_dimension_numbers<[1], [0], [0], [1], [0, 0, 1, 1], [], []>} : vector<78x16xbf16>, vector<16x1xbf16>, vector<78x1xf32> -> vector<78x1xf32>
    %92 = vector.extract_strided_slice %11 {offsets = [12, 0], sizes = [78, 16], strides = [1, 1]} : vector<100x16xbf16> to vector<78x16xbf16>
    %c3_79 = arith.constant 3 : index
    %c1_80 = arith.constant 1 : index
    %c0_81 = arith.constant 0 : index
    %c0_82 = arith.constant 0 : index
    %93 = vector.load %arg2[%c3_79, %c1_80, %c0_81, %c0_82] : memref<4x4x16x1xbf16, #tpu.memory_space<vmem>>, vector<1x1x16x1xbf16>
    %94 = vector.shape_cast %93 : vector<1x1x16x1xbf16> to vector<16x1xbf16>
    %cst_83 = arith.constant dense<0.000000e+00> : vector<78x1xf32>
    %95 = tpu.matmul %92, %94, %cst_83 {dimension_numbers = #tpu.dot_dimension_numbers<[1], [0], [0], [1], [0, 0, 1, 1], [], []>} : vector<78x16xbf16>, vector<16x1xbf16>, vector<78x1xf32> -> vector<78x1xf32>
    %96 = arith.addf %91, %95 : vector<78x1xf32>
    %97 = vector.extract_strided_slice %11 {offsets = [21, 0], sizes = [78, 16], strides = [1, 1]} : vector<100x16xbf16> to vector<78x16xbf16>
    %c3_84 = arith.constant 3 : index
    %c2_85 = arith.constant 2 : index
    %c0_86 = arith.constant 0 : index
    %c0_87 = arith.constant 0 : index
    %98 = vector.load %arg2[%c3_84, %c2_85, %c0_86, %c0_87] : memref<4x4x16x1xbf16, #tpu.memory_space<vmem>>, vector<1x1x16x1xbf16>
    %99 = vector.shape_cast %98 : vector<1x1x16x1xbf16> to vector<16x1xbf16>
    %cst_88 = arith.constant dense<0.000000e+00> : vector<78x1xf32>
    %100 = tpu.matmul %97, %99, %cst_88 {dimension_numbers = #tpu.dot_dimension_numbers<[1], [0], [0], [1], [0, 0, 1, 1], [], []>} : vector<78x16xbf16>, vector<16x1xbf16>, vector<78x1xf32> -> vector<78x1xf32>
    %101 = arith.addf %96, %100 : vector<78x1xf32>
    %102 = vector.extract_strided_slice %11 {offsets = [22, 0], sizes = [78, 16], strides = [1, 1]} : vector<100x16xbf16> to vector<78x16xbf16>
    %c3_89 = arith.constant 3 : index
    %c3_90 = arith.constant 3 : index
    %c0_91 = arith.constant 0 : index
    %c0_92 = arith.constant 0 : index
    %103 = vector.load %arg2[%c3_89, %c3_90, %c0_91, %c0_92] : memref<4x4x16x1xbf16, #tpu.memory_space<vmem>>, vector<1x1x16x1xbf16>
    %104 = vector.shape_cast %103 : vector<1x1x16x1xbf16> to vector<16x1xbf16>
    %cst_93 = arith.constant dense<0.000000e+00> : vector<78x1xf32>
    %105 = tpu.matmul %102, %104, %cst_93 {dimension_numbers = #tpu.dot_dimension_numbers<[1], [0], [0], [1], [0, 0, 1, 1], [], []>} : vector<78x16xbf16>, vector<16x1xbf16>, vector<78x1xf32> -> vector<78x1xf32>
    %106 = arith.addf %101, %105 : vector<78x1xf32>
    %107 = vector.broadcast %12 : vector<1x1xf32> to vector<78x1xf32>
    %108 = arith.addf %106, %107 : vector<78x1xf32>
    %109 = math.tanh %108 : vector<78x1xf32>
    %c0_94 = arith.constant 0 : index
    %c0_95 = arith.constant 0 : index
    %c3_96 = arith.constant 3 : index
    %110 = vector.load %arg6[%c0_94, %c0_95, %c3_96] : memref<1x78x4xf32, #tpu.memory_space<vmem>>, vector<1x78x1xf32>
    %111 = vector.shape_cast %110 : vector<1x78x1xf32> to vector<78x1xf32>
    %112 = vector.shape_cast %109 : vector<78x1xf32> to vector<1x78x1xf32>
    tpu.vector_store %arg6[%c0_94, %c0_95, %c3_96], %112 {strides = array<i32>} : memref<1x78x4xf32, #tpu.memory_space<vmem>>, vector<1x78x1xf32>,
    return
  }
  func.func @transform_0(%arg0: i32) -> (i32, i32, i32) {
    %c0_i32 = arith.constant 0 : i32
    %c0_i32_0 = arith.constant 0 : i32
    %c0_i32_1 = arith.constant 0 : i32
    return %arg0, %c0_i32, %c0_i32_0 : i32, i32, i32
  }
  func.func @transform_1(%arg0: i32) -> (i32, i32, i32, i32) {
    %c0_i32 = arith.constant 0 : i32
    %c0_i32_0 = arith.constant 0 : i32
    %c0_i32_1 = arith.constant 0 : i32
    %c0_i32_2 = arith.constant 0 : i32
    %c0_i32_3 = arith.constant 0 : i32
    return %c0_i32, %c0_i32_0, %c0_i32_1, %c0_i32_2 : i32, i32, i32, i32
  }
  func.func @transform_2(%arg0: i32) -> (i32, i32) {
    %c0_i32 = arith.constant 0 : i32
    %c0_i32_0 = arith.constant 0 : i32
    %c0_i32_1 = arith.constant 0 : i32
    return %c0_i32, %c0_i32_0 : i32, i32
  }
  func.func @transform_3(%arg0: i32) -> (i32, i32) {
    %c0_i32 = arith.constant 0 : i32
    %c0_i32_0 = arith.constant 0 : i32
    %c0_i32_1 = arith.constant 0 : i32
    return %c0_i32, %c0_i32_0 : i32, i32
  }
  func.func @transform_4(%arg0: i32) -> (i32, i32) {
    %c0_i32 = arith.constant 0 : i32
    %c0_i32_0 = arith.constant 0 : i32
    %c0_i32_1 = arith.constant 0 : i32
    return %c0_i32, %c0_i32_0 : i32, i32
  }
  func.func @transform_5(%arg0: i32) -> (i32, i32, i32) {
    %c0_i32 = arith.constant 0 : i32
    %c0_i32_0 = arith.constant 0 : i32
    %c0_i32_1 = arith.constant 0 : i32
    return %arg0, %c0_i32, %c0_i32_0 : i32, i32, i32
  }
}

module attributes {stable_mosaic.version = 11 : i64} {
  func.func @_blend_kernel(%arg0: i32, %arg1: memref<1x1x256xf32, #tpu.memory_space<vmem>>, %arg2: memref<1x1x256xf32, #tpu.memory_space<vmem>>, %arg3: memref<1x1x256xf32, #tpu.memory_space<vmem>>, %arg4: memref<1x1x256xf32, #tpu.memory_space<vmem>>) attributes {dimension_semantics = [#tpu.dimension_semantics<parallel>], iteration_bounds = array<i64: 2>, scalar_prefetch = 0 : i64, scratch_operands = 0 : i64, tpu.core_type = #tpu.core_type<tc>, window_params = [{transform_indices = @transform_0, window_bounds = array<i64: 1, 1, 256>}, {transform_indices = @transform_1, window_bounds = array<i64: 1, 1, 256>}, {pipeline_mode = #tpu.pipeline_mode<synchronous>, transform_indices = @transform_2, window_bounds = array<i64: 1, 1, 256>}, {transform_indices = @transform_3, window_bounds = array<i64: 1, 1, 256>}]} {
    %c0 = arith.constant 0 : index
    %c0_0 = arith.constant 0 : index
    %c0_1 = arith.constant 0 : index
    %0 = vector.load %arg1[%c0, %c0_0, %c0_1] : memref<1x1x256xf32, #tpu.memory_space<vmem>>, vector<1x1x256xf32>
    %cst = arith.constant 1.000000e+00 : f32
    %1 = vector.broadcast %cst : f32 to vector<1x1x256xf32>
    %2 = arith.addf %0, %1 : vector<1x1x256xf32>
    %cst_2 = arith.constant 5.000000e-01 : f32
    %3 = vector.broadcast %cst_2 : f32 to vector<1x1x256xf32>
    %4 = arith.mulf %2, %3 : vector<1x1x256xf32>
    %c0_3 = arith.constant 0 : index
    %c0_4 = arith.constant 0 : index
    %c0_5 = arith.constant 0 : index
    %5 = vector.load %arg3[%c0_3, %c0_4, %c0_5] : memref<1x1x256xf32, #tpu.memory_space<vmem>>, vector<1x1x256xf32>
    %cst_6 = arith.constant 1.000000e+00 : f32
    %6 = vector.broadcast %cst_6 : f32 to vector<1x1x256xf32>
    %7 = arith.subf %6, %5 : vector<1x1x256xf32>
    %8 = arith.mulf %4, %7 : vector<1x1x256xf32>
    %c0_7 = arith.constant 0 : index
    %c0_8 = arith.constant 0 : index
    %c0_9 = arith.constant 0 : index
    %9 = vector.load %arg2[%c0_7, %c0_8, %c0_9] : memref<1x1x256xf32, #tpu.memory_space<vmem>>, vector<1x1x256xf32>
    %10 = arith.mulf %9, %5 : vector<1x1x256xf32>
    %11 = arith.addf %8, %10 : vector<1x1x256xf32>
    %c0_10 = arith.constant 0 : index
    %c0_11 = arith.constant 0 : index
    %c0_12 = arith.constant 0 : index
    %12 = vector.load %arg4[%c0_10, %c0_11, %c0_12] : memref<1x1x256xf32, #tpu.memory_space<vmem>>, vector<1x1x256xf32>
    tpu.vector_store %arg4[%c0_10, %c0_11, %c0_12], %11 {strides = array<i32>} : memref<1x1x256xf32, #tpu.memory_space<vmem>>, vector<1x1x256xf32>,
    return
  }
  func.func @transform_0(%arg0: i32) -> (i32, i32, i32) {
    %c0_i32 = arith.constant 0 : i32
    %c0_i32_0 = arith.constant 0 : i32
    %c0_i32_1 = arith.constant 0 : i32
    return %arg0, %c0_i32, %c0_i32_0 : i32, i32, i32
  }
  func.func @transform_1(%arg0: i32) -> (i32, i32, i32) {
    %c0_i32 = arith.constant 0 : i32
    %c0_i32_0 = arith.constant 0 : i32
    %c0_i32_1 = arith.constant 0 : i32
    return %arg0, %c0_i32, %c0_i32_0 : i32, i32, i32
  }
  func.func @transform_2(%arg0: i32) -> (i32, i32, i32) {
    %c0_i32 = arith.constant 0 : i32
    %c0_i32_0 = arith.constant 0 : i32
    %c0_i32_1 = arith.constant 0 : i32
    %c0_i32_2 = arith.constant 0 : i32
    return %c0_i32, %c0_i32_0, %c0_i32_1 : i32, i32, i32
  }
  func.func @transform_3(%arg0: i32) -> (i32, i32, i32) {
    %c0_i32 = arith.constant 0 : i32
    %c0_i32_0 = arith.constant 0 : i32
    %c0_i32_1 = arith.constant 0 : i32
    return %arg0, %c0_i32, %c0_i32_0 : i32, i32, i32
  }
}

</mosaic_0001>

<llo_original>
// kernel: unet_forward.9
$region0: #{unet_forward.9}
  #allocation0 [shape = 'u32[]', space=smem, size = 0x4, offset = 0x4, fixed_abs, tag = 'smem constant byte address 0x4 - core index']
  #allocation1 [shape = 'u32[72,128]{1,0:T(1,128)}', space=vmem, size = 0x9000, scoped, tag = 'internal scratch']
  %s0 = inlined_call_operand.vmem [shape: bf16[2,81,4], index: 0, kind: input, shape index: {}]
  %s1 = inlined_call_operand.vmem [shape: bf16[1,4,4,8], index: 1, kind: input, shape index: {}]
  %s2 = inlined_call_operand.vmem [shape: f32[1,8], index: 2, kind: input, shape index: {}]
  %s3 = inlined_call_operand.vmem [shape: bf16[2,71,8], index: 3, kind: output, shape index: {}]
  %s4 = sld [smem:[#allocation0]]
  $region45: #{unet_forward.9} parent=0
    _
  %s6 = ssub.s32 1, %s4
  %s7 = scalar_select 0, %s6, %s4
  loop: start=0, step=1, limit=4
  $region2: #{unet_forward.9} parent=0 // loop_pre_header
    _
  $region3: #{unet_forward.9} parent=0 // loop_header
    %s9 = sphi 0, %s13
    %p10 = scmp.ge.s32.totalorder %s9, 4
    %s19 = sphi 0, %s21
    %s22 = sphi 0, %s19
    %s23 = sphi 0, %s22
    %s39 = sphi 0, %s23
    %s43 = sphi 0, %s43
    %s45 = sphi 0, %s43
    %s46 = sphi 0, %s45
    %s60 = sphi 0, %s46
    %s64 = sphi 0, %s64
    %s66 = sphi 0, %s64
    %s67 = sphi 0, %s66
    %s81 = sphi 0, %s67
    %s87 = sphi 0, %s89
    %s90 = sphi 0, %s87
    %s91 = sphi 0, %s90
    %s107 = sphi 0, %s91
  $region4: #{unet_forward.9} parent=0 // loop_header_branch
    %12 = sbr.rel (%p10) target = $region8
  $region5: #{unet_forward.9} parent=0 // loop_body
    %s14 = ssub.s32 %s9, 1
    %s15 = ssub.s32 %s9, 2
    %s16 = sadd.s32 %s9, 1
    %s17 = ssub.s32 %s9, %s16
    %p18 = scmp.eq.s32.totalorder %s17, 0
    %s20 = sadd.s32 %s19, 1
    %s21 = scalar_select %p18, %s19, %s20
    %p24 = pneg %p18
    %p25 = scmp.eq.s32.totalorder %s9, 1
    %p26 = por %p24, %p25
    %p27 = scmp.ne.s32.totalorder %s19, %s22
    %p28 = scmp.eq.s32.totalorder %s9, 0
    %p29 = por %p27, %p28
    %p30 = scmp.ne.s32.totalorder %s19, %s22
    %p31 = scmp.eq.s32.totalorder %s14, 1
    %p32 = por %p30, %p31
    %p33 = scmp.ne.s32.totalorder %s22, %s23
    %p34 = scmp.eq.s32.totalorder %s14, 0
    %p35 = por %p33, %p34
    %p36 = scmp.ne.s32.totalorder %s22, %s23
    %p37 = scmp.eq.s32.totalorder %s15, 1
    %p38 = por %p36, %p37
    %p40 = scmp.ne.s32.totalorder %s23, %s39
    %p41 = scmp.eq.s32.totalorder %s15, 0
    %p42 = por %p40, %p41
    %s44 = sadd.s32 %s43, 1
    %p47 = scmp.eq.s32.totalorder %s9, 1
    %p48 = scmp.ne.s32.totalorder %s43, %s45
    %p49 = scmp.eq.s32.totalorder %s9, 0
    %p50 = por %p48, %p49
    %p51 = scmp.ne.s32.totalorder %s43, %s45
    %p52 = scmp.eq.s32.totalorder %s14, 1
    %p53 = por %p51, %p52
    %p54 = scmp.ne.s32.totalorder %s45, %s46
    %p55 = scmp.eq.s32.totalorder %s14, 0
    %p56 = por %p54, %p55
    %p57 = scmp.ne.s32.totalorder %s45, %s46
    %p58 = scmp.eq.s32.totalorder %s15, 1
    %p59 = por %p57, %p58
    %p61 = scmp.ne.s32.totalorder %s46, %s60
    %p62 = scmp.eq.s32.totalorder %s15, 0
    %p63 = por %p61, %p62
    %s65 = sadd.s32 %s64, 1
    %p68 = scmp.eq.s32.totalorder %s9, 1
    %p69 = scmp.ne.s32.totalorder %s64, %s66
    %p70 = scmp.eq.s32.totalorder %s9, 0
    %p71 = por %p69, %p70
    %p72 = scmp.ne.s32.totalorder %s64, %s66
    %p73 = scmp.eq.s32.totalorder %s14, 1
    %p74 = por %p72, %p73
    %p75 = scmp.ne.s32.totalorder %s66, %s67
    %p76 = scmp.eq.s32.totalorder %s14, 0
    %p77 = por %p75, %p76
    %p78 = scmp.ne.s32.totalorder %s66, %s67
    %p79 = scmp.eq.s32.totalorder %s15, 1
    %p80 = por %p78, %p79
    %p82 = scmp.ne.s32.totalorder %s67, %s81
    %p83 = scmp.eq.s32.totalorder %s15, 0
    %p84 = por %p82, %p83
    %s85 = ssub.s32 %s9, %s16
    %p86 = scmp.eq.s32.totalorder %s85, 0
    %s88 = sadd.s32 %s87, 1
    %s89 = scalar_select %p86, %s87, %s88
    %p92 = pneg %p86
    %p93 = scmp.eq.s32.totalorder %s9, 1
    %p94 = por %p92, %p93
    %p95 = scmp.ne.s32.totalorder %s87, %s90
    %p96 = scmp.eq.s32.totalorder %s9, 0
    %p97 = por %p95, %p96
    %p98 = scmp.ne.s32.totalorder %s87, %s90
    %p99 = scmp.eq.s32.totalorder %s14, 1
    %p100 = por %p98, %p99
    %p101 = scmp.ne.s32.totalorder %s90, %s91
    %p102 = scmp.eq.s32.totalorder %s14, 0
    %p103 = por %p101, %p102
    %p104 = scmp.ne.s32.totalorder %s90, %s91
    %p105 = scmp.eq.s32.totalorder %s15, 1
    %p106 = por %p104, %p105
    %p108 = scmp.ne.s32.totalorder %s91, %s107
    %p109 = scmp.eq.s32.totalorder %s15, 0
    %p110 = por %p108, %p109
    %p111 = scmp.le.s32.totalorder 1, %s9
    %p112 = scmp.lt.s32.totalorder %s9, 3
    %p113 = pnand %p111, %p112
    %p114 = pneg %p113
    // Predicated region
    $region9: #{unet_forward.9} parent=5 // pred_check
      _
    $region10: #{unet_forward.9} parent=5 // pred_check_branch
      %116 = sbr.rel (%p113) target = $region12
    $region11: #{unet_forward.9} parent=5 // pred_region
      %s117 = ssub.s32 %s9, 1
      // Predicated region
      $region13: #{unet_forward.9} parent=11 // pred_check
        %p118 = pneg %p56
      $region14: #{unet_forward.9} parent=11 // pred_check_branch
        %120 = sbr.rel (%p118) target = $region16
      $region15: #{unet_forward.9} parent=11 // pred_region
        _
      $region16: #{unet_forward.9} parent=11 // pred_fallthru
        _
      // Predicated region
      $region17: #{unet_forward.9} parent=11 // pred_check
        %p121 = pneg %p77
      $region18: #{unet_forward.9} parent=11 // pred_check_branch
        %123 = sbr.rel (%p121) target = $region20
      $region19: #{unet_forward.9} parent=11 // pred_region
        _
      $region20: #{unet_forward.9} parent=11 // pred_fallthru
        _
    $region12: #{unet_forward.9} parent=5 // pred_fallthru
      _
    %p124 = scmp.lt.s32.totalorder %s9, 2
    // Predicated region
    $region21: #{unet_forward.9} parent=5 // pred_check
      %p125 = pneg %p124
    $region22: #{unet_forward.9} parent=5 // pred_check_branch
      %127 = sbr.rel (%p125) target = $region24
    $region23: #{unet_forward.9} parent=5 // pred_region
      // Predicated region
      $region25: #{unet_forward.9} parent=23 // pred_check
        %p128 = pneg %p29
      $region26: #{unet_forward.9} parent=23 // pred_check_branch
        %130 = sbr.rel (%p128) target = $region28
      $region27: #{unet_forward.9} parent=23 // pred_region
        %p131 = scmp.lt.s32.totalorder %s9, 1
        %s132 = scalar_select %p131, %s9, 1
        %s133 = smul.addr %s132, 11
        %s134 = smul.addr %s133, 4
        %s135 = scalar_lea.vmem %s0, %s134
      $region28: #{unet_forward.9} parent=23 // pred_fallthru
        _
    $region24: #{unet_forward.9} parent=5 // pred_fallthru
      _
    %p136 = scmp.le.s32.totalorder 1, %s9
    %p137 = scmp.lt.s32.totalorder %s9, 3
    %p138 = pnand %p136, %p137
    %p139 = pneg %p138
    // Predicated region
    $region29: #{unet_forward.9} parent=5 // pred_check
      _
    $region30: #{unet_forward.9} parent=5 // pred_check_branch
      %141 = sbr.rel (%p138) target = $region32
    $region31: #{unet_forward.9} parent=5 // pred_region
      %s142 = ssub.s32 %s9, 1
      %p143 = scmp.lt.s32.totalorder %s14, 1
      %s144 = scalar_select %p143, %s14, 1
      %s145 = smul.addr %s144, 11
      %s146 = smul.addr %s145, 4
      %s147 = scalar_lea.vmem %s0, %s146
      %p148 = pneg %p35
      %p149 = pneg %p32
      %p150 = pneg %p56
      %p151 = pneg %p53
      %p152 = pneg %p77
      %p153 = pneg %p74
      %p154 = pneg %p103
      %p155 = pneg %p100
      %p156 = scmp.lt.s32.totalorder %s14, 1
      %s157 = scalar_select %p156, %s14, 1
      %s158 = smul.addr %s157, 9
      %s159 = smul.addr %s158, 4
      %s160 = scalar_lea.vmem %s3, %s159
      %p161 = scmp.lt.s32.totalorder %s14, 1
      %s162 = scalar_select %p161, %s14, 1
      %s163 = smul.addr %s162, 11
      %s164 = smul.addr %s163, 4
      %s165 = scalar_lea.vmem %s0, %s164
      %p166 = scmp.lt.s32.totalorder %s14, 1
      %s167 = scalar_select %p166, %s14, 1
      %s168 = smul.addr %s167, 9
      %s169 = smul.addr %s168, 4
      %s170 = scalar_lea.vmem %s3, %s169
      %v172 = vld [vmem:[%s165] sm:$0xf]
      %v173 = vld [vmem:[%s165 + $0x4] sm:$0xf]
      %v174 = vld [vmem:[%s165 + $0x8] sm:$0xf]
      %v175 = vld [vmem:[%s165 + $0xc] sm:$0xf]
      %v176 = vld [vmem:[%s165 + $0x10] sm:$0xf]
      %v177 = vld [vmem:[%s165 + $0x14] sm:$0xf]
      %v178 = vld [vmem:[%s165 + $0x18] sm:$0xf]
      %v179 = vld [vmem:[%s165 + $0x1c] sm:$0xf]
      %v180 = vld [vmem:[%s165 + $0x20] sm:$0xf]
      %v181 = vld [vmem:[%s165 + $0x24] sm:$0xf]
      %v182 = vld [vmem:[%s165 + $0x28] sm:$0x1]
      %v183 = vld [vmem:[%s2] sm:$0x1]
      %v184 = vld [vmem:[%s1] sm:$0x3]
      %s185 = scalar_lea.vmem %s1, 2
      %v186 = vld [vmem:[%s185] sm:$0x3]
      %v196 = vunpack.c.l.b16 %v172
      %v197 = vunpack.c.l.b16 %v173
      %v198 = vunpack.c.l.b16 %v174
      %v199 = vunpack.c.l.b16 %v175
      %v200 = vunpack.c.l.b16 %v176
      %v201 = vunpack.c.l.b16 %v177
      %v202 = vunpack.c.l.b16 %v178
      %v203 = vunpack.c.l.b16 %v179
      %v204 = vunpack.c.l.b16 %v180
      %v205 = vpack.c.b16 %v197, %v196
      %v206 = vpack.c.b16 %v199, %v198
      %v207 = vpack.c.b16 %v201, %v200
      %v208 = vpack.c.b16 %v203, %v202
      %v209 = vpack.c.b16 %v204, %v204
      %vm210 = vsmask.f32 7424
      %v212 = vshrl.u32 %v205, 16
      %v214 = vshll.u32 %v205, 16
      %v216 = vrot.slane %v214, 1
      %v217 = vor.u32 %v212, %v216
      %v219 = vshll.u32 %v206, 16
      %v221 = vrot.slane %v219, 1
      %v222 = vsel %vm210, %v217, %v221
      %v223 = vshrl.u32 %v206, 16
      %v225 = vor.u32 %v223, %v221
      %v227 = vshll.u32 %v207, 16
      %v229 = vrot.slane %v227, 1
      %v230 = vsel %vm210, %v225, %v229
      %v231 = vshrl.u32 %v207, 16
      %v233 = vor.u32 %v231, %v229
      %v235 = vshll.u32 %v208, 16
      %v237 = vrot.slane %v235, 1
      %v238 = vsel %vm210, %v233, %v237
      %v239 = vshrl.u32 %v208, 16
      %v241 = vor.u32 %v239, %v237
      %v243 = vshll.u32 %v209, 16
      %v245 = vrot.slane %v243, 1
      %v246 = vsel %vm210, %v241, %v245
      %v247 = vshrl.u32 %v209, 16
      %v249 = vor.u32 %v247, %v245
      %vm250 = vcmask 31744
      %v252 = vsel %vm250, %v222, 0
      %v255 = vsel %vm250, %v230, 0
      %v258 = vsel %vm250, %v238, 0
      %v261 = vsel %vm250, %v246, 0
      %v264 = vsel %vm250, %v249, 0
      %vm266 = vcmask 1041408
      %v268 = vsel %vm266, %v186, 0
      %270 = vmatpush.bf16.msra.mxu0 0
      %271 = vmatpush.bf16.msra.mxu0 0
      %272 = vmatpush.bf16.msra.mxu0 0
      %273 = vmatpush.bf16.msra.mxu0 0
      %274 = vmatpush.bf16.msra.mxu0 0
      %275 = vmatpush.bf16.msra.mxu0 0
      %276 = vmatpush.bf16.msra.mxu0 0
      %277 = vmatpush.bf16.msra.mxu0 %v268
      %278 = vmatmul.bf16.gmra.mxu0 %v252
      %v279 = vpop.f32.mrf.mxu0
      %v280 = vadd.f32 0.0, %v279
      %v281 = vpop.f32.mrf.mxu0
      %v282 = vadd.f32 0.0, %v281
      %283 = vmatmul.bf16.gmra.mxu0 %v255
      %v284 = vpop.f32.mrf.mxu0
      %v285 = vadd.f32 0.0, %v284
      %v286 = vpop.f32.mrf.mxu0
      %v287 = vadd.f32 0.0, %v286
      %288 = vmatmul.bf16.gmra.mxu0 %v258
      %v289 = vpop.f32.mrf.mxu0
      %v290 = vadd.f32 0.0, %v289
      %v291 = vpop.f32.mrf.mxu0
      %v292 = vadd.f32 0.0, %v291
      %293 = vmatmul.bf16.gmra.mxu0 %v261
      %v294 = vpop.f32.mrf.mxu0
      %v295 = vadd.f32 0.0, %v294
      %v296 = vpop.f32.mrf.mxu0
      %v297 = vadd.f32 0.0, %v296
      %298 = vmatmul.bf16.gmra.mxu0 %v264
      %v299 = vpop.f32.mrf.mxu0
      %v300 = vadd.f32 0.0, %v299
      %v301 = vpop.f32.mrf.mxu0
      %302 = vdwg.mxu0
      %v303 = vsel %vm250, %v205, 0
      %v305 = vsel %vm250, %v206, 0
      %v307 = vsel %vm250, %v207, 0
      %v309 = vsel %vm250, %v208, 0
      %v311 = vsel %vm250, %v209, 0
      %v314 = vsel %vm266, %v184, 0
      %316 = vmatpush.bf16.msra.mxu0 0
      %317 = vmatpush.bf16.msra.mxu0 0
      %318 = vmatpush.bf16.msra.mxu0 0
      %319 = vmatpush.bf16.msra.mxu0 0
      %320 = vmatpush.bf16.msra.mxu0 0
      %321 = vmatpush.bf16.msra.mxu0 0
      %322 = vmatpush.bf16.msra.mxu0 0
      %323 = vmatpush.bf16.msra.mxu0 %v314
      %324 = vmatmul.bf16.gmra.mxu0 %v303
      %v325 = vpop.f32.mrf.mxu0
      %v326 = vadd.f32 %v280, %v325
      %v327 = vpop.f32.mrf.mxu0
      %v328 = vadd.f32 %v282, %v327
      %329 = vmatmul.bf16.gmra.mxu0 %v305
      %v330 = vpop.f32.mrf.mxu0
      %v331 = vadd.f32 %v285, %v330
      %v332 = vpop.f32.mrf.mxu0
      %v333 = vadd.f32 %v287, %v332
      %334 = vmatmul.bf16.gmra.mxu0 %v307
      %v335 = vpop.f32.mrf.mxu0
      %v336 = vadd.f32 %v290, %v335
      %v337 = vpop.f32.mrf.mxu0
      %v338 = vadd.f32 %v292, %v337
      %339 = vmatmul.bf16.gmra.mxu0 %v309
      %v340 = vpop.f32.mrf.mxu0
      %v341 = vadd.f32 %v295, %v340
      %v342 = vpop.f32.mrf.mxu0
      %v343 = vadd.f32 %v297, %v342
      %344 = vmatmul.bf16.gmra.mxu0 %v311
      %v345 = vpop.f32.mrf.mxu0
      %v346 = vadd.f32 %v300, %v345
      %v347 = vpop.f32.mrf.mxu0
      %348 = vdwg.mxu0
      %s349 = scalar_lea.vmem %s1, 4
      %v350 = vld [vmem:[%s349] sm:$0x3]
      %v352 = vunpack.c.l.b16 %v181
      %v353 = vpack.c.b16 %v198, %v197
      %v354 = vpack.c.b16 %v200, %v199
      %v355 = vpack.c.b16 %v202, %v201
      %v356 = vpack.c.b16 %v204, %v203
      %v357 = vpack.c.b16 %v352, %v352
      %v359 = vshrl.u32 %v353, 16
      %v361 = vshll.u32 %v353, 16
      %v363 = vrot.slane %v361, 1
      %v364 = vor.u32 %v359, %v363
      %v366 = vshll.u32 %v354, 16
      %v368 = vrot.slane %v366, 1
      %v369 = vsel %vm210, %v364, %v368
      %v370 = vshrl.u32 %v354, 16
      %v372 = vor.u32 %v370, %v368
      %v374 = vshll.u32 %v355, 16
      %v376 = vrot.slane %v374, 1
      %v377 = vsel %vm210, %v372, %v376
      %v378 = vshrl.u32 %v355, 16
      %v380 = vor.u32 %v378, %v376
      %v382 = vshll.u32 %v356, 16
      %v384 = vrot.slane %v382, 1
      %v385 = vsel %vm210, %v380, %v384
      %v386 = vshrl.u32 %v356, 16
      %v388 = vor.u32 %v386, %v384
      %v390 = vshll.u32 %v357, 16
      %v392 = vrot.slane %v390, 1
      %v393 = vsel %vm210, %v388, %v392
      %v394 = vshrl.u32 %v357, 16
      %v396 = vor.u32 %v394, %v392
      %v398 = vsel %vm250, %v369, 0
      %v401 = vsel %vm250, %v377, 0
      %v404 = vsel %vm250, %v385, 0
      %v407 = vsel %vm250, %v393, 0
      %v410 = vsel %vm250, %v396, 0
      %v413 = vsel %vm266, %v350, 0
      %415 = vmatpush.bf16.msra.mxu0 0
      %416 = vmatpush.bf16.msra.mxu0 0
      %417 = vmatpush.bf16.msra.mxu0 0
      %418 = vmatpush.bf16.msra.mxu0 0
      %419 = vmatpush.bf16.msra.mxu0 0
      %420 = vmatpush.bf16.msra.mxu0 0
      %421 = vmatpush.bf16.msra.mxu0 0
      %422 = vmatpush.bf16.msra.mxu0 %v413
      %423 = vmatmul.bf16.gmra.mxu0 %v398
      %v424 = vpop.f32.mrf.mxu0
      %v425 = vadd.f32 0.0, %v424
      %v426 = vpop.f32.mrf.mxu0
      %v427 = vadd.f32 0.0, %v426
      %428 = vmatmul.bf16.gmra.mxu0 %v401
      %v429 = vpop.f32.mrf.mxu0
      %v430 = vadd.f32 0.0, %v429
      %v431 = vpop.f32.mrf.mxu0
      %v432 = vadd.f32 0.0, %v431
      %433 = vmatmul.bf16.gmra.mxu0 %v404
      %v434 = vpop.f32.mrf.mxu0
      %v435 = vadd.f32 0.0, %v434
      %v436 = vpop.f32.mrf.mxu0
      %v437 = vadd.f32 0.0, %v436
      %438 = vmatmul.bf16.gmra.mxu0 %v407
      %v439 = vpop.f32.mrf.mxu0
      %v440 = vadd.f32 0.0, %v439
      %v441 = vpop.f32.mrf.mxu0
      %v442 = vadd.f32 0.0, %v441
      %443 = vmatmul.bf16.gmra.mxu0 %v410
      %v444 = vpop.f32.mrf.mxu0
      %v445 = vadd.f32 0.0, %v444
      %v446 = vpop.f32.mrf.mxu0
      %447 = vdwg.mxu0
      %v448 = vadd.f32 %v326, %v425
      %v449 = vadd.f32 %v328, %v427
      %v450 = vadd.f32 %v331, %v430
      %v451 = vadd.f32 %v333, %v432
      %v452 = vadd.f32 %v336, %v435
      %v453 = vadd.f32 %v338, %v437
      %v454 = vadd.f32 %v341, %v440
      %v455 = vadd.f32 %v343, %v442
      %v456 = vadd.f32 %v346, %v445
      %s457 = scalar_lea.vmem %s1, 6
      %v458 = vld [vmem:[%s457] sm:$0x3]
      %v460 = vunpack.c.l.b16 %v182
      %v461 = vpack.c.b16 %v460, %v352
      %vm462 = vcmask 1046528
      %v463 = vrot.slane %v353, 1
      %v464 = vrot.slane %v354, 1
      %v465 = vsel %vm462, %v463, %v464
      %v466 = vrot.slane %v355, 1
      %v467 = vsel %vm462, %v464, %v466
      %v468 = vrot.slane %v356, 1
      %v469 = vsel %vm462, %v466, %v468
      %v470 = vrot.slane %v461, 1
      %v471 = vsel %vm462, %v468, %v470
      %v473 = vsel %vm250, %v465, 0
      %v476 = vsel %vm250, %v467, 0
      %v479 = vsel %vm250, %v469, 0
      %v482 = vsel %vm250, %v471, 0
      %v485 = vsel %vm250, %v470, 0
      %v488 = vsel %vm266, %v458, 0
      %490 = vmatpush.bf16.msra.mxu0 0
      %491 = vmatpush.bf16.msra.mxu0 0
      %492 = vmatpush.bf16.msra.mxu0 0
      %493 = vmatpush.bf16.msra.mxu0 0
      %494 = vmatpush.bf16.msra.mxu0 0
      %495 = vmatpush.bf16.msra.mxu0 0
      %496 = vmatpush.bf16.msra.mxu0 0
      %497 = vmatpush.bf16.msra.mxu0 %v488
      %498 = vmatmul.bf16.gmra.mxu0 %v473
      %v499 = vpop.f32.mrf.mxu0
      %v500 = vadd.f32 0.0, %v499
      %v501 = vpop.f32.mrf.mxu0
      %v502 = vadd.f32 0.0, %v501
      %503 = vmatmul.bf16.gmra.mxu0 %v476
      %v504 = vpop.f32.mrf.mxu0
      %v505 = vadd.f32 0.0, %v504
      %v506 = vpop.f32.mrf.mxu0
      %v507 = vadd.f32 0.0, %v506
      %508 = vmatmul.bf16.gmra.mxu0 %v479
      %v509 = vpop.f32.mrf.mxu0
      %v510 = vadd.f32 0.0, %v509
      %v511 = vpop.f32.mrf.mxu0
      %v512 = vadd.f32 0.0, %v511
      %513 = vmatmul.bf16.gmra.mxu0 %v482
      %v514 = vpop.f32.mrf.mxu0
      %v515 = vadd.f32 0.0, %v514
      %v516 = vpop.f32.mrf.mxu0
      %v517 = vadd.f32 0.0, %v516
      %518 = vmatmul.bf16.gmra.mxu0 %v485
      %v519 = vpop.f32.mrf.mxu0
      %v520 = vadd.f32 0.0, %v519
      %v521 = vpop.f32.mrf.mxu0
      %522 = vdwg.mxu0
      %v523 = vadd.f32 %v448, %v500
      %v524 = vadd.f32 %v449, %v502
      %v525 = vadd.f32 %v450, %v505
      %v526 = vadd.f32 %v451, %v507
      %v527 = vadd.f32 %v452, %v510
      %v528 = vadd.f32 %v453, %v512
      %v529 = vadd.f32 %v454, %v515
      %v530 = vadd.f32 %v455, %v517
      %v531 = vadd.f32 %v456, %v520
      %v533 = vperm.slane %v183, 0
      %v535 = vadd.f32 %v523, %v533
      %v536 = vadd.f32 %v524, %v533
      %v537 = vadd.f32 %v525, %v533
      %v538 = vadd.f32 %v526, %v533
      %v539 = vadd.f32 %v527, %v533
      %v540 = vadd.f32 %v528, %v533
      %v541 = vadd.f32 %v529, %v533
      %v542 = vadd.f32 %v530, %v533
      %v543 = vadd.f32 %v531, %v533
      %vm544 = vcmp.ge.f32.partialorder %v535, 0.0
      %vm545 = vcmp.ge.f32.partialorder %v536, 0.0
      %vm546 = vcmp.ge.f32.partialorder %v537, 0.0
      %vm547 = vcmp.ge.f32.partialorder %v538, 0.0
      %vm548 = vcmp.ge.f32.partialorder %v539, 0.0
      %vm549 = vcmp.ge.f32.partialorder %v540, 0.0
      %vm550 = vcmp.ge.f32.partialorder %v541, 0.0
      %vm551 = vcmp.ge.f32.partialorder %v542, 0.0
      %vm552 = vcmp.ge.f32.partialorder %v543, 0.0
      %v553 = vmul.f32 %v535, 0.2
      %v554 = vmul.f32 %v536, 0.2
      %v555 = vmul.f32 %v537, 0.2
      %v556 = vmul.f32 %v538, 0.2
      %v557 = vmul.f32 %v539, 0.2
      %v558 = vmul.f32 %v540, 0.2
      %v559 = vmul.f32 %v541, 0.2
      %v560 = vmul.f32 %v542, 0.2
      %v561 = vmul.f32 %v543, 0.2
      %v562 = vsel %vm544, %v535, %v553
      %v563 = vsel %vm545, %v536, %v554
      %v564 = vsel %vm546, %v537, %v555
      %v565 = vsel %vm547, %v538, %v556
      %v566 = vsel %vm548, %v539, %v557
      %v567 = vsel %vm549, %v540, %v558
      %v568 = vsel %vm550, %v541, %v559
      %v569 = vsel %vm551, %v542, %v560
      %v570 = vsel %vm552, %v543, %v561
      %v571 = vpack.c.bf16 %v562, %v562
      %v572 = vpack.c.bf16 %v563, %v563
      %v573 = vpack.c.bf16 %v564, %v564
      %v574 = vpack.c.bf16 %v565, %v565
      %v575 = vpack.c.bf16 %v566, %v566
      %v576 = vpack.c.bf16 %v567, %v567
      %v577 = vpack.c.bf16 %v568, %v568
      %v578 = vpack.c.bf16 %v569, %v569
      %v579 = vpack.c.bf16 %v570, %v570
      %vm580 = vcmask 60416
      %581 = vst.msk [vmem:[%s170] sm:$0xf] %vm580, %v571
      %582 = vst.msk [vmem:[%s170 + $0x4] sm:$0xf] %vm580, %v572
      %583 = vst.msk [vmem:[%s170 + $0x8] sm:$0xf] %vm580, %v573
      %584 = vst.msk [vmem:[%s170 + $0xc] sm:$0xf] %vm580, %v574
      %585 = vst.msk [vmem:[%s170 + $0x10] sm:$0xf] %vm580, %v575
      %586 = vst.msk [vmem:[%s170 + $0x14] sm:$0xf] %vm580, %v576
      %587 = vst.msk [vmem:[%s170 + $0x18] sm:$0xf] %vm580, %v577
      %588 = vst.msk [vmem:[%s170 + $0x1c] sm:$0xf] %vm580, %v578
      %vm589 = vcmask 60416
      %vm590 = vsmask.f32 3328
      %vm591 = vmand %vm589, %vm590
      %v592 = vld [vmem:[%s170 + $0x20] sm:$0xf]
      %v593 = vsel %vm591, %v579, %v592
      %594 = vst [vmem:[%s170 + $0x20] sm:$0xf] %v593
      %p595 = scmp.lt.s32.totalorder %s14, 1
      %s596 = scalar_select %p595, %s14, 1
      %s597 = smul.addr %s596, 9
      %s598 = smul.addr %s597, 4
      %s599 = scalar_lea.vmem %s3, %s598
      // Predicated region
      $region33: #{unet_forward.9} parent=31 // pred_check
        %p600 = pneg %p100
      $region34: #{unet_forward.9} parent=31 // pred_check_branch
        %602 = sbr.rel (%p600) target = $region36
      $region35: #{unet_forward.9} parent=31 // pred_region
        _
      $region36: #{unet_forward.9} parent=31 // pred_fallthru
        _
    $region32: #{unet_forward.9} parent=5 // pred_fallthru
      _
    %p603 = scmp.le.s32.totalorder 2, %s9
    // Predicated region
    $region37: #{unet_forward.9} parent=5 // pred_check
      %p604 = pneg %p603
    $region38: #{unet_forward.9} parent=5 // pred_check_branch
      %606 = sbr.rel (%p604) target = $region40
    $region39: #{unet_forward.9} parent=5 // pred_region
      %s607 = ssub.s32 %s9, 2
      // Predicated region
      $region41: #{unet_forward.9} parent=39 // pred_check
        %p608 = pneg %p106
      $region42: #{unet_forward.9} parent=39 // pred_check_branch
        %610 = sbr.rel (%p608) target = $region44
      $region43: #{unet_forward.9} parent=39 // pred_region
        %p611 = scmp.lt.s32.totalorder %s15, 1
        %s612 = scalar_select %p611, %s15, 1
        %s613 = smul.addr %s612, 9
        %s614 = smul.addr %s613, 4
        %s615 = scalar_lea.vmem %s3, %s614
      $region44: #{unet_forward.9} parent=39 // pred_fallthru
        _
    $region40: #{unet_forward.9} parent=5 // pred_fallthru
      _
  $region6: #{unet_forward.9} parent=0 // loop_footer
    %s13 = sadd.s32 1, %s9
  $region7: #{unet_forward.9} parent=0 // loop_footer_branch
    %8 = sbr.rel target = $region3
  $region8: #{unet_forward.9} parent=0 // loop_exit
    _

// kernel: tile.23
$region0: #{tile.23}
  #allocation0 [shape = 's32[1]{0}', space=sflag, size = 0x4, scoped, tag = 'scoped memory for tile.23']
  %s0 = inlined_call_operand.vmem [shape: f32[16], index: 0, kind: input, shape index: {}]
  %s1 = inlined_call_operand.vmem [shape: f32[4,16], index: 1, kind: output, shape index: {}]
  // Predicated region
  $region2: #{tile.23} parent=0 // pred_check
    _
  $region3: #{tile.23} parent=0 // pred_check_branch
    %3 = sbr.rel (0) target = $region5
  $region4: #{tile.23} parent=0 // pred_region
    _
  $region5: #{tile.23} parent=0 // pred_fallthru
    _
  %v4 = vld [vmem:[%s0] ss:$0 sm:$0xff]
  %5 = vst [vmem:[%s1] sm:$0xf] %v4

// kernel: tile.28
$region0: #{tile.28}
  %s0 = inlined_call_operand.vmem [shape: f32[4,16], index: 0, kind: input, shape index: {}]
  %s1 = inlined_call_operand.vmem [shape: f32[1,64], index: 1, kind: output, shape index: {}]
  $region1: #{tile.28} parent=0
    #allocation0 [shape = 'u8[4096]{0}', space=vmem, size = 0x1000, scoped, tag = 'scoped mem for output reshape']
    #allocation1 [shape = 'u8[4096]{0}', space=vmem, size = 0x1000, scoped, tag = 'scoped mem for input reshape']
    %s3 = ssub.s32 16, 1
    %v4 = vld [vmem:[%s0] sm:%s3]
    %5 = vst [vmem:[#allocation1] sm:%s3] %v4
    %v6 = vld [vmem:[#allocation1] sm:$0x1]
    %vm7 = vcmask 130048
    %8 = vst.msk [vmem:[#allocation0] sm:$0x1] %vm7, %v6
    %s9 = scalar_lea.vmem [#allocation1], 3
    %v10 = vld [vmem:[%s9] sm:$0x1]
    %11 = vrot.lane.b32.xlu0 %v10, 48
    %v12 = vpop.permute.xlu0 %11
    %vm13 = vcmask 523648
    %14 = vst.msk [vmem:[#allocation0] sm:$0x1] %vm13, %v12
    %s15 = scalar_lea.vmem [#allocation1], 2
    %v16 = vld [vmem:[%s15] sm:$0x1]
    %17 = vrot.lane.b32.xlu0 %v16, 32
    %v18 = vpop.permute.xlu0 %17
    %vm19 = vcmask 392448
    %20 = vst.msk [vmem:[#allocation0] sm:$0x1] %vm19, %v18
    %s21 = scalar_lea.vmem [#allocation1], 1
    %v22 = vld [vmem:[%s21] sm:$0x1]
    %23 = vrot.lane.b32.xlu0 %v22, 16
    %v24 = vpop.permute.xlu0 %23
    %vm25 = vcmask 261248
    %26 = vst.msk [vmem:[#allocation0] sm:$0x1] %vm25, %v24
    %s28 = ssub.s32 2, 1
    %v29 = vld [vmem:[#allocation0] sm:%s28]
    %s31 = ssub.s32 2, 1
    %32 = vst [vmem:[%s1] sm:%s31] %v29

// kernel: unet_forward.10
$region0: #{unet_forward.10}
  #allocation0 [shape = 'u32[]', space=smem, size = 0x4, offset = 0x4, fixed_abs, tag = 'smem constant byte address 0x4 - core index']
  #allocation1 [shape = 'u32[72,128]{1,0:T(1,128)}', space=vmem, size = 0x9000, scoped, tag = 'internal scratch']
  %s0 = inlined_call_operand.vmem [shape: bf16[2,25,32], index: 0, kind: input, shape index: {}]
  %s1 = inlined_call_operand.vmem [shape: bf16[1,4,32,16], index: 1, kind: input, shape index: {}]
  %s2 = inlined_call_operand.vmem [shape: f32[1,16], index: 2, kind: input, shape index: {}]
  %s3 = inlined_call_operand.vmem [shape: bf16[2,19,16], index: 3, kind: output, shape index: {0}]
  %s4 = inlined_call_operand.vmem [shape: f32[2,1,16], index: 4, kind: output, shape index: {1}]
  %s5 = inlined_call_operand.vmem [shape: f32[2,1,16], index: 5, kind: output, shape index: {2}]
  %6 = xla_tuple %s3, %s4, %s5
  %s7 = sld [smem:[#allocation0]]
  $region61: #{unet_forward.10} parent=0
    _
  %s9 = ssub.s32 1, %s7
  %s10 = scalar_select 0, %s9, %s7
  loop: start=0, step=1, limit=4
  $region2: #{unet_forward.10} parent=0 // loop_pre_header
    _
  $region3: #{unet_forward.10} parent=0 // loop_header
    %s12 = sphi 0, %s16
    %p13 = scmp.ge.s32.totalorder %s12, 4
    %s22 = sphi 0, %s24
    %s25 = sphi 0, %s22
    %s26 = sphi 0, %s25
    %s42 = sphi 0, %s26
    %s46 = sphi 0, %s46
    %s48 = sphi 0, %s46
    %s49 = sphi 0, %s48
    %s63 = sphi 0, %s49
    %s67 = sphi 0, %s67
    %s69 = sphi 0, %s67
    %s70 = sphi 0, %s69
    %s84 = sphi 0, %s70
    %s90 = sphi 0, %s92
    %s93 = sphi 0, %s90
    %s94 = sphi 0, %s93
    %s110 = sphi 0, %s94
    %s116 = sphi 0, %s118
    %s119 = sphi 0, %s116
    %s120 = sphi 0, %s119
    %s136 = sphi 0, %s120
    %s142 = sphi 0, %s144
    %s145 = sphi 0, %s142
    %s146 = sphi 0, %s145
    %s162 = sphi 0, %s146
  $region4: #{unet_forward.10} parent=0 // loop_header_branch
    %15 = sbr.rel (%p13) target = $region8
  $region5: #{unet_forward.10} parent=0 // loop_body
    %s17 = ssub.s32 %s12, 1
    %s18 = ssub.s32 %s12, 2
    %s19 = sadd.s32 %s12, 1
    %s20 = ssub.s32 %s12, %s19
    %p21 = scmp.eq.s32.totalorder %s20, 0
    %s23 = sadd.s32 %s22, 1
    %s24 = scalar_select %p21, %s22, %s23
    %p27 = pneg %p21
    %p28 = scmp.eq.s32.totalorder %s12, 1
    %p29 = por %p27, %p28
    %p30 = scmp.ne.s32.totalorder %s22, %s25
    %p31 = scmp.eq.s32.totalorder %s12, 0
    %p32 = por %p30, %p31
    %p33 = scmp.ne.s32.totalorder %s22, %s25
    %p34 = scmp.eq.s32.totalorder %s17, 1
    %p35 = por %p33, %p34
    %p36 = scmp.ne.s32.totalorder %s25, %s26
    %p37 = scmp.eq.s32.totalorder %s17, 0
    %p38 = por %p36, %p37
    %p39 = scmp.ne.s32.totalorder %s25, %s26
    %p40 = scmp.eq.s32.totalorder %s18, 1
    %p41 = por %p39, %p40
    %p43 = scmp.ne.s32.totalorder %s26, %s42
    %p44 = scmp.eq.s32.totalorder %s18, 0
    %p45 = por %p43, %p44
    %s47 = sadd.s32 %s46, 1
    %p50 = scmp.eq.s32.totalorder %s12, 1
    %p51 = scmp.ne.s32.totalorder %s46, %s48
    %p52 = scmp.eq.s32.totalorder %s12, 0
    %p53 = por %p51, %p52
    %p54 = scmp.ne.s32.totalorder %s46, %s48
    %p55 = scmp.eq.s32.totalorder %s17, 1
    %p56 = por %p54, %p55
    %p57 = scmp.ne.s32.totalorder %s48, %s49
    %p58 = scmp.eq.s32.totalorder %s17, 0
    %p59 = por %p57, %p58
    %p60 = scmp.ne.s32.totalorder %s48, %s49
    %p61 = scmp.eq.s32.totalorder %s18, 1
    %p62 = por %p60, %p61
    %p64 = scmp.ne.s32.totalorder %s49, %s63
    %p65 = scmp.eq.s32.totalorder %s18, 0
    %p66 = por %p64, %p65
    %s68 = sadd.s32 %s67, 1
    %p71 = scmp.eq.s32.totalorder %s12, 1
    %p72 = scmp.ne.s32.totalorder %s67, %s69
    %p73 = scmp.eq.s32.totalorder %s12, 0
    %p74 = por %p72, %p73
    %p75 = scmp.ne.s32.totalorder %s67, %s69
    %p76 = scmp.eq.s32.totalorder %s17, 1
    %p77 = por %p75, %p76
    %p78 = scmp.ne.s32.totalorder %s69, %s70
    %p79 = scmp.eq.s32.totalorder %s17, 0
    %p80 = por %p78, %p79
    %p81 = scmp.ne.s32.totalorder %s69, %s70
    %p82 = scmp.eq.s32.totalorder %s18, 1
    %p83 = por %p81, %p82
    %p85 = scmp.ne.s32.totalorder %s70, %s84
    %p86 = scmp.eq.s32.totalorder %s18, 0
    %p87 = por %p85, %p86
    %s88 = ssub.s32 %s12, %s19
    %p89 = scmp.eq.s32.totalorder %s88, 0
    %s91 = sadd.s32 %s90, 1
    %s92 = scalar_select %p89, %s90, %s91
    %p95 = pneg %p89
    %p96 = scmp.eq.s32.totalorder %s12, 1
    %p97 = por %p95, %p96
    %p98 = scmp.ne.s32.totalorder %s90, %s93
    %p99 = scmp.eq.s32.totalorder %s12, 0
    %p100 = por %p98, %p99
    %p101 = scmp.ne.s32.totalorder %s90, %s93
    %p102 = scmp.eq.s32.totalorder %s17, 1
    %p103 = por %p101, %p102
    %p104 = scmp.ne.s32.totalorder %s93, %s94
    %p105 = scmp.eq.s32.totalorder %s17, 0
    %p106 = por %p104, %p105
    %p107 = scmp.ne.s32.totalorder %s93, %s94
    %p108 = scmp.eq.s32.totalorder %s18, 1
    %p109 = por %p107, %p108
    %p111 = scmp.ne.s32.totalorder %s94, %s110
    %p112 = scmp.eq.s32.totalorder %s18, 0
    %p113 = por %p111, %p112
    %s114 = ssub.s32 %s12, %s19
    %p115 = scmp.eq.s32.totalorder %s114, 0
    %s117 = sadd.s32 %s116, 1
    %s118 = scalar_select %p115, %s116, %s117
    %p121 = pneg %p115
    %p122 = scmp.eq.s32.totalorder %s12, 1
    %p123 = por %p121, %p122
    %p124 = scmp.ne.s32.totalorder %s116, %s119
    %p125 = scmp.eq.s32.totalorder %s12, 0
    %p126 = por %p124, %p125
    %p127 = scmp.ne.s32.totalorder %s116, %s119
    %p128 = scmp.eq.s32.totalorder %s17, 1
    %p129 = por %p127, %p128
    %p130 = scmp.ne.s32.totalorder %s119, %s120
    %p131 = scmp.eq.s32.totalorder %s17, 0
    %p132 = por %p130, %p131
    %p133 = scmp.ne.s32.totalorder %s119, %s120
    %p134 = scmp.eq.s32.totalorder %s18, 1
    %p135 = por %p133, %p134
    %p137 = scmp.ne.s32.totalorder %s120, %s136
    %p138 = scmp.eq.s32.totalorder %s18, 0
    %p139 = por %p137, %p138
    %s140 = ssub.s32 %s12, %s19
    %p141 = scmp.eq.s32.totalorder %s140, 0
    %s143 = sadd.s32 %s142, 1
    %s144 = scalar_select %p141, %s142, %s143
    %p147 = pneg %p141
    %p148 = scmp.eq.s32.totalorder %s12, 1
    %p149 = por %p147, %p148
    %p150 = scmp.ne.s32.totalorder %s142, %s145
    %p151 = scmp.eq.s32.totalorder %s12, 0
    %p152 = por %p150, %p151
    %p153 = scmp.ne.s32.totalorder %s142, %s145
    %p154 = scmp.eq.s32.totalorder %s17, 1
    %p155 = por %p153, %p154
    %p156 = scmp.ne.s32.totalorder %s145, %s146
    %p157 = scmp.eq.s32.totalorder %s17, 0
    %p158 = por %p156, %p157
    %p159 = scmp.ne.s32.totalorder %s145, %s146
    %p160 = scmp.eq.s32.totalorder %s18, 1
    %p161 = por %p159, %p160
    %p163 = scmp.ne.s32.totalorder %s146, %s162
    %p164 = scmp.eq.s32.totalorder %s18, 0
    %p165 = por %p163, %p164
    %p166 = scmp.le.s32.totalorder 1, %s12
    %p167 = scmp.lt.s32.totalorder %s12, 3
    %p168 = pnand %p166, %p167
    %p169 = pneg %p168
    // Predicated region
    $region9: #{unet_forward.10} parent=5 // pred_check
      _
    $region10: #{unet_forward.10} parent=5 // pred_check_branch
      %171 = sbr.rel (%p168) target = $region12
    $region11: #{unet_forward.10} parent=5 // pred_region
      %s172 = ssub.s32 %s12, 1
      // Predicated region
      $region13: #{unet_forward.10} parent=11 // pred_check
        %p173 = pneg %p59
      $region14: #{unet_forward.10} parent=11 // pred_check_branch
        %175 = sbr.rel (%p173) target = $region16
      $region15: #{unet_forward.10} parent=11 // pred_region
        _
      $region16: #{unet_forward.10} parent=11 // pred_fallthru
        _
      // Predicated region
      $region17: #{unet_forward.10} parent=11 // pred_check
        %p176 = pneg %p80
      $region18: #{unet_forward.10} parent=11 // pred_check_branch
        %178 = sbr.rel (%p176) target = $region20
      $region19: #{unet_forward.10} parent=11 // pred_region
        _
      $region20: #{unet_forward.10} parent=11 // pred_fallthru
        _
    $region12: #{unet_forward.10} parent=5 // pred_fallthru
      _
    %p179 = scmp.lt.s32.totalorder %s12, 2
    // Predicated region
    $region21: #{unet_forward.10} parent=5 // pred_check
      %p180 = pneg %p179
    $region22: #{unet_forward.10} parent=5 // pred_check_branch
      %182 = sbr.rel (%p180) target = $region24
    $region23: #{unet_forward.10} parent=5 // pred_region
      // Predicated region
      $region25: #{unet_forward.10} parent=23 // pred_check
        %p183 = pneg %p32
      $region26: #{unet_forward.10} parent=23 // pred_check_branch
        %185 = sbr.rel (%p183) target = $region28
      $region27: #{unet_forward.10} parent=23 // pred_region
        %p186 = scmp.lt.s32.totalorder %s12, 1
        %s187 = scalar_select %p186, %s12, 1
        %s188 = smul.addr %s187, 4
        %s189 = smul.addr %s188, 4
        %s190 = scalar_lea.vmem %s0, %s189
      $region28: #{unet_forward.10} parent=23 // pred_fallthru
        _
    $region24: #{unet_forward.10} parent=5 // pred_fallthru
      _
    %p191 = scmp.le.s32.totalorder 1, %s12
    %p192 = scmp.lt.s32.totalorder %s12, 3
    %p193 = pnand %p191, %p192
    %p194 = pneg %p193
    // Predicated region
    $region29: #{unet_forward.10} parent=5 // pred_check
      _
    $region30: #{unet_forward.10} parent=5 // pred_check_branch
      %196 = sbr.rel (%p193) target = $region32
    $region31: #{unet_forward.10} parent=5 // pred_region
      %s197 = ssub.s32 %s12, 1
      %p198 = scmp.lt.s32.totalorder %s17, 1
      %s199 = scalar_select %p198, %s17, 1
      %s200 = smul.addr %s199, 4
      %s201 = smul.addr %s200, 4
      %s202 = scalar_lea.vmem %s0, %s201
      %p203 = pneg %p38
      %p204 = pneg %p35
      %p205 = pneg %p59
      %p206 = pneg %p56
      %p207 = pneg %p80
      %p208 = pneg %p77
      %p209 = pneg %p106
      %p210 = pneg %p103
      %p211 = scmp.lt.s32.totalorder %s17, 1
      %s212 = scalar_select %p211, %s17, 1
      %s213 = smul.addr %s212, 3
      %s214 = smul.addr %s213, 4
      %s215 = scalar_lea.vmem %s3, %s214
      %p216 = pneg %p132
      %p217 = pneg %p129
      %p218 = scmp.lt.s32.totalorder %s17, 1
      %s219 = scalar_select %p218, %s17, 1
      %s220 = scalar_lea.vmem %s4, %s219
      %p221 = pneg %p158
      %p222 = pneg %p155
      %p223 = scmp.lt.s32.totalorder %s17, 1
      %s224 = scalar_select %p223, %s17, 1
      %s225 = scalar_lea.vmem %s5, %s224
      %p226 = scmp.lt.s32.totalorder %s17, 1
      %s227 = scalar_select %p226, %s17, 1
      %s228 = smul.addr %s227, 4
      %s229 = smul.addr %s228, 4
      %s230 = scalar_lea.vmem %s0, %s229
      %p231 = scmp.lt.s32.totalorder %s17, 1
      %s232 = scalar_select %p231, %s17, 1
      %s233 = smul.addr %s232, 3
      %s234 = smul.addr %s233, 4
      %s235 = scalar_lea.vmem %s3, %s234
      %p236 = scmp.lt.s32.totalorder %s17, 1
      %s237 = scalar_select %p236, %s17, 1
      %s238 = scalar_lea.vmem %s4, %s237
      %p239 = scmp.lt.s32.totalorder %s17, 1
      %s240 = scalar_select %p239, %s17, 1
      %s241 = scalar_lea.vmem %s5, %s240
      %v243 = vld [vmem:[%s230] sm:$0xf]
      %v244 = vld [vmem:[%s230 + $0x4] sm:$0xf]
      %v245 = vld [vmem:[%s230 + $0x8] sm:$0xf]
      %v246 = vld [vmem:[%s230 + $0xc] sm:$0x1]
      %v247 = vld [vmem:[%s2] sm:$0x1]
      %v248 = vlaneseq
      %v249 = vshrl.u32 %v248, 7
      %v250 = vadd.s32 %v249, 8
      %v251 = vadd.s32 %v249, 16
      %vm252 = vcmp.lt.s32.totalorder %v249, 0
      %v253 = vsub.s32 0, %v249
      %v254 = vsel %vm252, %v253, %v249
      %v255 = vand.u32 %v254, 65535
      %v256 = vshrl.u32 %v254, 16
      %v258 = vmul.u32 %v255, 52429
      %v259 = vmul.u32 %v255, 52428
      %v260 = vmul.u32 %v256, 52429
      %v261 = vmul.u32 %v256, 52428
      %v262 = vshll.u32 %v259, 16
      %v263 = vshrl.u32 %v259, 16
      %v264 = vshll.u32 %v260, 16
      %v265 = vshrl.u32 %v260, 16
      %vm266 = vc.u32 %v258, %v262
      %v267 = vsel %vm266, 1, 0
      %v268 = vadd.s32 %v258, %v262
      %v269 = vadd.s32 %v261, %v267
      %vm270 = vc.u32 %v268, %v264
      %v271 = vsel %vm270, 1, 0
      %v272 = vadd.s32 %v268, %v264
      %v273 = vadd.s32 %v269, %v271
      %v274 = vadd.s32 %v273, %v263
      %v275 = vadd.s32 %v274, %v265
      %v276 = vshrl.u32 %v275, 2
      %v277 = vmul.u32 %v276, 5
      %v278 = vsub.s32 %v254, %v277
      %v279 = vsub.s32 0, %v278
      %v280 = vsel %vm252, %v279, %v278
      %vm281 = vcmp.lt.s32.totalorder %v250, 0
      %v282 = vsub.s32 0, %v250
      %v283 = vsel %vm281, %v282, %v250
      %v284 = vand.u32 %v283, 65535
      %v285 = vshrl.u32 %v283, 16
      %v287 = vmul.u32 %v284, 52429
      %v288 = vmul.u32 %v284, 52428
      %v289 = vmul.u32 %v285, 52429
      %v290 = vmul.u32 %v285, 52428
      %v291 = vshll.u32 %v288, 16
      %v292 = vshrl.u32 %v288, 16
      %v293 = vshll.u32 %v289, 16
      %v294 = vshrl.u32 %v289, 16
      %vm295 = vc.u32 %v287, %v291
      %v296 = vsel %vm295, 1, 0
      %v297 = vadd.s32 %v287, %v291
      %v298 = vadd.s32 %v290, %v296
      %vm299 = vc.u32 %v297, %v293
      %v300 = vsel %vm299, 1, 0
      %v301 = vadd.s32 %v297, %v293
      %v302 = vadd.s32 %v298, %v300
      %v303 = vadd.s32 %v302, %v292
      %v304 = vadd.s32 %v303, %v294
      %v305 = vshrl.u32 %v304, 2
      %v306 = vmul.u32 %v305, 5
      %v307 = vsub.s32 %v283, %v306
      %v308 = vsub.s32 0, %v307
      %v309 = vsel %vm281, %v308, %v307
      %vm310 = vcmp.lt.s32.totalorder %v251, 0
      %v311 = vsub.s32 0, %v251
      %v312 = vsel %vm310, %v311, %v251
      %v313 = vand.u32 %v312, 65535
      %v314 = vshrl.u32 %v312, 16
      %v316 = vmul.u32 %v313, 52429
      %v317 = vmul.u32 %v313, 52428
      %v318 = vmul.u32 %v314, 52429
      %v319 = vmul.u32 %v314, 52428
      %v320 = vshll.u32 %v317, 16
      %v321 = vshrl.u32 %v317, 16
      %v322 = vshll.u32 %v318, 16
      %v323 = vshrl.u32 %v318, 16
      %vm324 = vc.u32 %v316, %v320
      %v325 = vsel %vm324, 1, 0
      %v326 = vadd.s32 %v316, %v320
      %v327 = vadd.s32 %v319, %v325
      %vm328 = vc.u32 %v326, %v322
      %v329 = vsel %vm328, 1, 0
      %v330 = vadd.s32 %v326, %v322
      %v331 = vadd.s32 %v327, %v329
      %v332 = vadd.s32 %v331, %v321
      %v333 = vadd.s32 %v332, %v323
      %v334 = vshrl.u32 %v333, 2
      %v335 = vmul.u32 %v334, 5
      %v336 = vsub.s32 %v312, %v335
      %v337 = vsub.s32 0, %v336
      %v338 = vsel %vm310, %v337, %v336
      %vm339 = vcmp.ne.s32.totalorder %v280, 0
      %vm340 = vcmp.ne.s32.totalorder %v309, 0
      %vm341 = vcmp.ne.s32.totalorder %v338, 0
      %vm342 = vcmp.lt.s32.totalorder %v280, 0
      %vm343 = vcmp.lt.s32.totalorder %v309, 0
      %vm344 = vcmp.lt.s32.totalorder %v338, 0
      %vm345 = vmand %vm342, %vm339
      %vm346 = vmand %vm343, %vm340
      %vm347 = vmand %vm344, %vm341
      %v348 = vadd.s32 %v280, 5
      %v349 = vadd.s32 %v309, 5
      %v350 = vadd.s32 %v338, 5
      %v351 = vsel %vm345, %v348, %v280
      %v352 = vsel %vm346, %v349, %v309
      %v353 = vsel %vm347, %v350, %v338
      %vm354 = vcmp.lt.s32.totalorder %v351, 4
      %vm355 = vcmp.lt.s32.totalorder %v352, 4
      %vm356 = vcmp.lt.s32.totalorder %v353, 4
      %v357 = vsel %vm354, 1, 0
      %v358 = vsel %vm355, 1, 0
      %v359 = vsel %vm356, 1, 0
      %v360 = vcvt.s32.f32 %v357
      %v361 = vcvt.s32.f32 %v358
      %v362 = vcvt.s32.f32 %v359
      %v363 = vld [vmem:[%s1] sm:$0xf]
      %v364 = vld [vmem:[%s1 + $0x4] sm:$0xf]
      %v365 = vld [vmem:[%s1 + $0x8] sm:$0xf]
      %v366 = vld [vmem:[%s1 + $0xc] sm:$0xf]
      %s367 = scalar_lea.vmem %s1, 16
      %v368 = vld [vmem:[%s367] sm:$0xf]
      %v369 = vld [vmem:[%s367 + $0x4] sm:$0xf]
      %v370 = vld [vmem:[%s367 + $0x8] sm:$0xf]
      %v371 = vld [vmem:[%s367 + $0xc] sm:$0xf]
      %v375 = vunpack.c.l.b16 %v243
      %v376 = vunpack.c.l.b16 %v244
      %v377 = vunpack.c.l.b16 %v245
      %v378 = vpack.c.b16 %v376, %v375
      %v379 = vpack.c.b16 %v377, %v377
      %vm380 = vsmask.f32 7424
      %v382 = vshrl.u32 %v378, 16
      %v384 = vshll.u32 %v378, 16
      %v386 = vrot.slane %v384, 1
      %v387 = vor.u32 %v382, %v386
      %v389 = vshll.u32 %v379, 16
      %v391 = vrot.slane %v389, 1
      %v392 = vsel %vm380, %v387, %v391
      %v393 = vshrl.u32 %v379, 16
      %v395 = vor.u32 %v393, %v391
      %v400 = vunpack.c.l.b16 %v368
      %v401 = vunpack.c.l.b16 %v369
      %v402 = vunpack.c.l.b16 %v370
      %v403 = vunpack.c.l.b16 %v371
      %v404 = vpack.c.b16 %v401, %v400
      %v405 = vpack.c.b16 %v403, %v402
      %vm408 = vcmask 261120
      %v410 = vsel %vm408, %v392, 0
      %v413 = vsel %vm408, %v395, 0
      %415 = vmatpush.bf16.msra.mxu0 0
      %416 = vmatpush.bf16.msra.mxu0 0
      %417 = vmatpush.bf16.msra.mxu0 0
      %418 = vmatpush.bf16.msra.mxu0 0
      %419 = vmatpush.bf16.msra.mxu0 0
      %420 = vmatpush.bf16.msra.mxu0 0
      %421 = vmatpush.bf16.msra.mxu0 %v405
      %422 = vmatpush.bf16.msra.mxu0 %v404
      %423 = vmatmul.bf16.gmra.mxu0 %v410
      %v424 = vpop.f32.mrf.mxu0
      %v425 = vadd.f32 0.0, %v424
      %v426 = vpop.f32.mrf.mxu0
      %v427 = vadd.f32 0.0, %v426
      %428 = vmatmul.bf16.gmra.mxu0 %v413
      %v429 = vpop.f32.mrf.mxu0
      %v430 = vadd.f32 0.0, %v429
      %v431 = vpop.f32.mrf.mxu0
      %432 = vdwg.mxu0
      %v437 = vunpack.c.l.b16 %v363
      %v438 = vunpack.c.l.b16 %v364
      %v439 = vunpack.c.l.b16 %v365
      %v440 = vunpack.c.l.b16 %v366
      %v441 = vpack.c.b16 %v438, %v437
      %v442 = vpack.c.b16 %v440, %v439
      %v445 = vsel %vm408, %v378, 0
      %v447 = vsel %vm408, %v379, 0
      %449 = vmatpush.bf16.msra.mxu0 0
      %450 = vmatpush.bf16.msra.mxu0 0
      %451 = vmatpush.bf16.msra.mxu0 0
      %452 = vmatpush.bf16.msra.mxu0 0
      %453 = vmatpush.bf16.msra.mxu0 0
      %454 = vmatpush.bf16.msra.mxu0 0
      %455 = vmatpush.bf16.msra.mxu0 %v442
      %456 = vmatpush.bf16.msra.mxu0 %v441
      %457 = vmatmul.bf16.gmra.mxu0 %v445
      %v458 = vpop.f32.mrf.mxu0
      %v459 = vadd.f32 %v425, %v458
      %v460 = vpop.f32.mrf.mxu0
      %v461 = vadd.f32 %v427, %v460
      %462 = vmatmul.bf16.gmra.mxu0 %v447
      %v463 = vpop.f32.mrf.mxu0
      %v464 = vadd.f32 %v430, %v463
      %v465 = vpop.f32.mrf.mxu0
      %466 = vdwg.mxu0
      %s467 = scalar_lea.vmem %s1, 32
      %v468 = vld [vmem:[%s467] sm:$0xf]
      %v469 = vld [vmem:[%s467 + $0x4] sm:$0xf]
      %v470 = vld [vmem:[%s467 + $0x8] sm:$0xf]
      %v471 = vld [vmem:[%s467 + $0xc] sm:$0xf]
      %vm472 = vsmask.f32 5376
      %v473 = vrot.slane %v382, 2
      %v474 = vrot.slane %v384, 3
      %v475 = vor.u32 %v473, %v474
      %v476 = vrot.slane %v393, 2
      %v477 = vrot.slane %v389, 3
      %v478 = vor.u32 %v476, %v477
      %v479 = vsel %vm472, %v475, %v478
      %v484 = vunpack.c.l.b16 %v468
      %v485 = vunpack.c.l.b16 %v469
      %v486 = vunpack.c.l.b16 %v470
      %v487 = vunpack.c.l.b16 %v471
      %v488 = vpack.c.b16 %v485, %v484
      %v489 = vpack.c.b16 %v487, %v486
      %v493 = vsel %vm408, %v479, 0
      %v496 = vsel %vm408, %v478, 0
      %498 = vmatpush.bf16.msra.mxu0 0
      %499 = vmatpush.bf16.msra.mxu0 0
      %500 = vmatpush.bf16.msra.mxu0 0
      %501 = vmatpush.bf16.msra.mxu0 0
      %502 = vmatpush.bf16.msra.mxu0 0
      %503 = vmatpush.bf16.msra.mxu0 0
      %504 = vmatpush.bf16.msra.mxu0 %v489
      %505 = vmatpush.bf16.msra.mxu0 %v488
      %506 = vmatmul.bf16.gmra.mxu0 %v493
      %v507 = vpop.f32.mrf.mxu0
      %v508 = vadd.f32 0.0, %v507
      %v509 = vpop.f32.mrf.mxu0
      %v510 = vadd.f32 0.0, %v509
      %511 = vmatmul.bf16.gmra.mxu0 %v496
      %v512 = vpop.f32.mrf.mxu0
      %v513 = vadd.f32 0.0, %v512
      %v514 = vpop.f32.mrf.mxu0
      %515 = vdwg.mxu0
      %v516 = vadd.f32 %v459, %v508
      %v517 = vadd.f32 %v461, %v510
      %v518 = vadd.f32 %v464, %v513
      %s519 = scalar_lea.vmem %s1, 48
      %v520 = vld [vmem:[%s519] sm:$0xf]
      %v521 = vld [vmem:[%s519 + $0x4] sm:$0xf]
      %v522 = vld [vmem:[%s519 + $0x8] sm:$0xf]
      %v523 = vld [vmem:[%s519 + $0xc] sm:$0xf]
      %v525 = vunpack.c.l.b16 %v246
      %v526 = vpack.c.b16 %v525, %v377
      %vm527 = vcmask 1044480
      %v528 = vrot.slane %v378, 3
      %v529 = vrot.slane %v526, 3
      %v530 = vsel %vm527, %v528, %v529
      %v535 = vunpack.c.l.b16 %v520
      %v536 = vunpack.c.l.b16 %v521
      %v537 = vunpack.c.l.b16 %v522
      %v538 = vunpack.c.l.b16 %v523
      %v539 = vpack.c.b16 %v536, %v535
      %v540 = vpack.c.b16 %v538, %v537
      %v544 = vsel %vm408, %v530, 0
      %v547 = vsel %vm408, %v529, 0
      %549 = vmatpush.bf16.msra.mxu0 0
      %550 = vmatpush.bf16.msra.mxu0 0
      %551 = vmatpush.bf16.msra.mxu0 0
      %552 = vmatpush.bf16.msra.mxu0 0
      %553 = vmatpush.bf16.msra.mxu0 0
      %554 = vmatpush.bf16.msra.mxu0 0
      %555 = vmatpush.bf16.msra.mxu0 %v540
      %556 = vmatpush.bf16.msra.mxu0 %v539
      %557 = vmatmul.bf16.gmra.mxu0 %v544
      %v558 = vpop.f32.mrf.mxu0
      %v559 = vadd.f32 0.0, %v558
      %v560 = vpop.f32.mrf.mxu0
      %v561 = vadd.f32 0.0, %v560
      %562 = vmatmul.bf16.gmra.mxu0 %v547
      %v563 = vpop.f32.mrf.mxu0
      %v564 = vadd.f32 0.0, %v563
      %v565 = vpop.f32.mrf.mxu0
      %566 = vdwg.mxu0
      %v567 = vadd.f32 %v516, %v559
      %v568 = vadd.f32 %v517, %v561
      %v569 = vadd.f32 %v518, %v564
      %v571 = vperm.slane %v247, 0
      %v573 = vadd.f32 %v567, %v571
      %v574 = vadd.f32 %v568, %v571
      %v575 = vadd.f32 %v569, %v571
      %v576 = vmul.f32 %v573, %v360
      %v577 = vmul.f32 %v574, %v361
      %v578 = vmul.f32 %v575, %v362
      %vm579 = vcmask 130048
      %v580 = vsel %vm579, %v576, 0.0
      %v581 = vsel %vm579, %v577, 0.0
      %v582 = vadd.f32 %v580, %v581
      %vm583 = vcmask 124928
      %v584 = vsel %vm583, %v578, 0.0
      %v585 = vadd.f32 %v582, %v584
      %v586 = vrot.slane %v585, 4
      %v587 = vadd.f32 %v585, %v586
      %v588 = vrot.slane %v587, 2
      %v589 = vadd.f32 %v587, %v588
      %v590 = vrot.slane %v589, 1
      %v591 = vadd.f32 %v589, %v590
      %v592 = vadd.f32 %v591, 0.0
      %v593 = vmul.f32 %v573, %v576
      %v594 = vmul.f32 %v574, %v577
      %v595 = vmul.f32 %v575, %v578
      %v596 = vsel %vm579, %v593, 0.0
      %v597 = vsel %vm579, %v594, 0.0
      %v598 = vadd.f32 %v596, %v597
      %v599 = vsel %vm583, %v595, 0.0
      %v600 = vadd.f32 %v598, %v599
      %v601 = vrot.slane %v600, 4
      %v602 = vadd.f32 %v600, %v601
      %v603 = vrot.slane %v602, 2
      %v604 = vadd.f32 %v602, %v603
      %v605 = vrot.slane %v604, 1
      %v606 = vadd.f32 %v604, %v605
      %v607 = vadd.f32 %v606, 0.0
      %v608 = vpack.c.bf16 %v573, %v573
      %v609 = vpack.c.bf16 %v574, %v574
      %v610 = vpack.c.bf16 %v575, %v575
      %vm611 = vcmask 125952
      %612 = vst.msk [vmem:[%s235] sm:$0xf] %vm611, %v608
      %613 = vst.msk [vmem:[%s235 + $0x4] sm:$0xf] %vm611, %v609
      %vm614 = vcmask 123904
      %vm615 = vsmask.f32 1280
      %vm616 = vmand %vm614, %vm615
      %v617 = vld [vmem:[%s235 + $0x8] sm:$0x3]
      %v618 = vsel %vm616, %v610, %v617
      %619 = vst [vmem:[%s235 + $0x8] sm:$0x3] %v618
      %vm620 = vcmask 122880
      %621 = vst.msk [vmem:[%s238] sm:$0x1] %vm620, %v592
      %622 = vst.msk [vmem:[%s241] sm:$0x1] %vm620, %v607
      %p623 = scmp.lt.s32.totalorder %s17, 1
      %s624 = scalar_select %p623, %s17, 1
      %s625 = smul.addr %s624, 3
      %s626 = smul.addr %s625, 4
      %s627 = scalar_lea.vmem %s3, %s626
      %p628 = scmp.lt.s32.totalorder %s17, 1
      %s629 = scalar_select %p628, %s17, 1
      %s630 = scalar_lea.vmem %s4, %s629
      %p631 = scmp.lt.s32.totalorder %s17, 1
      %s632 = scalar_select %p631, %s17, 1
      %s633 = scalar_lea.vmem %s5, %s632
      // Predicated region
      $region33: #{unet_forward.10} parent=31 // pred_check
        %p634 = pneg %p103
      $region34: #{unet_forward.10} parent=31 // pred_check_branch
        %636 = sbr.rel (%p634) target = $region36
      $region35: #{unet_forward.10} parent=31 // pred_region
        _
      $region36: #{unet_forward.10} parent=31 // pred_fallthru
        _
      // Predicated region
      $region37: #{unet_forward.10} parent=31 // pred_check
        %p637 = pneg %p129
      $region38: #{unet_forward.10} parent=31 // pred_check_branch
        %639 = sbr.rel (%p637) target = $region40
      $region39: #{unet_forward.10} parent=31 // pred_region
        _
      $region40: #{unet_forward.10} parent=31 // pred_fallthru
        _
      // Predicated region
      $region41: #{unet_forward.10} parent=31 // pred_check
        %p640 = pneg %p155
      $region42: #{unet_forward.10} parent=31 // pred_check_branch
        %642 = sbr.rel (%p640) target = $region44
      $region43: #{unet_forward.10} parent=31 // pred_region
        _
      $region44: #{unet_forward.10} parent=31 // pred_fallthru
        _
    $region32: #{unet_forward.10} parent=5 // pred_fallthru
      _
    %p643 = scmp.le.s32.totalorder 2, %s12
    // Predicated region
    $region45: #{unet_forward.10} parent=5 // pred_check
      %p644 = pneg %p643
    $region46: #{unet_forward.10} parent=5 // pred_check_branch
      %646 = sbr.rel (%p644) target = $region48
    $region47: #{unet_forward.10} parent=5 // pred_region
      %s647 = ssub.s32 %s12, 2
      // Predicated region
      $region49: #{unet_forward.10} parent=47 // pred_check
        %p648 = pneg %p109
      $region50: #{unet_forward.10} parent=47 // pred_check_branch
        %650 = sbr.rel (%p648) target = $region52
      $region51: #{unet_forward.10} parent=47 // pred_region
        %p651 = scmp.lt.s32.totalorder %s18, 1
        %s652 = scalar_select %p651, %s18, 1
        %s653 = smul.addr %s652, 3
        %s654 = smul.addr %s653, 4
        %s655 = scalar_lea.vmem %s3, %s654
      $region52: #{unet_forward.10} parent=47 // pred_fallthru
        _
      // Predicated region
      $region53: #{unet_forward.10} parent=47 // pred_check
        %p656 = pneg %p135
      $region54: #{unet_forward.10} parent=47 // pred_check_branch
        %658 = sbr.rel (%p656) target = $region56
      $region55: #{unet_forward.10} parent=47 // pred_region
        %p659 = scmp.lt.s32.totalorder %s18, 1
        %s660 = scalar_select %p659, %s18, 1
        %s661 = scalar_lea.vmem %s4, %s660
      $region56: #{unet_forward.10} parent=47 // pred_fallthru
        _
      // Predicated region
      $region57: #{unet_forward.10} parent=47 // pred_check
        %p662 = pneg %p161
      $region58: #{unet_forward.10} parent=47 // pred_check_branch
        %664 = sbr.rel (%p662) target = $region60
      $region59: #{unet_forward.10} parent=47 // pred_region
        %p665 = scmp.lt.s32.totalorder %s18, 1
        %s666 = scalar_select %p665, %s18, 1
        %s667 = scalar_lea.vmem %s5, %s666
      $region60: #{unet_forward.10} parent=47 // pred_fallthru
        _
    $region48: #{unet_forward.10} parent=5 // pred_fallthru
      _
  $region6: #{unet_forward.10} parent=0 // loop_footer
    %s16 = sadd.s32 1, %s12
  $region7: #{unet_forward.10} parent=0 // loop_footer_branch
    %11 = sbr.rel target = $region3
  $region8: #{unet_forward.10} parent=0 // loop_exit
    _

// kernel: tile.33
$region0: #{tile.33}
  #allocation0 [shape = 's32[1]{0}', space=sflag, size = 0x4, scoped, tag = 'scoped memory for tile.33']
  %s0 = inlined_call_operand.vmem [shape: f32[32], index: 0, kind: input, shape index: {}]
  %s1 = inlined_call_operand.vmem [shape: f32[4,32], index: 1, kind: output, shape index: {}]
  // Predicated region
  $region2: #{tile.33} parent=0 // pred_check
    _
  $region3: #{tile.33} parent=0 // pred_check_branch
    %3 = sbr.rel (0) target = $region5
  $region4: #{tile.33} parent=0 // pred_region
    _
  $region5: #{tile.33} parent=0 // pred_fallthru
    _
  %v4 = vld [vmem:[%s0] ss:$0 sm:$0xff]
  %5 = vst [vmem:[%s1] sm:$0xf] %v4

// kernel: tile.38
$region0: #{tile.38}
  %s0 = inlined_call_operand.vmem [shape: f32[4,32], index: 0, kind: input, shape index: {}]
  %s1 = inlined_call_operand.vmem [shape: f32[1,128], index: 1, kind: output, shape index: {}]
  $region1: #{tile.38} parent=0
    #allocation0 [shape = 'u8[4096]{0}', space=vmem, size = 0x1000, scoped, tag = 'scoped mem for output reshape']
    #allocation1 [shape = 'u8[4096]{0}', space=vmem, size = 0x1000, scoped, tag = 'scoped mem for input reshape']
    %s3 = ssub.s32 16, 1
    %v4 = vld [vmem:[%s0] sm:%s3]
    %5 = vst [vmem:[#allocation1] sm:%s3] %v4
    %v6 = vld [vmem:[#allocation1] sm:$0x1]
    %vm7 = vcmask 261120
    %8 = vst.msk [vmem:[#allocation0] sm:$0x1] %vm7, %v6
    %s9 = scalar_lea.vmem [#allocation1], 3
    %v10 = vld [vmem:[%s9] sm:$0x1]
    %11 = vrot.lane.b32.xlu0 %v10, 96
    %v12 = vpop.permute.xlu0 %11
    %vm13 = vcmask 1048320
    %14 = vst.msk [vmem:[#allocation0] sm:$0x1] %vm13, %v12
    %s15 = scalar_lea.vmem [#allocation1], 2
    %v16 = vld [vmem:[%s15] sm:$0x1]
    %17 = vrot.lane.b32.xlu0 %v16, 64
    %v18 = vpop.permute.xlu0 %17
    %vm19 = vcmask 785920
    %20 = vst.msk [vmem:[#allocation0] sm:$0x1] %vm19, %v18
    %s21 = scalar_lea.vmem [#allocation1], 1
    %v22 = vld [vmem:[%s21] sm:$0x1]
    %23 = vrot.lane.b32.xlu0 %v22, 32
    %v24 = vpop.permute.xlu0 %23
    %vm25 = vcmask 523520
    %26 = vst.msk [vmem:[#allocation0] sm:$0x1] %vm25, %v24
    %s28 = ssub.s32 2, 1
    %v29 = vld [vmem:[#allocation0] sm:%s28]
    %s31 = ssub.s32 2, 1
    %32 = vst [vmem:[%s1] sm:%s31] %v29

// kernel: unet_forward.11
$region0: #{unet_forward.11}
  #allocation0 [shape = 'u32[]', space=smem, size = 0x4, offset = 0x4, fixed_abs, tag = 'smem constant byte address 0x4 - core index']
  #allocation1 [shape = 'u32[72,128]{1,0:T(1,128)}', space=vmem, size = 0x9000, scoped, tag = 'internal scratch']
  %s0 = inlined_call_operand.vmem [shape: bf16[2,9,64], index: 0, kind: input, shape index: {}]
  %s1 = inlined_call_operand.vmem [shape: bf16[1,4,64,32], index: 1, kind: input, shape index: {}]
  %s2 = inlined_call_operand.vmem [shape: f32[1,32], index: 2, kind: input, shape index: {}]
  %s3 = inlined_call_operand.vmem [shape: f32[1,64], index: 3, kind: input, shape index: {}]
  %s4 = inlined_call_operand.vmem [shape: f32[1,64], index: 4, kind: input, shape index: {}]
  %s5 = inlined_call_operand.vmem [shape: bf16[2,5,32], index: 5, kind: output, shape index: {0}]
  %s6 = inlined_call_operand.vmem [shape: f32[2,1,32], index: 6, kind: output, shape index: {1}]
  %s7 = inlined_call_operand.vmem [shape: f32[2,1,32], index: 7, kind: output, shape index: {2}]
  %8 = xla_tuple %s5, %s6, %s7
  %s9 = sld [smem:[#allocation0]]
  $region69: #{unet_forward.11} parent=0
    _
  %s11 = ssub.s32 1, %s9
  %s12 = scalar_select 0, %s11, %s9
  loop: start=0, step=1, limit=4
  $region2: #{unet_forward.11} parent=0 // loop_pre_header
    _
  $region3: #{unet_forward.11} parent=0 // loop_header
    %s14 = sphi 0, %s18
    %p15 = scmp.ge.s32.totalorder %s14, 4
    %s24 = sphi 0, %s26
    %s27 = sphi 0, %s24
    %s28 = sphi 0, %s27
    %s44 = sphi 0, %s28
    %s48 = sphi 0, %s48
    %s50 = sphi 0, %s48
    %s51 = sphi 0, %s50
    %s65 = sphi 0, %s51
    %s69 = sphi 0, %s69
    %s71 = sphi 0, %s69
    %s72 = sphi 0, %s71
    %s86 = sphi 0, %s72
    %s90 = sphi 0, %s90
    %s92 = sphi 0, %s90
    %s93 = sphi 0, %s92
    %s107 = sphi 0, %s93
    %s111 = sphi 0, %s111
    %s113 = sphi 0, %s111
    %s114 = sphi 0, %s113
    %s128 = sphi 0, %s114
    %s134 = sphi 0, %s136
    %s137 = sphi 0, %s134
    %s138 = sphi 0, %s137
    %s154 = sphi 0, %s138
    %s160 = sphi 0, %s162
    %s163 = sphi 0, %s160
    %s164 = sphi 0, %s163
    %s180 = sphi 0, %s164
    %s186 = sphi 0, %s188
    %s189 = sphi 0, %s186
    %s190 = sphi 0, %s189
    %s206 = sphi 0, %s190
  $region4: #{unet_forward.11} parent=0 // loop_header_branch
    %17 = sbr.rel (%p15) target = $region8
  $region5: #{unet_forward.11} parent=0 // loop_body
    %s19 = ssub.s32 %s14, 1
    %s20 = ssub.s32 %s14, 2
    %s21 = sadd.s32 %s14, 1
    %s22 = ssub.s32 %s14, %s21
    %p23 = scmp.eq.s32.totalorder %s22, 0
    %s25 = sadd.s32 %s24, 1
    %s26 = scalar_select %p23, %s24, %s25
    %p29 = pneg %p23
    %p30 = scmp.eq.s32.totalorder %s14, 1
    %p31 = por %p29, %p30
    %p32 = scmp.ne.s32.totalorder %s24, %s27
    %p33 = scmp.eq.s32.totalorder %s14, 0
    %p34 = por %p32, %p33
    %p35 = scmp.ne.s32.totalorder %s24, %s27
    %p36 = scmp.eq.s32.totalorder %s19, 1
    %p37 = por %p35, %p36
    %p38 = scmp.ne.s32.totalorder %s27, %s28
    %p39 = scmp.eq.s32.totalorder %s19, 0
    %p40 = por %p38, %p39
    %p41 = scmp.ne.s32.totalorder %s27, %s28
    %p42 = scmp.eq.s32.totalorder %s20, 1
    %p43 = por %p41, %p42
    %p45 = scmp.ne.s32.totalorder %s28, %s44
    %p46 = scmp.eq.s32.totalorder %s20, 0
    %p47 = por %p45, %p46
    %s49 = sadd.s32 %s48, 1
    %p52 = scmp.eq.s32.totalorder %s14, 1
    %p53 = scmp.ne.s32.totalorder %s48, %s50
    %p54 = scmp.eq.s32.totalorder %s14, 0
    %p55 = por %p53, %p54
    %p56 = scmp.ne.s32.totalorder %s48, %s50
    %p57 = scmp.eq.s32.totalorder %s19, 1
    %p58 = por %p56, %p57
    %p59 = scmp.ne.s32.totalorder %s50, %s51
    %p60 = scmp.eq.s32.totalorder %s19, 0
    %p61 = por %p59, %p60
    %p62 = scmp.ne.s32.totalorder %s50, %s51
    %p63 = scmp.eq.s32.totalorder %s20, 1
    %p64 = por %p62, %p63
    %p66 = scmp.ne.s32.totalorder %s51, %s65
    %p67 = scmp.eq.s32.totalorder %s20, 0
    %p68 = por %p66, %p67
    %s70 = sadd.s32 %s69, 1
    %p73 = scmp.eq.s32.totalorder %s14, 1
    %p74 = scmp.ne.s32.totalorder %s69, %s71
    %p75 = scmp.eq.s32.totalorder %s14, 0
    %p76 = por %p74, %p75
    %p77 = scmp.ne.s32.totalorder %s69, %s71
    %p78 = scmp.eq.s32.totalorder %s19, 1
    %p79 = por %p77, %p78
    %p80 = scmp.ne.s32.totalorder %s71, %s72
    %p81 = scmp.eq.s32.totalorder %s19, 0
    %p82 = por %p80, %p81
    %p83 = scmp.ne.s32.totalorder %s71, %s72
    %p84 = scmp.eq.s32.totalorder %s20, 1
    %p85 = por %p83, %p84
    %p87 = scmp.ne.s32.totalorder %s72, %s86
    %p88 = scmp.eq.s32.totalorder %s20, 0
    %p89 = por %p87, %p88
    %s91 = sadd.s32 %s90, 1
    %p94 = scmp.eq.s32.totalorder %s14, 1
    %p95 = scmp.ne.s32.totalorder %s90, %s92
    %p96 = scmp.eq.s32.totalorder %s14, 0
    %p97 = por %p95, %p96
    %p98 = scmp.ne.s32.totalorder %s90, %s92
    %p99 = scmp.eq.s32.totalorder %s19, 1
    %p100 = por %p98, %p99
    %p101 = scmp.ne.s32.totalorder %s92, %s93
    %p102 = scmp.eq.s32.totalorder %s19, 0
    %p103 = por %p101, %p102
    %p104 = scmp.ne.s32.totalorder %s92, %s93
    %p105 = scmp.eq.s32.totalorder %s20, 1
    %p106 = por %p104, %p105
    %p108 = scmp.ne.s32.totalorder %s93, %s107
    %p109 = scmp.eq.s32.totalorder %s20, 0
    %p110 = por %p108, %p109
    %s112 = sadd.s32 %s111, 1
    %p115 = scmp.eq.s32.totalorder %s14, 1
    %p116 = scmp.ne.s32.totalorder %s111, %s113
    %p117 = scmp.eq.s32.totalorder %s14, 0
    %p118 = por %p116, %p117
    %p119 = scmp.ne.s32.totalorder %s111, %s113
    %p120 = scmp.eq.s32.totalorder %s19, 1
    %p121 = por %p119, %p120
    %p122 = scmp.ne.s32.totalorder %s113, %s114
    %p123 = scmp.eq.s32.totalorder %s19, 0
    %p124 = por %p122, %p123
    %p125 = scmp.ne.s32.totalorder %s113, %s114
    %p126 = scmp.eq.s32.totalorder %s20, 1
    %p127 = por %p125, %p126
    %p129 = scmp.ne.s32.totalorder %s114, %s128
    %p130 = scmp.eq.s32.totalorder %s20, 0
    %p131 = por %p129, %p130
    %s132 = ssub.s32 %s14, %s21
    %p133 = scmp.eq.s32.totalorder %s132, 0
    %s135 = sadd.s32 %s134, 1
    %s136 = scalar_select %p133, %s134, %s135
    %p139 = pneg %p133
    %p140 = scmp.eq.s32.totalorder %s14, 1
    %p141 = por %p139, %p140
    %p142 = scmp.ne.s32.totalorder %s134, %s137
    %p143 = scmp.eq.s32.totalorder %s14, 0
    %p144 = por %p142, %p143
    %p145 = scmp.ne.s32.totalorder %s134, %s137
    %p146 = scmp.eq.s32.totalorder %s19, 1
    %p147 = por %p145, %p146
    %p148 = scmp.ne.s32.totalorder %s137, %s138
    %p149 = scmp.eq.s32.totalorder %s19, 0
    %p150 = por %p148, %p149
    %p151 = scmp.ne.s32.totalorder %s137, %s138
    %p152 = scmp.eq.s32.totalorder %s20, 1
    %p153 = por %p151, %p152
    %p155 = scmp.ne.s32.totalorder %s138, %s154
    %p156 = scmp.eq.s32.totalorder %s20, 0
    %p157 = por %p155, %p156
    %s158 = ssub.s32 %s14, %s21
    %p159 = scmp.eq.s32.totalorder %s158, 0
    %s161 = sadd.s32 %s160, 1
    %s162 = scalar_select %p159, %s160, %s161
    %p165 = pneg %p159
    %p166 = scmp.eq.s32.totalorder %s14, 1
    %p167 = por %p165, %p166
    %p168 = scmp.ne.s32.totalorder %s160, %s163
    %p169 = scmp.eq.s32.totalorder %s14, 0
    %p170 = por %p168, %p169
    %p171 = scmp.ne.s32.totalorder %s160, %s163
    %p172 = scmp.eq.s32.totalorder %s19, 1
    %p173 = por %p171, %p172
    %p174 = scmp.ne.s32.totalorder %s163, %s164
    %p175 = scmp.eq.s32.totalorder %s19, 0
    %p176 = por %p174, %p175
    %p177 = scmp.ne.s32.totalorder %s163, %s164
    %p178 = scmp.eq.s32.totalorder %s20, 1
    %p179 = por %p177, %p178
    %p181 = scmp.ne.s32.totalorder %s164, %s180
    %p182 = scmp.eq.s32.totalorder %s20, 0
    %p183 = por %p181, %p182
    %s184 = ssub.s32 %s14, %s21
    %p185 = scmp.eq.s32.totalorder %s184, 0
    %s187 = sadd.s32 %s186, 1
    %s188 = scalar_select %p185, %s186, %s187
    %p191 = pneg %p185
    %p192 = scmp.eq.s32.totalorder %s14, 1
    %p193 = por %p191, %p192
    %p194 = scmp.ne.s32.totalorder %s186, %s189
    %p195 = scmp.eq.s32.totalorder %s14, 0
    %p196 = por %p194, %p195
    %p197 = scmp.ne.s32.totalorder %s186, %s189
    %p198 = scmp.eq.s32.totalorder %s19, 1
    %p199 = por %p197, %p198
    %p200 = scmp.ne.s32.totalorder %s189, %s190
    %p201 = scmp.eq.s32.totalorder %s19, 0
    %p202 = por %p200, %p201
    %p203 = scmp.ne.s32.totalorder %s189, %s190
    %p204 = scmp.eq.s32.totalorder %s20, 1
    %p205 = por %p203, %p204
    %p207 = scmp.ne.s32.totalorder %s190, %s206
    %p208 = scmp.eq.s32.totalorder %s20, 0
    %p209 = por %p207, %p208
    %p210 = scmp.le.s32.totalorder 1, %s14
    %p211 = scmp.lt.s32.totalorder %s14, 3
    %p212 = pnand %p210, %p211
    %p213 = pneg %p212
    // Predicated region
    $region9: #{unet_forward.11} parent=5 // pred_check
      _
    $region10: #{unet_forward.11} parent=5 // pred_check_branch
      %215 = sbr.rel (%p212) target = $region12
    $region11: #{unet_forward.11} parent=5 // pred_region
      %s216 = ssub.s32 %s14, 1
      // Predicated region
      $region13: #{unet_forward.11} parent=11 // pred_check
        %p217 = pneg %p61
      $region14: #{unet_forward.11} parent=11 // pred_check_branch
        %219 = sbr.rel (%p217) target = $region16
      $region15: #{unet_forward.11} parent=11 // pred_region
        _
      $region16: #{unet_forward.11} parent=11 // pred_fallthru
        _
      // Predicated region
      $region17: #{unet_forward.11} parent=11 // pred_check
        %p220 = pneg %p82
      $region18: #{unet_forward.11} parent=11 // pred_check_branch
        %222 = sbr.rel (%p220) target = $region20
      $region19: #{unet_forward.11} parent=11 // pred_region
        _
      $region20: #{unet_forward.11} parent=11 // pred_fallthru
        _
      // Predicated region
      $region21: #{unet_forward.11} parent=11 // pred_check
        %p223 = pneg %p103
      $region22: #{unet_forward.11} parent=11 // pred_check_branch
        %225 = sbr.rel (%p223) target = $region24
      $region23: #{unet_forward.11} parent=11 // pred_region
        _
      $region24: #{unet_forward.11} parent=11 // pred_fallthru
        _
      // Predicated region
      $region25: #{unet_forward.11} parent=11 // pred_check
        %p226 = pneg %p124
      $region26: #{unet_forward.11} parent=11 // pred_check_branch
        %228 = sbr.rel (%p226) target = $region28
      $region27: #{unet_forward.11} parent=11 // pred_region
        _
      $region28: #{unet_forward.11} parent=11 // pred_fallthru
        _
    $region12: #{unet_forward.11} parent=5 // pred_fallthru
      _
    %p229 = scmp.lt.s32.totalorder %s14, 2
    // Predicated region
    $region29: #{unet_forward.11} parent=5 // pred_check
      %p230 = pneg %p229
    $region30: #{unet_forward.11} parent=5 // pred_check_branch
      %232 = sbr.rel (%p230) target = $region32
    $region31: #{unet_forward.11} parent=5 // pred_region
      // Predicated region
      $region33: #{unet_forward.11} parent=31 // pred_check
        %p233 = pneg %p34
      $region34: #{unet_forward.11} parent=31 // pred_check_branch
        %235 = sbr.rel (%p233) target = $region36
      $region35: #{unet_forward.11} parent=31 // pred_region
        %p236 = scmp.lt.s32.totalorder %s14, 1
        %s237 = scalar_select %p236, %s14, 1
        %s238 = smul.addr %s237, 2
        %s239 = smul.addr %s238, 4
        %s240 = scalar_lea.vmem %s0, %s239
      $region36: #{unet_forward.11} parent=31 // pred_fallthru
        _
    $region32: #{unet_forward.11} parent=5 // pred_fallthru
      _
    %p241 = scmp.le.s32.totalorder 1, %s14
    %p242 = scmp.lt.s32.totalorder %s14, 3
    %p243 = pnand %p241, %p242
    %p244 = pneg %p243
    // Predicated region
    $region37: #{unet_forward.11} parent=5 // pred_check
      _
    $region38: #{unet_forward.11} parent=5 // pred_check_branch
      %246 = sbr.rel (%p243) target = $region40
    $region39: #{unet_forward.11} parent=5 // pred_region
      %s247 = ssub.s32 %s14, 1
      %p248 = scmp.lt.s32.totalorder %s19, 1
      %s249 = scalar_select %p248, %s19, 1
      %s250 = smul.addr %s249, 2
      %s251 = smul.addr %s250, 4
      %s252 = scalar_lea.vmem %s0, %s251
      %p253 = pneg %p40
      %p254 = pneg %p37
      %p255 = pneg %p61
      %p256 = pneg %p58
      %p257 = pneg %p82
      %p258 = pneg %p79
      %p259 = pneg %p103
      %p260 = pneg %p100
      %p261 = pneg %p124
      %p262 = pneg %p121
      %p263 = pneg %p150
      %p264 = pneg %p147
      %p265 = scmp.lt.s32.totalorder %s19, 1
      %s266 = scalar_select %p265, %s19, 1
      %s267 = smul.addr %s266, 4
      %s268 = scalar_lea.vmem %s5, %s267
      %p269 = pneg %p176
      %p270 = pneg %p173
      %p271 = scmp.lt.s32.totalorder %s19, 1
      %s272 = scalar_select %p271, %s19, 1
      %s273 = scalar_lea.vmem %s6, %s272
      %p274 = pneg %p202
      %p275 = pneg %p199
      %p276 = scmp.lt.s32.totalorder %s19, 1
      %s277 = scalar_select %p276, %s19, 1
      %s278 = scalar_lea.vmem %s7, %s277
      %p279 = scmp.lt.s32.totalorder %s19, 1
      %s280 = scalar_select %p279, %s19, 1
      %s281 = smul.addr %s280, 2
      %s282 = smul.addr %s281, 4
      %s283 = scalar_lea.vmem %s0, %s282
      %p284 = scmp.lt.s32.totalorder %s19, 1
      %s285 = scalar_select %p284, %s19, 1
      %s286 = smul.addr %s285, 4
      %s287 = scalar_lea.vmem %s5, %s286
      %p288 = scmp.lt.s32.totalorder %s19, 1
      %s289 = scalar_select %p288, %s19, 1
      %s290 = scalar_lea.vmem %s6, %s289
      %p291 = scmp.lt.s32.totalorder %s19, 1
      %s292 = scalar_select %p291, %s19, 1
      %s293 = scalar_lea.vmem %s7, %s292
      %v295 = vld [vmem:[%s283] sm:$0xf]
      %v296 = vld [vmem:[%s283 + $0x4] sm:$0x1]
      %v297 = vunpack.c.l.bf16 %v295
      %v298 = vunpack.c.l.bf16 %v296
      %v299 = vld [vmem:[%s3] sm:$0x1]
      %v301 = vperm.slane %v299, 0
      %v303 = vmul.f32 %v297, %v301
      %v304 = vmul.f32 %v298, %v301
      %v305 = vld [vmem:[%s4] sm:$0x1]
      %v307 = vperm.slane %v305, 0
      %v309 = vadd.f32 %v303, %v307
      %v310 = vadd.f32 %v304, %v307
      %vm311 = vcmp.ge.f32.partialorder %v309, 0.0
      %vm312 = vcmp.ge.f32.partialorder %v310, 0.0
      %v313 = vmul.f32 %v309, 0.2
      %v314 = vmul.f32 %v310, 0.2
      %v315 = vsel %vm311, %v309, %v313
      %v316 = vsel %vm312, %v310, %v314
      %v317 = vpack.c.bf16 %v315, %v315
      %v318 = vpack.c.bf16 %v316, %v316
      %v319 = vld [vmem:[%s2] sm:$0x1]
      %v320 = vlaneseq
      %v321 = vshrl.u32 %v320, 7
      %vm322 = vcmp.lt.s32.totalorder %v321, 0
      %v323 = vsub.s32 0, %v321
      %v324 = vsel %vm322, %v323, %v321
      %v325 = vand.u32 %v324, 65535
      %v326 = vshrl.u32 %v324, 16
      %v328 = vmul.u32 %v325, 43691
      %v329 = vmul.u32 %v325, 43690
      %v330 = vmul.u32 %v326, 43691
      %v331 = vmul.u32 %v326, 43690
      %v332 = vshll.u32 %v329, 16
      %v333 = vshrl.u32 %v329, 16
      %v334 = vshll.u32 %v330, 16
      %v335 = vshrl.u32 %v330, 16
      %vm336 = vc.u32 %v328, %v332
      %v337 = vsel %vm336, 1, 0
      %v338 = vadd.s32 %v328, %v332
      %v339 = vadd.s32 %v331, %v337
      %vm340 = vc.u32 %v338, %v334
      %v341 = vsel %vm340, 1, 0
      %v342 = vadd.s32 %v338, %v334
      %v343 = vadd.s32 %v339, %v341
      %v344 = vadd.s32 %v343, %v333
      %v345 = vadd.s32 %v344, %v335
      %v346 = vshrl.u32 %v345, 1
      %v347 = vmul.u32 %v346, 3
      %v348 = vsub.s32 %v324, %v347
      %v349 = vsub.s32 0, %v348
      %v350 = vsel %vm322, %v349, %v348
      %vm351 = vcmp.ne.s32.totalorder %v350, 0
      %vm352 = vcmp.lt.s32.totalorder %v350, 0
      %vm353 = vmand %vm352, %vm351
      %v354 = vadd.s32 %v350, 3
      %v355 = vsel %vm353, %v354, %v350
      %vm356 = vcmp.lt.s32.totalorder %v355, 2
      %v357 = vsel %vm356, 1, 0
      %v358 = vcvt.s32.f32 %v357
      %v359 = vld [vmem:[%s1] sm:$0xf]
      %v360 = vld [vmem:[%s1 + $0x4] sm:$0xf]
      %v361 = vld [vmem:[%s1 + $0x8] sm:$0xf]
      %v362 = vld [vmem:[%s1 + $0xc] sm:$0xf]
      %v363 = vld [vmem:[%s1 + $0x10] sm:$0xf]
      %v364 = vld [vmem:[%s1 + $0x14] sm:$0xf]
      %v365 = vld [vmem:[%s1 + $0x18] sm:$0xf]
      %v366 = vld [vmem:[%s1 + $0x1c] sm:$0xf]
      %s367 = scalar_lea.vmem %s1, 32
      %v368 = vld [vmem:[%s367] sm:$0xf]
      %v369 = vld [vmem:[%s367 + $0x4] sm:$0xf]
      %v370 = vld [vmem:[%s367 + $0x8] sm:$0xf]
      %v371 = vld [vmem:[%s367 + $0xc] sm:$0xf]
      %v372 = vld [vmem:[%s367 + $0x10] sm:$0xf]
      %v373 = vld [vmem:[%s367 + $0x14] sm:$0xf]
      %v374 = vld [vmem:[%s367 + $0x18] sm:$0xf]
      %v375 = vld [vmem:[%s367 + $0x1c] sm:$0xf]
      %v377 = vunpack.c.l.b16 %v317
      %v378 = vpack.c.b16 %v377, %v377
      %v380 = vshrl.u32 %v378, 16
      %v382 = vshll.u32 %v378, 16
      %v384 = vrot.slane %v382, 1
      %v385 = vor.u32 %v380, %v384
      %v394 = vunpack.c.l.b16 %v368
      %v395 = vunpack.c.l.b16 %v369
      %v396 = vunpack.c.l.b16 %v370
      %v397 = vunpack.c.l.b16 %v371
      %v398 = vunpack.c.l.b16 %v372
      %v399 = vunpack.c.l.b16 %v373
      %v400 = vunpack.c.l.b16 %v374
      %v401 = vunpack.c.l.b16 %v375
      %v402 = vpack.c.b16 %v395, %v394
      %v403 = vpack.c.b16 %v397, %v396
      %v404 = vpack.c.b16 %v399, %v398
      %v405 = vpack.c.b16 %v401, %v400
      %vm410 = vcmask 523264
      %v412 = vsel %vm410, %v385, 0
      %414 = vmatpush.bf16.msra.mxu0 0
      %415 = vmatpush.bf16.msra.mxu0 0
      %416 = vmatpush.bf16.msra.mxu0 0
      %417 = vmatpush.bf16.msra.mxu0 0
      %418 = vmatpush.bf16.msra.mxu0 %v405
      %419 = vmatpush.bf16.msra.mxu0 %v404
      %420 = vmatpush.bf16.msra.mxu0 %v403
      %421 = vmatpush.bf16.msra.mxu0 %v402
      %422 = vmatmul.bf16.gmra.mxu0 %v412
      %v423 = vpop.f32.mrf.mxu0
      %v424 = vadd.f32 0.0, %v423
      %v425 = vpop.f32.mrf.mxu0
      %426 = vdwg.mxu0
      %v435 = vunpack.c.l.b16 %v359
      %v436 = vunpack.c.l.b16 %v360
      %v437 = vunpack.c.l.b16 %v361
      %v438 = vunpack.c.l.b16 %v362
      %v439 = vunpack.c.l.b16 %v363
      %v440 = vunpack.c.l.b16 %v364
      %v441 = vunpack.c.l.b16 %v365
      %v442 = vunpack.c.l.b16 %v366
      %v443 = vpack.c.b16 %v436, %v435
      %v444 = vpack.c.b16 %v438, %v437
      %v445 = vpack.c.b16 %v440, %v439
      %v446 = vpack.c.b16 %v442, %v441
      %v452 = vsel %vm410, %v317, 0
      %454 = vmatpush.bf16.msra.mxu0 0
      %455 = vmatpush.bf16.msra.mxu0 0
      %456 = vmatpush.bf16.msra.mxu0 0
      %457 = vmatpush.bf16.msra.mxu0 0
      %458 = vmatpush.bf16.msra.mxu0 %v446
      %459 = vmatpush.bf16.msra.mxu0 %v445
      %460 = vmatpush.bf16.msra.mxu0 %v444
      %461 = vmatpush.bf16.msra.mxu0 %v443
      %462 = vmatmul.bf16.gmra.mxu0 %v452
      %v463 = vpop.f32.mrf.mxu0
      %v464 = vadd.f32 %v424, %v463
      %v465 = vpop.f32.mrf.mxu0
      %466 = vdwg.mxu0
      %s467 = scalar_lea.vmem %s1, 64
      %v468 = vld [vmem:[%s467] sm:$0xf]
      %v469 = vld [vmem:[%s467 + $0x4] sm:$0xf]
      %v470 = vld [vmem:[%s467 + $0x8] sm:$0xf]
      %v471 = vld [vmem:[%s467 + $0xc] sm:$0xf]
      %v472 = vld [vmem:[%s467 + $0x10] sm:$0xf]
      %v473 = vld [vmem:[%s467 + $0x14] sm:$0xf]
      %v474 = vld [vmem:[%s467 + $0x18] sm:$0xf]
      %v475 = vld [vmem:[%s467 + $0x1c] sm:$0xf]
      %v476 = vrot.slane %v380, 1
      %v477 = vrot.slane %v382, 2
      %v478 = vor.u32 %v476, %v477
      %v487 = vunpack.c.l.b16 %v468
      %v488 = vunpack.c.l.b16 %v469
      %v489 = vunpack.c.l.b16 %v470
      %v490 = vunpack.c.l.b16 %v471
      %v491 = vunpack.c.l.b16 %v472
      %v492 = vunpack.c.l.b16 %v473
      %v493 = vunpack.c.l.b16 %v474
      %v494 = vunpack.c.l.b16 %v475
      %v495 = vpack.c.b16 %v488, %v487
      %v496 = vpack.c.b16 %v490, %v489
      %v497 = vpack.c.b16 %v492, %v491
      %v498 = vpack.c.b16 %v494, %v493
      %v504 = vsel %vm410, %v478, 0
      %506 = vmatpush.bf16.msra.mxu0 0
      %507 = vmatpush.bf16.msra.mxu0 0
      %508 = vmatpush.bf16.msra.mxu0 0
      %509 = vmatpush.bf16.msra.mxu0 0
      %510 = vmatpush.bf16.msra.mxu0 %v498
      %511 = vmatpush.bf16.msra.mxu0 %v497
      %512 = vmatpush.bf16.msra.mxu0 %v496
      %513 = vmatpush.bf16.msra.mxu0 %v495
      %514 = vmatmul.bf16.gmra.mxu0 %v504
      %v515 = vpop.f32.mrf.mxu0
      %v516 = vadd.f32 0.0, %v515
      %v517 = vpop.f32.mrf.mxu0
      %518 = vdwg.mxu0
      %v519 = vadd.f32 %v464, %v516
      %s520 = scalar_lea.vmem %s1, 96
      %v521 = vld [vmem:[%s520] sm:$0xf]
      %v522 = vld [vmem:[%s520 + $0x4] sm:$0xf]
      %v523 = vld [vmem:[%s520 + $0x8] sm:$0xf]
      %v524 = vld [vmem:[%s520 + $0xc] sm:$0xf]
      %v525 = vld [vmem:[%s520 + $0x10] sm:$0xf]
      %v526 = vld [vmem:[%s520 + $0x14] sm:$0xf]
      %v527 = vld [vmem:[%s520 + $0x18] sm:$0xf]
      %v528 = vld [vmem:[%s520 + $0x1c] sm:$0xf]
      %v530 = vunpack.c.l.b16 %v318
      %v531 = vpack.c.b16 %v530, %v377
      %v532 = vrot.slane %v531, 2
      %v541 = vunpack.c.l.b16 %v521
      %v542 = vunpack.c.l.b16 %v522
      %v543 = vunpack.c.l.b16 %v523
      %v544 = vunpack.c.l.b16 %v524
      %v545 = vunpack.c.l.b16 %v525
      %v546 = vunpack.c.l.b16 %v526
      %v547 = vunpack.c.l.b16 %v527
      %v548 = vunpack.c.l.b16 %v528
      %v549 = vpack.c.b16 %v542, %v541
      %v550 = vpack.c.b16 %v544, %v543
      %v551 = vpack.c.b16 %v546, %v545
      %v552 = vpack.c.b16 %v548, %v547
      %v558 = vsel %vm410, %v532, 0
      %560 = vmatpush.bf16.msra.mxu0 0
      %561 = vmatpush.bf16.msra.mxu0 0
      %562 = vmatpush.bf16.msra.mxu0 0
      %563 = vmatpush.bf16.msra.mxu0 0
      %564 = vmatpush.bf16.msra.mxu0 %v552
      %565 = vmatpush.bf16.msra.mxu0 %v551
      %566 = vmatpush.bf16.msra.mxu0 %v550
      %567 = vmatpush.bf16.msra.mxu0 %v549
      %568 = vmatmul.bf16.gmra.mxu0 %v558
      %v569 = vpop.f32.mrf.mxu0
      %v570 = vadd.f32 0.0, %v569
      %v571 = vpop.f32.mrf.mxu0
      %572 = vdwg.mxu0
      %v573 = vadd.f32 %v519, %v570
      %v575 = vperm.slane %v319, 0
      %v577 = vadd.f32 %v573, %v575
      %v578 = vmul.f32 %v577, %v358
      %vm579 = vcmask 258048
      %v580 = vsel %vm579, %v578, 0.0
      %v581 = vrot.slane %v580, 4
      %v582 = vadd.f32 %v580, %v581
      %v583 = vrot.slane %v582, 2
      %v584 = vadd.f32 %v582, %v583
      %v585 = vrot.slane %v584, 1
      %v586 = vadd.f32 %v584, %v585
      %v587 = vadd.f32 %v586, 0.0
      %v588 = vmul.f32 %v577, %v578
      %v589 = vsel %vm579, %v588, 0.0
      %v590 = vrot.slane %v589, 4
      %v591 = vadd.f32 %v589, %v590
      %v592 = vrot.slane %v591, 2
      %v593 = vadd.f32 %v591, %v592
      %v594 = vrot.slane %v593, 1
      %v595 = vadd.f32 %v593, %v594
      %v596 = vadd.f32 %v595, 0.0
      %v597 = vpack.c.bf16 %v577, %v577
      %vm598 = vcmask 256000
      %vm599 = vsmask.f32 2304
      %vm600 = vmand %vm598, %vm599
      %v601 = vld [vmem:[%s287] sm:$0x7]
      %v602 = vsel %vm600, %v597, %v601
      %603 = vst [vmem:[%s287] sm:$0x7] %v602
      %vm604 = vcmask 253952
      %605 = vst.msk [vmem:[%s290] sm:$0x1] %vm604, %v587
      %606 = vst.msk [vmem:[%s293] sm:$0x1] %vm604, %v596
      %p607 = scmp.lt.s32.totalorder %s19, 1
      %s608 = scalar_select %p607, %s19, 1
      %s609 = smul.addr %s608, 4
      %s610 = scalar_lea.vmem %s5, %s609
      %p611 = scmp.lt.s32.totalorder %s19, 1
      %s612 = scalar_select %p611, %s19, 1
      %s613 = scalar_lea.vmem %s6, %s612
      %p614 = scmp.lt.s32.totalorder %s19, 1
      %s615 = scalar_select %p614, %s19, 1
      %s616 = scalar_lea.vmem %s7, %s615
      // Predicated region
      $region41: #{unet_forward.11} parent=39 // pred_check
        %p617 = pneg %p147
      $region42: #{unet_forward.11} parent=39 // pred_check_branch
        %619 = sbr.rel (%p617) target = $region44
      $region43: #{unet_forward.11} parent=39 // pred_region
        _
      $region44: #{unet_forward.11} parent=39 // pred_fallthru
        _
      // Predicated region
      $region45: #{unet_forward.11} parent=39 // pred_check
        %p620 = pneg %p173
      $region46: #{unet_forward.11} parent=39 // pred_check_branch
        %622 = sbr.rel (%p620) target = $region48
      $region47: #{unet_forward.11} parent=39 // pred_region
        _
      $region48: #{unet_forward.11} parent=39 // pred_fallthru
        _
      // Predicated region
      $region49: #{unet_forward.11} parent=39 // pred_check
        %p623 = pneg %p199
      $region50: #{unet_forward.11} parent=39 // pred_check_branch
        %625 = sbr.rel (%p623) target = $region52
      $region51: #{unet_forward.11} parent=39 // pred_region
        _
      $region52: #{unet_forward.11} parent=39 // pred_fallthru
        _
    $region40: #{unet_forward.11} parent=5 // pred_fallthru
      _
    %p626 = scmp.le.s32.totalorder 2, %s14
    // Predicated region
    $region53: #{unet_forward.11} parent=5 // pred_check
      %p627 = pneg %p626
    $region54: #{unet_forward.11} parent=5 // pred_check_branch
      %629 = sbr.rel (%p627) target = $region56
    $region55: #{unet_forward.11} parent=5 // pred_region
      %s630 = ssub.s32 %s14, 2
      // Predicated region
      $region57: #{unet_forward.11} parent=55 // pred_check
        %p631 = pneg %p153
      $region58: #{unet_forward.11} parent=55 // pred_check_branch
        %633 = sbr.rel (%p631) target = $region60
      $region59: #{unet_forward.11} parent=55 // pred_region
        %p634 = scmp.lt.s32.totalorder %s20, 1
        %s635 = scalar_select %p634, %s20, 1
        %s636 = smul.addr %s635, 4
        %s637 = scalar_lea.vmem %s5, %s636
      $region60: #{unet_forward.11} parent=55 // pred_fallthru
        _
      // Predicated region
      $region61: #{unet_forward.11} parent=55 // pred_check
        %p638 = pneg %p179
      $region62: #{unet_forward.11} parent=55 // pred_check_branch
        %640 = sbr.rel (%p638) target = $region64
      $region63: #{unet_forward.11} parent=55 // pred_region
        %p641 = scmp.lt.s32.totalorder %s20, 1
        %s642 = scalar_select %p641, %s20, 1
        %s643 = scalar_lea.vmem %s6, %s642
      $region64: #{unet_forward.11} parent=55 // pred_fallthru
        _
      // Predicated region
      $region65: #{unet_forward.11} parent=55 // pred_check
        %p644 = pneg %p205
      $region66: #{unet_forward.11} parent=55 // pred_check_branch
        %646 = sbr.rel (%p644) target = $region68
      $region67: #{unet_forward.11} parent=55 // pred_region
        %p647 = scmp.lt.s32.totalorder %s20, 1
        %s648 = scalar_select %p647, %s20, 1
        %s649 = scalar_lea.vmem %s7, %s648
      $region68: #{unet_forward.11} parent=55 // pred_fallthru
        _
    $region56: #{unet_forward.11} parent=5 // pred_fallthru
      _
  $region6: #{unet_forward.11} parent=0 // loop_footer
    %s18 = sadd.s32 1, %s14
  $region7: #{unet_forward.11} parent=0 // loop_footer_branch
    %13 = sbr.rel target = $region3
  $region8: #{unet_forward.11} parent=0 // loop_exit
    _

// kernel: unet_forward.12
$region0: #{unet_forward.12}
  #allocation0 [shape = 'u32[]', space=smem, size = 0x4, offset = 0x4, fixed_abs, tag = 'smem constant byte address 0x4 - core index']
  #allocation1 [shape = 'u32[72,128]{1,0:T(1,128)}', space=vmem, size = 0x9000, scoped, tag = 'internal scratch']
  %s0 = inlined_call_operand.vmem [shape: bf16[2,4,128], index: 0, kind: input, shape index: {}]
  %s1 = inlined_call_operand.vmem [shape: bf16[1,4,128,64], index: 1, kind: input, shape index: {}]
  %s2 = inlined_call_operand.vmem [shape: f32[1,64], index: 2, kind: input, shape index: {}]
  %s3 = inlined_call_operand.vmem [shape: f32[1,128], index: 3, kind: input, shape index: {}]
  %s4 = inlined_call_operand.vmem [shape: f32[1,128], index: 4, kind: input, shape index: {}]
  %s5 = inlined_call_operand.vmem [shape: bf16[2,1,64], index: 5, kind: output, shape index: {}]
  %s6 = sld [smem:[#allocation0]]
  $region53: #{unet_forward.12} parent=0
    _
  %s8 = ssub.s32 1, %s6
  %s9 = scalar_select 0, %s8, %s6
  loop: start=0, step=1, limit=4
  $region2: #{unet_forward.12} parent=0 // loop_pre_header
    _
  $region3: #{unet_forward.12} parent=0 // loop_header
    %s11 = sphi 0, %s15
    %p12 = scmp.ge.s32.totalorder %s11, 4
    %s21 = sphi 0, %s23
    %s24 = sphi 0, %s21
    %s25 = sphi 0, %s24
    %s41 = sphi 0, %s25
    %s45 = sphi 0, %s45
    %s47 = sphi 0, %s45
    %s48 = sphi 0, %s47
    %s62 = sphi 0, %s48
    %s66 = sphi 0, %s66
    %s68 = sphi 0, %s66
    %s69 = sphi 0, %s68
    %s83 = sphi 0, %s69
    %s87 = sphi 0, %s87
    %s89 = sphi 0, %s87
    %s90 = sphi 0, %s89
    %s104 = sphi 0, %s90
    %s108 = sphi 0, %s108
    %s110 = sphi 0, %s108
    %s111 = sphi 0, %s110
    %s125 = sphi 0, %s111
    %s131 = sphi 0, %s133
    %s134 = sphi 0, %s131
    %s135 = sphi 0, %s134
    %s151 = sphi 0, %s135
  $region4: #{unet_forward.12} parent=0 // loop_header_branch
    %14 = sbr.rel (%p12) target = $region8
  $region5: #{unet_forward.12} parent=0 // loop_body
    %s16 = ssub.s32 %s11, 1
    %s17 = ssub.s32 %s11, 2
    %s18 = sadd.s32 %s11, 1
    %s19 = ssub.s32 %s11, %s18
    %p20 = scmp.eq.s32.totalorder %s19, 0
    %s22 = sadd.s32 %s21, 1
    %s23 = scalar_select %p20, %s21, %s22
    %p26 = pneg %p20
    %p27 = scmp.eq.s32.totalorder %s11, 1
    %p28 = por %p26, %p27
    %p29 = scmp.ne.s32.totalorder %s21, %s24
    %p30 = scmp.eq.s32.totalorder %s11, 0
    %p31 = por %p29, %p30
    %p32 = scmp.ne.s32.totalorder %s21, %s24
    %p33 = scmp.eq.s32.totalorder %s16, 1
    %p34 = por %p32, %p33
    %p35 = scmp.ne.s32.totalorder %s24, %s25
    %p36 = scmp.eq.s32.totalorder %s16, 0
    %p37 = por %p35, %p36
    %p38 = scmp.ne.s32.totalorder %s24, %s25
    %p39 = scmp.eq.s32.totalorder %s17, 1
    %p40 = por %p38, %p39
    %p42 = scmp.ne.s32.totalorder %s25, %s41
    %p43 = scmp.eq.s32.totalorder %s17, 0
    %p44 = por %p42, %p43
    %s46 = sadd.s32 %s45, 1
    %p49 = scmp.eq.s32.totalorder %s11, 1
    %p50 = scmp.ne.s32.totalorder %s45, %s47
    %p51 = scmp.eq.s32.totalorder %s11, 0
    %p52 = por %p50, %p51
    %p53 = scmp.ne.s32.totalorder %s45, %s47
    %p54 = scmp.eq.s32.totalorder %s16, 1
    %p55 = por %p53, %p54
    %p56 = scmp.ne.s32.totalorder %s47, %s48
    %p57 = scmp.eq.s32.totalorder %s16, 0
    %p58 = por %p56, %p57
    %p59 = scmp.ne.s32.totalorder %s47, %s48
    %p60 = scmp.eq.s32.totalorder %s17, 1
    %p61 = por %p59, %p60
    %p63 = scmp.ne.s32.totalorder %s48, %s62
    %p64 = scmp.eq.s32.totalorder %s17, 0
    %p65 = por %p63, %p64
    %s67 = sadd.s32 %s66, 1
    %p70 = scmp.eq.s32.totalorder %s11, 1
    %p71 = scmp.ne.s32.totalorder %s66, %s68
    %p72 = scmp.eq.s32.totalorder %s11, 0
    %p73 = por %p71, %p72
    %p74 = scmp.ne.s32.totalorder %s66, %s68
    %p75 = scmp.eq.s32.totalorder %s16, 1
    %p76 = por %p74, %p75
    %p77 = scmp.ne.s32.totalorder %s68, %s69
    %p78 = scmp.eq.s32.totalorder %s16, 0
    %p79 = por %p77, %p78
    %p80 = scmp.ne.s32.totalorder %s68, %s69
    %p81 = scmp.eq.s32.totalorder %s17, 1
    %p82 = por %p80, %p81
    %p84 = scmp.ne.s32.totalorder %s69, %s83
    %p85 = scmp.eq.s32.totalorder %s17, 0
    %p86 = por %p84, %p85
    %s88 = sadd.s32 %s87, 1
    %p91 = scmp.eq.s32.totalorder %s11, 1
    %p92 = scmp.ne.s32.totalorder %s87, %s89
    %p93 = scmp.eq.s32.totalorder %s11, 0
    %p94 = por %p92, %p93
    %p95 = scmp.ne.s32.totalorder %s87, %s89
    %p96 = scmp.eq.s32.totalorder %s16, 1
    %p97 = por %p95, %p96
    %p98 = scmp.ne.s32.totalorder %s89, %s90
    %p99 = scmp.eq.s32.totalorder %s16, 0
    %p100 = por %p98, %p99
    %p101 = scmp.ne.s32.totalorder %s89, %s90
    %p102 = scmp.eq.s32.totalorder %s17, 1
    %p103 = por %p101, %p102
    %p105 = scmp.ne.s32.totalorder %s90, %s104
    %p106 = scmp.eq.s32.totalorder %s17, 0
    %p107 = por %p105, %p106
    %s109 = sadd.s32 %s108, 1
    %p112 = scmp.eq.s32.totalorder %s11, 1
    %p113 = scmp.ne.s32.totalorder %s108, %s110
    %p114 = scmp.eq.s32.totalorder %s11, 0
    %p115 = por %p113, %p114
    %p116 = scmp.ne.s32.totalorder %s108, %s110
    %p117 = scmp.eq.s32.totalorder %s16, 1
    %p118 = por %p116, %p117
    %p119 = scmp.ne.s32.totalorder %s110, %s111
    %p120 = scmp.eq.s32.totalorder %s16, 0
    %p121 = por %p119, %p120
    %p122 = scmp.ne.s32.totalorder %s110, %s111
    %p123 = scmp.eq.s32.totalorder %s17, 1
    %p124 = por %p122, %p123
    %p126 = scmp.ne.s32.totalorder %s111, %s125
    %p127 = scmp.eq.s32.totalorder %s17, 0
    %p128 = por %p126, %p127
    %s129 = ssub.s32 %s11, %s18
    %p130 = scmp.eq.s32.totalorder %s129, 0
    %s132 = sadd.s32 %s131, 1
    %s133 = scalar_select %p130, %s131, %s132
    %p136 = pneg %p130
    %p137 = scmp.eq.s32.totalorder %s11, 1
    %p138 = por %p136, %p137
    %p139 = scmp.ne.s32.totalorder %s131, %s134
    %p140 = scmp.eq.s32.totalorder %s11, 0
    %p141 = por %p139, %p140
    %p142 = scmp.ne.s32.totalorder %s131, %s134
    %p143 = scmp.eq.s32.totalorder %s16, 1
    %p144 = por %p142, %p143
    %p145 = scmp.ne.s32.totalorder %s134, %s135
    %p146 = scmp.eq.s32.totalorder %s16, 0
    %p147 = por %p145, %p146
    %p148 = scmp.ne.s32.totalorder %s134, %s135
    %p149 = scmp.eq.s32.totalorder %s17, 1
    %p150 = por %p148, %p149
    %p152 = scmp.ne.s32.totalorder %s135, %s151
    %p153 = scmp.eq.s32.totalorder %s17, 0
    %p154 = por %p152, %p153
    %p155 = scmp.le.s32.totalorder 1, %s11
    %p156 = scmp.lt.s32.totalorder %s11, 3
    %p157 = pnand %p155, %p156
    %p158 = pneg %p157
    // Predicated region
    $region9: #{unet_forward.12} parent=5 // pred_check
      _
    $region10: #{unet_forward.12} parent=5 // pred_check_branch
      %160 = sbr.rel (%p157) target = $region12
    $region11: #{unet_forward.12} parent=5 // pred_region
      %s161 = ssub.s32 %s11, 1
      // Predicated region
      $region13: #{unet_forward.12} parent=11 // pred_check
        %p162 = pneg %p58
      $region14: #{unet_forward.12} parent=11 // pred_check_branch
        %164 = sbr.rel (%p162) target = $region16
      $region15: #{unet_forward.12} parent=11 // pred_region
        _
      $region16: #{unet_forward.12} parent=11 // pred_fallthru
        _
      // Predicated region
      $region17: #{unet_forward.12} parent=11 // pred_check
        %p165 = pneg %p79
      $region18: #{unet_forward.12} parent=11 // pred_check_branch
        %167 = sbr.rel (%p165) target = $region20
      $region19: #{unet_forward.12} parent=11 // pred_region
        _
      $region20: #{unet_forward.12} parent=11 // pred_fallthru
        _
      // Predicated region
      $region21: #{unet_forward.12} parent=11 // pred_check
        %p168 = pneg %p100
      $region22: #{unet_forward.12} parent=11 // pred_check_branch
        %170 = sbr.rel (%p168) target = $region24
      $region23: #{unet_forward.12} parent=11 // pred_region
        _
      $region24: #{unet_forward.12} parent=11 // pred_fallthru
        _
      // Predicated region
      $region25: #{unet_forward.12} parent=11 // pred_check
        %p171 = pneg %p121
      $region26: #{unet_forward.12} parent=11 // pred_check_branch
        %173 = sbr.rel (%p171) target = $region28
      $region27: #{unet_forward.12} parent=11 // pred_region
        _
      $region28: #{unet_forward.12} parent=11 // pred_fallthru
        _
    $region12: #{unet_forward.12} parent=5 // pred_fallthru
      _
    %p174 = scmp.lt.s32.totalorder %s11, 2
    // Predicated region
    $region29: #{unet_forward.12} parent=5 // pred_check
      %p175 = pneg %p174
    $region30: #{unet_forward.12} parent=5 // pred_check_branch
      %177 = sbr.rel (%p175) target = $region32
    $region31: #{unet_forward.12} parent=5 // pred_region
      // Predicated region
      $region33: #{unet_forward.12} parent=31 // pred_check
        %p178 = pneg %p31
      $region34: #{unet_forward.12} parent=31 // pred_check_branch
        %180 = sbr.rel (%p178) target = $region36
      $region35: #{unet_forward.12} parent=31 // pred_region
        %p181 = scmp.lt.s32.totalorder %s11, 1
        %s182 = scalar_select %p181, %s11, 1
        %s183 = smul.addr %s182, 2
        %s184 = scalar_lea.vmem %s0, %s183
      $region36: #{unet_forward.12} parent=31 // pred_fallthru
        _
    $region32: #{unet_forward.12} parent=5 // pred_fallthru
      _
    %p185 = scmp.le.s32.totalorder 1, %s11
    %p186 = scmp.lt.s32.totalorder %s11, 3
    %p187 = pnand %p185, %p186
    %p188 = pneg %p187
    // Predicated region
    $region37: #{unet_forward.12} parent=5 // pred_check
      _
    $region38: #{unet_forward.12} parent=5 // pred_check_branch
      %190 = sbr.rel (%p187) target = $region40
    $region39: #{unet_forward.12} parent=5 // pred_region
      %s191 = ssub.s32 %s11, 1
      %p192 = scmp.lt.s32.totalorder %s16, 1
      %s193 = scalar_select %p192, %s16, 1
      %s194 = smul.addr %s193, 2
      %s195 = scalar_lea.vmem %s0, %s194
      %p196 = pneg %p37
      %p197 = pneg %p34
      %p198 = pneg %p58
      %p199 = pneg %p55
      %p200 = pneg %p79
      %p201 = pneg %p76
      %p202 = pneg %p100
      %p203 = pneg %p97
      %p204 = pneg %p121
      %p205 = pneg %p118
      %p206 = pneg %p147
      %p207 = pneg %p144
      %p208 = scmp.lt.s32.totalorder %s16, 1
      %s209 = scalar_select %p208, %s16, 1
      %s210 = scalar_lea.vmem %s5, %s209
      %p211 = scmp.lt.s32.totalorder %s16, 1
      %s212 = scalar_select %p211, %s16, 1
      %s213 = smul.addr %s212, 2
      %s214 = scalar_lea.vmem %s0, %s213
      %p215 = scmp.lt.s32.totalorder %s16, 1
      %s216 = scalar_select %p215, %s16, 1
      %s217 = scalar_lea.vmem %s5, %s216
      %v218 = vld [vmem:[%s214] sm:$0x3]
      %v219 = vunpack.c.l.bf16 %v218
      %v220 = vld [vmem:[%s3] sm:$0x1]
      %v222 = vperm.slane %v220, 0
      %v224 = vmul.f32 %v219, %v222
      %v225 = vld [vmem:[%s4] sm:$0x1]
      %v227 = vperm.slane %v225, 0
      %v229 = vadd.f32 %v224, %v227
      %vm230 = vcmp.ge.f32.partialorder %v229, 0.0
      %v231 = vmul.f32 %v229, 0.2
      %v232 = vsel %vm230, %v229, %v231
      %v233 = vpack.c.bf16 %v232, %v232
      %v234 = vld [vmem:[%s2] sm:$0x1]
      %v235 = vld [vmem:[%s1] sm:$0xf]
      %v236 = vld [vmem:[%s1 + $0x4] sm:$0xf]
      %v237 = vld [vmem:[%s1 + $0x8] sm:$0xf]
      %v238 = vld [vmem:[%s1 + $0xc] sm:$0xf]
      %v239 = vld [vmem:[%s1 + $0x10] sm:$0xf]
      %v240 = vld [vmem:[%s1 + $0x14] sm:$0xf]
      %v241 = vld [vmem:[%s1 + $0x18] sm:$0xf]
      %v242 = vld [vmem:[%s1 + $0x1c] sm:$0xf]
      %v243 = vld [vmem:[%s1 + $0x20] sm:$0xf]
      %v244 = vld [vmem:[%s1 + $0x24] sm:$0xf]
      %v245 = vld [vmem:[%s1 + $0x28] sm:$0xf]
      %v246 = vld [vmem:[%s1 + $0x2c] sm:$0xf]
      %v247 = vld [vmem:[%s1 + $0x30] sm:$0xf]
      %v248 = vld [vmem:[%s1 + $0x34] sm:$0xf]
      %v249 = vld [vmem:[%s1 + $0x38] sm:$0xf]
      %v250 = vld [vmem:[%s1 + $0x3c] sm:$0xf]
      %s251 = scalar_lea.vmem %s1, 64
      %v252 = vld [vmem:[%s251] sm:$0xf]
      %v253 = vld [vmem:[%s251 + $0x4] sm:$0xf]
      %v254 = vld [vmem:[%s251 + $0x8] sm:$0xf]
      %v255 = vld [vmem:[%s251 + $0xc] sm:$0xf]
      %v256 = vld [vmem:[%s251 + $0x10] sm:$0xf]
      %v257 = vld [vmem:[%s251 + $0x14] sm:$0xf]
      %v258 = vld [vmem:[%s251 + $0x18] sm:$0xf]
      %v259 = vld [vmem:[%s251 + $0x1c] sm:$0xf]
      %v260 = vld [vmem:[%s251 + $0x20] sm:$0xf]
      %v261 = vld [vmem:[%s251 + $0x24] sm:$0xf]
      %v262 = vld [vmem:[%s251 + $0x28] sm:$0xf]
      %v263 = vld [vmem:[%s251 + $0x2c] sm:$0xf]
      %v264 = vld [vmem:[%s251 + $0x30] sm:$0xf]
      %v265 = vld [vmem:[%s251 + $0x34] sm:$0xf]
      %v266 = vld [vmem:[%s251 + $0x38] sm:$0xf]
      %v267 = vld [vmem:[%s251 + $0x3c] sm:$0xf]
      %v269 = vunpack.c.l.b16 %v233
      %v270 = vpack.c.b16 %v269, %v269
      %v272 = vshrl.u32 %v270, 16
      %v291 = vunpack.c.l.b16 %v252
      %v292 = vunpack.c.l.b16 %v253
      %v293 = vunpack.c.l.b16 %v254
      %v294 = vunpack.c.l.b16 %v255
      %v295 = vunpack.c.l.b16 %v256
      %v296 = vunpack.c.l.b16 %v257
      %v297 = vunpack.c.l.b16 %v258
      %v298 = vunpack.c.l.b16 %v259
      %v299 = vunpack.c.l.b16 %v260
      %v300 = vunpack.c.l.b16 %v261
      %v301 = vunpack.c.l.b16 %v262
      %v302 = vunpack.c.l.b16 %v263
      %v303 = vunpack.c.l.b16 %v264
      %v304 = vunpack.c.l.b16 %v265
      %v305 = vunpack.c.l.b16 %v266
      %v306 = vunpack.c.l.b16 %v267
      %v307 = vpack.c.b16 %v292, %v291
      %v308 = vpack.c.b16 %v294, %v293
      %v309 = vpack.c.b16 %v296, %v295
      %v310 = vpack.c.b16 %v298, %v297
      %v311 = vpack.c.b16 %v300, %v299
      %v312 = vpack.c.b16 %v302, %v301
      %v313 = vpack.c.b16 %v304, %v303
      %v314 = vpack.c.b16 %v306, %v305
      %323 = vmatpush.bf16.msra.mxu0 %v314
      %324 = vmatpush.bf16.msra.mxu0 %v313
      %325 = vmatpush.bf16.msra.mxu0 %v312
      %326 = vmatpush.bf16.msra.mxu0 %v311
      %327 = vmatpush.bf16.msra.mxu0 %v310
      %328 = vmatpush.bf16.msra.mxu0 %v309
      %329 = vmatpush.bf16.msra.mxu0 %v308
      %330 = vmatpush.bf16.msra.mxu0 %v307
      %331 = vmatmul.bf16.gmra.mxu0 %v272
      %v332 = vpop.f32.mrf.mxu0
      %v333 = vadd.f32 0.0, %v332
      %v334 = vpop.f32.mrf.mxu0
      %335 = vdwg.mxu0
      %v352 = vunpack.c.l.b16 %v235
      %v353 = vunpack.c.l.b16 %v236
      %v354 = vunpack.c.l.b16 %v237
      %v355 = vunpack.c.l.b16 %v238
      %v356 = vunpack.c.l.b16 %v239
      %v357 = vunpack.c.l.b16 %v240
      %v358 = vunpack.c.l.b16 %v241
      %v359 = vunpack.c.l.b16 %v242
      %v360 = vunpack.c.l.b16 %v243
      %v361 = vunpack.c.l.b16 %v244
      %v362 = vunpack.c.l.b16 %v245
      %v363 = vunpack.c.l.b16 %v246
      %v364 = vunpack.c.l.b16 %v247
      %v365 = vunpack.c.l.b16 %v248
      %v366 = vunpack.c.l.b16 %v249
      %v367 = vunpack.c.l.b16 %v250
      %v368 = vpack.c.b16 %v353, %v352
      %v369 = vpack.c.b16 %v355, %v354
      %v370 = vpack.c.b16 %v357, %v356
      %v371 = vpack.c.b16 %v359, %v358
      %v372 = vpack.c.b16 %v361, %v360
      %v373 = vpack.c.b16 %v363, %v362
      %v374 = vpack.c.b16 %v365, %v364
      %v375 = vpack.c.b16 %v367, %v366
      %384 = vmatpush.bf16.msra.mxu0 %v375
      %385 = vmatpush.bf16.msra.mxu0 %v374
      %386 = vmatpush.bf16.msra.mxu0 %v373
      %387 = vmatpush.bf16.msra.mxu0 %v372
      %388 = vmatpush.bf16.msra.mxu0 %v371
      %389 = vmatpush.bf16.msra.mxu0 %v370
      %390 = vmatpush.bf16.msra.mxu0 %v369
      %391 = vmatpush.bf16.msra.mxu0 %v368
      %392 = vmatmul.bf16.gmra.mxu0 %v233
      %v393 = vpop.f32.mrf.mxu0
      %v394 = vadd.f32 %v333, %v393
      %v395 = vpop.f32.mrf.mxu0
      %396 = vdwg.mxu0
      %s397 = scalar_lea.vmem %s1, 128
      %v398 = vld [vmem:[%s397] sm:$0xf]
      %v399 = vld [vmem:[%s397 + $0x4] sm:$0xf]
      %v400 = vld [vmem:[%s397 + $0x8] sm:$0xf]
      %v401 = vld [vmem:[%s397 + $0xc] sm:$0xf]
      %v402 = vld [vmem:[%s397 + $0x10] sm:$0xf]
      %v403 = vld [vmem:[%s397 + $0x14] sm:$0xf]
      %v404 = vld [vmem:[%s397 + $0x18] sm:$0xf]
      %v405 = vld [vmem:[%s397 + $0x1c] sm:$0xf]
      %v406 = vld [vmem:[%s397 + $0x20] sm:$0xf]
      %v407 = vld [vmem:[%s397 + $0x24] sm:$0xf]
      %v408 = vld [vmem:[%s397 + $0x28] sm:$0xf]
      %v409 = vld [vmem:[%s397 + $0x2c] sm:$0xf]
      %v410 = vld [vmem:[%s397 + $0x30] sm:$0xf]
      %v411 = vld [vmem:[%s397 + $0x34] sm:$0xf]
      %v412 = vld [vmem:[%s397 + $0x38] sm:$0xf]
      %v413 = vld [vmem:[%s397 + $0x3c] sm:$0xf]
      %v414 = vrot.slane %v270, 1
      %v432 = vunpack.c.l.b16 %v398
      %v433 = vunpack.c.l.b16 %v399
      %v434 = vunpack.c.l.b16 %v400
      %v435 = vunpack.c.l.b16 %v401
      %v436 = vunpack.c.l.b16 %v402
      %v437 = vunpack.c.l.b16 %v403
      %v438 = vunpack.c.l.b16 %v404
      %v439 = vunpack.c.l.b16 %v405
      %v440 = vunpack.c.l.b16 %v406
      %v441 = vunpack.c.l.b16 %v407
      %v442 = vunpack.c.l.b16 %v408
      %v443 = vunpack.c.l.b16 %v409
      %v444 = vunpack.c.l.b16 %v410
      %v445 = vunpack.c.l.b16 %v411
      %v446 = vunpack.c.l.b16 %v412
      %v447 = vunpack.c.l.b16 %v413
      %v448 = vpack.c.b16 %v433, %v432
      %v449 = vpack.c.b16 %v435, %v434
      %v450 = vpack.c.b16 %v437, %v436
      %v451 = vpack.c.b16 %v439, %v438
      %v452 = vpack.c.b16 %v441, %v440
      %v453 = vpack.c.b16 %v443, %v442
      %v454 = vpack.c.b16 %v445, %v444
      %v455 = vpack.c.b16 %v447, %v446
      %464 = vmatpush.bf16.msra.mxu0 %v455
      %465 = vmatpush.bf16.msra.mxu0 %v454
      %466 = vmatpush.bf16.msra.mxu0 %v453
      %467 = vmatpush.bf16.msra.mxu0 %v452
      %468 = vmatpush.bf16.msra.mxu0 %v451
      %469 = vmatpush.bf16.msra.mxu0 %v450
      %470 = vmatpush.bf16.msra.mxu0 %v449
      %471 = vmatpush.bf16.msra.mxu0 %v448
      %472 = vmatmul.bf16.gmra.mxu0 %v414
      %v473 = vpop.f32.mrf.mxu0
      %v474 = vadd.f32 0.0, %v473
      %v475 = vpop.f32.mrf.mxu0
      %476 = vdwg.mxu0
      %v477 = vadd.f32 %v394, %v474
      %s478 = scalar_lea.vmem %s1, 192
      %v479 = vld [vmem:[%s478] sm:$0xf]
      %v480 = vld [vmem:[%s478 + $0x4] sm:$0xf]
      %v481 = vld [vmem:[%s478 + $0x8] sm:$0xf]
      %v482 = vld [vmem:[%s478 + $0xc] sm:$0xf]
      %v483 = vld [vmem:[%s478 + $0x10] sm:$0xf]
      %v484 = vld [vmem:[%s478 + $0x14] sm:$0xf]
      %v485 = vld [vmem:[%s478 + $0x18] sm:$0xf]
      %v486 = vld [vmem:[%s478 + $0x1c] sm:$0xf]
      %v487 = vld [vmem:[%s478 + $0x20] sm:$0xf]
      %v488 = vld [vmem:[%s478 + $0x24] sm:$0xf]
      %v489 = vld [vmem:[%s478 + $0x28] sm:$0xf]
      %v490 = vld [vmem:[%s478 + $0x2c] sm:$0xf]
      %v491 = vld [vmem:[%s478 + $0x30] sm:$0xf]
      %v492 = vld [vmem:[%s478 + $0x34] sm:$0xf]
      %v493 = vld [vmem:[%s478 + $0x38] sm:$0xf]
      %v494 = vld [vmem:[%s478 + $0x3c] sm:$0xf]
      %v495 = vrot.slane %v272, 1
      %v513 = vunpack.c.l.b16 %v479
      %v514 = vunpack.c.l.b16 %v480
      %v515 = vunpack.c.l.b16 %v481
      %v516 = vunpack.c.l.b16 %v482
      %v517 = vunpack.c.l.b16 %v483
      %v518 = vunpack.c.l.b16 %v484
      %v519 = vunpack.c.l.b16 %v485
      %v520 = vunpack.c.l.b16 %v486
      %v521 = vunpack.c.l.b16 %v487
      %v522 = vunpack.c.l.b16 %v488
      %v523 = vunpack.c.l.b16 %v489
      %v524 = vunpack.c.l.b16 %v490
      %v525 = vunpack.c.l.b16 %v491
      %v526 = vunpack.c.l.b16 %v492
      %v527 = vunpack.c.l.b16 %v493
      %v528 = vunpack.c.l.b16 %v494
      %v529 = vpack.c.b16 %v514, %v513
      %v530 = vpack.c.b16 %v516, %v515
      %v531 = vpack.c.b16 %v518, %v517
      %v532 = vpack.c.b16 %v520, %v519
      %v533 = vpack.c.b16 %v522, %v521
      %v534 = vpack.c.b16 %v524, %v523
      %v535 = vpack.c.b16 %v526, %v525
      %v536 = vpack.c.b16 %v528, %v527
      %545 = vmatpush.bf16.msra.mxu0 %v536
      %546 = vmatpush.bf16.msra.mxu0 %v535
      %547 = vmatpush.bf16.msra.mxu0 %v534
      %548 = vmatpush.bf16.msra.mxu0 %v533
      %549 = vmatpush.bf16.msra.mxu0 %v532
      %550 = vmatpush.bf16.msra.mxu0 %v531
      %551 = vmatpush.bf16.msra.mxu0 %v530
      %552 = vmatpush.bf16.msra.mxu0 %v529
      %553 = vmatmul.bf16.gmra.mxu0 %v495
      %v554 = vpop.f32.mrf.mxu0
      %v555 = vadd.f32 0.0, %v554
      %v556 = vpop.f32.mrf.mxu0
      %557 = vdwg.mxu0
      %v558 = vadd.f32 %v477, %v555
      %v559 = vadd.f32 %v558, %v234
      %v560 = vpack.c.bf16 %v559, %v559
      %vm561 = vcmask 516096
      %vm562 = vsmask.f32 256
      %vm563 = vmand %vm561, %vm562
      %v564 = vld [vmem:[%s217] sm:$0x1]
      %v565 = vsel %vm563, %v560, %v564
      %566 = vst [vmem:[%s217] sm:$0x1] %v565
      %p567 = scmp.lt.s32.totalorder %s16, 1
      %s568 = scalar_select %p567, %s16, 1
      %s569 = scalar_lea.vmem %s5, %s568
      // Predicated region
      $region41: #{unet_forward.12} parent=39 // pred_check
        %p570 = pneg %p144
      $region42: #{unet_forward.12} parent=39 // pred_check_branch
        %572 = sbr.rel (%p570) target = $region44
      $region43: #{unet_forward.12} parent=39 // pred_region
        _
      $region44: #{unet_forward.12} parent=39 // pred_fallthru
        _
    $region40: #{unet_forward.12} parent=5 // pred_fallthru
      _
    %p573 = scmp.le.s32.totalorder 2, %s11
    // Predicated region
    $region45: #{unet_forward.12} parent=5 // pred_check
      %p574 = pneg %p573
    $region46: #{unet_forward.12} parent=5 // pred_check_branch
      %576 = sbr.rel (%p574) target = $region48
    $region47: #{unet_forward.12} parent=5 // pred_region
      %s577 = ssub.s32 %s11, 2
      // Predicated region
      $region49: #{unet_forward.12} parent=47 // pred_check
        %p578 = pneg %p150
      $region50: #{unet_forward.12} parent=47 // pred_check_branch
        %580 = sbr.rel (%p578) target = $region52
      $region51: #{unet_forward.12} parent=47 // pred_region
        %p581 = scmp.lt.s32.totalorder %s17, 1
        %s582 = scalar_select %p581, %s17, 1
        %s583 = scalar_lea.vmem %s5, %s582
      $region52: #{unet_forward.12} parent=47 // pred_fallthru
        _
    $region48: #{unet_forward.12} parent=5 // pred_fallthru
      _
  $region6: #{unet_forward.12} parent=0 // loop_footer
    %s15 = sadd.s32 1, %s11
  $region7: #{unet_forward.12} parent=0 // loop_footer_branch
    %10 = sbr.rel target = $region3
  $region8: #{unet_forward.12} parent=0 // loop_exit
    _

// kernel: unet_forward.13
$region0: #{unet_forward.13}
  #allocation0 [shape = 'u32[]', space=smem, size = 0x4, offset = 0x4, fixed_abs, tag = 'smem constant byte address 0x4 - core index']
  #allocation1 [shape = 'u32[72,128]{1,0:T(1,128)}', space=vmem, size = 0x9000, scoped, tag = 'internal scratch']
  %s0 = inlined_call_operand.vmem [shape: bf16[2,9,64], index: 0, kind: input, shape index: {}]
  %s1 = inlined_call_operand.vmem [shape: bf16[4,4,64,32], index: 1, kind: input, shape index: {}]
  %s2 = inlined_call_operand.vmem [shape: f32[1,32], index: 2, kind: input, shape index: {}]
  %s3 = inlined_call_operand.vmem [shape: bf16[2,1,128], index: 3, kind: output, shape index: {0}]
  %s4 = inlined_call_operand.vmem [shape: f32[2,1,32], index: 4, kind: output, shape index: {1}]
  %s5 = inlined_call_operand.vmem [shape: f32[2,1,32], index: 5, kind: output, shape index: {2}]
  %6 = xla_tuple %s3, %s4, %s5
  %s7 = sld [smem:[#allocation0]]
  $region61: #{unet_forward.13} parent=0
    _
  %s9 = ssub.s32 1, %s7
  %s10 = scalar_select 0, %s9, %s7
  loop: start=0, step=1, limit=4
  $region2: #{unet_forward.13} parent=0 // loop_pre_header
    _
  $region3: #{unet_forward.13} parent=0 // loop_header
    %s12 = sphi 0, %s16
    %p13 = scmp.ge.s32.totalorder %s12, 4
    %s22 = sphi 0, %s24
    %s25 = sphi 0, %s22
    %s26 = sphi 0, %s25
    %s42 = sphi 0, %s26
    %s46 = sphi 0, %s46
    %s48 = sphi 0, %s46
    %s49 = sphi 0, %s48
    %s63 = sphi 0, %s49
    %s67 = sphi 0, %s67
    %s69 = sphi 0, %s67
    %s70 = sphi 0, %s69
    %s84 = sphi 0, %s70
    %s90 = sphi 0, %s92
    %s93 = sphi 0, %s90
    %s94 = sphi 0, %s93
    %s110 = sphi 0, %s94
    %s116 = sphi 0, %s118
    %s119 = sphi 0, %s116
    %s120 = sphi 0, %s119
    %s136 = sphi 0, %s120
    %s142 = sphi 0, %s144
    %s145 = sphi 0, %s142
    %s146 = sphi 0, %s145
    %s162 = sphi 0, %s146
  $region4: #{unet_forward.13} parent=0 // loop_header_branch
    %15 = sbr.rel (%p13) target = $region8
  $region5: #{unet_forward.13} parent=0 // loop_body
    %s17 = ssub.s32 %s12, 1
    %s18 = ssub.s32 %s12, 2
    %s19 = sadd.s32 %s12, 1
    %s20 = ssub.s32 %s12, %s19
    %p21 = scmp.eq.s32.totalorder %s20, 0
    %s23 = sadd.s32 %s22, 1
    %s24 = scalar_select %p21, %s22, %s23
    %p27 = pneg %p21
    %p28 = scmp.eq.s32.totalorder %s12, 1
    %p29 = por %p27, %p28
    %p30 = scmp.ne.s32.totalorder %s22, %s25
    %p31 = scmp.eq.s32.totalorder %s12, 0
    %p32 = por %p30, %p31
    %p33 = scmp.ne.s32.totalorder %s22, %s25
    %p34 = scmp.eq.s32.totalorder %s17, 1
    %p35 = por %p33, %p34
    %p36 = scmp.ne.s32.totalorder %s25, %s26
    %p37 = scmp.eq.s32.totalorder %s17, 0
    %p38 = por %p36, %p37
    %p39 = scmp.ne.s32.totalorder %s25, %s26
    %p40 = scmp.eq.s32.totalorder %s18, 1
    %p41 = por %p39, %p40
    %p43 = scmp.ne.s32.totalorder %s26, %s42
    %p44 = scmp.eq.s32.totalorder %s18, 0
    %p45 = por %p43, %p44
    %s47 = sadd.s32 %s46, 1
    %p50 = scmp.eq.s32.totalorder %s12, 1
    %p51 = scmp.ne.s32.totalorder %s46, %s48
    %p52 = scmp.eq.s32.totalorder %s12, 0
    %p53 = por %p51, %p52
    %p54 = scmp.ne.s32.totalorder %s46, %s48
    %p55 = scmp.eq.s32.totalorder %s17, 1
    %p56 = por %p54, %p55
    %p57 = scmp.ne.s32.totalorder %s48, %s49
    %p58 = scmp.eq.s32.totalorder %s17, 0
    %p59 = por %p57, %p58
    %p60 = scmp.ne.s32.totalorder %s48, %s49
    %p61 = scmp.eq.s32.totalorder %s18, 1
    %p62 = por %p60, %p61
    %p64 = scmp.ne.s32.totalorder %s49, %s63
    %p65 = scmp.eq.s32.totalorder %s18, 0
    %p66 = por %p64, %p65
    %s68 = sadd.s32 %s67, 1
    %p71 = scmp.eq.s32.totalorder %s12, 1
    %p72 = scmp.ne.s32.totalorder %s67, %s69
    %p73 = scmp.eq.s32.totalorder %s12, 0
    %p74 = por %p72, %p73
    %p75 = scmp.ne.s32.totalorder %s67, %s69
    %p76 = scmp.eq.s32.totalorder %s17, 1
    %p77 = por %p75, %p76
    %p78 = scmp.ne.s32.totalorder %s69, %s70
    %p79 = scmp.eq.s32.totalorder %s17, 0
    %p80 = por %p78, %p79
    %p81 = scmp.ne.s32.totalorder %s69, %s70
    %p82 = scmp.eq.s32.totalorder %s18, 1
    %p83 = por %p81, %p82
    %p85 = scmp.ne.s32.totalorder %s70, %s84
    %p86 = scmp.eq.s32.totalorder %s18, 0
    %p87 = por %p85, %p86
    %s88 = ssub.s32 %s12, %s19
    %p89 = scmp.eq.s32.totalorder %s88, 0
    %s91 = sadd.s32 %s90, 1
    %s92 = scalar_select %p89, %s90, %s91
    %p95 = pneg %p89
    %p96 = scmp.eq.s32.totalorder %s12, 1
    %p97 = por %p95, %p96
    %p98 = scmp.ne.s32.totalorder %s90, %s93
    %p99 = scmp.eq.s32.totalorder %s12, 0
    %p100 = por %p98, %p99
    %p101 = scmp.ne.s32.totalorder %s90, %s93
    %p102 = scmp.eq.s32.totalorder %s17, 1
    %p103 = por %p101, %p102
    %p104 = scmp.ne.s32.totalorder %s93, %s94
    %p105 = scmp.eq.s32.totalorder %s17, 0
    %p106 = por %p104, %p105
    %p107 = scmp.ne.s32.totalorder %s93, %s94
    %p108 = scmp.eq.s32.totalorder %s18, 1
    %p109 = por %p107, %p108
    %p111 = scmp.ne.s32.totalorder %s94, %s110
    %p112 = scmp.eq.s32.totalorder %s18, 0
    %p113 = por %p111, %p112
    %s114 = ssub.s32 %s12, %s19
    %p115 = scmp.eq.s32.totalorder %s114, 0
    %s117 = sadd.s32 %s116, 1
    %s118 = scalar_select %p115, %s116, %s117
    %p121 = pneg %p115
    %p122 = scmp.eq.s32.totalorder %s12, 1
    %p123 = por %p121, %p122
    %p124 = scmp.ne.s32.totalorder %s116, %s119
    %p125 = scmp.eq.s32.totalorder %s12, 0
    %p126 = por %p124, %p125
    %p127 = scmp.ne.s32.totalorder %s116, %s119
    %p128 = scmp.eq.s32.totalorder %s17, 1
    %p129 = por %p127, %p128
    %p130 = scmp.ne.s32.totalorder %s119, %s120
    %p131 = scmp.eq.s32.totalorder %s17, 0
    %p132 = por %p130, %p131
    %p133 = scmp.ne.s32.totalorder %s119, %s120
    %p134 = scmp.eq.s32.totalorder %s18, 1
    %p135 = por %p133, %p134
    %p137 = scmp.ne.s32.totalorder %s120, %s136
    %p138 = scmp.eq.s32.totalorder %s18, 0
    %p139 = por %p137, %p138
    %s140 = ssub.s32 %s12, %s19
    %p141 = scmp.eq.s32.totalorder %s140, 0
    %s143 = sadd.s32 %s142, 1
    %s144 = scalar_select %p141, %s142, %s143
    %p147 = pneg %p141
    %p148 = scmp.eq.s32.totalorder %s12, 1
    %p149 = por %p147, %p148
    %p150 = scmp.ne.s32.totalorder %s142, %s145
    %p151 = scmp.eq.s32.totalorder %s12, 0
    %p152 = por %p150, %p151
    %p153 = scmp.ne.s32.totalorder %s142, %s145
    %p154 = scmp.eq.s32.totalorder %s17, 1
    %p155 = por %p153, %p154
    %p156 = scmp.ne.s32.totalorder %s145, %s146
    %p157 = scmp.eq.s32.totalorder %s17, 0
    %p158 = por %p156, %p157
    %p159 = scmp.ne.s32.totalorder %s145, %s146
    %p160 = scmp.eq.s32.totalorder %s18, 1
    %p161 = por %p159, %p160
    %p163 = scmp.ne.s32.totalorder %s146, %s162
    %p164 = scmp.eq.s32.totalorder %s18, 0
    %p165 = por %p163, %p164
    %p166 = scmp.le.s32.totalorder 1, %s12
    %p167 = scmp.lt.s32.totalorder %s12, 3
    %p168 = pnand %p166, %p167
    %p169 = pneg %p168
    // Predicated region
    $region9: #{unet_forward.13} parent=5 // pred_check
      _
    $region10: #{unet_forward.13} parent=5 // pred_check_branch
      %171 = sbr.rel (%p168) target = $region12
    $region11: #{unet_forward.13} parent=5 // pred_region
      %s172 = ssub.s32 %s12, 1
      // Predicated region
      $region13: #{unet_forward.13} parent=11 // pred_check
        %p173 = pneg %p59
      $region14: #{unet_forward.13} parent=11 // pred_check_branch
        %175 = sbr.rel (%p173) target = $region16
      $region15: #{unet_forward.13} parent=11 // pred_region
        _
      $region16: #{unet_forward.13} parent=11 // pred_fallthru
        _
      // Predicated region
      $region17: #{unet_forward.13} parent=11 // pred_check
        %p176 = pneg %p80
      $region18: #{unet_forward.13} parent=11 // pred_check_branch
        %178 = sbr.rel (%p176) target = $region20
      $region19: #{unet_forward.13} parent=11 // pred_region
        _
      $region20: #{unet_forward.13} parent=11 // pred_fallthru
        _
    $region12: #{unet_forward.13} parent=5 // pred_fallthru
      _
    %p179 = scmp.lt.s32.totalorder %s12, 2
    // Predicated region
    $region21: #{unet_forward.13} parent=5 // pred_check
      %p180 = pneg %p179
    $region22: #{unet_forward.13} parent=5 // pred_check_branch
      %182 = sbr.rel (%p180) target = $region24
    $region23: #{unet_forward.13} parent=5 // pred_region
      // Predicated region
      $region25: #{unet_forward.13} parent=23 // pred_check
        %p183 = pneg %p32
      $region26: #{unet_forward.13} parent=23 // pred_check_branch
        %185 = sbr.rel (%p183) target = $region28
      $region27: #{unet_forward.13} parent=23 // pred_region
        %p186 = scmp.lt.s32.totalorder %s12, 1
        %s187 = scalar_select %p186, %s12, 1
        %s188 = smul.addr %s187, 2
        %s189 = smul.addr %s188, 4
        %s190 = scalar_lea.vmem %s0, %s189
      $region28: #{unet_forward.13} parent=23 // pred_fallthru
        _
    $region24: #{unet_forward.13} parent=5 // pred_fallthru
      _
    %p191 = scmp.le.s32.totalorder 1, %s12
    %p192 = scmp.lt.s32.totalorder %s12, 3
    %p193 = pnand %p191, %p192
    %p194 = pneg %p193
    // Predicated region
    $region29: #{unet_forward.13} parent=5 // pred_check
      _
    $region30: #{unet_forward.13} parent=5 // pred_check_branch
      %196 = sbr.rel (%p193) target = $region32
    $region31: #{unet_forward.13} parent=5 // pred_region
      %s197 = ssub.s32 %s12, 1
      %p198 = scmp.lt.s32.totalorder %s17, 1
      %s199 = scalar_select %p198, %s17, 1
      %s200 = smul.addr %s199, 2
      %s201 = smul.addr %s200, 4
      %s202 = scalar_lea.vmem %s0, %s201
      %p203 = pneg %p38
      %p204 = pneg %p35
      %p205 = pneg %p59
      %p206 = pneg %p56
      %p207 = pneg %p80
      %p208 = pneg %p77
      %p209 = pneg %p106
      %p210 = pneg %p103
      %p211 = scmp.lt.s32.totalorder %s17, 1
      %s212 = scalar_select %p211, %s17, 1
      %s213 = scalar_lea.vmem %s3, %s212
      %p214 = pneg %p132
      %p215 = pneg %p129
      %p216 = scmp.lt.s32.totalorder %s17, 1
      %s217 = scalar_select %p216, %s17, 1
      %s218 = scalar_lea.vmem %s4, %s217
      %p219 = pneg %p158
      %p220 = pneg %p155
      %p221 = scmp.lt.s32.totalorder %s17, 1
      %s222 = scalar_select %p221, %s17, 1
      %s223 = scalar_lea.vmem %s5, %s222
      %p224 = scmp.lt.s32.totalorder %s17, 1
      %s225 = scalar_select %p224, %s17, 1
      %s226 = smul.addr %s225, 2
      %s227 = smul.addr %s226, 4
      %s228 = scalar_lea.vmem %s0, %s227
      %p229 = scmp.lt.s32.totalorder %s17, 1
      %s230 = scalar_select %p229, %s17, 1
      %s231 = scalar_lea.vmem %s3, %s230
      %p232 = scmp.lt.s32.totalorder %s17, 1
      %s233 = scalar_select %p232, %s17, 1
      %s234 = scalar_lea.vmem %s4, %s233
      %p235 = scmp.lt.s32.totalorder %s17, 1
      %s236 = scalar_select %p235, %s17, 1
      %s237 = scalar_lea.vmem %s5, %s236
      %v239 = vld [vmem:[%s228] sm:$0xf]
      %v240 = vld [vmem:[%s228 + $0x4] sm:$0x1]
      %v241 = vunpack.c.l.bf16 %v239
      %v242 = vunpack.c.l.bf16 %v240
      %v243 = vmax.f32 %v241, 0.0
      %v244 = vmax.f32 %v242, 0.0
      %v245 = vpack.c.bf16 %v243, %v243
      %v246 = vpack.c.bf16 %v244, %v244
      %v247 = vld [vmem:[%s2] sm:$0x1]
      %v248 = vlaneseq
      %v249 = vshrl.u32 %v248, 7
      %vm250 = vcmp.lt.s32.totalorder %v249, 0
      %v251 = vsub.s32 0, %v249
      %v252 = vsel %vm250, %v251, %v249
      %v253 = vand.u32 %v252, 65535
      %v254 = vshrl.u32 %v252, 16
      %v256 = vmul.u32 %v253, 43691
      %v257 = vmul.u32 %v253, 43690
      %v258 = vmul.u32 %v254, 43691
      %v259 = vmul.u32 %v254, 43690
      %v260 = vshll.u32 %v257, 16
      %v261 = vshrl.u32 %v257, 16
      %v262 = vshll.u32 %v258, 16
      %v263 = vshrl.u32 %v258, 16
      %vm264 = vc.u32 %v256, %v260
      %v265 = vsel %vm264, 1, 0
      %v266 = vadd.s32 %v256, %v260
      %v267 = vadd.s32 %v259, %v265
      %vm268 = vc.u32 %v266, %v262
      %v269 = vsel %vm268, 1, 0
      %v270 = vadd.s32 %v266, %v262
      %v271 = vadd.s32 %v267, %v269
      %v272 = vadd.s32 %v271, %v261
      %v273 = vadd.s32 %v272, %v263
      %v274 = vshrl.u32 %v273, 1
      %v275 = vmul.u32 %v274, 3
      %v276 = vsub.s32 %v252, %v275
      %v277 = vsub.s32 0, %v276
      %v278 = vsel %vm250, %v277, %v276
      %vm279 = vcmp.ne.s32.totalorder %v278, 0
      %vm280 = vcmp.lt.s32.totalorder %v278, 0
      %vm281 = vmand %vm280, %vm279
      %v282 = vadd.s32 %v278, 3
      %v283 = vsel %vm281, %v282, %v278
      %vm284 = vcmp.lt.s32.totalorder %v283, 1
      %v285 = vsel %vm284, 1, 0
      %v286 = vcvt.s32.f32 %v285
      %v287 = vld [vmem:[%s1] sm:$0xf]
      %v288 = vld [vmem:[%s1 + $0x4] sm:$0xf]
      %v289 = vld [vmem:[%s1 + $0x8] sm:$0xf]
      %v290 = vld [vmem:[%s1 + $0xc] sm:$0xf]
      %v291 = vld [vmem:[%s1 + $0x10] sm:$0xf]
      %v292 = vld [vmem:[%s1 + $0x14] sm:$0xf]
      %v293 = vld [vmem:[%s1 + $0x18] sm:$0xf]
      %v294 = vld [vmem:[%s1 + $0x1c] sm:$0xf]
      %s295 = scalar_lea.vmem %s1, 32
      %v296 = vld [vmem:[%s295] sm:$0xf]
      %v297 = vld [vmem:[%s295 + $0x4] sm:$0xf]
      %v298 = vld [vmem:[%s295 + $0x8] sm:$0xf]
      %v299 = vld [vmem:[%s295 + $0xc] sm:$0xf]
      %v300 = vld [vmem:[%s295 + $0x10] sm:$0xf]
      %v301 = vld [vmem:[%s295 + $0x14] sm:$0xf]
      %v302 = vld [vmem:[%s295 + $0x18] sm:$0xf]
      %v303 = vld [vmem:[%s295 + $0x1c] sm:$0xf]
      %v305 = vunpack.c.l.b16 %v245
      %v306 = vpack.c.b16 %v305, %v305
      %v308 = vshrl.u32 %v306, 16
      %v318 = vunpack.c.l.b16 %v296
      %v319 = vunpack.c.l.b16 %v297
      %v320 = vunpack.c.l.b16 %v298
      %v321 = vunpack.c.l.b16 %v299
      %v322 = vunpack.c.l.b16 %v300
      %v323 = vunpack.c.l.b16 %v301
      %v324 = vunpack.c.l.b16 %v302
      %v325 = vunpack.c.l.b16 %v303
      %v326 = vpack.c.b16 %v319, %v318
      %v327 = vpack.c.b16 %v321, %v320
      %v328 = vpack.c.b16 %v323, %v322
      %v329 = vpack.c.b16 %v325, %v324
      %vm334 = vcmask 523264
      %v336 = vsel %vm334, %v308, 0
      %338 = vmatpush.bf16.msra.mxu0 0
      %339 = vmatpush.bf16.msra.mxu0 0
      %340 = vmatpush.bf16.msra.mxu0 0
      %341 = vmatpush.bf16.msra.mxu0 0
      %342 = vmatpush.bf16.msra.mxu0 %v329
      %343 = vmatpush.bf16.msra.mxu0 %v328
      %344 = vmatpush.bf16.msra.mxu0 %v327
      %345 = vmatpush.bf16.msra.mxu0 %v326
      %346 = vmatmul.bf16.gmra.mxu0 %v336
      %v347 = vpop.f32.mrf.mxu0
      %v348 = vadd.f32 0.0, %v347
      %v349 = vpop.f32.mrf.mxu0
      %350 = vdwg.mxu0
      %v359 = vunpack.c.l.b16 %v287
      %v360 = vunpack.c.l.b16 %v288
      %v361 = vunpack.c.l.b16 %v289
      %v362 = vunpack.c.l.b16 %v290
      %v363 = vunpack.c.l.b16 %v291
      %v364 = vunpack.c.l.b16 %v292
      %v365 = vunpack.c.l.b16 %v293
      %v366 = vunpack.c.l.b16 %v294
      %v367 = vpack.c.b16 %v360, %v359
      %v368 = vpack.c.b16 %v362, %v361
      %v369 = vpack.c.b16 %v364, %v363
      %v370 = vpack.c.b16 %v366, %v365
      %v376 = vsel %vm334, %v245, 0
      %378 = vmatpush.bf16.msra.mxu0 0
      %379 = vmatpush.bf16.msra.mxu0 0
      %380 = vmatpush.bf16.msra.mxu0 0
      %381 = vmatpush.bf16.msra.mxu0 0
      %382 = vmatpush.bf16.msra.mxu0 %v370
      %383 = vmatpush.bf16.msra.mxu0 %v369
      %384 = vmatpush.bf16.msra.mxu0 %v368
      %385 = vmatpush.bf16.msra.mxu0 %v367
      %386 = vmatmul.bf16.gmra.mxu0 %v376
      %v387 = vpop.f32.mrf.mxu0
      %v388 = vadd.f32 %v348, %v387
      %v389 = vpop.f32.mrf.mxu0
      %390 = vdwg.mxu0
      %s391 = scalar_lea.vmem %s1, 64
      %v392 = vld [vmem:[%s391] sm:$0xf]
      %v393 = vld [vmem:[%s391 + $0x4] sm:$0xf]
      %v394 = vld [vmem:[%s391 + $0x8] sm:$0xf]
      %v395 = vld [vmem:[%s391 + $0xc] sm:$0xf]
      %v396 = vld [vmem:[%s391 + $0x10] sm:$0xf]
      %v397 = vld [vmem:[%s391 + $0x14] sm:$0xf]
      %v398 = vld [vmem:[%s391 + $0x18] sm:$0xf]
      %v399 = vld [vmem:[%s391 + $0x1c] sm:$0xf]
      %v400 = vrot.slane %v308, 1
      %v409 = vunpack.c.l.b16 %v392
      %v410 = vunpack.c.l.b16 %v393
      %v411 = vunpack.c.l.b16 %v394
      %v412 = vunpack.c.l.b16 %v395
      %v413 = vunpack.c.l.b16 %v396
      %v414 = vunpack.c.l.b16 %v397
      %v415 = vunpack.c.l.b16 %v398
      %v416 = vunpack.c.l.b16 %v399
      %v417 = vpack.c.b16 %v410, %v409
      %v418 = vpack.c.b16 %v412, %v411
      %v419 = vpack.c.b16 %v414, %v413
      %v420 = vpack.c.b16 %v416, %v415
      %v426 = vsel %vm334, %v400, 0
      %428 = vmatpush.bf16.msra.mxu0 0
      %429 = vmatpush.bf16.msra.mxu0 0
      %430 = vmatpush.bf16.msra.mxu0 0
      %431 = vmatpush.bf16.msra.mxu0 0
      %432 = vmatpush.bf16.msra.mxu0 %v420
      %433 = vmatpush.bf16.msra.mxu0 %v419
      %434 = vmatpush.bf16.msra.mxu0 %v418
      %435 = vmatpush.bf16.msra.mxu0 %v417
      %436 = vmatmul.bf16.gmra.mxu0 %v426
      %v437 = vpop.f32.mrf.mxu0
      %v438 = vadd.f32 0.0, %v437
      %v439 = vpop.f32.mrf.mxu0
      %440 = vdwg.mxu0
      %v441 = vadd.f32 %v388, %v438
      %s442 = scalar_lea.vmem %s1, 96
      %v443 = vld [vmem:[%s442] sm:$0xf]
      %v444 = vld [vmem:[%s442 + $0x4] sm:$0xf]
      %v445 = vld [vmem:[%s442 + $0x8] sm:$0xf]
      %v446 = vld [vmem:[%s442 + $0xc] sm:$0xf]
      %v447 = vld [vmem:[%s442 + $0x10] sm:$0xf]
      %v448 = vld [vmem:[%s442 + $0x14] sm:$0xf]
      %v449 = vld [vmem:[%s442 + $0x18] sm:$0xf]
      %v450 = vld [vmem:[%s442 + $0x1c] sm:$0xf]
      %v451 = vrot.slane %v306, 2
      %v460 = vunpack.c.l.b16 %v443
      %v461 = vunpack.c.l.b16 %v444
      %v462 = vunpack.c.l.b16 %v445
      %v463 = vunpack.c.l.b16 %v446
      %v464 = vunpack.c.l.b16 %v447
      %v465 = vunpack.c.l.b16 %v448
      %v466 = vunpack.c.l.b16 %v449
      %v467 = vunpack.c.l.b16 %v450
      %v468 = vpack.c.b16 %v461, %v460
      %v469 = vpack.c.b16 %v463, %v462
      %v470 = vpack.c.b16 %v465, %v464
      %v471 = vpack.c.b16 %v467, %v466
      %v477 = vsel %vm334, %v451, 0
      %479 = vmatpush.bf16.msra.mxu0 0
      %480 = vmatpush.bf16.msra.mxu0 0
      %481 = vmatpush.bf16.msra.mxu0 0
      %482 = vmatpush.bf16.msra.mxu0 0
      %483 = vmatpush.bf16.msra.mxu0 %v471
      %484 = vmatpush.bf16.msra.mxu0 %v470
      %485 = vmatpush.bf16.msra.mxu0 %v469
      %486 = vmatpush.bf16.msra.mxu0 %v468
      %487 = vmatmul.bf16.gmra.mxu0 %v477
      %v488 = vpop.f32.mrf.mxu0
      %v489 = vadd.f32 0.0, %v488
      %v490 = vpop.f32.mrf.mxu0
      %491 = vdwg.mxu0
      %v492 = vadd.f32 %v441, %v489
      %v493 = vadd.f32 %v492, %v247
      %v494 = vmul.f32 %v493, %v286
      %v495 = vadd.f32 %v494, 0.0
      %v496 = vadd.f32 %v495, 0.0
      %v497 = vmul.f32 %v493, %v494
      %v498 = vadd.f32 %v497, 0.0
      %v499 = vadd.f32 %v498, 0.0
      %v500 = vpack.c.bf16 %v493, %v493
      %vm501 = vcmask 253952
      %vm502 = vsmask.f32 256
      %vm503 = vmand %vm501, %vm502
      %v504 = vld [vmem:[%s231] sm:$0x1]
      %v505 = vsel %vm503, %v500, %v504
      %506 = vst [vmem:[%s231] sm:$0x1] %v505
      %s507 = scalar_lea.vmem %s1, 128
      %v508 = vld [vmem:[%s507] sm:$0xf]
      %v509 = vld [vmem:[%s507 + $0x4] sm:$0xf]
      %v510 = vld [vmem:[%s507 + $0x8] sm:$0xf]
      %v511 = vld [vmem:[%s507 + $0xc] sm:$0xf]
      %v512 = vld [vmem:[%s507 + $0x10] sm:$0xf]
      %v513 = vld [vmem:[%s507 + $0x14] sm:$0xf]
      %v514 = vld [vmem:[%s507 + $0x18] sm:$0xf]
      %v515 = vld [vmem:[%s507 + $0x1c] sm:$0xf]
      %s516 = scalar_lea.vmem %s1, 160
      %v517 = vld [vmem:[%s516] sm:$0xf]
      %v518 = vld [vmem:[%s516 + $0x4] sm:$0xf]
      %v519 = vld [vmem:[%s516 + $0x8] sm:$0xf]
      %v520 = vld [vmem:[%s516 + $0xc] sm:$0xf]
      %v521 = vld [vmem:[%s516 + $0x10] sm:$0xf]
      %v522 = vld [vmem:[%s516 + $0x14] sm:$0xf]
      %v523 = vld [vmem:[%s516 + $0x18] sm:$0xf]
      %v524 = vld [vmem:[%s516 + $0x1c] sm:$0xf]
      %v525 = vrot.slane %v306, 1
      %v534 = vunpack.c.l.b16 %v517
      %v535 = vunpack.c.l.b16 %v518
      %v536 = vunpack.c.l.b16 %v519
      %v537 = vunpack.c.l.b16 %v520
      %v538 = vunpack.c.l.b16 %v521
      %v539 = vunpack.c.l.b16 %v522
      %v540 = vunpack.c.l.b16 %v523
      %v541 = vunpack.c.l.b16 %v524
      %v542 = vpack.c.b16 %v535, %v534
      %v543 = vpack.c.b16 %v537, %v536
      %v544 = vpack.c.b16 %v539, %v538
      %v545 = vpack.c.b16 %v541, %v540
      %v551 = vsel %vm334, %v525, 0
      %553 = vmatpush.bf16.msra.mxu0 0
      %554 = vmatpush.bf16.msra.mxu0 0
      %555 = vmatpush.bf16.msra.mxu0 0
      %556 = vmatpush.bf16.msra.mxu0 0
      %557 = vmatpush.bf16.msra.mxu0 %v545
      %558 = vmatpush.bf16.msra.mxu0 %v544
      %559 = vmatpush.bf16.msra.mxu0 %v543
      %560 = vmatpush.bf16.msra.mxu0 %v542
      %561 = vmatmul.bf16.gmra.mxu0 %v551
      %v562 = vpop.f32.mrf.mxu0
      %v563 = vadd.f32 0.0, %v562
      %v564 = vpop.f32.mrf.mxu0
      %565 = vdwg.mxu0
      %v574 = vunpack.c.l.b16 %v508
      %v575 = vunpack.c.l.b16 %v509
      %v576 = vunpack.c.l.b16 %v510
      %v577 = vunpack.c.l.b16 %v511
      %v578 = vunpack.c.l.b16 %v512
      %v579 = vunpack.c.l.b16 %v513
      %v580 = vunpack.c.l.b16 %v514
      %v581 = vunpack.c.l.b16 %v515
      %v582 = vpack.c.b16 %v575, %v574
      %v583 = vpack.c.b16 %v577, %v576
      %v584 = vpack.c.b16 %v579, %v578
      %v585 = vpack.c.b16 %v581, %v580
      %590 = vmatpush.bf16.msra.mxu0 0
      %591 = vmatpush.bf16.msra.mxu0 0
      %592 = vmatpush.bf16.msra.mxu0 0
      %593 = vmatpush.bf16.msra.mxu0 0
      %594 = vmatpush.bf16.msra.mxu0 %v585
      %595 = vmatpush.bf16.msra.mxu0 %v584
      %596 = vmatpush.bf16.msra.mxu0 %v583
      %597 = vmatpush.bf16.msra.mxu0 %v582
      %598 = vmatmul.bf16.gmra.mxu0 %v336
      %v599 = vpop.f32.mrf.mxu0
      %v600 = vadd.f32 %v563, %v599
      %v601 = vpop.f32.mrf.mxu0
      %602 = vdwg.mxu0
      %s603 = scalar_lea.vmem %s1, 192
      %v604 = vld [vmem:[%s603] sm:$0xf]
      %v605 = vld [vmem:[%s603 + $0x4] sm:$0xf]
      %v606 = vld [vmem:[%s603 + $0x8] sm:$0xf]
      %v607 = vld [vmem:[%s603 + $0xc] sm:$0xf]
      %v608 = vld [vmem:[%s603 + $0x10] sm:$0xf]
      %v609 = vld [vmem:[%s603 + $0x14] sm:$0xf]
      %v610 = vld [vmem:[%s603 + $0x18] sm:$0xf]
      %v611 = vld [vmem:[%s603 + $0x1c] sm:$0xf]
      %v620 = vunpack.c.l.b16 %v604
      %v621 = vunpack.c.l.b16 %v605
      %v622 = vunpack.c.l.b16 %v606
      %v623 = vunpack.c.l.b16 %v607
      %v624 = vunpack.c.l.b16 %v608
      %v625 = vunpack.c.l.b16 %v609
      %v626 = vunpack.c.l.b16 %v610
      %v627 = vunpack.c.l.b16 %v611
      %v628 = vpack.c.b16 %v621, %v620
      %v629 = vpack.c.b16 %v623, %v622
      %v630 = vpack.c.b16 %v625, %v624
      %v631 = vpack.c.b16 %v627, %v626
      %636 = vmatpush.bf16.msra.mxu0 0
      %637 = vmatpush.bf16.msra.mxu0 0
      %638 = vmatpush.bf16.msra.mxu0 0
      %639 = vmatpush.bf16.msra.mxu0 0
      %640 = vmatpush.bf16.msra.mxu0 %v631
      %641 = vmatpush.bf16.msra.mxu0 %v630
      %642 = vmatpush.bf16.msra.mxu0 %v629
      %643 = vmatpush.bf16.msra.mxu0 %v628
      %644 = vmatmul.bf16.gmra.mxu0 %v477
      %v645 = vpop.f32.mrf.mxu0
      %v646 = vadd.f32 0.0, %v645
      %v647 = vpop.f32.mrf.mxu0
      %648 = vdwg.mxu0
      %v649 = vadd.f32 %v600, %v646
      %s650 = scalar_lea.vmem %s1, 224
      %v651 = vld [vmem:[%s650] sm:$0xf]
      %v652 = vld [vmem:[%s650 + $0x4] sm:$0xf]
      %v653 = vld [vmem:[%s650 + $0x8] sm:$0xf]
      %v654 = vld [vmem:[%s650 + $0xc] sm:$0xf]
      %v655 = vld [vmem:[%s650 + $0x10] sm:$0xf]
      %v656 = vld [vmem:[%s650 + $0x14] sm:$0xf]
      %v657 = vld [vmem:[%s650 + $0x18] sm:$0xf]
      %v658 = vld [vmem:[%s650 + $0x1c] sm:$0xf]
      %v659 = vrot.slane %v308, 2
      %v668 = vunpack.c.l.b16 %v651
      %v669 = vunpack.c.l.b16 %v652
      %v670 = vunpack.c.l.b16 %v653
      %v671 = vunpack.c.l.b16 %v654
      %v672 = vunpack.c.l.b16 %v655
      %v673 = vunpack.c.l.b16 %v656
      %v674 = vunpack.c.l.b16 %v657
      %v675 = vunpack.c.l.b16 %v658
      %v676 = vpack.c.b16 %v669, %v668
      %v677 = vpack.c.b16 %v671, %v670
      %v678 = vpack.c.b16 %v673, %v672
      %v679 = vpack.c.b16 %v675, %v674
      %v685 = vsel %vm334, %v659, 0
      %687 = vmatpush.bf16.msra.mxu0 0
      %688 = vmatpush.bf16.msra.mxu0 0
      %689 = vmatpush.bf16.msra.mxu0 0
      %690 = vmatpush.bf16.msra.mxu0 0
      %691 = vmatpush.bf16.msra.mxu0 %v679
      %692 = vmatpush.bf16.msra.mxu0 %v678
      %693 = vmatpush.bf16.msra.mxu0 %v677
      %694 = vmatpush.bf16.msra.mxu0 %v676
      %695 = vmatmul.bf16.gmra.mxu0 %v685
      %v696 = vpop.f32.mrf.mxu0
      %v697 = vadd.f32 0.0, %v696
      %v698 = vpop.f32.mrf.mxu0
      %699 = vdwg.mxu0
      %v700 = vadd.f32 %v649, %v697
      %v701 = vadd.f32 %v700, %v247
      %v702 = vmul.f32 %v701, %v286
      %v703 = vadd.f32 %v702, 0.0
      %v704 = vadd.f32 %v496, %v703
      %v705 = vmul.f32 %v701, %v702
      %v706 = vadd.f32 %v705, 0.0
      %v707 = vadd.f32 %v499, %v706
      %v708 = vpack.c.bf16 %v701, %v701
      %v710 = vrot.slane %v708, 3
      %vm711 = vcmask 1040384
      %v714 = vsel %vm711, %v708, %v710
      %716 = vrot.lane.b32.xlu0 %v714, 32
      %v717 = vpop.permute.xlu0 %716
      %vm719 = vcmask 516352
      %vm720 = vmand %vm719, %vm502
      %v721 = vld [vmem:[%s231] sm:$0x1]
      %v722 = vsel %vm720, %v717, %v721
      %723 = vst [vmem:[%s231] sm:$0x1] %v722
      %s724 = scalar_lea.vmem %s1, 256
      %v725 = vld [vmem:[%s724] sm:$0xf]
      %v726 = vld [vmem:[%s724 + $0x4] sm:$0xf]
      %v727 = vld [vmem:[%s724 + $0x8] sm:$0xf]
      %v728 = vld [vmem:[%s724 + $0xc] sm:$0xf]
      %v729 = vld [vmem:[%s724 + $0x10] sm:$0xf]
      %v730 = vld [vmem:[%s724 + $0x14] sm:$0xf]
      %v731 = vld [vmem:[%s724 + $0x18] sm:$0xf]
      %v732 = vld [vmem:[%s724 + $0x1c] sm:$0xf]
      %s733 = scalar_lea.vmem %s1, 288
      %v734 = vld [vmem:[%s733] sm:$0xf]
      %v735 = vld [vmem:[%s733 + $0x4] sm:$0xf]
      %v736 = vld [vmem:[%s733 + $0x8] sm:$0xf]
      %v737 = vld [vmem:[%s733 + $0xc] sm:$0xf]
      %v738 = vld [vmem:[%s733 + $0x10] sm:$0xf]
      %v739 = vld [vmem:[%s733 + $0x14] sm:$0xf]
      %v740 = vld [vmem:[%s733 + $0x18] sm:$0xf]
      %v741 = vld [vmem:[%s733 + $0x1c] sm:$0xf]
      %v750 = vunpack.c.l.b16 %v734
      %v751 = vunpack.c.l.b16 %v735
      %v752 = vunpack.c.l.b16 %v736
      %v753 = vunpack.c.l.b16 %v737
      %v754 = vunpack.c.l.b16 %v738
      %v755 = vunpack.c.l.b16 %v739
      %v756 = vunpack.c.l.b16 %v740
      %v757 = vunpack.c.l.b16 %v741
      %v758 = vpack.c.b16 %v751, %v750
      %v759 = vpack.c.b16 %v753, %v752
      %v760 = vpack.c.b16 %v755, %v754
      %v761 = vpack.c.b16 %v757, %v756
      %766 = vmatpush.bf16.msra.mxu0 0
      %767 = vmatpush.bf16.msra.mxu0 0
      %768 = vmatpush.bf16.msra.mxu0 0
      %769 = vmatpush.bf16.msra.mxu0 0
      %770 = vmatpush.bf16.msra.mxu0 %v761
      %771 = vmatpush.bf16.msra.mxu0 %v760
      %772 = vmatpush.bf16.msra.mxu0 %v759
      %773 = vmatpush.bf16.msra.mxu0 %v758
      %774 = vmatmul.bf16.gmra.mxu0 %v477
      %v775 = vpop.f32.mrf.mxu0
      %v776 = vadd.f32 0.0, %v775
      %v777 = vpop.f32.mrf.mxu0
      %778 = vdwg.mxu0
      %v787 = vunpack.c.l.b16 %v725
      %v788 = vunpack.c.l.b16 %v726
      %v789 = vunpack.c.l.b16 %v727
      %v790 = vunpack.c.l.b16 %v728
      %v791 = vunpack.c.l.b16 %v729
      %v792 = vunpack.c.l.b16 %v730
      %v793 = vunpack.c.l.b16 %v731
      %v794 = vunpack.c.l.b16 %v732
      %v795 = vpack.c.b16 %v788, %v787
      %v796 = vpack.c.b16 %v790, %v789
      %v797 = vpack.c.b16 %v792, %v791
      %v798 = vpack.c.b16 %v794, %v793
      %803 = vmatpush.bf16.msra.mxu0 0
      %804 = vmatpush.bf16.msra.mxu0 0
      %805 = vmatpush.bf16.msra.mxu0 0
      %806 = vmatpush.bf16.msra.mxu0 0
      %807 = vmatpush.bf16.msra.mxu0 %v798
      %808 = vmatpush.bf16.msra.mxu0 %v797
      %809 = vmatpush.bf16.msra.mxu0 %v796
      %810 = vmatpush.bf16.msra.mxu0 %v795
      %811 = vmatmul.bf16.gmra.mxu0 %v426
      %v812 = vpop.f32.mrf.mxu0
      %v813 = vadd.f32 %v776, %v812
      %v814 = vpop.f32.mrf.mxu0
      %815 = vdwg.mxu0
      %s816 = scalar_lea.vmem %s1, 320
      %v817 = vld [vmem:[%s816] sm:$0xf]
      %v818 = vld [vmem:[%s816 + $0x4] sm:$0xf]
      %v819 = vld [vmem:[%s816 + $0x8] sm:$0xf]
      %v820 = vld [vmem:[%s816 + $0xc] sm:$0xf]
      %v821 = vld [vmem:[%s816 + $0x10] sm:$0xf]
      %v822 = vld [vmem:[%s816 + $0x14] sm:$0xf]
      %v823 = vld [vmem:[%s816 + $0x18] sm:$0xf]
      %v824 = vld [vmem:[%s816 + $0x1c] sm:$0xf]
      %v825 = vrot.slane %v306, 3
      %v834 = vunpack.c.l.b16 %v817
      %v835 = vunpack.c.l.b16 %v818
      %v836 = vunpack.c.l.b16 %v819
      %v837 = vunpack.c.l.b16 %v820
      %v838 = vunpack.c.l.b16 %v821
      %v839 = vunpack.c.l.b16 %v822
      %v840 = vunpack.c.l.b16 %v823
      %v841 = vunpack.c.l.b16 %v824
      %v842 = vpack.c.b16 %v835, %v834
      %v843 = vpack.c.b16 %v837, %v836
      %v844 = vpack.c.b16 %v839, %v838
      %v845 = vpack.c.b16 %v841, %v840
      %v851 = vsel %vm334, %v825, 0
      %853 = vmatpush.bf16.msra.mxu0 0
      %854 = vmatpush.bf16.msra.mxu0 0
      %855 = vmatpush.bf16.msra.mxu0 0
      %856 = vmatpush.bf16.msra.mxu0 0
      %857 = vmatpush.bf16.msra.mxu0 %v845
      %858 = vmatpush.bf16.msra.mxu0 %v844
      %859 = vmatpush.bf16.msra.mxu0 %v843
      %860 = vmatpush.bf16.msra.mxu0 %v842
      %861 = vmatmul.bf16.gmra.mxu0 %v851
      %v862 = vpop.f32.mrf.mxu0
      %v863 = vadd.f32 0.0, %v862
      %v864 = vpop.f32.mrf.mxu0
      %865 = vdwg.mxu0
      %v866 = vadd.f32 %v813, %v863
      %s867 = scalar_lea.vmem %s1, 352
      %v868 = vld [vmem:[%s867] sm:$0xf]
      %v869 = vld [vmem:[%s867 + $0x4] sm:$0xf]
      %v870 = vld [vmem:[%s867 + $0x8] sm:$0xf]
      %v871 = vld [vmem:[%s867 + $0xc] sm:$0xf]
      %v872 = vld [vmem:[%s867 + $0x10] sm:$0xf]
      %v873 = vld [vmem:[%s867 + $0x14] sm:$0xf]
      %v874 = vld [vmem:[%s867 + $0x18] sm:$0xf]
      %v875 = vld [vmem:[%s867 + $0x1c] sm:$0xf]
      %v876 = vrot.slane %v308, 3
      %v885 = vunpack.c.l.b16 %v868
      %v886 = vunpack.c.l.b16 %v869
      %v887 = vunpack.c.l.b16 %v870
      %v888 = vunpack.c.l.b16 %v871
      %v889 = vunpack.c.l.b16 %v872
      %v890 = vunpack.c.l.b16 %v873
      %v891 = vunpack.c.l.b16 %v874
      %v892 = vunpack.c.l.b16 %v875
      %v893 = vpack.c.b16 %v886, %v885
      %v894 = vpack.c.b16 %v888, %v887
      %v895 = vpack.c.b16 %v890, %v889
      %v896 = vpack.c.b16 %v892, %v891
      %v902 = vsel %vm334, %v876, 0
      %904 = vmatpush.bf16.msra.mxu0 0
      %905 = vmatpush.bf16.msra.mxu0 0
      %906 = vmatpush.bf16.msra.mxu0 0
      %907 = vmatpush.bf16.msra.mxu0 0
      %908 = vmatpush.bf16.msra.mxu0 %v896
      %909 = vmatpush.bf16.msra.mxu0 %v895
      %910 = vmatpush.bf16.msra.mxu0 %v894
      %911 = vmatpush.bf16.msra.mxu0 %v893
      %912 = vmatmul.bf16.gmra.mxu0 %v902
      %v913 = vpop.f32.mrf.mxu0
      %v914 = vadd.f32 0.0, %v913
      %v915 = vpop.f32.mrf.mxu0
      %916 = vdwg.mxu0
      %v917 = vadd.f32 %v866, %v914
      %v918 = vadd.f32 %v917, %v247
      %v919 = vmul.f32 %v918, %v286
      %v920 = vadd.f32 %v919, 0.0
      %v921 = vadd.f32 %v704, %v920
      %v922 = vmul.f32 %v918, %v919
      %v923 = vadd.f32 %v922, 0.0
      %v924 = vadd.f32 %v707, %v923
      %v925 = vpack.c.bf16 %v918, %v918
      %v927 = vrot.slane %v925, 3
      %v930 = vsel %vm711, %v925, %v927
      %932 = vrot.lane.b32.xlu0 %v930, 64
      %v933 = vpop.permute.xlu0 %932
      %vm935 = vcmask 778752
      %vm936 = vmand %vm935, %vm502
      %v937 = vld [vmem:[%s231] sm:$0x1]
      %v938 = vsel %vm936, %v933, %v937
      %939 = vst [vmem:[%s231] sm:$0x1] %v938
      %s940 = scalar_lea.vmem %s1, 384
      %v941 = vld [vmem:[%s940] sm:$0xf]
      %v942 = vld [vmem:[%s940 + $0x4] sm:$0xf]
      %v943 = vld [vmem:[%s940 + $0x8] sm:$0xf]
      %v944 = vld [vmem:[%s940 + $0xc] sm:$0xf]
      %v945 = vld [vmem:[%s940 + $0x10] sm:$0xf]
      %v946 = vld [vmem:[%s940 + $0x14] sm:$0xf]
      %v947 = vld [vmem:[%s940 + $0x18] sm:$0xf]
      %v948 = vld [vmem:[%s940 + $0x1c] sm:$0xf]
      %s949 = scalar_lea.vmem %s1, 416
      %v950 = vld [vmem:[%s949] sm:$0xf]
      %v951 = vld [vmem:[%s949 + $0x4] sm:$0xf]
      %v952 = vld [vmem:[%s949 + $0x8] sm:$0xf]
      %v953 = vld [vmem:[%s949 + $0xc] sm:$0xf]
      %v954 = vld [vmem:[%s949 + $0x10] sm:$0xf]
      %v955 = vld [vmem:[%s949 + $0x14] sm:$0xf]
      %v956 = vld [vmem:[%s949 + $0x18] sm:$0xf]
      %v957 = vld [vmem:[%s949 + $0x1c] sm:$0xf]
      %v966 = vunpack.c.l.b16 %v950
      %v967 = vunpack.c.l.b16 %v951
      %v968 = vunpack.c.l.b16 %v952
      %v969 = vunpack.c.l.b16 %v953
      %v970 = vunpack.c.l.b16 %v954
      %v971 = vunpack.c.l.b16 %v955
      %v972 = vunpack.c.l.b16 %v956
      %v973 = vunpack.c.l.b16 %v957
      %v974 = vpack.c.b16 %v967, %v966
      %v975 = vpack.c.b16 %v969, %v968
      %v976 = vpack.c.b16 %v971, %v970
      %v977 = vpack.c.b16 %v973, %v972
      %982 = vmatpush.bf16.msra.mxu0 0
      %983 = vmatpush.bf16.msra.mxu0 0
      %984 = vmatpush.bf16.msra.mxu0 0
      %985 = vmatpush.bf16.msra.mxu0 0
      %986 = vmatpush.bf16.msra.mxu0 %v977
      %987 = vmatpush.bf16.msra.mxu0 %v976
      %988 = vmatpush.bf16.msra.mxu0 %v975
      %989 = vmatpush.bf16.msra.mxu0 %v974
      %990 = vmatmul.bf16.gmra.mxu0 %v685
      %v991 = vpop.f32.mrf.mxu0
      %v992 = vadd.f32 0.0, %v991
      %v993 = vpop.f32.mrf.mxu0
      %994 = vdwg.mxu0
      %v1003 = vunpack.c.l.b16 %v941
      %v1004 = vunpack.c.l.b16 %v942
      %v1005 = vunpack.c.l.b16 %v943
      %v1006 = vunpack.c.l.b16 %v944
      %v1007 = vunpack.c.l.b16 %v945
      %v1008 = vunpack.c.l.b16 %v946
      %v1009 = vunpack.c.l.b16 %v947
      %v1010 = vunpack.c.l.b16 %v948
      %v1011 = vpack.c.b16 %v1004, %v1003
      %v1012 = vpack.c.b16 %v1006, %v1005
      %v1013 = vpack.c.b16 %v1008, %v1007
      %v1014 = vpack.c.b16 %v1010, %v1009
      %1019 = vmatpush.bf16.msra.mxu0 0
      %1020 = vmatpush.bf16.msra.mxu0 0
      %1021 = vmatpush.bf16.msra.mxu0 0
      %1022 = vmatpush.bf16.msra.mxu0 0
      %1023 = vmatpush.bf16.msra.mxu0 %v1014
      %1024 = vmatpush.bf16.msra.mxu0 %v1013
      %1025 = vmatpush.bf16.msra.mxu0 %v1012
      %1026 = vmatpush.bf16.msra.mxu0 %v1011
      %1027 = vmatmul.bf16.gmra.mxu0 %v477
      %v1028 = vpop.f32.mrf.mxu0
      %v1029 = vadd.f32 %v992, %v1028
      %v1030 = vpop.f32.mrf.mxu0
      %1031 = vdwg.mxu0
      %s1032 = scalar_lea.vmem %s1, 448
      %v1033 = vld [vmem:[%s1032] sm:$0xf]
      %v1034 = vld [vmem:[%s1032 + $0x4] sm:$0xf]
      %v1035 = vld [vmem:[%s1032 + $0x8] sm:$0xf]
      %v1036 = vld [vmem:[%s1032 + $0xc] sm:$0xf]
      %v1037 = vld [vmem:[%s1032 + $0x10] sm:$0xf]
      %v1038 = vld [vmem:[%s1032 + $0x14] sm:$0xf]
      %v1039 = vld [vmem:[%s1032 + $0x18] sm:$0xf]
      %v1040 = vld [vmem:[%s1032 + $0x1c] sm:$0xf]
      %v1049 = vunpack.c.l.b16 %v1033
      %v1050 = vunpack.c.l.b16 %v1034
      %v1051 = vunpack.c.l.b16 %v1035
      %v1052 = vunpack.c.l.b16 %v1036
      %v1053 = vunpack.c.l.b16 %v1037
      %v1054 = vunpack.c.l.b16 %v1038
      %v1055 = vunpack.c.l.b16 %v1039
      %v1056 = vunpack.c.l.b16 %v1040
      %v1057 = vpack.c.b16 %v1050, %v1049
      %v1058 = vpack.c.b16 %v1052, %v1051
      %v1059 = vpack.c.b16 %v1054, %v1053
      %v1060 = vpack.c.b16 %v1056, %v1055
      %1065 = vmatpush.bf16.msra.mxu0 0
      %1066 = vmatpush.bf16.msra.mxu0 0
      %1067 = vmatpush.bf16.msra.mxu0 0
      %1068 = vmatpush.bf16.msra.mxu0 0
      %1069 = vmatpush.bf16.msra.mxu0 %v1060
      %1070 = vmatpush.bf16.msra.mxu0 %v1059
      %1071 = vmatpush.bf16.msra.mxu0 %v1058
      %1072 = vmatpush.bf16.msra.mxu0 %v1057
      %1073 = vmatmul.bf16.gmra.mxu0 %v902
      %v1074 = vpop.f32.mrf.mxu0
      %v1075 = vadd.f32 0.0, %v1074
      %v1076 = vpop.f32.mrf.mxu0
      %1077 = vdwg.mxu0
      %v1078 = vadd.f32 %v1029, %v1075
      %s1079 = scalar_lea.vmem %s1, 480
      %v1080 = vld [vmem:[%s1079] sm:$0xf]
      %v1081 = vld [vmem:[%s1079 + $0x4] sm:$0xf]
      %v1082 = vld [vmem:[%s1079 + $0x8] sm:$0xf]
      %v1083 = vld [vmem:[%s1079 + $0xc] sm:$0xf]
      %v1084 = vld [vmem:[%s1079 + $0x10] sm:$0xf]
      %v1085 = vld [vmem:[%s1079 + $0x14] sm:$0xf]
      %v1086 = vld [vmem:[%s1079 + $0x18] sm:$0xf]
      %v1087 = vld [vmem:[%s1079 + $0x1c] sm:$0xf]
      %v1096 = vunpack.c.l.b16 %v1080
      %v1097 = vunpack.c.l.b16 %v1081
      %v1098 = vunpack.c.l.b16 %v1082
      %v1099 = vunpack.c.l.b16 %v1083
      %v1100 = vunpack.c.l.b16 %v1084
      %v1101 = vunpack.c.l.b16 %v1085
      %v1102 = vunpack.c.l.b16 %v1086
      %v1103 = vunpack.c.l.b16 %v1087
      %v1104 = vpack.c.b16 %v1097, %v1096
      %v1105 = vpack.c.b16 %v1099, %v1098
      %v1106 = vpack.c.b16 %v1101, %v1100
      %v1107 = vpack.c.b16 %v1103, %v1102
      %v1113 = vsel %vm334, %v246, 0
      %1115 = vmatpush.bf16.msra.mxu0 0
      %1116 = vmatpush.bf16.msra.mxu0 0
      %1117 = vmatpush.bf16.msra.mxu0 0
      %1118 = vmatpush.bf16.msra.mxu0 0
      %1119 = vmatpush.bf16.msra.mxu0 %v1107
      %1120 = vmatpush.bf16.msra.mxu0 %v1106
      %1121 = vmatpush.bf16.msra.mxu0 %v1105
      %1122 = vmatpush.bf16.msra.mxu0 %v1104
      %1123 = vmatmul.bf16.gmra.mxu0 %v1113
      %v1124 = vpop.f32.mrf.mxu0
      %v1125 = vadd.f32 0.0, %v1124
      %v1126 = vpop.f32.mrf.mxu0
      %1127 = vdwg.mxu0
      %v1128 = vadd.f32 %v1078, %v1125
      %v1129 = vadd.f32 %v1128, %v247
      %v1130 = vmul.f32 %v1129, %v286
      %v1131 = vadd.f32 %v1130, 0.0
      %v1132 = vadd.f32 %v921, %v1131
      %v1133 = vmul.f32 %v1129, %v1130
      %v1134 = vadd.f32 %v1133, 0.0
      %v1135 = vadd.f32 %v924, %v1134
      %v1136 = vpack.c.bf16 %v1129, %v1129
      %v1138 = vrot.slane %v1136, 3
      %v1141 = vsel %vm711, %v1136, %v1138
      %1143 = vrot.lane.b32.xlu0 %v1141, 96
      %v1144 = vpop.permute.xlu0 %1143
      %vm1146 = vcmask 1041152
      %vm1147 = vmand %vm1146, %vm502
      %v1148 = vld [vmem:[%s231] sm:$0x1]
      %v1149 = vsel %vm1147, %v1144, %v1148
      %1150 = vst [vmem:[%s231] sm:$0x1] %v1149
      %vm1151 = vcmask 253952
      %1152 = vst.msk [vmem:[%s234] sm:$0x1] %vm1151, %v1132
      %1153 = vst.msk [vmem:[%s237] sm:$0x1] %vm1151, %v1135
      %p1154 = scmp.lt.s32.totalorder %s17, 1
      %s1155 = scalar_select %p1154, %s17, 1
      %s1156 = scalar_lea.vmem %s3, %s1155
      %p1157 = scmp.lt.s32.totalorder %s17, 1
      %s1158 = scalar_select %p1157, %s17, 1
      %s1159 = scalar_lea.vmem %s4, %s1158
      %p1160 = scmp.lt.s32.totalorder %s17, 1
      %s1161 = scalar_select %p1160, %s17, 1
      %s1162 = scalar_lea.vmem %s5, %s1161
      // Predicated region
      $region33: #{unet_forward.13} parent=31 // pred_check
        %p1163 = pneg %p103
      $region34: #{unet_forward.13} parent=31 // pred_check_branch
        %1165 = sbr.rel (%p1163) target = $region36
      $region35: #{unet_forward.13} parent=31 // pred_region
        _
      $region36: #{unet_forward.13} parent=31 // pred_fallthru
        _
      // Predicated region
      $region37: #{unet_forward.13} parent=31 // pred_check
        %p1166 = pneg %p129
      $region38: #{unet_forward.13} parent=31 // pred_check_branch
        %1168 = sbr.rel (%p1166) target = $region40
      $region39: #{unet_forward.13} parent=31 // pred_region
        _
      $region40: #{unet_forward.13} parent=31 // pred_fallthru
        _
      // Predicated region
      $region41: #{unet_forward.13} parent=31 // pred_check
        %p1169 = pneg %p155
      $region42: #{unet_forward.13} parent=31 // pred_check_branch
        %1171 = sbr.rel (%p1169) target = $region44
      $region43: #{unet_forward.13} parent=31 // pred_region
        _
      $region44: #{unet_forward.13} parent=31 // pred_fallthru
        _
    $region32: #{unet_forward.13} parent=5 // pred_fallthru
      _
    %p1172 = scmp.le.s32.totalorder 2, %s12
    // Predicated region
    $region45: #{unet_forward.13} parent=5 // pred_check
      %p1173 = pneg %p1172
    $region46: #{unet_forward.13} parent=5 // pred_check_branch
      %1175 = sbr.rel (%p1173) target = $region48
    $region47: #{unet_forward.13} parent=5 // pred_region
      %s1176 = ssub.s32 %s12, 2
      // Predicated region
      $region49: #{unet_forward.13} parent=47 // pred_check
        %p1177 = pneg %p109
      $region50: #{unet_forward.13} parent=47 // pred_check_branch
        %1179 = sbr.rel (%p1177) target = $region52
      $region51: #{unet_forward.13} parent=47 // pred_region
        %p1180 = scmp.lt.s32.totalorder %s18, 1
        %s1181 = scalar_select %p1180, %s18, 1
        %s1182 = scalar_lea.vmem %s3, %s1181
      $region52: #{unet_forward.13} parent=47 // pred_fallthru
        _
      // Predicated region
      $region53: #{unet_forward.13} parent=47 // pred_check
        %p1183 = pneg %p135
      $region54: #{unet_forward.13} parent=47 // pred_check_branch
        %1185 = sbr.rel (%p1183) target = $region56
      $region55: #{unet_forward.13} parent=47 // pred_region
        %p1186 = scmp.lt.s32.totalorder %s18, 1
        %s1187 = scalar_select %p1186, %s18, 1
        %s1188 = scalar_lea.vmem %s4, %s1187
      $region56: #{unet_forward.13} parent=47 // pred_fallthru
        _
      // Predicated region
      $region57: #{unet_forward.13} parent=47 // pred_check
        %p1189 = pneg %p161
      $region58: #{unet_forward.13} parent=47 // pred_check_branch
        %1191 = sbr.rel (%p1189) target = $region60
      $region59: #{unet_forward.13} parent=47 // pred_region
        %p1192 = scmp.lt.s32.totalorder %s18, 1
        %s1193 = scalar_select %p1192, %s18, 1
        %s1194 = scalar_lea.vmem %s5, %s1193
      $region60: #{unet_forward.13} parent=47 // pred_fallthru
        _
    $region48: #{unet_forward.13} parent=5 // pred_fallthru
      _
  $region6: #{unet_forward.13} parent=0 // loop_footer
    %s16 = sadd.s32 1, %s12
  $region7: #{unet_forward.13} parent=0 // loop_footer_branch
    %11 = sbr.rel target = $region3
  $region8: #{unet_forward.13} parent=0 // loop_exit
    _

// kernel: unet_forward.14
$region0: #{unet_forward.14}
  #allocation0 [shape = 'u32[]', space=smem, size = 0x4, offset = 0x4, fixed_abs, tag = 'smem constant byte address 0x4 - core index']
  #allocation1 [shape = 'u32[72,128]{1,0:T(1,128)}', space=vmem, size = 0x9000, scoped, tag = 'internal scratch']
  %s0 = inlined_call_operand.vmem [shape: bf16[2,16,64], index: 0, kind: input, shape index: {}]
  %s1 = inlined_call_operand.vmem [shape: bf16[4,4,64,16], index: 1, kind: input, shape index: {}]
  %s2 = inlined_call_operand.vmem [shape: f32[1,16], index: 2, kind: input, shape index: {}]
  %s3 = inlined_call_operand.vmem [shape: f32[1,64], index: 3, kind: input, shape index: {}]
  %s4 = inlined_call_operand.vmem [shape: f32[1,64], index: 4, kind: input, shape index: {}]
  %s5 = inlined_call_operand.vmem [shape: bf16[2,6,64], index: 5, kind: output, shape index: {0}]
  %s6 = inlined_call_operand.vmem [shape: f32[2,1,16], index: 6, kind: output, shape index: {1}]
  %s7 = inlined_call_operand.vmem [shape: f32[2,1,16], index: 7, kind: output, shape index: {2}]
  %8 = xla_tuple %s5, %s6, %s7
  %s9 = sld [smem:[#allocation0]]
  $region69: #{unet_forward.14} parent=0
    _
  %s11 = ssub.s32 1, %s9
  %s12 = scalar_select 0, %s11, %s9
  loop: start=0, step=1, limit=4
  $region2: #{unet_forward.14} parent=0 // loop_pre_header
    _
  $region3: #{unet_forward.14} parent=0 // loop_header
    %s14 = sphi 0, %s18
    %p15 = scmp.ge.s32.totalorder %s14, 4
    %s24 = sphi 0, %s26
    %s27 = sphi 0, %s24
    %s28 = sphi 0, %s27
    %s44 = sphi 0, %s28
    %s48 = sphi 0, %s48
    %s50 = sphi 0, %s48
    %s51 = sphi 0, %s50
    %s65 = sphi 0, %s51
    %s69 = sphi 0, %s69
    %s71 = sphi 0, %s69
    %s72 = sphi 0, %s71
    %s86 = sphi 0, %s72
    %s90 = sphi 0, %s90
    %s92 = sphi 0, %s90
    %s93 = sphi 0, %s92
    %s107 = sphi 0, %s93
    %s111 = sphi 0, %s111
    %s113 = sphi 0, %s111
    %s114 = sphi 0, %s113
    %s128 = sphi 0, %s114
    %s134 = sphi 0, %s136
    %s137 = sphi 0, %s134
    %s138 = sphi 0, %s137
    %s154 = sphi 0, %s138
    %s160 = sphi 0, %s162
    %s163 = sphi 0, %s160
    %s164 = sphi 0, %s163
    %s180 = sphi 0, %s164
    %s186 = sphi 0, %s188
    %s189 = sphi 0, %s186
    %s190 = sphi 0, %s189
    %s206 = sphi 0, %s190
  $region4: #{unet_forward.14} parent=0 // loop_header_branch
    %17 = sbr.rel (%p15) target = $region8
  $region5: #{unet_forward.14} parent=0 // loop_body
    %s19 = ssub.s32 %s14, 1
    %s20 = ssub.s32 %s14, 2
    %s21 = sadd.s32 %s14, 1
    %s22 = ssub.s32 %s14, %s21
    %p23 = scmp.eq.s32.totalorder %s22, 0
    %s25 = sadd.s32 %s24, 1
    %s26 = scalar_select %p23, %s24, %s25
    %p29 = pneg %p23
    %p30 = scmp.eq.s32.totalorder %s14, 1
    %p31 = por %p29, %p30
    %p32 = scmp.ne.s32.totalorder %s24, %s27
    %p33 = scmp.eq.s32.totalorder %s14, 0
    %p34 = por %p32, %p33
    %p35 = scmp.ne.s32.totalorder %s24, %s27
    %p36 = scmp.eq.s32.totalorder %s19, 1
    %p37 = por %p35, %p36
    %p38 = scmp.ne.s32.totalorder %s27, %s28
    %p39 = scmp.eq.s32.totalorder %s19, 0
    %p40 = por %p38, %p39
    %p41 = scmp.ne.s32.totalorder %s27, %s28
    %p42 = scmp.eq.s32.totalorder %s20, 1
    %p43 = por %p41, %p42
    %p45 = scmp.ne.s32.totalorder %s28, %s44
    %p46 = scmp.eq.s32.totalorder %s20, 0
    %p47 = por %p45, %p46
    %s49 = sadd.s32 %s48, 1
    %p52 = scmp.eq.s32.totalorder %s14, 1
    %p53 = scmp.ne.s32.totalorder %s48, %s50
    %p54 = scmp.eq.s32.totalorder %s14, 0
    %p55 = por %p53, %p54
    %p56 = scmp.ne.s32.totalorder %s48, %s50
    %p57 = scmp.eq.s32.totalorder %s19, 1
    %p58 = por %p56, %p57
    %p59 = scmp.ne.s32.totalorder %s50, %s51
    %p60 = scmp.eq.s32.totalorder %s19, 0
    %p61 = por %p59, %p60
    %p62 = scmp.ne.s32.totalorder %s50, %s51
    %p63 = scmp.eq.s32.totalorder %s20, 1
    %p64 = por %p62, %p63
    %p66 = scmp.ne.s32.totalorder %s51, %s65
    %p67 = scmp.eq.s32.totalorder %s20, 0
    %p68 = por %p66, %p67
    %s70 = sadd.s32 %s69, 1
    %p73 = scmp.eq.s32.totalorder %s14, 1
    %p74 = scmp.ne.s32.totalorder %s69, %s71
    %p75 = scmp.eq.s32.totalorder %s14, 0
    %p76 = por %p74, %p75
    %p77 = scmp.ne.s32.totalorder %s69, %s71
    %p78 = scmp.eq.s32.totalorder %s19, 1
    %p79 = por %p77, %p78
    %p80 = scmp.ne.s32.totalorder %s71, %s72
    %p81 = scmp.eq.s32.totalorder %s19, 0
    %p82 = por %p80, %p81
    %p83 = scmp.ne.s32.totalorder %s71, %s72
    %p84 = scmp.eq.s32.totalorder %s20, 1
    %p85 = por %p83, %p84
    %p87 = scmp.ne.s32.totalorder %s72, %s86
    %p88 = scmp.eq.s32.totalorder %s20, 0
    %p89 = por %p87, %p88
    %s91 = sadd.s32 %s90, 1
    %p94 = scmp.eq.s32.totalorder %s14, 1
    %p95 = scmp.ne.s32.totalorder %s90, %s92
    %p96 = scmp.eq.s32.totalorder %s14, 0
    %p97 = por %p95, %p96
    %p98 = scmp.ne.s32.totalorder %s90, %s92
    %p99 = scmp.eq.s32.totalorder %s19, 1
    %p100 = por %p98, %p99
    %p101 = scmp.ne.s32.totalorder %s92, %s93
    %p102 = scmp.eq.s32.totalorder %s19, 0
    %p103 = por %p101, %p102
    %p104 = scmp.ne.s32.totalorder %s92, %s93
    %p105 = scmp.eq.s32.totalorder %s20, 1
    %p106 = por %p104, %p105
    %p108 = scmp.ne.s32.totalorder %s93, %s107
    %p109 = scmp.eq.s32.totalorder %s20, 0
    %p110 = por %p108, %p109
    %s112 = sadd.s32 %s111, 1
    %p115 = scmp.eq.s32.totalorder %s14, 1
    %p116 = scmp.ne.s32.totalorder %s111, %s113
    %p117 = scmp.eq.s32.totalorder %s14, 0
    %p118 = por %p116, %p117
    %p119 = scmp.ne.s32.totalorder %s111, %s113
    %p120 = scmp.eq.s32.totalorder %s19, 1
    %p121 = por %p119, %p120
    %p122 = scmp.ne.s32.totalorder %s113, %s114
    %p123 = scmp.eq.s32.totalorder %s19, 0
    %p124 = por %p122, %p123
    %p125 = scmp.ne.s32.totalorder %s113, %s114
    %p126 = scmp.eq.s32.totalorder %s20, 1
    %p127 = por %p125, %p126
    %p129 = scmp.ne.s32.totalorder %s114, %s128
    %p130 = scmp.eq.s32.totalorder %s20, 0
    %p131 = por %p129, %p130
    %s132 = ssub.s32 %s14, %s21
    %p133 = scmp.eq.s32.totalorder %s132, 0
    %s135 = sadd.s32 %s134, 1
    %s136 = scalar_select %p133, %s134, %s135
    %p139 = pneg %p133
    %p140 = scmp.eq.s32.totalorder %s14, 1
    %p141 = por %p139, %p140
    %p142 = scmp.ne.s32.totalorder %s134, %s137
    %p143 = scmp.eq.s32.totalorder %s14, 0
    %p144 = por %p142, %p143
    %p145 = scmp.ne.s32.totalorder %s134, %s137
    %p146 = scmp.eq.s32.totalorder %s19, 1
    %p147 = por %p145, %p146
    %p148 = scmp.ne.s32.totalorder %s137, %s138
    %p149 = scmp.eq.s32.totalorder %s19, 0
    %p150 = por %p148, %p149
    %p151 = scmp.ne.s32.totalorder %s137, %s138
    %p152 = scmp.eq.s32.totalorder %s20, 1
    %p153 = por %p151, %p152
    %p155 = scmp.ne.s32.totalorder %s138, %s154
    %p156 = scmp.eq.s32.totalorder %s20, 0
    %p157 = por %p155, %p156
    %s158 = ssub.s32 %s14, %s21
    %p159 = scmp.eq.s32.totalorder %s158, 0
    %s161 = sadd.s32 %s160, 1
    %s162 = scalar_select %p159, %s160, %s161
    %p165 = pneg %p159
    %p166 = scmp.eq.s32.totalorder %s14, 1
    %p167 = por %p165, %p166
    %p168 = scmp.ne.s32.totalorder %s160, %s163
    %p169 = scmp.eq.s32.totalorder %s14, 0
    %p170 = por %p168, %p169
    %p171 = scmp.ne.s32.totalorder %s160, %s163
    %p172 = scmp.eq.s32.totalorder %s19, 1
    %p173 = por %p171, %p172
    %p174 = scmp.ne.s32.totalorder %s163, %s164
    %p175 = scmp.eq.s32.totalorder %s19, 0
    %p176 = por %p174, %p175
    %p177 = scmp.ne.s32.totalorder %s163, %s164
    %p178 = scmp.eq.s32.totalorder %s20, 1
    %p179 = por %p177, %p178
    %p181 = scmp.ne.s32.totalorder %s164, %s180
    %p182 = scmp.eq.s32.totalorder %s20, 0
    %p183 = por %p181, %p182
    %s184 = ssub.s32 %s14, %s21
    %p185 = scmp.eq.s32.totalorder %s184, 0
    %s187 = sadd.s32 %s186, 1
    %s188 = scalar_select %p185, %s186, %s187
    %p191 = pneg %p185
    %p192 = scmp.eq.s32.totalorder %s14, 1
    %p193 = por %p191, %p192
    %p194 = scmp.ne.s32.totalorder %s186, %s189
    %p195 = scmp.eq.s32.totalorder %s14, 0
    %p196 = por %p194, %p195
    %p197 = scmp.ne.s32.totalorder %s186, %s189
    %p198 = scmp.eq.s32.totalorder %s19, 1
    %p199 = por %p197, %p198
    %p200 = scmp.ne.s32.totalorder %s189, %s190
    %p201 = scmp.eq.s32.totalorder %s19, 0
    %p202 = por %p200, %p201
    %p203 = scmp.ne.s32.totalorder %s189, %s190
    %p204 = scmp.eq.s32.totalorder %s20, 1
    %p205 = por %p203, %p204
    %p207 = scmp.ne.s32.totalorder %s190, %s206
    %p208 = scmp.eq.s32.totalorder %s20, 0
    %p209 = por %p207, %p208
    %p210 = scmp.le.s32.totalorder 1, %s14
    %p211 = scmp.lt.s32.totalorder %s14, 3
    %p212 = pnand %p210, %p211
    %p213 = pneg %p212
    // Predicated region
    $region9: #{unet_forward.14} parent=5 // pred_check
      _
    $region10: #{unet_forward.14} parent=5 // pred_check_branch
      %215 = sbr.rel (%p212) target = $region12
    $region11: #{unet_forward.14} parent=5 // pred_region
      %s216 = ssub.s32 %s14, 1
      // Predicated region
      $region13: #{unet_forward.14} parent=11 // pred_check
        %p217 = pneg %p61
      $region14: #{unet_forward.14} parent=11 // pred_check_branch
        %219 = sbr.rel (%p217) target = $region16
      $region15: #{unet_forward.14} parent=11 // pred_region
        _
      $region16: #{unet_forward.14} parent=11 // pred_fallthru
        _
      // Predicated region
      $region17: #{unet_forward.14} parent=11 // pred_check
        %p220 = pneg %p82
      $region18: #{unet_forward.14} parent=11 // pred_check_branch
        %222 = sbr.rel (%p220) target = $region20
      $region19: #{unet_forward.14} parent=11 // pred_region
        _
      $region20: #{unet_forward.14} parent=11 // pred_fallthru
        _
      // Predicated region
      $region21: #{unet_forward.14} parent=11 // pred_check
        %p223 = pneg %p103
      $region22: #{unet_forward.14} parent=11 // pred_check_branch
        %225 = sbr.rel (%p223) target = $region24
      $region23: #{unet_forward.14} parent=11 // pred_region
        _
      $region24: #{unet_forward.14} parent=11 // pred_fallthru
        _
      // Predicated region
      $region25: #{unet_forward.14} parent=11 // pred_check
        %p226 = pneg %p124
      $region26: #{unet_forward.14} parent=11 // pred_check_branch
        %228 = sbr.rel (%p226) target = $region28
      $region27: #{unet_forward.14} parent=11 // pred_region
        _
      $region28: #{unet_forward.14} parent=11 // pred_fallthru
        _
    $region12: #{unet_forward.14} parent=5 // pred_fallthru
      _
    %p229 = scmp.lt.s32.totalorder %s14, 2
    // Predicated region
    $region29: #{unet_forward.14} parent=5 // pred_check
      %p230 = pneg %p229
    $region30: #{unet_forward.14} parent=5 // pred_check_branch
      %232 = sbr.rel (%p230) target = $region32
    $region31: #{unet_forward.14} parent=5 // pred_region
      // Predicated region
      $region33: #{unet_forward.14} parent=31 // pred_check
        %p233 = pneg %p34
      $region34: #{unet_forward.14} parent=31 // pred_check_branch
        %235 = sbr.rel (%p233) target = $region36
      $region35: #{unet_forward.14} parent=31 // pred_region
        %p236 = scmp.lt.s32.totalorder %s14, 1
        %s237 = scalar_select %p236, %s14, 1
        %s238 = smul.addr %s237, 2
        %s239 = smul.addr %s238, 4
        %s240 = scalar_lea.vmem %s0, %s239
      $region36: #{unet_forward.14} parent=31 // pred_fallthru
        _
    $region32: #{unet_forward.14} parent=5 // pred_fallthru
      _
    %p241 = scmp.le.s32.totalorder 1, %s14
    %p242 = scmp.lt.s32.totalorder %s14, 3
    %p243 = pnand %p241, %p242
    %p244 = pneg %p243
    // Predicated region
    $region37: #{unet_forward.14} parent=5 // pred_check
      _
    $region38: #{unet_forward.14} parent=5 // pred_check_branch
      %246 = sbr.rel (%p243) target = $region40
    $region39: #{unet_forward.14} parent=5 // pred_region
      %s247 = ssub.s32 %s14, 1
      %p248 = scmp.lt.s32.totalorder %s19, 1
      %s249 = scalar_select %p248, %s19, 1
      %s250 = smul.addr %s249, 2
      %s251 = smul.addr %s250, 4
      %s252 = scalar_lea.vmem %s0, %s251
      %p253 = pneg %p40
      %p254 = pneg %p37
      %p255 = pneg %p61
      %p256 = pneg %p58
      %p257 = pneg %p82
      %p258 = pneg %p79
      %p259 = pneg %p103
      %p260 = pneg %p100
      %p261 = pneg %p124
      %p262 = pneg %p121
      %p263 = pneg %p150
      %p264 = pneg %p147
      %p265 = scmp.lt.s32.totalorder %s19, 1
      %s266 = scalar_select %p265, %s19, 1
      %s267 = smul.addr %s266, 4
      %s268 = scalar_lea.vmem %s5, %s267
      %p269 = pneg %p176
      %p270 = pneg %p173
      %p271 = scmp.lt.s32.totalorder %s19, 1
      %s272 = scalar_select %p271, %s19, 1
      %s273 = scalar_lea.vmem %s6, %s272
      %p274 = pneg %p202
      %p275 = pneg %p199
      %p276 = scmp.lt.s32.totalorder %s19, 1
      %s277 = scalar_select %p276, %s19, 1
      %s278 = scalar_lea.vmem %s7, %s277
      %p279 = scmp.lt.s32.totalorder %s19, 1
      %s280 = scalar_select %p279, %s19, 1
      %s281 = smul.addr %s280, 2
      %s282 = smul.addr %s281, 4
      %s283 = scalar_lea.vmem %s0, %s282
      %p284 = scmp.lt.s32.totalorder %s19, 1
      %s285 = scalar_select %p284, %s19, 1
      %s286 = smul.addr %s285, 4
      %s287 = scalar_lea.vmem %s5, %s286
      %p288 = scmp.lt.s32.totalorder %s19, 1
      %s289 = scalar_select %p288, %s19, 1
      %s290 = scalar_lea.vmem %s6, %s289
      %p291 = scmp.lt.s32.totalorder %s19, 1
      %s292 = scalar_select %p291, %s19, 1
      %s293 = scalar_lea.vmem %s7, %s292
      %v295 = vld [vmem:[%s283] sm:$0xf]
      %v296 = vld [vmem:[%s283 + $0x4] sm:$0xf]
      %v297 = vunpack.c.l.bf16 %v295
      %v298 = vunpack.c.l.bf16 %v296
      %v299 = vld [vmem:[%s3] sm:$0x1]
      %v301 = vperm.slane %v299, 0
      %v303 = vmul.f32 %v297, %v301
      %v304 = vmul.f32 %v298, %v301
      %v305 = vld [vmem:[%s4] sm:$0x1]
      %v307 = vperm.slane %v305, 0
      %v309 = vadd.f32 %v303, %v307
      %v310 = vadd.f32 %v304, %v307
      %v311 = vmax.f32 %v309, 0.0
      %v312 = vmax.f32 %v310, 0.0
      %v313 = vpack.c.bf16 %v311, %v311
      %v314 = vpack.c.bf16 %v312, %v312
      %v315 = vld [vmem:[%s2] sm:$0x1]
      %v316 = vlaneseq
      %v317 = vshrl.u32 %v316, 7
      %vm318 = vcmp.lt.s32.totalorder %v317, 0
      %v319 = vsub.s32 0, %v317
      %v320 = vsel %vm318, %v319, %v317
      %v321 = vshrl.u32 %v320, 2
      %v322 = vand.u32 %v320, 3
      %v323 = vsub.s32 0, %v322
      %v324 = vsel %vm318, %v323, %v322
      %vm325 = vcmp.ne.s32.totalorder %v324, 0
      %vm326 = vcmp.lt.s32.totalorder %v324, 0
      %vm327 = vmand %vm326, %vm325
      %v328 = vadd.s32 %v324, 4
      %v329 = vsel %vm327, %v328, %v324
      %vm330 = vcmp.lt.s32.totalorder %v329, 2
      %v331 = vsel %vm330, 1, 0
      %v332 = vcvt.s32.f32 %v331
      %v333 = vld [vmem:[%s1] sm:$0xf]
      %v334 = vld [vmem:[%s1 + $0x4] sm:$0xf]
      %v335 = vld [vmem:[%s1 + $0x8] sm:$0xf]
      %v336 = vld [vmem:[%s1 + $0xc] sm:$0xf]
      %v337 = vld [vmem:[%s1 + $0x10] sm:$0xf]
      %v338 = vld [vmem:[%s1 + $0x14] sm:$0xf]
      %v339 = vld [vmem:[%s1 + $0x18] sm:$0xf]
      %v340 = vld [vmem:[%s1 + $0x1c] sm:$0xf]
      %s341 = scalar_lea.vmem %s1, 32
      %v342 = vld [vmem:[%s341] sm:$0xf]
      %v343 = vld [vmem:[%s341 + $0x4] sm:$0xf]
      %v344 = vld [vmem:[%s341 + $0x8] sm:$0xf]
      %v345 = vld [vmem:[%s341 + $0xc] sm:$0xf]
      %v346 = vld [vmem:[%s341 + $0x10] sm:$0xf]
      %v347 = vld [vmem:[%s341 + $0x14] sm:$0xf]
      %v348 = vld [vmem:[%s341 + $0x18] sm:$0xf]
      %v349 = vld [vmem:[%s341 + $0x1c] sm:$0xf]
      %v351 = vunpack.c.l.b16 %v313
      %v352 = vpack.c.b16 %v351, %v351
      %v354 = vshrl.u32 %v352, 16
      %v356 = vshll.u32 %v352, 16
      %v358 = vrot.slane %v356, 1
      %v359 = vor.u32 %v354, %v358
      %v368 = vunpack.c.l.b16 %v342
      %v369 = vunpack.c.l.b16 %v343
      %v370 = vunpack.c.l.b16 %v344
      %v371 = vunpack.c.l.b16 %v345
      %v372 = vunpack.c.l.b16 %v346
      %v373 = vunpack.c.l.b16 %v347
      %v374 = vunpack.c.l.b16 %v348
      %v375 = vunpack.c.l.b16 %v349
      %v376 = vpack.c.b16 %v369, %v368
      %v377 = vpack.c.b16 %v371, %v370
      %v378 = vpack.c.b16 %v373, %v372
      %v379 = vpack.c.b16 %v375, %v374
      %vm384 = vcmask 523264
      %v386 = vsel %vm384, %v359, 0
      %388 = vmatpush.bf16.msra.mxu0 0
      %389 = vmatpush.bf16.msra.mxu0 0
      %390 = vmatpush.bf16.msra.mxu0 0
      %391 = vmatpush.bf16.msra.mxu0 0
      %392 = vmatpush.bf16.msra.mxu0 %v379
      %393 = vmatpush.bf16.msra.mxu0 %v378
      %394 = vmatpush.bf16.msra.mxu0 %v377
      %395 = vmatpush.bf16.msra.mxu0 %v376
      %396 = vmatmul.bf16.gmra.mxu0 %v386
      %v397 = vpop.f32.mrf.mxu0
      %v398 = vadd.f32 0.0, %v397
      %v399 = vpop.f32.mrf.mxu0
      %400 = vdwg.mxu0
      %v409 = vunpack.c.l.b16 %v333
      %v410 = vunpack.c.l.b16 %v334
      %v411 = vunpack.c.l.b16 %v335
      %v412 = vunpack.c.l.b16 %v336
      %v413 = vunpack.c.l.b16 %v337
      %v414 = vunpack.c.l.b16 %v338
      %v415 = vunpack.c.l.b16 %v339
      %v416 = vunpack.c.l.b16 %v340
      %v417 = vpack.c.b16 %v410, %v409
      %v418 = vpack.c.b16 %v412, %v411
      %v419 = vpack.c.b16 %v414, %v413
      %v420 = vpack.c.b16 %v416, %v415
      %v426 = vsel %vm384, %v313, 0
      %428 = vmatpush.bf16.msra.mxu0 0
      %429 = vmatpush.bf16.msra.mxu0 0
      %430 = vmatpush.bf16.msra.mxu0 0
      %431 = vmatpush.bf16.msra.mxu0 0
      %432 = vmatpush.bf16.msra.mxu0 %v420
      %433 = vmatpush.bf16.msra.mxu0 %v419
      %434 = vmatpush.bf16.msra.mxu0 %v418
      %435 = vmatpush.bf16.msra.mxu0 %v417
      %436 = vmatmul.bf16.gmra.mxu0 %v426
      %v437 = vpop.f32.mrf.mxu0
      %v438 = vadd.f32 %v398, %v437
      %v439 = vpop.f32.mrf.mxu0
      %440 = vdwg.mxu0
      %s441 = scalar_lea.vmem %s1, 64
      %v442 = vld [vmem:[%s441] sm:$0xf]
      %v443 = vld [vmem:[%s441 + $0x4] sm:$0xf]
      %v444 = vld [vmem:[%s441 + $0x8] sm:$0xf]
      %v445 = vld [vmem:[%s441 + $0xc] sm:$0xf]
      %v446 = vld [vmem:[%s441 + $0x10] sm:$0xf]
      %v447 = vld [vmem:[%s441 + $0x14] sm:$0xf]
      %v448 = vld [vmem:[%s441 + $0x18] sm:$0xf]
      %v449 = vld [vmem:[%s441 + $0x1c] sm:$0xf]
      %v451 = vunpack.c.l.b16 %v314
      %v452 = vpack.c.b16 %v451, %v351
      %v453 = vrot.slane %v452, 2
      %v462 = vunpack.c.l.b16 %v442
      %v463 = vunpack.c.l.b16 %v443
      %v464 = vunpack.c.l.b16 %v444
      %v465 = vunpack.c.l.b16 %v445
      %v466 = vunpack.c.l.b16 %v446
      %v467 = vunpack.c.l.b16 %v447
      %v468 = vunpack.c.l.b16 %v448
      %v469 = vunpack.c.l.b16 %v449
      %v470 = vpack.c.b16 %v463, %v462
      %v471 = vpack.c.b16 %v465, %v464
      %v472 = vpack.c.b16 %v467, %v466
      %v473 = vpack.c.b16 %v469, %v468
      %v479 = vsel %vm384, %v453, 0
      %481 = vmatpush.bf16.msra.mxu0 0
      %482 = vmatpush.bf16.msra.mxu0 0
      %483 = vmatpush.bf16.msra.mxu0 0
      %484 = vmatpush.bf16.msra.mxu0 0
      %485 = vmatpush.bf16.msra.mxu0 %v473
      %486 = vmatpush.bf16.msra.mxu0 %v472
      %487 = vmatpush.bf16.msra.mxu0 %v471
      %488 = vmatpush.bf16.msra.mxu0 %v470
      %489 = vmatmul.bf16.gmra.mxu0 %v479
      %v490 = vpop.f32.mrf.mxu0
      %v491 = vadd.f32 0.0, %v490
      %v492 = vpop.f32.mrf.mxu0
      %493 = vdwg.mxu0
      %v494 = vadd.f32 %v438, %v491
      %s495 = scalar_lea.vmem %s1, 96
      %v496 = vld [vmem:[%s495] sm:$0xf]
      %v497 = vld [vmem:[%s495 + $0x4] sm:$0xf]
      %v498 = vld [vmem:[%s495 + $0x8] sm:$0xf]
      %v499 = vld [vmem:[%s495 + $0xc] sm:$0xf]
      %v500 = vld [vmem:[%s495 + $0x10] sm:$0xf]
      %v501 = vld [vmem:[%s495 + $0x14] sm:$0xf]
      %v502 = vld [vmem:[%s495 + $0x18] sm:$0xf]
      %v503 = vld [vmem:[%s495 + $0x1c] sm:$0xf]
      %v505 = vshrl.u32 %v452, 16
      %v507 = vrot.slane %v505, 2
      %v508 = vshll.u32 %v452, 16
      %v510 = vrot.slane %v508, 3
      %v511 = vor.u32 %v507, %v510
      %v520 = vunpack.c.l.b16 %v496
      %v521 = vunpack.c.l.b16 %v497
      %v522 = vunpack.c.l.b16 %v498
      %v523 = vunpack.c.l.b16 %v499
      %v524 = vunpack.c.l.b16 %v500
      %v525 = vunpack.c.l.b16 %v501
      %v526 = vunpack.c.l.b16 %v502
      %v527 = vunpack.c.l.b16 %v503
      %v528 = vpack.c.b16 %v521, %v520
      %v529 = vpack.c.b16 %v523, %v522
      %v530 = vpack.c.b16 %v525, %v524
      %v531 = vpack.c.b16 %v527, %v526
      %v537 = vsel %vm384, %v511, 0
      %539 = vmatpush.bf16.msra.mxu0 0
      %540 = vmatpush.bf16.msra.mxu0 0
      %541 = vmatpush.bf16.msra.mxu0 0
      %542 = vmatpush.bf16.msra.mxu0 0
      %543 = vmatpush.bf16.msra.mxu0 %v531
      %544 = vmatpush.bf16.msra.mxu0 %v530
      %545 = vmatpush.bf16.msra.mxu0 %v529
      %546 = vmatpush.bf16.msra.mxu0 %v528
      %547 = vmatmul.bf16.gmra.mxu0 %v537
      %v548 = vpop.f32.mrf.mxu0
      %v549 = vadd.f32 0.0, %v548
      %v550 = vpop.f32.mrf.mxu0
      %551 = vdwg.mxu0
      %v552 = vadd.f32 %v494, %v549
      %v554 = vperm.slane %v315, 0
      %v556 = vadd.f32 %v552, %v554
      %v557 = vmul.f32 %v556, %v332
      %vm558 = vcmask 128000
      %v559 = vsel %vm558, %v557, 0.0
      %v560 = vrot.slane %v559, 4
      %v561 = vadd.f32 %v559, %v560
      %v562 = vrot.slane %v561, 2
      %v563 = vadd.f32 %v561, %v562
      %v564 = vrot.slane %v563, 1
      %v565 = vadd.f32 %v563, %v564
      %v566 = vadd.f32 %v565, 0.0
      %v567 = vmul.f32 %v556, %v557
      %v568 = vsel %vm558, %v567, 0.0
      %v569 = vrot.slane %v568, 4
      %v570 = vadd.f32 %v568, %v569
      %v571 = vrot.slane %v570, 2
      %v572 = vadd.f32 %v570, %v571
      %v573 = vrot.slane %v572, 1
      %v574 = vadd.f32 %v572, %v573
      %v575 = vadd.f32 %v574, 0.0
      %v576 = vpack.c.bf16 %v556, %v556
      %vm577 = vcmask 124928
      %578 = vst.msk [vmem:[%s287] sm:$0x7] %vm577, %v576
      %s579 = scalar_lea.vmem %s1, 128
      %v580 = vld [vmem:[%s579] sm:$0xf]
      %v581 = vld [vmem:[%s579 + $0x4] sm:$0xf]
      %v582 = vld [vmem:[%s579 + $0x8] sm:$0xf]
      %v583 = vld [vmem:[%s579 + $0xc] sm:$0xf]
      %v584 = vld [vmem:[%s579 + $0x10] sm:$0xf]
      %v585 = vld [vmem:[%s579 + $0x14] sm:$0xf]
      %v586 = vld [vmem:[%s579 + $0x18] sm:$0xf]
      %v587 = vld [vmem:[%s579 + $0x1c] sm:$0xf]
      %s588 = scalar_lea.vmem %s1, 160
      %v589 = vld [vmem:[%s588] sm:$0xf]
      %v590 = vld [vmem:[%s588 + $0x4] sm:$0xf]
      %v591 = vld [vmem:[%s588 + $0x8] sm:$0xf]
      %v592 = vld [vmem:[%s588 + $0xc] sm:$0xf]
      %v593 = vld [vmem:[%s588 + $0x10] sm:$0xf]
      %v594 = vld [vmem:[%s588 + $0x14] sm:$0xf]
      %v595 = vld [vmem:[%s588 + $0x18] sm:$0xf]
      %v596 = vld [vmem:[%s588 + $0x1c] sm:$0xf]
      %v597 = vrot.slane %v352, 1
      %v606 = vunpack.c.l.b16 %v589
      %v607 = vunpack.c.l.b16 %v590
      %v608 = vunpack.c.l.b16 %v591
      %v609 = vunpack.c.l.b16 %v592
      %v610 = vunpack.c.l.b16 %v593
      %v611 = vunpack.c.l.b16 %v594
      %v612 = vunpack.c.l.b16 %v595
      %v613 = vunpack.c.l.b16 %v596
      %v614 = vpack.c.b16 %v607, %v606
      %v615 = vpack.c.b16 %v609, %v608
      %v616 = vpack.c.b16 %v611, %v610
      %v617 = vpack.c.b16 %v613, %v612
      %v623 = vsel %vm384, %v597, 0
      %625 = vmatpush.bf16.msra.mxu0 0
      %626 = vmatpush.bf16.msra.mxu0 0
      %627 = vmatpush.bf16.msra.mxu0 0
      %628 = vmatpush.bf16.msra.mxu0 0
      %629 = vmatpush.bf16.msra.mxu0 %v617
      %630 = vmatpush.bf16.msra.mxu0 %v616
      %631 = vmatpush.bf16.msra.mxu0 %v615
      %632 = vmatpush.bf16.msra.mxu0 %v614
      %633 = vmatmul.bf16.gmra.mxu0 %v623
      %v634 = vpop.f32.mrf.mxu0
      %v635 = vadd.f32 0.0, %v634
      %v636 = vpop.f32.mrf.mxu0
      %637 = vdwg.mxu0
      %v646 = vunpack.c.l.b16 %v580
      %v647 = vunpack.c.l.b16 %v581
      %v648 = vunpack.c.l.b16 %v582
      %v649 = vunpack.c.l.b16 %v583
      %v650 = vunpack.c.l.b16 %v584
      %v651 = vunpack.c.l.b16 %v585
      %v652 = vunpack.c.l.b16 %v586
      %v653 = vunpack.c.l.b16 %v587
      %v654 = vpack.c.b16 %v647, %v646
      %v655 = vpack.c.b16 %v649, %v648
      %v656 = vpack.c.b16 %v651, %v650
      %v657 = vpack.c.b16 %v653, %v652
      %662 = vmatpush.bf16.msra.mxu0 0
      %663 = vmatpush.bf16.msra.mxu0 0
      %664 = vmatpush.bf16.msra.mxu0 0
      %665 = vmatpush.bf16.msra.mxu0 0
      %666 = vmatpush.bf16.msra.mxu0 %v657
      %667 = vmatpush.bf16.msra.mxu0 %v656
      %668 = vmatpush.bf16.msra.mxu0 %v655
      %669 = vmatpush.bf16.msra.mxu0 %v654
      %670 = vmatmul.bf16.gmra.mxu0 %v386
      %v671 = vpop.f32.mrf.mxu0
      %v672 = vadd.f32 %v635, %v671
      %v673 = vpop.f32.mrf.mxu0
      %674 = vdwg.mxu0
      %s675 = scalar_lea.vmem %s1, 192
      %v676 = vld [vmem:[%s675] sm:$0xf]
      %v677 = vld [vmem:[%s675 + $0x4] sm:$0xf]
      %v678 = vld [vmem:[%s675 + $0x8] sm:$0xf]
      %v679 = vld [vmem:[%s675 + $0xc] sm:$0xf]
      %v680 = vld [vmem:[%s675 + $0x10] sm:$0xf]
      %v681 = vld [vmem:[%s675 + $0x14] sm:$0xf]
      %v682 = vld [vmem:[%s675 + $0x18] sm:$0xf]
      %v683 = vld [vmem:[%s675 + $0x1c] sm:$0xf]
      %v692 = vunpack.c.l.b16 %v676
      %v693 = vunpack.c.l.b16 %v677
      %v694 = vunpack.c.l.b16 %v678
      %v695 = vunpack.c.l.b16 %v679
      %v696 = vunpack.c.l.b16 %v680
      %v697 = vunpack.c.l.b16 %v681
      %v698 = vunpack.c.l.b16 %v682
      %v699 = vunpack.c.l.b16 %v683
      %v700 = vpack.c.b16 %v693, %v692
      %v701 = vpack.c.b16 %v695, %v694
      %v702 = vpack.c.b16 %v697, %v696
      %v703 = vpack.c.b16 %v699, %v698
      %708 = vmatpush.bf16.msra.mxu0 0
      %709 = vmatpush.bf16.msra.mxu0 0
      %710 = vmatpush.bf16.msra.mxu0 0
      %711 = vmatpush.bf16.msra.mxu0 0
      %712 = vmatpush.bf16.msra.mxu0 %v703
      %713 = vmatpush.bf16.msra.mxu0 %v702
      %714 = vmatpush.bf16.msra.mxu0 %v701
      %715 = vmatpush.bf16.msra.mxu0 %v700
      %716 = vmatmul.bf16.gmra.mxu0 %v537
      %v717 = vpop.f32.mrf.mxu0
      %v718 = vadd.f32 0.0, %v717
      %v719 = vpop.f32.mrf.mxu0
      %720 = vdwg.mxu0
      %v721 = vadd.f32 %v672, %v718
      %s722 = scalar_lea.vmem %s1, 224
      %v723 = vld [vmem:[%s722] sm:$0xf]
      %v724 = vld [vmem:[%s722 + $0x4] sm:$0xf]
      %v725 = vld [vmem:[%s722 + $0x8] sm:$0xf]
      %v726 = vld [vmem:[%s722 + $0xc] sm:$0xf]
      %v727 = vld [vmem:[%s722 + $0x10] sm:$0xf]
      %v728 = vld [vmem:[%s722 + $0x14] sm:$0xf]
      %v729 = vld [vmem:[%s722 + $0x18] sm:$0xf]
      %v730 = vld [vmem:[%s722 + $0x1c] sm:$0xf]
      %v731 = vrot.slane %v452, 3
      %v740 = vunpack.c.l.b16 %v723
      %v741 = vunpack.c.l.b16 %v724
      %v742 = vunpack.c.l.b16 %v725
      %v743 = vunpack.c.l.b16 %v726
      %v744 = vunpack.c.l.b16 %v727
      %v745 = vunpack.c.l.b16 %v728
      %v746 = vunpack.c.l.b16 %v729
      %v747 = vunpack.c.l.b16 %v730
      %v748 = vpack.c.b16 %v741, %v740
      %v749 = vpack.c.b16 %v743, %v742
      %v750 = vpack.c.b16 %v745, %v744
      %v751 = vpack.c.b16 %v747, %v746
      %v757 = vsel %vm384, %v731, 0
      %759 = vmatpush.bf16.msra.mxu0 0
      %760 = vmatpush.bf16.msra.mxu0 0
      %761 = vmatpush.bf16.msra.mxu0 0
      %762 = vmatpush.bf16.msra.mxu0 0
      %763 = vmatpush.bf16.msra.mxu0 %v751
      %764 = vmatpush.bf16.msra.mxu0 %v750
      %765 = vmatpush.bf16.msra.mxu0 %v749
      %766 = vmatpush.bf16.msra.mxu0 %v748
      %767 = vmatmul.bf16.gmra.mxu0 %v757
      %v768 = vpop.f32.mrf.mxu0
      %v769 = vadd.f32 0.0, %v768
      %v770 = vpop.f32.mrf.mxu0
      %771 = vdwg.mxu0
      %v772 = vadd.f32 %v721, %v769
      %v773 = vadd.f32 %v772, %v554
      %v774 = vmul.f32 %v773, %v332
      %v775 = vsel %vm558, %v774, 0.0
      %v776 = vrot.slane %v775, 4
      %v777 = vadd.f32 %v775, %v776
      %v778 = vrot.slane %v777, 2
      %v779 = vadd.f32 %v777, %v778
      %v780 = vrot.slane %v779, 1
      %v781 = vadd.f32 %v779, %v780
      %v782 = vadd.f32 %v566, %v781
      %v783 = vmul.f32 %v773, %v774
      %v784 = vsel %vm558, %v783, 0.0
      %v785 = vrot.slane %v784, 4
      %v786 = vadd.f32 %v784, %v785
      %v787 = vrot.slane %v786, 2
      %v788 = vadd.f32 %v786, %v787
      %v789 = vrot.slane %v788, 1
      %v790 = vadd.f32 %v788, %v789
      %v791 = vadd.f32 %v575, %v790
      %v792 = vpack.c.bf16 %v773, %v773
      %794 = vrot.lane.b32.xlu0 %v792, 16
      %v795 = vpop.permute.xlu0 %794
      %vm797 = vcmask 256128
      %798 = vst.msk [vmem:[%s287] sm:$0x7] %vm797, %v795
      %s799 = scalar_lea.vmem %s1, 256
      %v800 = vld [vmem:[%s799] sm:$0xf]
      %v801 = vld [vmem:[%s799 + $0x4] sm:$0xf]
      %v802 = vld [vmem:[%s799 + $0x8] sm:$0xf]
      %v803 = vld [vmem:[%s799 + $0xc] sm:$0xf]
      %v804 = vld [vmem:[%s799 + $0x10] sm:$0xf]
      %v805 = vld [vmem:[%s799 + $0x14] sm:$0xf]
      %v806 = vld [vmem:[%s799 + $0x18] sm:$0xf]
      %v807 = vld [vmem:[%s799 + $0x1c] sm:$0xf]
      %s808 = scalar_lea.vmem %s1, 288
      %v809 = vld [vmem:[%s808] sm:$0xf]
      %v810 = vld [vmem:[%s808 + $0x4] sm:$0xf]
      %v811 = vld [vmem:[%s808 + $0x8] sm:$0xf]
      %v812 = vld [vmem:[%s808 + $0xc] sm:$0xf]
      %v813 = vld [vmem:[%s808 + $0x10] sm:$0xf]
      %v814 = vld [vmem:[%s808 + $0x14] sm:$0xf]
      %v815 = vld [vmem:[%s808 + $0x18] sm:$0xf]
      %v816 = vld [vmem:[%s808 + $0x1c] sm:$0xf]
      %v825 = vunpack.c.l.b16 %v809
      %v826 = vunpack.c.l.b16 %v810
      %v827 = vunpack.c.l.b16 %v811
      %v828 = vunpack.c.l.b16 %v812
      %v829 = vunpack.c.l.b16 %v813
      %v830 = vunpack.c.l.b16 %v814
      %v831 = vunpack.c.l.b16 %v815
      %v832 = vunpack.c.l.b16 %v816
      %v833 = vpack.c.b16 %v826, %v825
      %v834 = vpack.c.b16 %v828, %v827
      %v835 = vpack.c.b16 %v830, %v829
      %v836 = vpack.c.b16 %v832, %v831
      %841 = vmatpush.bf16.msra.mxu0 0
      %842 = vmatpush.bf16.msra.mxu0 0
      %843 = vmatpush.bf16.msra.mxu0 0
      %844 = vmatpush.bf16.msra.mxu0 0
      %845 = vmatpush.bf16.msra.mxu0 %v836
      %846 = vmatpush.bf16.msra.mxu0 %v835
      %847 = vmatpush.bf16.msra.mxu0 %v834
      %848 = vmatpush.bf16.msra.mxu0 %v833
      %849 = vmatmul.bf16.gmra.mxu0 %v537
      %v850 = vpop.f32.mrf.mxu0
      %v851 = vadd.f32 0.0, %v850
      %v852 = vpop.f32.mrf.mxu0
      %853 = vdwg.mxu0
      %v862 = vunpack.c.l.b16 %v800
      %v863 = vunpack.c.l.b16 %v801
      %v864 = vunpack.c.l.b16 %v802
      %v865 = vunpack.c.l.b16 %v803
      %v866 = vunpack.c.l.b16 %v804
      %v867 = vunpack.c.l.b16 %v805
      %v868 = vunpack.c.l.b16 %v806
      %v869 = vunpack.c.l.b16 %v807
      %v870 = vpack.c.b16 %v863, %v862
      %v871 = vpack.c.b16 %v865, %v864
      %v872 = vpack.c.b16 %v867, %v866
      %v873 = vpack.c.b16 %v869, %v868
      %878 = vmatpush.bf16.msra.mxu0 0
      %879 = vmatpush.bf16.msra.mxu0 0
      %880 = vmatpush.bf16.msra.mxu0 0
      %881 = vmatpush.bf16.msra.mxu0 0
      %882 = vmatpush.bf16.msra.mxu0 %v873
      %883 = vmatpush.bf16.msra.mxu0 %v872
      %884 = vmatpush.bf16.msra.mxu0 %v871
      %885 = vmatpush.bf16.msra.mxu0 %v870
      %886 = vmatmul.bf16.gmra.mxu0 %v479
      %v887 = vpop.f32.mrf.mxu0
      %v888 = vadd.f32 %v851, %v887
      %v889 = vpop.f32.mrf.mxu0
      %890 = vdwg.mxu0
      %s891 = scalar_lea.vmem %s1, 320
      %v892 = vld [vmem:[%s891] sm:$0xf]
      %v893 = vld [vmem:[%s891 + $0x4] sm:$0xf]
      %v894 = vld [vmem:[%s891 + $0x8] sm:$0xf]
      %v895 = vld [vmem:[%s891 + $0xc] sm:$0xf]
      %v896 = vld [vmem:[%s891 + $0x10] sm:$0xf]
      %v897 = vld [vmem:[%s891 + $0x14] sm:$0xf]
      %v898 = vld [vmem:[%s891 + $0x18] sm:$0xf]
      %v899 = vld [vmem:[%s891 + $0x1c] sm:$0xf]
      %v908 = vunpack.c.l.b16 %v892
      %v909 = vunpack.c.l.b16 %v893
      %v910 = vunpack.c.l.b16 %v894
      %v911 = vunpack.c.l.b16 %v895
      %v912 = vunpack.c.l.b16 %v896
      %v913 = vunpack.c.l.b16 %v897
      %v914 = vunpack.c.l.b16 %v898
      %v915 = vunpack.c.l.b16 %v899
      %v916 = vpack.c.b16 %v909, %v908
      %v917 = vpack.c.b16 %v911, %v910
      %v918 = vpack.c.b16 %v913, %v912
      %v919 = vpack.c.b16 %v915, %v914
      %v925 = vsel %vm384, %v314, 0
      %927 = vmatpush.bf16.msra.mxu0 0
      %928 = vmatpush.bf16.msra.mxu0 0
      %929 = vmatpush.bf16.msra.mxu0 0
      %930 = vmatpush.bf16.msra.mxu0 0
      %931 = vmatpush.bf16.msra.mxu0 %v919
      %932 = vmatpush.bf16.msra.mxu0 %v918
      %933 = vmatpush.bf16.msra.mxu0 %v917
      %934 = vmatpush.bf16.msra.mxu0 %v916
      %935 = vmatmul.bf16.gmra.mxu0 %v925
      %v936 = vpop.f32.mrf.mxu0
      %v937 = vadd.f32 0.0, %v936
      %v938 = vpop.f32.mrf.mxu0
      %939 = vdwg.mxu0
      %v940 = vadd.f32 %v888, %v937
      %s941 = scalar_lea.vmem %s1, 352
      %v942 = vld [vmem:[%s941] sm:$0xf]
      %v943 = vld [vmem:[%s941 + $0x4] sm:$0xf]
      %v944 = vld [vmem:[%s941 + $0x8] sm:$0xf]
      %v945 = vld [vmem:[%s941 + $0xc] sm:$0xf]
      %v946 = vld [vmem:[%s941 + $0x10] sm:$0xf]
      %v947 = vld [vmem:[%s941 + $0x14] sm:$0xf]
      %v948 = vld [vmem:[%s941 + $0x18] sm:$0xf]
      %v949 = vld [vmem:[%s941 + $0x1c] sm:$0xf]
      %v950 = vpack.c.b16 %v451, %v451
      %v952 = vshrl.u32 %v950, 16
      %v954 = vshll.u32 %v950, 16
      %v956 = vrot.slane %v954, 1
      %v957 = vor.u32 %v952, %v956
      %v966 = vunpack.c.l.b16 %v942
      %v967 = vunpack.c.l.b16 %v943
      %v968 = vunpack.c.l.b16 %v944
      %v969 = vunpack.c.l.b16 %v945
      %v970 = vunpack.c.l.b16 %v946
      %v971 = vunpack.c.l.b16 %v947
      %v972 = vunpack.c.l.b16 %v948
      %v973 = vunpack.c.l.b16 %v949
      %v974 = vpack.c.b16 %v967, %v966
      %v975 = vpack.c.b16 %v969, %v968
      %v976 = vpack.c.b16 %v971, %v970
      %v977 = vpack.c.b16 %v973, %v972
      %v983 = vsel %vm384, %v957, 0
      %985 = vmatpush.bf16.msra.mxu0 0
      %986 = vmatpush.bf16.msra.mxu0 0
      %987 = vmatpush.bf16.msra.mxu0 0
      %988 = vmatpush.bf16.msra.mxu0 0
      %989 = vmatpush.bf16.msra.mxu0 %v977
      %990 = vmatpush.bf16.msra.mxu0 %v976
      %991 = vmatpush.bf16.msra.mxu0 %v975
      %992 = vmatpush.bf16.msra.mxu0 %v974
      %993 = vmatmul.bf16.gmra.mxu0 %v983
      %v994 = vpop.f32.mrf.mxu0
      %v995 = vadd.f32 0.0, %v994
      %v996 = vpop.f32.mrf.mxu0
      %997 = vdwg.mxu0
      %v998 = vadd.f32 %v940, %v995
      %v999 = vadd.f32 %v998, %v554
      %v1000 = vmul.f32 %v999, %v332
      %v1001 = vsel %vm558, %v1000, 0.0
      %v1002 = vrot.slane %v1001, 4
      %v1003 = vadd.f32 %v1001, %v1002
      %v1004 = vrot.slane %v1003, 2
      %v1005 = vadd.f32 %v1003, %v1004
      %v1006 = vrot.slane %v1005, 1
      %v1007 = vadd.f32 %v1005, %v1006
      %v1008 = vadd.f32 %v782, %v1007
      %v1009 = vmul.f32 %v999, %v1000
      %v1010 = vsel %vm558, %v1009, 0.0
      %v1011 = vrot.slane %v1010, 4
      %v1012 = vadd.f32 %v1010, %v1011
      %v1013 = vrot.slane %v1012, 2
      %v1014 = vadd.f32 %v1012, %v1013
      %v1015 = vrot.slane %v1014, 1
      %v1016 = vadd.f32 %v1014, %v1015
      %v1017 = vadd.f32 %v791, %v1016
      %v1018 = vpack.c.bf16 %v999, %v999
      %1020 = vrot.lane.b32.xlu0 %v1018, 32
      %v1021 = vpop.permute.xlu0 %1020
      %vm1023 = vcmask 387328
      %1024 = vst.msk [vmem:[%s287] sm:$0x7] %vm1023, %v1021
      %s1025 = scalar_lea.vmem %s1, 384
      %v1026 = vld [vmem:[%s1025] sm:$0xf]
      %v1027 = vld [vmem:[%s1025 + $0x4] sm:$0xf]
      %v1028 = vld [vmem:[%s1025 + $0x8] sm:$0xf]
      %v1029 = vld [vmem:[%s1025 + $0xc] sm:$0xf]
      %v1030 = vld [vmem:[%s1025 + $0x10] sm:$0xf]
      %v1031 = vld [vmem:[%s1025 + $0x14] sm:$0xf]
      %v1032 = vld [vmem:[%s1025 + $0x18] sm:$0xf]
      %v1033 = vld [vmem:[%s1025 + $0x1c] sm:$0xf]
      %s1034 = scalar_lea.vmem %s1, 416
      %v1035 = vld [vmem:[%s1034] sm:$0xf]
      %v1036 = vld [vmem:[%s1034 + $0x4] sm:$0xf]
      %v1037 = vld [vmem:[%s1034 + $0x8] sm:$0xf]
      %v1038 = vld [vmem:[%s1034 + $0xc] sm:$0xf]
      %v1039 = vld [vmem:[%s1034 + $0x10] sm:$0xf]
      %v1040 = vld [vmem:[%s1034 + $0x14] sm:$0xf]
      %v1041 = vld [vmem:[%s1034 + $0x18] sm:$0xf]
      %v1042 = vld [vmem:[%s1034 + $0x1c] sm:$0xf]
      %v1051 = vunpack.c.l.b16 %v1035
      %v1052 = vunpack.c.l.b16 %v1036
      %v1053 = vunpack.c.l.b16 %v1037
      %v1054 = vunpack.c.l.b16 %v1038
      %v1055 = vunpack.c.l.b16 %v1039
      %v1056 = vunpack.c.l.b16 %v1040
      %v1057 = vunpack.c.l.b16 %v1041
      %v1058 = vunpack.c.l.b16 %v1042
      %v1059 = vpack.c.b16 %v1052, %v1051
      %v1060 = vpack.c.b16 %v1054, %v1053
      %v1061 = vpack.c.b16 %v1056, %v1055
      %v1062 = vpack.c.b16 %v1058, %v1057
      %1067 = vmatpush.bf16.msra.mxu0 0
      %1068 = vmatpush.bf16.msra.mxu0 0
      %1069 = vmatpush.bf16.msra.mxu0 0
      %1070 = vmatpush.bf16.msra.mxu0 0
      %1071 = vmatpush.bf16.msra.mxu0 %v1062
      %1072 = vmatpush.bf16.msra.mxu0 %v1061
      %1073 = vmatpush.bf16.msra.mxu0 %v1060
      %1074 = vmatpush.bf16.msra.mxu0 %v1059
      %1075 = vmatmul.bf16.gmra.mxu0 %v757
      %v1076 = vpop.f32.mrf.mxu0
      %v1077 = vadd.f32 0.0, %v1076
      %v1078 = vpop.f32.mrf.mxu0
      %1079 = vdwg.mxu0
      %v1088 = vunpack.c.l.b16 %v1026
      %v1089 = vunpack.c.l.b16 %v1027
      %v1090 = vunpack.c.l.b16 %v1028
      %v1091 = vunpack.c.l.b16 %v1029
      %v1092 = vunpack.c.l.b16 %v1030
      %v1093 = vunpack.c.l.b16 %v1031
      %v1094 = vunpack.c.l.b16 %v1032
      %v1095 = vunpack.c.l.b16 %v1033
      %v1096 = vpack.c.b16 %v1089, %v1088
      %v1097 = vpack.c.b16 %v1091, %v1090
      %v1098 = vpack.c.b16 %v1093, %v1092
      %v1099 = vpack.c.b16 %v1095, %v1094
      %1104 = vmatpush.bf16.msra.mxu0 0
      %1105 = vmatpush.bf16.msra.mxu0 0
      %1106 = vmatpush.bf16.msra.mxu0 0
      %1107 = vmatpush.bf16.msra.mxu0 0
      %1108 = vmatpush.bf16.msra.mxu0 %v1099
      %1109 = vmatpush.bf16.msra.mxu0 %v1098
      %1110 = vmatpush.bf16.msra.mxu0 %v1097
      %1111 = vmatpush.bf16.msra.mxu0 %v1096
      %1112 = vmatmul.bf16.gmra.mxu0 %v537
      %v1113 = vpop.f32.mrf.mxu0
      %v1114 = vadd.f32 %v1077, %v1113
      %v1115 = vpop.f32.mrf.mxu0
      %1116 = vdwg.mxu0
      %s1117 = scalar_lea.vmem %s1, 448
      %v1118 = vld [vmem:[%s1117] sm:$0xf]
      %v1119 = vld [vmem:[%s1117 + $0x4] sm:$0xf]
      %v1120 = vld [vmem:[%s1117 + $0x8] sm:$0xf]
      %v1121 = vld [vmem:[%s1117 + $0xc] sm:$0xf]
      %v1122 = vld [vmem:[%s1117 + $0x10] sm:$0xf]
      %v1123 = vld [vmem:[%s1117 + $0x14] sm:$0xf]
      %v1124 = vld [vmem:[%s1117 + $0x18] sm:$0xf]
      %v1125 = vld [vmem:[%s1117 + $0x1c] sm:$0xf]
      %v1134 = vunpack.c.l.b16 %v1118
      %v1135 = vunpack.c.l.b16 %v1119
      %v1136 = vunpack.c.l.b16 %v1120
      %v1137 = vunpack.c.l.b16 %v1121
      %v1138 = vunpack.c.l.b16 %v1122
      %v1139 = vunpack.c.l.b16 %v1123
      %v1140 = vunpack.c.l.b16 %v1124
      %v1141 = vunpack.c.l.b16 %v1125
      %v1142 = vpack.c.b16 %v1135, %v1134
      %v1143 = vpack.c.b16 %v1137, %v1136
      %v1144 = vpack.c.b16 %v1139, %v1138
      %v1145 = vpack.c.b16 %v1141, %v1140
      %1150 = vmatpush.bf16.msra.mxu0 0
      %1151 = vmatpush.bf16.msra.mxu0 0
      %1152 = vmatpush.bf16.msra.mxu0 0
      %1153 = vmatpush.bf16.msra.mxu0 0
      %1154 = vmatpush.bf16.msra.mxu0 %v1145
      %1155 = vmatpush.bf16.msra.mxu0 %v1144
      %1156 = vmatpush.bf16.msra.mxu0 %v1143
      %1157 = vmatpush.bf16.msra.mxu0 %v1142
      %1158 = vmatmul.bf16.gmra.mxu0 %v983
      %v1159 = vpop.f32.mrf.mxu0
      %v1160 = vadd.f32 0.0, %v1159
      %v1161 = vpop.f32.mrf.mxu0
      %1162 = vdwg.mxu0
      %v1163 = vadd.f32 %v1114, %v1160
      %s1164 = scalar_lea.vmem %s1, 480
      %v1165 = vld [vmem:[%s1164] sm:$0xf]
      %v1166 = vld [vmem:[%s1164 + $0x4] sm:$0xf]
      %v1167 = vld [vmem:[%s1164 + $0x8] sm:$0xf]
      %v1168 = vld [vmem:[%s1164 + $0xc] sm:$0xf]
      %v1169 = vld [vmem:[%s1164 + $0x10] sm:$0xf]
      %v1170 = vld [vmem:[%s1164 + $0x14] sm:$0xf]
      %v1171 = vld [vmem:[%s1164 + $0x18] sm:$0xf]
      %v1172 = vld [vmem:[%s1164 + $0x1c] sm:$0xf]
      %v1173 = vrot.slane %v950, 1
      %v1182 = vunpack.c.l.b16 %v1165
      %v1183 = vunpack.c.l.b16 %v1166
      %v1184 = vunpack.c.l.b16 %v1167
      %v1185 = vunpack.c.l.b16 %v1168
      %v1186 = vunpack.c.l.b16 %v1169
      %v1187 = vunpack.c.l.b16 %v1170
      %v1188 = vunpack.c.l.b16 %v1171
      %v1189 = vunpack.c.l.b16 %v1172
      %v1190 = vpack.c.b16 %v1183, %v1182
      %v1191 = vpack.c.b16 %v1185, %v1184
      %v1192 = vpack.c.b16 %v1187, %v1186
      %v1193 = vpack.c.b16 %v1189, %v1188
      %v1199 = vsel %vm384, %v1173, 0
      %1201 = vmatpush.bf16.msra.mxu0 0
      %1202 = vmatpush.bf16.msra.mxu0 0
      %1203 = vmatpush.bf16.msra.mxu0 0
      %1204 = vmatpush.bf16.msra.mxu0 0
      %1205 = vmatpush.bf16.msra.mxu0 %v1193
      %1206 = vmatpush.bf16.msra.mxu0 %v1192
      %1207 = vmatpush.bf16.msra.mxu0 %v1191
      %1208 = vmatpush.bf16.msra.mxu0 %v1190
      %1209 = vmatmul.bf16.gmra.mxu0 %v1199
      %v1210 = vpop.f32.mrf.mxu0
      %v1211 = vadd.f32 0.0, %v1210
      %v1212 = vpop.f32.mrf.mxu0
      %1213 = vdwg.mxu0
      %v1214 = vadd.f32 %v1163, %v1211
      %v1215 = vadd.f32 %v1214, %v554
      %v1216 = vmul.f32 %v1215, %v332
      %v1217 = vsel %vm558, %v1216, 0.0
      %v1218 = vrot.slane %v1217, 4
      %v1219 = vadd.f32 %v1217, %v1218
      %v1220 = vrot.slane %v1219, 2
      %v1221 = vadd.f32 %v1219, %v1220
      %v1222 = vrot.slane %v1221, 1
      %v1223 = vadd.f32 %v1221, %v1222
      %v1224 = vadd.f32 %v1008, %v1223
      %v1225 = vmul.f32 %v1215, %v1216
      %v1226 = vsel %vm558, %v1225, 0.0
      %v1227 = vrot.slane %v1226, 4
      %v1228 = vadd.f32 %v1226, %v1227
      %v1229 = vrot.slane %v1228, 2
      %v1230 = vadd.f32 %v1228, %v1229
      %v1231 = vrot.slane %v1230, 1
      %v1232 = vadd.f32 %v1230, %v1231
      %v1233 = vadd.f32 %v1017, %v1232
      %v1234 = vpack.c.bf16 %v1215, %v1215
      %1236 = vrot.lane.b32.xlu0 %v1234, 48
      %v1237 = vpop.permute.xlu0 %1236
      %vm1239 = vcmask 518528
      %1240 = vst.msk [vmem:[%s287] sm:$0x7] %vm1239, %v1237
      %vm1241 = vcmask 122880
      %1242 = vst.msk [vmem:[%s290] sm:$0x1] %vm1241, %v1224
      %1243 = vst.msk [vmem:[%s293] sm:$0x1] %vm1241, %v1233
      %p1244 = scmp.lt.s32.totalorder %s19, 1
      %s1245 = scalar_select %p1244, %s19, 1
      %s1246 = smul.addr %s1245, 4
      %s1247 = scalar_lea.vmem %s5, %s1246
      %p1248 = scmp.lt.s32.totalorder %s19, 1
      %s1249 = scalar_select %p1248, %s19, 1
      %s1250 = scalar_lea.vmem %s6, %s1249
      %p1251 = scmp.lt.s32.totalorder %s19, 1
      %s1252 = scalar_select %p1251, %s19, 1
      %s1253 = scalar_lea.vmem %s7, %s1252
      // Predicated region
      $region41: #{unet_forward.14} parent=39 // pred_check
        %p1254 = pneg %p147
      $region42: #{unet_forward.14} parent=39 // pred_check_branch
        %1256 = sbr.rel (%p1254) target = $region44
      $region43: #{unet_forward.14} parent=39 // pred_region
        _
      $region44: #{unet_forward.14} parent=39 // pred_fallthru
        _
      // Predicated region
      $region45: #{unet_forward.14} parent=39 // pred_check
        %p1257 = pneg %p173
      $region46: #{unet_forward.14} parent=39 // pred_check_branch
        %1259 = sbr.rel (%p1257) target = $region48
      $region47: #{unet_forward.14} parent=39 // pred_region
        _
      $region48: #{unet_forward.14} parent=39 // pred_fallthru
        _
      // Predicated region
      $region49: #{unet_forward.14} parent=39 // pred_check
        %p1260 = pneg %p199
      $region50: #{unet_forward.14} parent=39 // pred_check_branch
        %1262 = sbr.rel (%p1260) target = $region52
      $region51: #{unet_forward.14} parent=39 // pred_region
        _
      $region52: #{unet_forward.14} parent=39 // pred_fallthru
        _
    $region40: #{unet_forward.14} parent=5 // pred_fallthru
      _
    %p1263 = scmp.le.s32.totalorder 2, %s14
    // Predicated region
    $region53: #{unet_forward.14} parent=5 // pred_check
      %p1264 = pneg %p1263
    $region54: #{unet_forward.14} parent=5 // pred_check_branch
      %1266 = sbr.rel (%p1264) target = $region56
    $region55: #{unet_forward.14} parent=5 // pred_region
      %s1267 = ssub.s32 %s14, 2
      // Predicated region
      $region57: #{unet_forward.14} parent=55 // pred_check
        %p1268 = pneg %p153
      $region58: #{unet_forward.14} parent=55 // pred_check_branch
        %1270 = sbr.rel (%p1268) target = $region60
      $region59: #{unet_forward.14} parent=55 // pred_region
        %p1271 = scmp.lt.s32.totalorder %s20, 1
        %s1272 = scalar_select %p1271, %s20, 1
        %s1273 = smul.addr %s1272, 4
        %s1274 = scalar_lea.vmem %s5, %s1273
      $region60: #{unet_forward.14} parent=55 // pred_fallthru
        _
      // Predicated region
      $region61: #{unet_forward.14} parent=55 // pred_check
        %p1275 = pneg %p179
      $region62: #{unet_forward.14} parent=55 // pred_check_branch
        %1277 = sbr.rel (%p1275) target = $region64
      $region63: #{unet_forward.14} parent=55 // pred_region
        %p1278 = scmp.lt.s32.totalorder %s20, 1
        %s1279 = scalar_select %p1278, %s20, 1
        %s1280 = scalar_lea.vmem %s6, %s1279
      $region64: #{unet_forward.14} parent=55 // pred_fallthru
        _
      // Predicated region
      $region65: #{unet_forward.14} parent=55 // pred_check
        %p1281 = pneg %p205
      $region66: #{unet_forward.14} parent=55 // pred_check_branch
        %1283 = sbr.rel (%p1281) target = $region68
      $region67: #{unet_forward.14} parent=55 // pred_region
        %p1284 = scmp.lt.s32.totalorder %s20, 1
        %s1285 = scalar_select %p1284, %s20, 1
        %s1286 = scalar_lea.vmem %s7, %s1285
      $region68: #{unet_forward.14} parent=55 // pred_fallthru
        _
    $region56: #{unet_forward.14} parent=5 // pred_fallthru
      _
  $region6: #{unet_forward.14} parent=0 // loop_footer
    %s18 = sadd.s32 1, %s14
  $region7: #{unet_forward.14} parent=0 // loop_footer_branch
    %13 = sbr.rel target = $region3
  $region8: #{unet_forward.14} parent=0 // loop_exit
    _

// kernel: unet_forward.15
$region0: #{unet_forward.15}
  #allocation0 [shape = 'u32[]', space=smem, size = 0x4, offset = 0x4, fixed_abs, tag = 'smem constant byte address 0x4 - core index']
  #allocation1 [shape = 'u32[72,128]{1,0:T(1,128)}', space=vmem, size = 0x9000, scoped, tag = 'internal scratch']
  %s0 = inlined_call_operand.vmem [shape: bf16[2,36,32], index: 0, kind: input, shape index: {}]
  %s1 = inlined_call_operand.vmem [shape: bf16[4,4,32,8], index: 1, kind: input, shape index: {}]
  %s2 = inlined_call_operand.vmem [shape: f32[1,8], index: 2, kind: input, shape index: {}]
  %s3 = inlined_call_operand.vmem [shape: f32[1,32], index: 3, kind: input, shape index: {}]
  %s4 = inlined_call_operand.vmem [shape: f32[1,32], index: 4, kind: input, shape index: {}]
  %s5 = inlined_call_operand.vmem [shape: bf16[2,22,32], index: 5, kind: output, shape index: {0}]
  %s6 = inlined_call_operand.vmem [shape: f32[2,1,8], index: 6, kind: output, shape index: {1}]
  %s7 = inlined_call_operand.vmem [shape: f32[2,1,8], index: 7, kind: output, shape index: {2}]
  %8 = xla_tuple %s5, %s6, %s7
  %s9 = sld [smem:[#allocation0]]
  $region69: #{unet_forward.15} parent=0
    _
  %s11 = ssub.s32 1, %s9
  %s12 = scalar_select 0, %s11, %s9
  loop: start=0, step=1, limit=4
  $region2: #{unet_forward.15} parent=0 // loop_pre_header
    _
  $region3: #{unet_forward.15} parent=0 // loop_header
    %s14 = sphi 0, %s18
    %p15 = scmp.ge.s32.totalorder %s14, 4
    %s24 = sphi 0, %s26
    %s27 = sphi 0, %s24
    %s28 = sphi 0, %s27
    %s44 = sphi 0, %s28
    %s48 = sphi 0, %s48
    %s50 = sphi 0, %s48
    %s51 = sphi 0, %s50
    %s65 = sphi 0, %s51
    %s69 = sphi 0, %s69
    %s71 = sphi 0, %s69
    %s72 = sphi 0, %s71
    %s86 = sphi 0, %s72
    %s90 = sphi 0, %s90
    %s92 = sphi 0, %s90
    %s93 = sphi 0, %s92
    %s107 = sphi 0, %s93
    %s111 = sphi 0, %s111
    %s113 = sphi 0, %s111
    %s114 = sphi 0, %s113
    %s128 = sphi 0, %s114
    %s134 = sphi 0, %s136
    %s137 = sphi 0, %s134
    %s138 = sphi 0, %s137
    %s154 = sphi 0, %s138
    %s160 = sphi 0, %s162
    %s163 = sphi 0, %s160
    %s164 = sphi 0, %s163
    %s180 = sphi 0, %s164
    %s186 = sphi 0, %s188
    %s189 = sphi 0, %s186
    %s190 = sphi 0, %s189
    %s206 = sphi 0, %s190
  $region4: #{unet_forward.15} parent=0 // loop_header_branch
    %17 = sbr.rel (%p15) target = $region8
  $region5: #{unet_forward.15} parent=0 // loop_body
    %s19 = ssub.s32 %s14, 1
    %s20 = ssub.s32 %s14, 2
    %s21 = sadd.s32 %s14, 1
    %s22 = ssub.s32 %s14, %s21
    %p23 = scmp.eq.s32.totalorder %s22, 0
    %s25 = sadd.s32 %s24, 1
    %s26 = scalar_select %p23, %s24, %s25
    %p29 = pneg %p23
    %p30 = scmp.eq.s32.totalorder %s14, 1
    %p31 = por %p29, %p30
    %p32 = scmp.ne.s32.totalorder %s24, %s27
    %p33 = scmp.eq.s32.totalorder %s14, 0
    %p34 = por %p32, %p33
    %p35 = scmp.ne.s32.totalorder %s24, %s27
    %p36 = scmp.eq.s32.totalorder %s19, 1
    %p37 = por %p35, %p36
    %p38 = scmp.ne.s32.totalorder %s27, %s28
    %p39 = scmp.eq.s32.totalorder %s19, 0
    %p40 = por %p38, %p39
    %p41 = scmp.ne.s32.totalorder %s27, %s28
    %p42 = scmp.eq.s32.totalorder %s20, 1
    %p43 = por %p41, %p42
    %p45 = scmp.ne.s32.totalorder %s28, %s44
    %p46 = scmp.eq.s32.totalorder %s20, 0
    %p47 = por %p45, %p46
    %s49 = sadd.s32 %s48, 1
    %p52 = scmp.eq.s32.totalorder %s14, 1
    %p53 = scmp.ne.s32.totalorder %s48, %s50
    %p54 = scmp.eq.s32.totalorder %s14, 0
    %p55 = por %p53, %p54
    %p56 = scmp.ne.s32.totalorder %s48, %s50
    %p57 = scmp.eq.s32.totalorder %s19, 1
    %p58 = por %p56, %p57
    %p59 = scmp.ne.s32.totalorder %s50, %s51
    %p60 = scmp.eq.s32.totalorder %s19, 0
    %p61 = por %p59, %p60
    %p62 = scmp.ne.s32.totalorder %s50, %s51
    %p63 = scmp.eq.s32.totalorder %s20, 1
    %p64 = por %p62, %p63
    %p66 = scmp.ne.s32.totalorder %s51, %s65
    %p67 = scmp.eq.s32.totalorder %s20, 0
    %p68 = por %p66, %p67
    %s70 = sadd.s32 %s69, 1
    %p73 = scmp.eq.s32.totalorder %s14, 1
    %p74 = scmp.ne.s32.totalorder %s69, %s71
    %p75 = scmp.eq.s32.totalorder %s14, 0
    %p76 = por %p74, %p75
    %p77 = scmp.ne.s32.totalorder %s69, %s71
    %p78 = scmp.eq.s32.totalorder %s19, 1
    %p79 = por %p77, %p78
    %p80 = scmp.ne.s32.totalorder %s71, %s72
    %p81 = scmp.eq.s32.totalorder %s19, 0
    %p82 = por %p80, %p81
    %p83 = scmp.ne.s32.totalorder %s71, %s72
    %p84 = scmp.eq.s32.totalorder %s20, 1
    %p85 = por %p83, %p84
    %p87 = scmp.ne.s32.totalorder %s72, %s86
    %p88 = scmp.eq.s32.totalorder %s20, 0
    %p89 = por %p87, %p88
    %s91 = sadd.s32 %s90, 1
    %p94 = scmp.eq.s32.totalorder %s14, 1
    %p95 = scmp.ne.s32.totalorder %s90, %s92
    %p96 = scmp.eq.s32.totalorder %s14, 0
    %p97 = por %p95, %p96
    %p98 = scmp.ne.s32.totalorder %s90, %s92
    %p99 = scmp.eq.s32.totalorder %s19, 1
    %p100 = por %p98, %p99
    %p101 = scmp.ne.s32.totalorder %s92, %s93
    %p102 = scmp.eq.s32.totalorder %s19, 0
    %p103 = por %p101, %p102
    %p104 = scmp.ne.s32.totalorder %s92, %s93
    %p105 = scmp.eq.s32.totalorder %s20, 1
    %p106 = por %p104, %p105
    %p108 = scmp.ne.s32.totalorder %s93, %s107
    %p109 = scmp.eq.s32.totalorder %s20, 0
    %p110 = por %p108, %p109
    %s112 = sadd.s32 %s111, 1
    %p115 = scmp.eq.s32.totalorder %s14, 1
    %p116 = scmp.ne.s32.totalorder %s111, %s113
    %p117 = scmp.eq.s32.totalorder %s14, 0
    %p118 = por %p116, %p117
    %p119 = scmp.ne.s32.totalorder %s111, %s113
    %p120 = scmp.eq.s32.totalorder %s19, 1
    %p121 = por %p119, %p120
    %p122 = scmp.ne.s32.totalorder %s113, %s114
    %p123 = scmp.eq.s32.totalorder %s19, 0
    %p124 = por %p122, %p123
    %p125 = scmp.ne.s32.totalorder %s113, %s114
    %p126 = scmp.eq.s32.totalorder %s20, 1
    %p127 = por %p125, %p126
    %p129 = scmp.ne.s32.totalorder %s114, %s128
    %p130 = scmp.eq.s32.totalorder %s20, 0
    %p131 = por %p129, %p130
    %s132 = ssub.s32 %s14, %s21
    %p133 = scmp.eq.s32.totalorder %s132, 0
    %s135 = sadd.s32 %s134, 1
    %s136 = scalar_select %p133, %s134, %s135
    %p139 = pneg %p133
    %p140 = scmp.eq.s32.totalorder %s14, 1
    %p141 = por %p139, %p140
    %p142 = scmp.ne.s32.totalorder %s134, %s137
    %p143 = scmp.eq.s32.totalorder %s14, 0
    %p144 = por %p142, %p143
    %p145 = scmp.ne.s32.totalorder %s134, %s137
    %p146 = scmp.eq.s32.totalorder %s19, 1
    %p147 = por %p145, %p146
    %p148 = scmp.ne.s32.totalorder %s137, %s138
    %p149 = scmp.eq.s32.totalorder %s19, 0
    %p150 = por %p148, %p149
    %p151 = scmp.ne.s32.totalorder %s137, %s138
    %p152 = scmp.eq.s32.totalorder %s20, 1
    %p153 = por %p151, %p152
    %p155 = scmp.ne.s32.totalorder %s138, %s154
    %p156 = scmp.eq.s32.totalorder %s20, 0
    %p157 = por %p155, %p156
    %s158 = ssub.s32 %s14, %s21
    %p159 = scmp.eq.s32.totalorder %s158, 0
    %s161 = sadd.s32 %s160, 1
    %s162 = scalar_select %p159, %s160, %s161
    %p165 = pneg %p159
    %p166 = scmp.eq.s32.totalorder %s14, 1
    %p167 = por %p165, %p166
    %p168 = scmp.ne.s32.totalorder %s160, %s163
    %p169 = scmp.eq.s32.totalorder %s14, 0
    %p170 = por %p168, %p169
    %p171 = scmp.ne.s32.totalorder %s160, %s163
    %p172 = scmp.eq.s32.totalorder %s19, 1
    %p173 = por %p171, %p172
    %p174 = scmp.ne.s32.totalorder %s163, %s164
    %p175 = scmp.eq.s32.totalorder %s19, 0
    %p176 = por %p174, %p175
    %p177 = scmp.ne.s32.totalorder %s163, %s164
    %p178 = scmp.eq.s32.totalorder %s20, 1
    %p179 = por %p177, %p178
    %p181 = scmp.ne.s32.totalorder %s164, %s180
    %p182 = scmp.eq.s32.totalorder %s20, 0
    %p183 = por %p181, %p182
    %s184 = ssub.s32 %s14, %s21
    %p185 = scmp.eq.s32.totalorder %s184, 0
    %s187 = sadd.s32 %s186, 1
    %s188 = scalar_select %p185, %s186, %s187
    %p191 = pneg %p185
    %p192 = scmp.eq.s32.totalorder %s14, 1
    %p193 = por %p191, %p192
    %p194 = scmp.ne.s32.totalorder %s186, %s189
    %p195 = scmp.eq.s32.totalorder %s14, 0
    %p196 = por %p194, %p195
    %p197 = scmp.ne.s32.totalorder %s186, %s189
    %p198 = scmp.eq.s32.totalorder %s19, 1
    %p199 = por %p197, %p198
    %p200 = scmp.ne.s32.totalorder %s189, %s190
    %p201 = scmp.eq.s32.totalorder %s19, 0
    %p202 = por %p200, %p201
    %p203 = scmp.ne.s32.totalorder %s189, %s190
    %p204 = scmp.eq.s32.totalorder %s20, 1
    %p205 = por %p203, %p204
    %p207 = scmp.ne.s32.totalorder %s190, %s206
    %p208 = scmp.eq.s32.totalorder %s20, 0
    %p209 = por %p207, %p208
    %p210 = scmp.le.s32.totalorder 1, %s14
    %p211 = scmp.lt.s32.totalorder %s14, 3
    %p212 = pnand %p210, %p211
    %p213 = pneg %p212
    // Predicated region
    $region9: #{unet_forward.15} parent=5 // pred_check
      _
    $region10: #{unet_forward.15} parent=5 // pred_check_branch
      %215 = sbr.rel (%p212) target = $region12
    $region11: #{unet_forward.15} parent=5 // pred_region
      %s216 = ssub.s32 %s14, 1
      // Predicated region
      $region13: #{unet_forward.15} parent=11 // pred_check
        %p217 = pneg %p61
      $region14: #{unet_forward.15} parent=11 // pred_check_branch
        %219 = sbr.rel (%p217) target = $region16
      $region15: #{unet_forward.15} parent=11 // pred_region
        _
      $region16: #{unet_forward.15} parent=11 // pred_fallthru
        _
      // Predicated region
      $region17: #{unet_forward.15} parent=11 // pred_check
        %p220 = pneg %p82
      $region18: #{unet_forward.15} parent=11 // pred_check_branch
        %222 = sbr.rel (%p220) target = $region20
      $region19: #{unet_forward.15} parent=11 // pred_region
        _
      $region20: #{unet_forward.15} parent=11 // pred_fallthru
        _
      // Predicated region
      $region21: #{unet_forward.15} parent=11 // pred_check
        %p223 = pneg %p103
      $region22: #{unet_forward.15} parent=11 // pred_check_branch
        %225 = sbr.rel (%p223) target = $region24
      $region23: #{unet_forward.15} parent=11 // pred_region
        _
      $region24: #{unet_forward.15} parent=11 // pred_fallthru
        _
      // Predicated region
      $region25: #{unet_forward.15} parent=11 // pred_check
        %p226 = pneg %p124
      $region26: #{unet_forward.15} parent=11 // pred_check_branch
        %228 = sbr.rel (%p226) target = $region28
      $region27: #{unet_forward.15} parent=11 // pred_region
        _
      $region28: #{unet_forward.15} parent=11 // pred_fallthru
        _
    $region12: #{unet_forward.15} parent=5 // pred_fallthru
      _
    %p229 = scmp.lt.s32.totalorder %s14, 2
    // Predicated region
    $region29: #{unet_forward.15} parent=5 // pred_check
      %p230 = pneg %p229
    $region30: #{unet_forward.15} parent=5 // pred_check_branch
      %232 = sbr.rel (%p230) target = $region32
    $region31: #{unet_forward.15} parent=5 // pred_region
      // Predicated region
      $region33: #{unet_forward.15} parent=31 // pred_check
        %p233 = pneg %p34
      $region34: #{unet_forward.15} parent=31 // pred_check_branch
        %235 = sbr.rel (%p233) target = $region36
      $region35: #{unet_forward.15} parent=31 // pred_region
        %p236 = scmp.lt.s32.totalorder %s14, 1
        %s237 = scalar_select %p236, %s14, 1
        %s238 = smul.addr %s237, 5
        %s239 = smul.addr %s238, 4
        %s240 = scalar_lea.vmem %s0, %s239
      $region36: #{unet_forward.15} parent=31 // pred_fallthru
        _
    $region32: #{unet_forward.15} parent=5 // pred_fallthru
      _
    %p241 = scmp.le.s32.totalorder 1, %s14
    %p242 = scmp.lt.s32.totalorder %s14, 3
    %p243 = pnand %p241, %p242
    %p244 = pneg %p243
    // Predicated region
    $region37: #{unet_forward.15} parent=5 // pred_check
      _
    $region38: #{unet_forward.15} parent=5 // pred_check_branch
      %246 = sbr.rel (%p243) target = $region40
    $region39: #{unet_forward.15} parent=5 // pred_region
      %s247 = ssub.s32 %s14, 1
      %p248 = scmp.lt.s32.totalorder %s19, 1
      %s249 = scalar_select %p248, %s19, 1
      %s250 = smul.addr %s249, 5
      %s251 = smul.addr %s250, 4
      %s252 = scalar_lea.vmem %s0, %s251
      %p253 = pneg %p40
      %p254 = pneg %p37
      %p255 = pneg %p61
      %p256 = pneg %p58
      %p257 = pneg %p82
      %p258 = pneg %p79
      %p259 = pneg %p103
      %p260 = pneg %p100
      %p261 = pneg %p124
      %p262 = pneg %p121
      %p263 = pneg %p150
      %p264 = pneg %p147
      %p265 = scmp.lt.s32.totalorder %s19, 1
      %s266 = scalar_select %p265, %s19, 1
      %s267 = smul.addr %s266, 3
      %s268 = smul.addr %s267, 4
      %s269 = scalar_lea.vmem %s5, %s268
      %p270 = pneg %p176
      %p271 = pneg %p173
      %p272 = scmp.lt.s32.totalorder %s19, 1
      %s273 = scalar_select %p272, %s19, 1
      %s274 = scalar_lea.vmem %s6, %s273
      %p275 = pneg %p202
      %p276 = pneg %p199
      %p277 = scmp.lt.s32.totalorder %s19, 1
      %s278 = scalar_select %p277, %s19, 1
      %s279 = scalar_lea.vmem %s7, %s278
      %p280 = scmp.lt.s32.totalorder %s19, 1
      %s281 = scalar_select %p280, %s19, 1
      %s282 = smul.addr %s281, 5
      %s283 = smul.addr %s282, 4
      %s284 = scalar_lea.vmem %s0, %s283
      %p285 = scmp.lt.s32.totalorder %s19, 1
      %s286 = scalar_select %p285, %s19, 1
      %s287 = smul.addr %s286, 3
      %s288 = smul.addr %s287, 4
      %s289 = scalar_lea.vmem %s5, %s288
      %p290 = scmp.lt.s32.totalorder %s19, 1
      %s291 = scalar_select %p290, %s19, 1
      %s292 = scalar_lea.vmem %s6, %s291
      %p293 = scmp.lt.s32.totalorder %s19, 1
      %s294 = scalar_select %p293, %s19, 1
      %s295 = scalar_lea.vmem %s7, %s294
      %v297 = vld [vmem:[%s284] sm:$0xf]
      %v298 = vld [vmem:[%s284 + $0x4] sm:$0xf]
      %v299 = vld [vmem:[%s284 + $0x8] sm:$0xf]
      %v300 = vld [vmem:[%s284 + $0xc] sm:$0xf]
      %v301 = vld [vmem:[%s284 + $0x10] sm:$0x3]
      %v302 = vunpack.c.l.bf16 %v297
      %v303 = vunpack.c.l.bf16 %v298
      %v304 = vunpack.c.l.bf16 %v299
      %v305 = vunpack.c.l.bf16 %v300
      %v306 = vunpack.c.l.bf16 %v301
      %v307 = vld [vmem:[%s3] sm:$0x1]
      %v309 = vperm.slane %v307, 0
      %v311 = vmul.f32 %v302, %v309
      %v312 = vmul.f32 %v303, %v309
      %v313 = vmul.f32 %v304, %v309
      %v314 = vmul.f32 %v305, %v309
      %v315 = vmul.f32 %v306, %v309
      %v316 = vld [vmem:[%s4] sm:$0x1]
      %v318 = vperm.slane %v316, 0
      %v320 = vadd.f32 %v311, %v318
      %v321 = vadd.f32 %v312, %v318
      %v322 = vadd.f32 %v313, %v318
      %v323 = vadd.f32 %v314, %v318
      %v324 = vadd.f32 %v315, %v318
      %v325 = vmax.f32 %v320, 0.0
      %v326 = vmax.f32 %v321, 0.0
      %v327 = vmax.f32 %v322, 0.0
      %v328 = vmax.f32 %v323, 0.0
      %v329 = vmax.f32 %v324, 0.0
      %v330 = vpack.c.bf16 %v325, %v325
      %v331 = vpack.c.bf16 %v326, %v326
      %v332 = vpack.c.bf16 %v327, %v327
      %v333 = vpack.c.bf16 %v328, %v328
      %v334 = vpack.c.bf16 %v329, %v329
      %v335 = vld [vmem:[%s2] sm:$0x1]
      %v336 = vlaneseq
      %v337 = vshrl.u32 %v336, 7
      %v338 = vadd.s32 %v337, 8
      %v339 = vadd.s32 %v337, 16
      %vm340 = vcmp.lt.s32.totalorder %v337, 0
      %v341 = vsub.s32 0, %v337
      %v342 = vsel %vm340, %v341, %v337
      %v343 = vand.u32 %v342, 65535
      %v344 = vshrl.u32 %v342, 16
      %v346 = vmul.u32 %v343, 43691
      %v347 = vmul.u32 %v343, 43690
      %v348 = vmul.u32 %v344, 43691
      %v349 = vmul.u32 %v344, 43690
      %v350 = vshll.u32 %v347, 16
      %v351 = vshrl.u32 %v347, 16
      %v352 = vshll.u32 %v348, 16
      %v353 = vshrl.u32 %v348, 16
      %vm354 = vc.u32 %v346, %v350
      %v355 = vsel %vm354, 1, 0
      %v356 = vadd.s32 %v346, %v350
      %v357 = vadd.s32 %v349, %v355
      %vm358 = vc.u32 %v356, %v352
      %v359 = vsel %vm358, 1, 0
      %v360 = vadd.s32 %v356, %v352
      %v361 = vadd.s32 %v357, %v359
      %v362 = vadd.s32 %v361, %v351
      %v363 = vadd.s32 %v362, %v353
      %v364 = vshrl.u32 %v363, 2
      %v365 = vmul.u32 %v364, 6
      %v366 = vsub.s32 %v342, %v365
      %v367 = vsub.s32 0, %v366
      %v368 = vsel %vm340, %v367, %v366
      %vm369 = vcmp.lt.s32.totalorder %v338, 0
      %v370 = vsub.s32 0, %v338
      %v371 = vsel %vm369, %v370, %v338
      %v372 = vand.u32 %v371, 65535
      %v373 = vshrl.u32 %v371, 16
      %v375 = vmul.u32 %v372, 43691
      %v376 = vmul.u32 %v372, 43690
      %v377 = vmul.u32 %v373, 43691
      %v378 = vmul.u32 %v373, 43690
      %v379 = vshll.u32 %v376, 16
      %v380 = vshrl.u32 %v376, 16
      %v381 = vshll.u32 %v377, 16
      %v382 = vshrl.u32 %v377, 16
      %vm383 = vc.u32 %v375, %v379
      %v384 = vsel %vm383, 1, 0
      %v385 = vadd.s32 %v375, %v379
      %v386 = vadd.s32 %v378, %v384
      %vm387 = vc.u32 %v385, %v381
      %v388 = vsel %vm387, 1, 0
      %v389 = vadd.s32 %v385, %v381
      %v390 = vadd.s32 %v386, %v388
      %v391 = vadd.s32 %v390, %v380
      %v392 = vadd.s32 %v391, %v382
      %v393 = vshrl.u32 %v392, 2
      %v394 = vmul.u32 %v393, 6
      %v395 = vsub.s32 %v371, %v394
      %v396 = vsub.s32 0, %v395
      %v397 = vsel %vm369, %v396, %v395
      %vm398 = vcmp.lt.s32.totalorder %v339, 0
      %v399 = vsub.s32 0, %v339
      %v400 = vsel %vm398, %v399, %v339
      %v401 = vand.u32 %v400, 65535
      %v402 = vshrl.u32 %v400, 16
      %v404 = vmul.u32 %v401, 43691
      %v405 = vmul.u32 %v401, 43690
      %v406 = vmul.u32 %v402, 43691
      %v407 = vmul.u32 %v402, 43690
      %v408 = vshll.u32 %v405, 16
      %v409 = vshrl.u32 %v405, 16
      %v410 = vshll.u32 %v406, 16
      %v411 = vshrl.u32 %v406, 16
      %vm412 = vc.u32 %v404, %v408
      %v413 = vsel %vm412, 1, 0
      %v414 = vadd.s32 %v404, %v408
      %v415 = vadd.s32 %v407, %v413
      %vm416 = vc.u32 %v414, %v410
      %v417 = vsel %vm416, 1, 0
      %v418 = vadd.s32 %v414, %v410
      %v419 = vadd.s32 %v415, %v417
      %v420 = vadd.s32 %v419, %v409
      %v421 = vadd.s32 %v420, %v411
      %v422 = vshrl.u32 %v421, 2
      %v423 = vmul.u32 %v422, 6
      %v424 = vsub.s32 %v400, %v423
      %v425 = vsub.s32 0, %v424
      %v426 = vsel %vm398, %v425, %v424
      %vm427 = vcmp.ne.s32.totalorder %v368, 0
      %vm428 = vcmp.ne.s32.totalorder %v397, 0
      %vm429 = vcmp.ne.s32.totalorder %v426, 0
      %vm430 = vcmp.lt.s32.totalorder %v368, 0
      %vm431 = vcmp.lt.s32.totalorder %v397, 0
      %vm432 = vcmp.lt.s32.totalorder %v426, 0
      %vm433 = vmand %vm430, %vm427
      %vm434 = vmand %vm431, %vm428
      %vm435 = vmand %vm432, %vm429
      %v436 = vadd.s32 %v368, 6
      %v437 = vadd.s32 %v397, 6
      %v438 = vadd.s32 %v426, 6
      %v439 = vsel %vm433, %v436, %v368
      %v440 = vsel %vm434, %v437, %v397
      %v441 = vsel %vm435, %v438, %v426
      %vm442 = vcmp.lt.s32.totalorder %v439, 4
      %vm443 = vcmp.lt.s32.totalorder %v440, 4
      %vm444 = vcmp.lt.s32.totalorder %v441, 4
      %v445 = vsel %vm442, 1, 0
      %v446 = vsel %vm443, 1, 0
      %v447 = vsel %vm444, 1, 0
      %v448 = vcvt.s32.f32 %v445
      %v449 = vcvt.s32.f32 %v446
      %v450 = vcvt.s32.f32 %v447
      %v451 = vld [vmem:[%s1] sm:$0xf]
      %v452 = vld [vmem:[%s1 + $0x4] sm:$0xf]
      %v453 = vld [vmem:[%s1 + $0x8] sm:$0xf]
      %v454 = vld [vmem:[%s1 + $0xc] sm:$0xf]
      %s455 = scalar_lea.vmem %s1, 16
      %v456 = vld [vmem:[%s455] sm:$0xf]
      %v457 = vld [vmem:[%s455 + $0x4] sm:$0xf]
      %v458 = vld [vmem:[%s455 + $0x8] sm:$0xf]
      %v459 = vld [vmem:[%s455 + $0xc] sm:$0xf]
      %v463 = vunpack.c.l.b16 %v330
      %v464 = vunpack.c.l.b16 %v331
      %v465 = vunpack.c.l.b16 %v332
      %v466 = vpack.c.b16 %v464, %v463
      %v467 = vpack.c.b16 %v465, %v465
      %vm468 = vsmask.f32 7424
      %v470 = vshrl.u32 %v466, 16
      %v472 = vshll.u32 %v466, 16
      %v474 = vrot.slane %v472, 1
      %v475 = vor.u32 %v470, %v474
      %v477 = vshll.u32 %v467, 16
      %v479 = vrot.slane %v477, 1
      %v480 = vsel %vm468, %v475, %v479
      %v481 = vshrl.u32 %v467, 16
      %v483 = vor.u32 %v481, %v479
      %v488 = vunpack.c.l.b16 %v456
      %v489 = vunpack.c.l.b16 %v457
      %v490 = vunpack.c.l.b16 %v458
      %v491 = vunpack.c.l.b16 %v459
      %v492 = vpack.c.b16 %v489, %v488
      %v493 = vpack.c.b16 %v491, %v490
      %vm496 = vcmask 261120
      %v498 = vsel %vm496, %v480, 0
      %v501 = vsel %vm496, %v483, 0
      %503 = vmatpush.bf16.msra.mxu0 0
      %504 = vmatpush.bf16.msra.mxu0 0
      %505 = vmatpush.bf16.msra.mxu0 0
      %506 = vmatpush.bf16.msra.mxu0 0
      %507 = vmatpush.bf16.msra.mxu0 0
      %508 = vmatpush.bf16.msra.mxu0 0
      %509 = vmatpush.bf16.msra.mxu0 %v493
      %510 = vmatpush.bf16.msra.mxu0 %v492
      %511 = vmatmul.bf16.gmra.mxu0 %v498
      %v512 = vpop.f32.mrf.mxu0
      %v513 = vadd.f32 0.0, %v512
      %v514 = vpop.f32.mrf.mxu0
      %v515 = vadd.f32 0.0, %v514
      %516 = vmatmul.bf16.gmra.mxu0 %v501
      %v517 = vpop.f32.mrf.mxu0
      %v518 = vadd.f32 0.0, %v517
      %v519 = vpop.f32.mrf.mxu0
      %520 = vdwg.mxu0
      %v525 = vunpack.c.l.b16 %v451
      %v526 = vunpack.c.l.b16 %v452
      %v527 = vunpack.c.l.b16 %v453
      %v528 = vunpack.c.l.b16 %v454
      %v529 = vpack.c.b16 %v526, %v525
      %v530 = vpack.c.b16 %v528, %v527
      %v533 = vsel %vm496, %v466, 0
      %v535 = vsel %vm496, %v467, 0
      %537 = vmatpush.bf16.msra.mxu0 0
      %538 = vmatpush.bf16.msra.mxu0 0
      %539 = vmatpush.bf16.msra.mxu0 0
      %540 = vmatpush.bf16.msra.mxu0 0
      %541 = vmatpush.bf16.msra.mxu0 0
      %542 = vmatpush.bf16.msra.mxu0 0
      %543 = vmatpush.bf16.msra.mxu0 %v530
      %544 = vmatpush.bf16.msra.mxu0 %v529
      %545 = vmatmul.bf16.gmra.mxu0 %v533
      %v546 = vpop.f32.mrf.mxu0
      %v547 = vadd.f32 %v513, %v546
      %v548 = vpop.f32.mrf.mxu0
      %v549 = vadd.f32 %v515, %v548
      %550 = vmatmul.bf16.gmra.mxu0 %v535
      %v551 = vpop.f32.mrf.mxu0
      %v552 = vadd.f32 %v518, %v551
      %v553 = vpop.f32.mrf.mxu0
      %554 = vdwg.mxu0
      %s555 = scalar_lea.vmem %s1, 32
      %v556 = vld [vmem:[%s555] sm:$0xf]
      %v557 = vld [vmem:[%s555 + $0x4] sm:$0xf]
      %v558 = vld [vmem:[%s555 + $0x8] sm:$0xf]
      %v559 = vld [vmem:[%s555 + $0xc] sm:$0xf]
      %v561 = vunpack.c.l.b16 %v333
      %v562 = vpack.c.b16 %v561, %v465
      %vm563 = vcmask 1044480
      %v564 = vrot.slane %v466, 3
      %v565 = vrot.slane %v562, 3
      %v566 = vsel %vm563, %v564, %v565
      %v571 = vunpack.c.l.b16 %v556
      %v572 = vunpack.c.l.b16 %v557
      %v573 = vunpack.c.l.b16 %v558
      %v574 = vunpack.c.l.b16 %v559
      %v575 = vpack.c.b16 %v572, %v571
      %v576 = vpack.c.b16 %v574, %v573
      %v580 = vsel %vm496, %v566, 0
      %v583 = vsel %vm496, %v565, 0
      %585 = vmatpush.bf16.msra.mxu0 0
      %586 = vmatpush.bf16.msra.mxu0 0
      %587 = vmatpush.bf16.msra.mxu0 0
      %588 = vmatpush.bf16.msra.mxu0 0
      %589 = vmatpush.bf16.msra.mxu0 0
      %590 = vmatpush.bf16.msra.mxu0 0
      %591 = vmatpush.bf16.msra.mxu0 %v576
      %592 = vmatpush.bf16.msra.mxu0 %v575
      %593 = vmatmul.bf16.gmra.mxu0 %v580
      %v594 = vpop.f32.mrf.mxu0
      %v595 = vadd.f32 0.0, %v594
      %v596 = vpop.f32.mrf.mxu0
      %v597 = vadd.f32 0.0, %v596
      %598 = vmatmul.bf16.gmra.mxu0 %v583
      %v599 = vpop.f32.mrf.mxu0
      %v600 = vadd.f32 0.0, %v599
      %v601 = vpop.f32.mrf.mxu0
      %602 = vdwg.mxu0
      %v603 = vadd.f32 %v547, %v595
      %v604 = vadd.f32 %v549, %v597
      %v605 = vadd.f32 %v552, %v600
      %s606 = scalar_lea.vmem %s1, 48
      %v607 = vld [vmem:[%s606] sm:$0xf]
      %v608 = vld [vmem:[%s606 + $0x4] sm:$0xf]
      %v609 = vld [vmem:[%s606 + $0x8] sm:$0xf]
      %v610 = vld [vmem:[%s606 + $0xc] sm:$0xf]
      %vm611 = vsmask.f32 4352
      %v612 = vrot.slane %v470, 3
      %v613 = vrot.slane %v472, 4
      %v614 = vor.u32 %v612, %v613
      %v616 = vshrl.u32 %v562, 16
      %v618 = vrot.slane %v616, 3
      %v619 = vshll.u32 %v562, 16
      %v621 = vrot.slane %v619, 4
      %v622 = vor.u32 %v618, %v621
      %v623 = vsel %vm611, %v614, %v622
      %v628 = vunpack.c.l.b16 %v607
      %v629 = vunpack.c.l.b16 %v608
      %v630 = vunpack.c.l.b16 %v609
      %v631 = vunpack.c.l.b16 %v610
      %v632 = vpack.c.b16 %v629, %v628
      %v633 = vpack.c.b16 %v631, %v630
      %v637 = vsel %vm496, %v623, 0
      %v640 = vsel %vm496, %v622, 0
      %642 = vmatpush.bf16.msra.mxu0 0
      %643 = vmatpush.bf16.msra.mxu0 0
      %644 = vmatpush.bf16.msra.mxu0 0
      %645 = vmatpush.bf16.msra.mxu0 0
      %646 = vmatpush.bf16.msra.mxu0 0
      %647 = vmatpush.bf16.msra.mxu0 0
      %648 = vmatpush.bf16.msra.mxu0 %v633
      %649 = vmatpush.bf16.msra.mxu0 %v632
      %650 = vmatmul.bf16.gmra.mxu0 %v637
      %v651 = vpop.f32.mrf.mxu0
      %v652 = vadd.f32 0.0, %v651
      %v653 = vpop.f32.mrf.mxu0
      %v654 = vadd.f32 0.0, %v653
      %655 = vmatmul.bf16.gmra.mxu0 %v640
      %v656 = vpop.f32.mrf.mxu0
      %v657 = vadd.f32 0.0, %v656
      %v658 = vpop.f32.mrf.mxu0
      %659 = vdwg.mxu0
      %v660 = vadd.f32 %v603, %v652
      %v661 = vadd.f32 %v604, %v654
      %v662 = vadd.f32 %v605, %v657
      %v664 = vperm.slane %v335, 0
      %v666 = vadd.f32 %v660, %v664
      %v667 = vadd.f32 %v661, %v664
      %v668 = vadd.f32 %v662, %v664
      %v669 = vmul.f32 %v666, %v448
      %v670 = vmul.f32 %v667, %v449
      %v671 = vmul.f32 %v668, %v450
      %vm672 = vcmask 64512
      %v673 = vsel %vm672, %v669, 0.0
      %v674 = vsel %vm672, %v670, 0.0
      %v675 = vadd.f32 %v673, %v674
      %vm676 = vcmask 62464
      %v677 = vsel %vm676, %v671, 0.0
      %v678 = vadd.f32 %v675, %v677
      %v679 = vrot.slane %v678, 4
      %v680 = vadd.f32 %v678, %v679
      %v681 = vrot.slane %v680, 2
      %v682 = vadd.f32 %v680, %v681
      %v683 = vrot.slane %v682, 1
      %v684 = vadd.f32 %v682, %v683
      %v685 = vadd.f32 %v684, 0.0
      %v686 = vmul.f32 %v666, %v669
      %v687 = vmul.f32 %v667, %v670
      %v688 = vmul.f32 %v668, %v671
      %v689 = vsel %vm672, %v686, 0.0
      %v690 = vsel %vm672, %v687, 0.0
      %v691 = vadd.f32 %v689, %v690
      %v692 = vsel %vm676, %v688, 0.0
      %v693 = vadd.f32 %v691, %v692
      %v694 = vrot.slane %v693, 4
      %v695 = vadd.f32 %v693, %v694
      %v696 = vrot.slane %v695, 2
      %v697 = vadd.f32 %v695, %v696
      %v698 = vrot.slane %v697, 1
      %v699 = vadd.f32 %v697, %v698
      %v700 = vadd.f32 %v699, 0.0
      %v701 = vpack.c.bf16 %v666, %v666
      %v702 = vpack.c.bf16 %v667, %v667
      %v703 = vpack.c.bf16 %v668, %v668
      %vm704 = vcmask 60416
      %705 = vst.msk [vmem:[%s289] sm:$0xf] %vm704, %v701
      %706 = vst.msk [vmem:[%s289 + $0x4] sm:$0xf] %vm704, %v702
      %vm707 = vcmask 59392
      %708 = vst.msk [vmem:[%s289 + $0x8] sm:$0x7] %vm707, %v703
      %s709 = scalar_lea.vmem %s1, 64
      %v710 = vld [vmem:[%s709] sm:$0xf]
      %v711 = vld [vmem:[%s709 + $0x4] sm:$0xf]
      %v712 = vld [vmem:[%s709 + $0x8] sm:$0xf]
      %v713 = vld [vmem:[%s709 + $0xc] sm:$0xf]
      %s714 = scalar_lea.vmem %s1, 80
      %v715 = vld [vmem:[%s714] sm:$0xf]
      %v716 = vld [vmem:[%s714 + $0x4] sm:$0xf]
      %v717 = vld [vmem:[%s714 + $0x8] sm:$0xf]
      %v718 = vld [vmem:[%s714 + $0xc] sm:$0xf]
      %vm719 = vcmask 1046528
      %v720 = vrot.slane %v466, 1
      %v721 = vrot.slane %v467, 1
      %v722 = vsel %vm719, %v720, %v721
      %v727 = vunpack.c.l.b16 %v715
      %v728 = vunpack.c.l.b16 %v716
      %v729 = vunpack.c.l.b16 %v717
      %v730 = vunpack.c.l.b16 %v718
      %v731 = vpack.c.b16 %v728, %v727
      %v732 = vpack.c.b16 %v730, %v729
      %v736 = vsel %vm496, %v722, 0
      %v739 = vsel %vm496, %v721, 0
      %741 = vmatpush.bf16.msra.mxu0 0
      %742 = vmatpush.bf16.msra.mxu0 0
      %743 = vmatpush.bf16.msra.mxu0 0
      %744 = vmatpush.bf16.msra.mxu0 0
      %745 = vmatpush.bf16.msra.mxu0 0
      %746 = vmatpush.bf16.msra.mxu0 0
      %747 = vmatpush.bf16.msra.mxu0 %v732
      %748 = vmatpush.bf16.msra.mxu0 %v731
      %749 = vmatmul.bf16.gmra.mxu0 %v736
      %v750 = vpop.f32.mrf.mxu0
      %v751 = vadd.f32 0.0, %v750
      %v752 = vpop.f32.mrf.mxu0
      %v753 = vadd.f32 0.0, %v752
      %754 = vmatmul.bf16.gmra.mxu0 %v739
      %v755 = vpop.f32.mrf.mxu0
      %v756 = vadd.f32 0.0, %v755
      %v757 = vpop.f32.mrf.mxu0
      %758 = vdwg.mxu0
      %v763 = vunpack.c.l.b16 %v710
      %v764 = vunpack.c.l.b16 %v711
      %v765 = vunpack.c.l.b16 %v712
      %v766 = vunpack.c.l.b16 %v713
      %v767 = vpack.c.b16 %v764, %v763
      %v768 = vpack.c.b16 %v766, %v765
      %771 = vmatpush.bf16.msra.mxu0 0
      %772 = vmatpush.bf16.msra.mxu0 0
      %773 = vmatpush.bf16.msra.mxu0 0
      %774 = vmatpush.bf16.msra.mxu0 0
      %775 = vmatpush.bf16.msra.mxu0 0
      %776 = vmatpush.bf16.msra.mxu0 0
      %777 = vmatpush.bf16.msra.mxu0 %v768
      %778 = vmatpush.bf16.msra.mxu0 %v767
      %779 = vmatmul.bf16.gmra.mxu0 %v498
      %v780 = vpop.f32.mrf.mxu0
      %v781 = vadd.f32 %v751, %v780
      %v782 = vpop.f32.mrf.mxu0
      %v783 = vadd.f32 %v753, %v782
      %784 = vmatmul.bf16.gmra.mxu0 %v501
      %v785 = vpop.f32.mrf.mxu0
      %v786 = vadd.f32 %v756, %v785
      %v787 = vpop.f32.mrf.mxu0
      %788 = vdwg.mxu0
      %s789 = scalar_lea.vmem %s1, 96
      %v790 = vld [vmem:[%s789] sm:$0xf]
      %v791 = vld [vmem:[%s789 + $0x4] sm:$0xf]
      %v792 = vld [vmem:[%s789 + $0x8] sm:$0xf]
      %v793 = vld [vmem:[%s789 + $0xc] sm:$0xf]
      %v798 = vunpack.c.l.b16 %v790
      %v799 = vunpack.c.l.b16 %v791
      %v800 = vunpack.c.l.b16 %v792
      %v801 = vunpack.c.l.b16 %v793
      %v802 = vpack.c.b16 %v799, %v798
      %v803 = vpack.c.b16 %v801, %v800
      %806 = vmatpush.bf16.msra.mxu0 0
      %807 = vmatpush.bf16.msra.mxu0 0
      %808 = vmatpush.bf16.msra.mxu0 0
      %809 = vmatpush.bf16.msra.mxu0 0
      %810 = vmatpush.bf16.msra.mxu0 0
      %811 = vmatpush.bf16.msra.mxu0 0
      %812 = vmatpush.bf16.msra.mxu0 %v803
      %813 = vmatpush.bf16.msra.mxu0 %v802
      %814 = vmatmul.bf16.gmra.mxu0 %v637
      %v815 = vpop.f32.mrf.mxu0
      %v816 = vadd.f32 0.0, %v815
      %v817 = vpop.f32.mrf.mxu0
      %v818 = vadd.f32 0.0, %v817
      %819 = vmatmul.bf16.gmra.mxu0 %v640
      %v820 = vpop.f32.mrf.mxu0
      %v821 = vadd.f32 0.0, %v820
      %v822 = vpop.f32.mrf.mxu0
      %823 = vdwg.mxu0
      %v824 = vadd.f32 %v781, %v816
      %v825 = vadd.f32 %v783, %v818
      %v826 = vadd.f32 %v786, %v821
      %s827 = scalar_lea.vmem %s1, 112
      %v828 = vld [vmem:[%s827] sm:$0xf]
      %v829 = vld [vmem:[%s827 + $0x4] sm:$0xf]
      %v830 = vld [vmem:[%s827 + $0x8] sm:$0xf]
      %v831 = vld [vmem:[%s827 + $0xc] sm:$0xf]
      %v832 = vpack.c.b16 %v465, %v464
      %v833 = vpack.c.b16 %v561, %v561
      %v838 = vunpack.c.l.b16 %v828
      %v839 = vunpack.c.l.b16 %v829
      %v840 = vunpack.c.l.b16 %v830
      %v841 = vunpack.c.l.b16 %v831
      %v842 = vpack.c.b16 %v839, %v838
      %v843 = vpack.c.b16 %v841, %v840
      %v847 = vsel %vm496, %v832, 0
      %v850 = vsel %vm496, %v833, 0
      %852 = vmatpush.bf16.msra.mxu0 0
      %853 = vmatpush.bf16.msra.mxu0 0
      %854 = vmatpush.bf16.msra.mxu0 0
      %855 = vmatpush.bf16.msra.mxu0 0
      %856 = vmatpush.bf16.msra.mxu0 0
      %857 = vmatpush.bf16.msra.mxu0 0
      %858 = vmatpush.bf16.msra.mxu0 %v843
      %859 = vmatpush.bf16.msra.mxu0 %v842
      %860 = vmatmul.bf16.gmra.mxu0 %v847
      %v861 = vpop.f32.mrf.mxu0
      %v862 = vadd.f32 0.0, %v861
      %v863 = vpop.f32.mrf.mxu0
      %v864 = vadd.f32 0.0, %v863
      %865 = vmatmul.bf16.gmra.mxu0 %v850
      %v866 = vpop.f32.mrf.mxu0
      %v867 = vadd.f32 0.0, %v866
      %v868 = vpop.f32.mrf.mxu0
      %869 = vdwg.mxu0
      %v870 = vadd.f32 %v824, %v862
      %v871 = vadd.f32 %v825, %v864
      %v872 = vadd.f32 %v826, %v867
      %v873 = vadd.f32 %v870, %v664
      %v874 = vadd.f32 %v871, %v664
      %v875 = vadd.f32 %v872, %v664
      %v876 = vmul.f32 %v873, %v448
      %v877 = vmul.f32 %v874, %v449
      %v878 = vmul.f32 %v875, %v450
      %v879 = vsel %vm672, %v876, 0.0
      %v880 = vsel %vm672, %v877, 0.0
      %v881 = vadd.f32 %v879, %v880
      %v882 = vsel %vm676, %v878, 0.0
      %v883 = vadd.f32 %v881, %v882
      %v884 = vrot.slane %v883, 4
      %v885 = vadd.f32 %v883, %v884
      %v886 = vrot.slane %v885, 2
      %v887 = vadd.f32 %v885, %v886
      %v888 = vrot.slane %v887, 1
      %v889 = vadd.f32 %v887, %v888
      %v890 = vadd.f32 %v685, %v889
      %v891 = vmul.f32 %v873, %v876
      %v892 = vmul.f32 %v874, %v877
      %v893 = vmul.f32 %v875, %v878
      %v894 = vsel %vm672, %v891, 0.0
      %v895 = vsel %vm672, %v892, 0.0
      %v896 = vadd.f32 %v894, %v895
      %v897 = vsel %vm676, %v893, 0.0
      %v898 = vadd.f32 %v896, %v897
      %v899 = vrot.slane %v898, 4
      %v900 = vadd.f32 %v898, %v899
      %v901 = vrot.slane %v900, 2
      %v902 = vadd.f32 %v900, %v901
      %v903 = vrot.slane %v902, 1
      %v904 = vadd.f32 %v902, %v903
      %v905 = vadd.f32 %v700, %v904
      %v906 = vpack.c.bf16 %v873, %v873
      %v907 = vpack.c.bf16 %v874, %v874
      %v908 = vpack.c.bf16 %v875, %v875
      %912 = vrot.lane.b32.xlu0 %v906, 8
      %v913 = vpop.permute.xlu0 %912
      %914 = vrot.lane.b32.xlu0 %v907, 8
      %v915 = vpop.permute.xlu0 %914
      %916 = vrot.lane.b32.xlu0 %v908, 8
      %v917 = vpop.permute.xlu0 %916
      %vm921 = vcmask 126016
      %922 = vst.msk [vmem:[%s289] sm:$0xf] %vm921, %v913
      %923 = vst.msk [vmem:[%s289 + $0x4] sm:$0xf] %vm921, %v915
      %vm924 = vcmask 124992
      %925 = vst.msk [vmem:[%s289 + $0x8] sm:$0x7] %vm924, %v917
      %s926 = scalar_lea.vmem %s1, 128
      %v927 = vld [vmem:[%s926] sm:$0xf]
      %v928 = vld [vmem:[%s926 + $0x4] sm:$0xf]
      %v929 = vld [vmem:[%s926 + $0x8] sm:$0xf]
      %v930 = vld [vmem:[%s926 + $0xc] sm:$0xf]
      %s931 = scalar_lea.vmem %s1, 144
      %v932 = vld [vmem:[%s931] sm:$0xf]
      %v933 = vld [vmem:[%s931 + $0x4] sm:$0xf]
      %v934 = vld [vmem:[%s931 + $0x8] sm:$0xf]
      %v935 = vld [vmem:[%s931 + $0xc] sm:$0xf]
      %v940 = vunpack.c.l.b16 %v932
      %v941 = vunpack.c.l.b16 %v933
      %v942 = vunpack.c.l.b16 %v934
      %v943 = vunpack.c.l.b16 %v935
      %v944 = vpack.c.b16 %v941, %v940
      %v945 = vpack.c.b16 %v943, %v942
      %948 = vmatpush.bf16.msra.mxu0 0
      %949 = vmatpush.bf16.msra.mxu0 0
      %950 = vmatpush.bf16.msra.mxu0 0
      %951 = vmatpush.bf16.msra.mxu0 0
      %952 = vmatpush.bf16.msra.mxu0 0
      %953 = vmatpush.bf16.msra.mxu0 0
      %954 = vmatpush.bf16.msra.mxu0 %v945
      %955 = vmatpush.bf16.msra.mxu0 %v944
      %956 = vmatmul.bf16.gmra.mxu0 %v637
      %v957 = vpop.f32.mrf.mxu0
      %v958 = vadd.f32 0.0, %v957
      %v959 = vpop.f32.mrf.mxu0
      %v960 = vadd.f32 0.0, %v959
      %961 = vmatmul.bf16.gmra.mxu0 %v640
      %v962 = vpop.f32.mrf.mxu0
      %v963 = vadd.f32 0.0, %v962
      %v964 = vpop.f32.mrf.mxu0
      %965 = vdwg.mxu0
      %v970 = vunpack.c.l.b16 %v927
      %v971 = vunpack.c.l.b16 %v928
      %v972 = vunpack.c.l.b16 %v929
      %v973 = vunpack.c.l.b16 %v930
      %v974 = vpack.c.b16 %v971, %v970
      %v975 = vpack.c.b16 %v973, %v972
      %978 = vmatpush.bf16.msra.mxu0 0
      %979 = vmatpush.bf16.msra.mxu0 0
      %980 = vmatpush.bf16.msra.mxu0 0
      %981 = vmatpush.bf16.msra.mxu0 0
      %982 = vmatpush.bf16.msra.mxu0 0
      %983 = vmatpush.bf16.msra.mxu0 0
      %984 = vmatpush.bf16.msra.mxu0 %v975
      %985 = vmatpush.bf16.msra.mxu0 %v974
      %986 = vmatmul.bf16.gmra.mxu0 %v580
      %v987 = vpop.f32.mrf.mxu0
      %v988 = vadd.f32 %v958, %v987
      %v989 = vpop.f32.mrf.mxu0
      %v990 = vadd.f32 %v960, %v989
      %991 = vmatmul.bf16.gmra.mxu0 %v583
      %v992 = vpop.f32.mrf.mxu0
      %v993 = vadd.f32 %v963, %v992
      %v994 = vpop.f32.mrf.mxu0
      %995 = vdwg.mxu0
      %s996 = scalar_lea.vmem %s1, 160
      %v997 = vld [vmem:[%s996] sm:$0xf]
      %v998 = vld [vmem:[%s996 + $0x4] sm:$0xf]
      %v999 = vld [vmem:[%s996 + $0x8] sm:$0xf]
      %v1000 = vld [vmem:[%s996 + $0xc] sm:$0xf]
      %v1002 = vunpack.c.l.b16 %v334
      %v1003 = vpack.c.b16 %v1002, %v561
      %vm1004 = vcmask 1045504
      %v1005 = vrot.slane %v832, 2
      %v1006 = vrot.slane %v1003, 2
      %v1007 = vsel %vm1004, %v1005, %v1006
      %v1012 = vunpack.c.l.b16 %v997
      %v1013 = vunpack.c.l.b16 %v998
      %v1014 = vunpack.c.l.b16 %v999
      %v1015 = vunpack.c.l.b16 %v1000
      %v1016 = vpack.c.b16 %v1013, %v1012
      %v1017 = vpack.c.b16 %v1015, %v1014
      %v1021 = vsel %vm496, %v1007, 0
      %v1024 = vsel %vm496, %v1006, 0
      %1026 = vmatpush.bf16.msra.mxu0 0
      %1027 = vmatpush.bf16.msra.mxu0 0
      %1028 = vmatpush.bf16.msra.mxu0 0
      %1029 = vmatpush.bf16.msra.mxu0 0
      %1030 = vmatpush.bf16.msra.mxu0 0
      %1031 = vmatpush.bf16.msra.mxu0 0
      %1032 = vmatpush.bf16.msra.mxu0 %v1017
      %1033 = vmatpush.bf16.msra.mxu0 %v1016
      %1034 = vmatmul.bf16.gmra.mxu0 %v1021
      %v1035 = vpop.f32.mrf.mxu0
      %v1036 = vadd.f32 0.0, %v1035
      %v1037 = vpop.f32.mrf.mxu0
      %v1038 = vadd.f32 0.0, %v1037
      %1039 = vmatmul.bf16.gmra.mxu0 %v1024
      %v1040 = vpop.f32.mrf.mxu0
      %v1041 = vadd.f32 0.0, %v1040
      %v1042 = vpop.f32.mrf.mxu0
      %1043 = vdwg.mxu0
      %v1044 = vadd.f32 %v988, %v1036
      %v1045 = vadd.f32 %v990, %v1038
      %v1046 = vadd.f32 %v993, %v1041
      %s1047 = scalar_lea.vmem %s1, 176
      %v1048 = vld [vmem:[%s1047] sm:$0xf]
      %v1049 = vld [vmem:[%s1047 + $0x4] sm:$0xf]
      %v1050 = vld [vmem:[%s1047 + $0x8] sm:$0xf]
      %v1051 = vld [vmem:[%s1047 + $0xc] sm:$0xf]
      %vm1052 = vsmask.f32 5376
      %v1053 = vshrl.u32 %v832, 16
      %v1055 = vrot.slane %v1053, 2
      %v1056 = vshll.u32 %v832, 16
      %v1058 = vrot.slane %v1056, 3
      %v1059 = vor.u32 %v1055, %v1058
      %v1061 = vshrl.u32 %v1003, 16
      %v1063 = vrot.slane %v1061, 2
      %v1064 = vshll.u32 %v1003, 16
      %v1066 = vrot.slane %v1064, 3
      %v1067 = vor.u32 %v1063, %v1066
      %v1068 = vsel %vm1052, %v1059, %v1067
      %v1073 = vunpack.c.l.b16 %v1048
      %v1074 = vunpack.c.l.b16 %v1049
      %v1075 = vunpack.c.l.b16 %v1050
      %v1076 = vunpack.c.l.b16 %v1051
      %v1077 = vpack.c.b16 %v1074, %v1073
      %v1078 = vpack.c.b16 %v1076, %v1075
      %v1082 = vsel %vm496, %v1068, 0
      %v1085 = vsel %vm496, %v1067, 0
      %1087 = vmatpush.bf16.msra.mxu0 0
      %1088 = vmatpush.bf16.msra.mxu0 0
      %1089 = vmatpush.bf16.msra.mxu0 0
      %1090 = vmatpush.bf16.msra.mxu0 0
      %1091 = vmatpush.bf16.msra.mxu0 0
      %1092 = vmatpush.bf16.msra.mxu0 0
      %1093 = vmatpush.bf16.msra.mxu0 %v1078
      %1094 = vmatpush.bf16.msra.mxu0 %v1077
      %1095 = vmatmul.bf16.gmra.mxu0 %v1082
      %v1096 = vpop.f32.mrf.mxu0
      %v1097 = vadd.f32 0.0, %v1096
      %v1098 = vpop.f32.mrf.mxu0
      %v1099 = vadd.f32 0.0, %v1098
      %1100 = vmatmul.bf16.gmra.mxu0 %v1085
      %v1101 = vpop.f32.mrf.mxu0
      %v1102 = vadd.f32 0.0, %v1101
      %v1103 = vpop.f32.mrf.mxu0
      %1104 = vdwg.mxu0
      %v1105 = vadd.f32 %v1044, %v1097
      %v1106 = vadd.f32 %v1045, %v1099
      %v1107 = vadd.f32 %v1046, %v1102
      %v1108 = vadd.f32 %v1105, %v664
      %v1109 = vadd.f32 %v1106, %v664
      %v1110 = vadd.f32 %v1107, %v664
      %v1111 = vmul.f32 %v1108, %v448
      %v1112 = vmul.f32 %v1109, %v449
      %v1113 = vmul.f32 %v1110, %v450
      %v1114 = vsel %vm672, %v1111, 0.0
      %v1115 = vsel %vm672, %v1112, 0.0
      %v1116 = vadd.f32 %v1114, %v1115
      %v1117 = vsel %vm676, %v1113, 0.0
      %v1118 = vadd.f32 %v1116, %v1117
      %v1119 = vrot.slane %v1118, 4
      %v1120 = vadd.f32 %v1118, %v1119
      %v1121 = vrot.slane %v1120, 2
      %v1122 = vadd.f32 %v1120, %v1121
      %v1123 = vrot.slane %v1122, 1
      %v1124 = vadd.f32 %v1122, %v1123
      %v1125 = vadd.f32 %v890, %v1124
      %v1126 = vmul.f32 %v1108, %v1111
      %v1127 = vmul.f32 %v1109, %v1112
      %v1128 = vmul.f32 %v1110, %v1113
      %v1129 = vsel %vm672, %v1126, 0.0
      %v1130 = vsel %vm672, %v1127, 0.0
      %v1131 = vadd.f32 %v1129, %v1130
      %v1132 = vsel %vm676, %v1128, 0.0
      %v1133 = vadd.f32 %v1131, %v1132
      %v1134 = vrot.slane %v1133, 4
      %v1135 = vadd.f32 %v1133, %v1134
      %v1136 = vrot.slane %v1135, 2
      %v1137 = vadd.f32 %v1135, %v1136
      %v1138 = vrot.slane %v1137, 1
      %v1139 = vadd.f32 %v1137, %v1138
      %v1140 = vadd.f32 %v905, %v1139
      %v1141 = vpack.c.bf16 %v1108, %v1108
      %v1142 = vpack.c.bf16 %v1109, %v1109
      %v1143 = vpack.c.bf16 %v1110, %v1110
      %1147 = vrot.lane.b32.xlu0 %v1141, 16
      %v1148 = vpop.permute.xlu0 %1147
      %1149 = vrot.lane.b32.xlu0 %v1142, 16
      %v1150 = vpop.permute.xlu0 %1149
      %1151 = vrot.lane.b32.xlu0 %v1143, 16
      %v1152 = vpop.permute.xlu0 %1151
      %vm1156 = vcmask 191616
      %1157 = vst.msk [vmem:[%s289] sm:$0xf] %vm1156, %v1148
      %1158 = vst.msk [vmem:[%s289 + $0x4] sm:$0xf] %vm1156, %v1150
      %vm1159 = vcmask 190592
      %1160 = vst.msk [vmem:[%s289 + $0x8] sm:$0x7] %vm1159, %v1152
      %s1161 = scalar_lea.vmem %s1, 192
      %v1162 = vld [vmem:[%s1161] sm:$0xf]
      %v1163 = vld [vmem:[%s1161 + $0x4] sm:$0xf]
      %v1164 = vld [vmem:[%s1161 + $0x8] sm:$0xf]
      %v1165 = vld [vmem:[%s1161 + $0xc] sm:$0xf]
      %s1166 = scalar_lea.vmem %s1, 208
      %v1167 = vld [vmem:[%s1166] sm:$0xf]
      %v1168 = vld [vmem:[%s1166 + $0x4] sm:$0xf]
      %v1169 = vld [vmem:[%s1166 + $0x8] sm:$0xf]
      %v1170 = vld [vmem:[%s1166 + $0xc] sm:$0xf]
      %v1175 = vunpack.c.l.b16 %v1167
      %v1176 = vunpack.c.l.b16 %v1168
      %v1177 = vunpack.c.l.b16 %v1169
      %v1178 = vunpack.c.l.b16 %v1170
      %v1179 = vpack.c.b16 %v1176, %v1175
      %v1180 = vpack.c.b16 %v1178, %v1177
      %1183 = vmatpush.bf16.msra.mxu0 0
      %1184 = vmatpush.bf16.msra.mxu0 0
      %1185 = vmatpush.bf16.msra.mxu0 0
      %1186 = vmatpush.bf16.msra.mxu0 0
      %1187 = vmatpush.bf16.msra.mxu0 0
      %1188 = vmatpush.bf16.msra.mxu0 0
      %1189 = vmatpush.bf16.msra.mxu0 %v1180
      %1190 = vmatpush.bf16.msra.mxu0 %v1179
      %1191 = vmatmul.bf16.gmra.mxu0 %v847
      %v1192 = vpop.f32.mrf.mxu0
      %v1193 = vadd.f32 0.0, %v1192
      %v1194 = vpop.f32.mrf.mxu0
      %v1195 = vadd.f32 0.0, %v1194
      %1196 = vmatmul.bf16.gmra.mxu0 %v850
      %v1197 = vpop.f32.mrf.mxu0
      %v1198 = vadd.f32 0.0, %v1197
      %v1199 = vpop.f32.mrf.mxu0
      %1200 = vdwg.mxu0
      %v1205 = vunpack.c.l.b16 %v1162
      %v1206 = vunpack.c.l.b16 %v1163
      %v1207 = vunpack.c.l.b16 %v1164
      %v1208 = vunpack.c.l.b16 %v1165
      %v1209 = vpack.c.b16 %v1206, %v1205
      %v1210 = vpack.c.b16 %v1208, %v1207
      %1213 = vmatpush.bf16.msra.mxu0 0
      %1214 = vmatpush.bf16.msra.mxu0 0
      %1215 = vmatpush.bf16.msra.mxu0 0
      %1216 = vmatpush.bf16.msra.mxu0 0
      %1217 = vmatpush.bf16.msra.mxu0 0
      %1218 = vmatpush.bf16.msra.mxu0 0
      %1219 = vmatpush.bf16.msra.mxu0 %v1210
      %1220 = vmatpush.bf16.msra.mxu0 %v1209
      %1221 = vmatmul.bf16.gmra.mxu0 %v637
      %v1222 = vpop.f32.mrf.mxu0
      %v1223 = vadd.f32 %v1193, %v1222
      %v1224 = vpop.f32.mrf.mxu0
      %v1225 = vadd.f32 %v1195, %v1224
      %1226 = vmatmul.bf16.gmra.mxu0 %v640
      %v1227 = vpop.f32.mrf.mxu0
      %v1228 = vadd.f32 %v1198, %v1227
      %v1229 = vpop.f32.mrf.mxu0
      %1230 = vdwg.mxu0
      %s1231 = scalar_lea.vmem %s1, 224
      %v1232 = vld [vmem:[%s1231] sm:$0xf]
      %v1233 = vld [vmem:[%s1231 + $0x4] sm:$0xf]
      %v1234 = vld [vmem:[%s1231 + $0x8] sm:$0xf]
      %v1235 = vld [vmem:[%s1231 + $0xc] sm:$0xf]
      %v1240 = vunpack.c.l.b16 %v1232
      %v1241 = vunpack.c.l.b16 %v1233
      %v1242 = vunpack.c.l.b16 %v1234
      %v1243 = vunpack.c.l.b16 %v1235
      %v1244 = vpack.c.b16 %v1241, %v1240
      %v1245 = vpack.c.b16 %v1243, %v1242
      %1248 = vmatpush.bf16.msra.mxu0 0
      %1249 = vmatpush.bf16.msra.mxu0 0
      %1250 = vmatpush.bf16.msra.mxu0 0
      %1251 = vmatpush.bf16.msra.mxu0 0
      %1252 = vmatpush.bf16.msra.mxu0 0
      %1253 = vmatpush.bf16.msra.mxu0 0
      %1254 = vmatpush.bf16.msra.mxu0 %v1245
      %1255 = vmatpush.bf16.msra.mxu0 %v1244
      %1256 = vmatmul.bf16.gmra.mxu0 %v1082
      %v1257 = vpop.f32.mrf.mxu0
      %v1258 = vadd.f32 0.0, %v1257
      %v1259 = vpop.f32.mrf.mxu0
      %v1260 = vadd.f32 0.0, %v1259
      %1261 = vmatmul.bf16.gmra.mxu0 %v1085
      %v1262 = vpop.f32.mrf.mxu0
      %v1263 = vadd.f32 0.0, %v1262
      %v1264 = vpop.f32.mrf.mxu0
      %1265 = vdwg.mxu0
      %v1266 = vadd.f32 %v1223, %v1258
      %v1267 = vadd.f32 %v1225, %v1260
      %v1268 = vadd.f32 %v1228, %v1263
      %s1269 = scalar_lea.vmem %s1, 240
      %v1270 = vld [vmem:[%s1269] sm:$0xf]
      %v1271 = vld [vmem:[%s1269 + $0x4] sm:$0xf]
      %v1272 = vld [vmem:[%s1269 + $0x8] sm:$0xf]
      %v1273 = vld [vmem:[%s1269 + $0xc] sm:$0xf]
      %v1274 = vrot.slane %v832, 3
      %v1275 = vrot.slane %v1003, 3
      %v1276 = vsel %vm563, %v1274, %v1275
      %v1281 = vunpack.c.l.b16 %v1270
      %v1282 = vunpack.c.l.b16 %v1271
      %v1283 = vunpack.c.l.b16 %v1272
      %v1284 = vunpack.c.l.b16 %v1273
      %v1285 = vpack.c.b16 %v1282, %v1281
      %v1286 = vpack.c.b16 %v1284, %v1283
      %v1290 = vsel %vm496, %v1276, 0
      %v1293 = vsel %vm496, %v1275, 0
      %1295 = vmatpush.bf16.msra.mxu0 0
      %1296 = vmatpush.bf16.msra.mxu0 0
      %1297 = vmatpush.bf16.msra.mxu0 0
      %1298 = vmatpush.bf16.msra.mxu0 0
      %1299 = vmatpush.bf16.msra.mxu0 0
      %1300 = vmatpush.bf16.msra.mxu0 0
      %1301 = vmatpush.bf16.msra.mxu0 %v1286
      %1302 = vmatpush.bf16.msra.mxu0 %v1285
      %1303 = vmatmul.bf16.gmra.mxu0 %v1290
      %v1304 = vpop.f32.mrf.mxu0
      %v1305 = vadd.f32 0.0, %v1304
      %v1306 = vpop.f32.mrf.mxu0
      %v1307 = vadd.f32 0.0, %v1306
      %1308 = vmatmul.bf16.gmra.mxu0 %v1293
      %v1309 = vpop.f32.mrf.mxu0
      %v1310 = vadd.f32 0.0, %v1309
      %v1311 = vpop.f32.mrf.mxu0
      %1312 = vdwg.mxu0
      %v1313 = vadd.f32 %v1266, %v1305
      %v1314 = vadd.f32 %v1267, %v1307
      %v1315 = vadd.f32 %v1268, %v1310
      %v1316 = vadd.f32 %v1313, %v664
      %v1317 = vadd.f32 %v1314, %v664
      %v1318 = vadd.f32 %v1315, %v664
      %v1319 = vmul.f32 %v1316, %v448
      %v1320 = vmul.f32 %v1317, %v449
      %v1321 = vmul.f32 %v1318, %v450
      %v1322 = vsel %vm672, %v1319, 0.0
      %v1323 = vsel %vm672, %v1320, 0.0
      %v1324 = vadd.f32 %v1322, %v1323
      %v1325 = vsel %vm676, %v1321, 0.0
      %v1326 = vadd.f32 %v1324, %v1325
      %v1327 = vrot.slane %v1326, 4
      %v1328 = vadd.f32 %v1326, %v1327
      %v1329 = vrot.slane %v1328, 2
      %v1330 = vadd.f32 %v1328, %v1329
      %v1331 = vrot.slane %v1330, 1
      %v1332 = vadd.f32 %v1330, %v1331
      %v1333 = vadd.f32 %v1125, %v1332
      %v1334 = vmul.f32 %v1316, %v1319
      %v1335 = vmul.f32 %v1317, %v1320
      %v1336 = vmul.f32 %v1318, %v1321
      %v1337 = vsel %vm672, %v1334, 0.0
      %v1338 = vsel %vm672, %v1335, 0.0
      %v1339 = vadd.f32 %v1337, %v1338
      %v1340 = vsel %vm676, %v1336, 0.0
      %v1341 = vadd.f32 %v1339, %v1340
      %v1342 = vrot.slane %v1341, 4
      %v1343 = vadd.f32 %v1341, %v1342
      %v1344 = vrot.slane %v1343, 2
      %v1345 = vadd.f32 %v1343, %v1344
      %v1346 = vrot.slane %v1345, 1
      %v1347 = vadd.f32 %v1345, %v1346
      %v1348 = vadd.f32 %v1140, %v1347
      %v1349 = vpack.c.bf16 %v1316, %v1316
      %v1350 = vpack.c.bf16 %v1317, %v1317
      %v1351 = vpack.c.bf16 %v1318, %v1318
      %1355 = vrot.lane.b32.xlu0 %v1349, 24
      %v1356 = vpop.permute.xlu0 %1355
      %1357 = vrot.lane.b32.xlu0 %v1350, 24
      %v1358 = vpop.permute.xlu0 %1357
      %1359 = vrot.lane.b32.xlu0 %v1351, 24
      %v1360 = vpop.permute.xlu0 %1359
      %vm1364 = vcmask 257216
      %1365 = vst.msk [vmem:[%s289] sm:$0xf] %vm1364, %v1356
      %1366 = vst.msk [vmem:[%s289 + $0x4] sm:$0xf] %vm1364, %v1358
      %vm1367 = vcmask 256192
      %1368 = vst.msk [vmem:[%s289 + $0x8] sm:$0x7] %vm1367, %v1360
      %vm1369 = vcmask 57344
      %1370 = vst.msk [vmem:[%s292] sm:$0x1] %vm1369, %v1333
      %1371 = vst.msk [vmem:[%s295] sm:$0x1] %vm1369, %v1348
      %p1372 = scmp.lt.s32.totalorder %s19, 1
      %s1373 = scalar_select %p1372, %s19, 1
      %s1374 = smul.addr %s1373, 3
      %s1375 = smul.addr %s1374, 4
      %s1376 = scalar_lea.vmem %s5, %s1375
      %p1377 = scmp.lt.s32.totalorder %s19, 1
      %s1378 = scalar_select %p1377, %s19, 1
      %s1379 = scalar_lea.vmem %s6, %s1378
      %p1380 = scmp.lt.s32.totalorder %s19, 1
      %s1381 = scalar_select %p1380, %s19, 1
      %s1382 = scalar_lea.vmem %s7, %s1381
      // Predicated region
      $region41: #{unet_forward.15} parent=39 // pred_check
        %p1383 = pneg %p147
      $region42: #{unet_forward.15} parent=39 // pred_check_branch
        %1385 = sbr.rel (%p1383) target = $region44
      $region43: #{unet_forward.15} parent=39 // pred_region
        _
      $region44: #{unet_forward.15} parent=39 // pred_fallthru
        _
      // Predicated region
      $region45: #{unet_forward.15} parent=39 // pred_check
        %p1386 = pneg %p173
      $region46: #{unet_forward.15} parent=39 // pred_check_branch
        %1388 = sbr.rel (%p1386) target = $region48
      $region47: #{unet_forward.15} parent=39 // pred_region
        _
      $region48: #{unet_forward.15} parent=39 // pred_fallthru
        _
      // Predicated region
      $region49: #{unet_forward.15} parent=39 // pred_check
        %p1389 = pneg %p199
      $region50: #{unet_forward.15} parent=39 // pred_check_branch
        %1391 = sbr.rel (%p1389) target = $region52
      $region51: #{unet_forward.15} parent=39 // pred_region
        _
      $region52: #{unet_forward.15} parent=39 // pred_fallthru
        _
    $region40: #{unet_forward.15} parent=5 // pred_fallthru
      _
    %p1392 = scmp.le.s32.totalorder 2, %s14
    // Predicated region
    $region53: #{unet_forward.15} parent=5 // pred_check
      %p1393 = pneg %p1392
    $region54: #{unet_forward.15} parent=5 // pred_check_branch
      %1395 = sbr.rel (%p1393) target = $region56
    $region55: #{unet_forward.15} parent=5 // pred_region
      %s1396 = ssub.s32 %s14, 2
      // Predicated region
      $region57: #{unet_forward.15} parent=55 // pred_check
        %p1397 = pneg %p153
      $region58: #{unet_forward.15} parent=55 // pred_check_branch
        %1399 = sbr.rel (%p1397) target = $region60
      $region59: #{unet_forward.15} parent=55 // pred_region
        %p1400 = scmp.lt.s32.totalorder %s20, 1
        %s1401 = scalar_select %p1400, %s20, 1
        %s1402 = smul.addr %s1401, 3
        %s1403 = smul.addr %s1402, 4
        %s1404 = scalar_lea.vmem %s5, %s1403
      $region60: #{unet_forward.15} parent=55 // pred_fallthru
        _
      // Predicated region
      $region61: #{unet_forward.15} parent=55 // pred_check
        %p1405 = pneg %p179
      $region62: #{unet_forward.15} parent=55 // pred_check_branch
        %1407 = sbr.rel (%p1405) target = $region64
      $region63: #{unet_forward.15} parent=55 // pred_region
        %p1408 = scmp.lt.s32.totalorder %s20, 1
        %s1409 = scalar_select %p1408, %s20, 1
        %s1410 = scalar_lea.vmem %s6, %s1409
      $region64: #{unet_forward.15} parent=55 // pred_fallthru
        _
      // Predicated region
      $region65: #{unet_forward.15} parent=55 // pred_check
        %p1411 = pneg %p205
      $region66: #{unet_forward.15} parent=55 // pred_check_branch
        %1413 = sbr.rel (%p1411) target = $region68
      $region67: #{unet_forward.15} parent=55 // pred_region
        %p1414 = scmp.lt.s32.totalorder %s20, 1
        %s1415 = scalar_select %p1414, %s20, 1
        %s1416 = scalar_lea.vmem %s7, %s1415
      $region68: #{unet_forward.15} parent=55 // pred_fallthru
        _
    $region56: #{unet_forward.15} parent=5 // pred_fallthru
      _
  $region6: #{unet_forward.15} parent=0 // loop_footer
    %s18 = sadd.s32 1, %s14
  $region7: #{unet_forward.15} parent=0 // loop_footer_branch
    %13 = sbr.rel target = $region3
  $region8: #{unet_forward.15} parent=0 // loop_exit
    _

// kernel: unet_forward.17
$region0: #{unet_forward.17}
  #allocation0 [shape = 'u32[]', space=smem, size = 0x4, offset = 0x4, fixed_abs, tag = 'smem constant byte address 0x4 - core index']
  #allocation1 [shape = 'u32[72,128]{1,0:T(1,128)}', space=vmem, size = 0x9000, scoped, tag = 'internal scratch']
  %s0 = inlined_call_operand.vmem [shape: f32[2,1,256], index: 0, kind: input, shape index: {}]
  %s1 = inlined_call_operand.vmem [shape: f32[2,1,256], index: 1, kind: input, shape index: {}]
  %s2 = inlined_call_operand.vmem [shape: f32[1,1,256], index: 2, kind: input, shape index: {}]
  %s3 = inlined_call_operand.vmem [shape: f32[2,1,256], index: 3, kind: output, shape index: {}]
  %s4 = sld [smem:[#allocation0]]
  $region45: #{unet_forward.17} parent=0
    _
  %s6 = ssub.s32 1, %s4
  %s7 = scalar_select 0, %s6, %s4
  loop: start=0, step=1, limit=4
  $region2: #{unet_forward.17} parent=0 // loop_pre_header
    _
  $region3: #{unet_forward.17} parent=0 // loop_header
    %s9 = sphi 0, %s13
    %p10 = scmp.ge.s32.totalorder %s9, 4
    %s19 = sphi 0, %s21
    %s22 = sphi 0, %s19
    %s23 = sphi 0, %s22
    %s39 = sphi 0, %s23
    %s45 = sphi 0, %s47
    %s48 = sphi 0, %s45
    %s49 = sphi 0, %s48
    %s65 = sphi 0, %s49
    %s69 = sphi 0, %s69
    %s71 = sphi 0, %s69
    %s72 = sphi 0, %s71
    %s86 = sphi 0, %s72
    %s92 = sphi 0, %s94
    %s95 = sphi 0, %s92
    %s96 = sphi 0, %s95
    %s112 = sphi 0, %s96
  $region4: #{unet_forward.17} parent=0 // loop_header_branch
    %12 = sbr.rel (%p10) target = $region8
  $region5: #{unet_forward.17} parent=0 // loop_body
    %s14 = ssub.s32 %s9, 1
    %s15 = ssub.s32 %s9, 2
    %s16 = sadd.s32 %s9, 1
    %s17 = ssub.s32 %s9, %s16
    %p18 = scmp.eq.s32.totalorder %s17, 0
    %s20 = sadd.s32 %s19, 1
    %s21 = scalar_select %p18, %s19, %s20
    %p24 = pneg %p18
    %p25 = scmp.eq.s32.totalorder %s9, 1
    %p26 = por %p24, %p25
    %p27 = scmp.ne.s32.totalorder %s19, %s22
    %p28 = scmp.eq.s32.totalorder %s9, 0
    %p29 = por %p27, %p28
    %p30 = scmp.ne.s32.totalorder %s19, %s22
    %p31 = scmp.eq.s32.totalorder %s14, 1
    %p32 = por %p30, %p31
    %p33 = scmp.ne.s32.totalorder %s22, %s23
    %p34 = scmp.eq.s32.totalorder %s14, 0
    %p35 = por %p33, %p34
    %p36 = scmp.ne.s32.totalorder %s22, %s23
    %p37 = scmp.eq.s32.totalorder %s15, 1
    %p38 = por %p36, %p37
    %p40 = scmp.ne.s32.totalorder %s23, %s39
    %p41 = scmp.eq.s32.totalorder %s15, 0
    %p42 = por %p40, %p41
    %s43 = ssub.s32 %s9, %s16
    %p44 = scmp.eq.s32.totalorder %s43, 0
    %s46 = sadd.s32 %s45, 1
    %s47 = scalar_select %p44, %s45, %s46
    %p50 = pneg %p44
    %p51 = scmp.eq.s32.totalorder %s9, 1
    %p52 = por %p50, %p51
    %p53 = scmp.ne.s32.totalorder %s45, %s48
    %p54 = scmp.eq.s32.totalorder %s9, 0
    %p55 = por %p53, %p54
    %p56 = scmp.ne.s32.totalorder %s45, %s48
    %p57 = scmp.eq.s32.totalorder %s14, 1
    %p58 = por %p56, %p57
    %p59 = scmp.ne.s32.totalorder %s48, %s49
    %p60 = scmp.eq.s32.totalorder %s14, 0
    %p61 = por %p59, %p60
    %p62 = scmp.ne.s32.totalorder %s48, %s49
    %p63 = scmp.eq.s32.totalorder %s15, 1
    %p64 = por %p62, %p63
    %p66 = scmp.ne.s32.totalorder %s49, %s65
    %p67 = scmp.eq.s32.totalorder %s15, 0
    %p68 = por %p66, %p67
    %s70 = sadd.s32 %s69, 1
    %p73 = scmp.eq.s32.totalorder %s9, 1
    %p74 = scmp.ne.s32.totalorder %s69, %s71
    %p75 = scmp.eq.s32.totalorder %s9, 0
    %p76 = por %p74, %p75
    %p77 = scmp.ne.s32.totalorder %s69, %s71
    %p78 = scmp.eq.s32.totalorder %s14, 1
    %p79 = por %p77, %p78
    %p80 = scmp.ne.s32.totalorder %s71, %s72
    %p81 = scmp.eq.s32.totalorder %s14, 0
    %p82 = por %p80, %p81
    %p83 = scmp.ne.s32.totalorder %s71, %s72
    %p84 = scmp.eq.s32.totalorder %s15, 1
    %p85 = por %p83, %p84
    %p87 = scmp.ne.s32.totalorder %s72, %s86
    %p88 = scmp.eq.s32.totalorder %s15, 0
    %p89 = por %p87, %p88
    %s90 = ssub.s32 %s9, %s16
    %p91 = scmp.eq.s32.totalorder %s90, 0
    %s93 = sadd.s32 %s92, 1
    %s94 = scalar_select %p91, %s92, %s93
    %p97 = pneg %p91
    %p98 = scmp.eq.s32.totalorder %s9, 1
    %p99 = por %p97, %p98
    %p100 = scmp.ne.s32.totalorder %s92, %s95
    %p101 = scmp.eq.s32.totalorder %s9, 0
    %p102 = por %p100, %p101
    %p103 = scmp.ne.s32.totalorder %s92, %s95
    %p104 = scmp.eq.s32.totalorder %s14, 1
    %p105 = por %p103, %p104
    %p106 = scmp.ne.s32.totalorder %s95, %s96
    %p107 = scmp.eq.s32.totalorder %s14, 0
    %p108 = por %p106, %p107
    %p109 = scmp.ne.s32.totalorder %s95, %s96
    %p110 = scmp.eq.s32.totalorder %s15, 1
    %p111 = por %p109, %p110
    %p113 = scmp.ne.s32.totalorder %s96, %s112
    %p114 = scmp.eq.s32.totalorder %s15, 0
    %p115 = por %p113, %p114
    %p116 = scmp.le.s32.totalorder 1, %s9
    %p117 = scmp.lt.s32.totalorder %s9, 3
    %p118 = pnand %p116, %p117
    %p119 = pneg %p118
    // Predicated region
    $region9: #{unet_forward.17} parent=5 // pred_check
      _
    $region10: #{unet_forward.17} parent=5 // pred_check_branch
      %121 = sbr.rel (%p118) target = $region12
    $region11: #{unet_forward.17} parent=5 // pred_region
      %s122 = ssub.s32 %s9, 1
      // Predicated region
      $region13: #{unet_forward.17} parent=11 // pred_check
        %p123 = pneg %p82
      $region14: #{unet_forward.17} parent=11 // pred_check_branch
        %125 = sbr.rel (%p123) target = $region16
      $region15: #{unet_forward.17} parent=11 // pred_region
        _
      $region16: #{unet_forward.17} parent=11 // pred_fallthru
        _
    $region12: #{unet_forward.17} parent=5 // pred_fallthru
      _
    %p126 = scmp.lt.s32.totalorder %s9, 2
    // Predicated region
    $region17: #{unet_forward.17} parent=5 // pred_check
      %p127 = pneg %p126
    $region18: #{unet_forward.17} parent=5 // pred_check_branch
      %129 = sbr.rel (%p127) target = $region20
    $region19: #{unet_forward.17} parent=5 // pred_region
      // Predicated region
      $region21: #{unet_forward.17} parent=19 // pred_check
        %p130 = pneg %p29
      $region22: #{unet_forward.17} parent=19 // pred_check_branch
        %132 = sbr.rel (%p130) target = $region24
      $region23: #{unet_forward.17} parent=19 // pred_region
        %p133 = scmp.lt.s32.totalorder %s9, 1
        %s134 = scalar_select %p133, %s9, 1
        %s135 = smul.addr %s134, 2
        %s136 = scalar_lea.vmem %s0, %s135
      $region24: #{unet_forward.17} parent=19 // pred_fallthru
        _
      // Predicated region
      $region25: #{unet_forward.17} parent=19 // pred_check
        %p137 = pneg %p55
      $region26: #{unet_forward.17} parent=19 // pred_check_branch
        %139 = sbr.rel (%p137) target = $region28
      $region27: #{unet_forward.17} parent=19 // pred_region
        %p140 = scmp.lt.s32.totalorder %s9, 1
        %s141 = scalar_select %p140, %s9, 1
        %s142 = smul.addr %s141, 2
        %s143 = scalar_lea.vmem %s1, %s142
      $region28: #{unet_forward.17} parent=19 // pred_fallthru
        _
    $region20: #{unet_forward.17} parent=5 // pred_fallthru
      _
    %p144 = scmp.le.s32.totalorder 1, %s9
    %p145 = scmp.lt.s32.totalorder %s9, 3
    %p146 = pnand %p144, %p145
    %p147 = pneg %p146
    // Predicated region
    $region29: #{unet_forward.17} parent=5 // pred_check
      _
    $region30: #{unet_forward.17} parent=5 // pred_check_branch
      %149 = sbr.rel (%p146) target = $region32
    $region31: #{unet_forward.17} parent=5 // pred_region
      %s150 = ssub.s32 %s9, 1
      %p151 = scmp.lt.s32.totalorder %s14, 1
      %s152 = scalar_select %p151, %s14, 1
      %s153 = smul.addr %s152, 2
      %s154 = scalar_lea.vmem %s0, %s153
      %p155 = pneg %p35
      %p156 = pneg %p32
      %p157 = scmp.lt.s32.totalorder %s14, 1
      %s158 = scalar_select %p157, %s14, 1
      %s159 = smul.addr %s158, 2
      %s160 = scalar_lea.vmem %s1, %s159
      %p161 = pneg %p61
      %p162 = pneg %p58
      %p163 = pneg %p82
      %p164 = pneg %p79
      %p165 = pneg %p108
      %p166 = pneg %p105
      %p167 = scmp.lt.s32.totalorder %s14, 1
      %s168 = scalar_select %p167, %s14, 1
      %s169 = smul.addr %s168, 2
      %s170 = scalar_lea.vmem %s3, %s169
      %p171 = scmp.lt.s32.totalorder %s14, 1
      %s172 = scalar_select %p171, %s14, 1
      %s173 = smul.addr %s172, 2
      %s174 = scalar_lea.vmem %s0, %s173
      %p175 = scmp.lt.s32.totalorder %s14, 1
      %s176 = scalar_select %p175, %s14, 1
      %s177 = smul.addr %s176, 2
      %s178 = scalar_lea.vmem %s1, %s177
      %p179 = scmp.lt.s32.totalorder %s14, 1
      %s180 = scalar_select %p179, %s14, 1
      %s181 = smul.addr %s180, 2
      %s182 = scalar_lea.vmem %s3, %s181
      %v183 = vld [vmem:[%s174] sm:$0x3]
      %v184 = vadd.f32 %v183, 1.0
      %v185 = vmul.f32 %v184, 0.5
      %v186 = vld [vmem:[%s2] sm:$0x3]
      %v187 = vsub.f32 1.0, %v186
      %v188 = vmul.f32 %v185, %v187
      %v189 = vld [vmem:[%s178] sm:$0x3]
      %v190 = vmul.f32 %v189, %v186
      %v191 = vadd.f32 %v188, %v190
      %v192 = vlaneseq
      %vm193 = vcmp.ge.s32.totalorder %v192, 0
      %vm194 = vcmp.lt.s32.totalorder %v192, 256
      %vm195 = vmand %vm193, %vm194
      %196 = vst.msk [vmem:[%s182] sm:$0x3] %vm195, %v191
      %p197 = scmp.lt.s32.totalorder %s14, 1
      %s198 = scalar_select %p197, %s14, 1
      %s199 = smul.addr %s198, 2
      %s200 = scalar_lea.vmem %s3, %s199
      // Predicated region
      $region33: #{unet_forward.17} parent=31 // pred_check
        %p201 = pneg %p105
      $region34: #{unet_forward.17} parent=31 // pred_check_branch
        %203 = sbr.rel (%p201) target = $region36
      $region35: #{unet_forward.17} parent=31 // pred_region
        _
      $region36: #{unet_forward.17} parent=31 // pred_fallthru
        _
    $region32: #{unet_forward.17} parent=5 // pred_fallthru
      _
    %p204 = scmp.le.s32.totalorder 2, %s9
    // Predicated region
    $region37: #{unet_forward.17} parent=5 // pred_check
      %p205 = pneg %p204
    $region38: #{unet_forward.17} parent=5 // pred_check_branch
      %207 = sbr.rel (%p205) target = $region40
    $region39: #{unet_forward.17} parent=5 // pred_region
      %s208 = ssub.s32 %s9, 2
      // Predicated region
      $region41: #{unet_forward.17} parent=39 // pred_check
        %p209 = pneg %p111
      $region42: #{unet_forward.17} parent=39 // pred_check_branch
        %211 = sbr.rel (%p209) target = $region44
      $region43: #{unet_forward.17} parent=39 // pred_region
        %p212 = scmp.lt.s32.totalorder %s15, 1
        %s213 = scalar_select %p212, %s15, 1
        %s214 = smul.addr %s213, 2
        %s215 = scalar_lea.vmem %s3, %s214
      $region44: #{unet_forward.17} parent=39 // pred_fallthru
        _
    $region40: #{unet_forward.17} parent=5 // pred_fallthru
      _
  $region6: #{unet_forward.17} parent=0 // loop_footer
    %s13 = sadd.s32 1, %s9
  $region7: #{unet_forward.17} parent=0 // loop_footer_branch
    %8 = sbr.rel target = $region3
  $region8: #{unet_forward.17} parent=0 // loop_exit
    _

// kernel: unet_forward.16
$region0: #{unet_forward.16}
  #allocation0 [shape = 'u32[]', space=smem, size = 0x4, offset = 0x4, fixed_abs, tag = 'smem constant byte address 0x4 - core index']
  #allocation1 [shape = 'u32[72,128]{1,0:T(1,128)}', space=vmem, size = 0x9000, scoped, tag = 'internal scratch']
  #allocation2 [shape = 'f32[1,1]{1,0:T(1,128)S(1)}', space=vmem, size = 0x200, scoped, tag = 'scoped memory for unet_forward.16']
  %s0 = inlined_call_operand.vmem [shape: bf16[2,100,16], index: 0, kind: input, shape index: {}]
  %s1 = inlined_call_operand.vmem [shape: bf16[4,4,16,1], index: 1, kind: input, shape index: {}]
  %s2 = inlined_call_operand.<no memory space> [shape: f32[1,1], index: 2, kind: input, shape index: {}]
  %s3 = inlined_call_operand.vmem [shape: f32[1,16], index: 3, kind: input, shape index: {}]
  %s4 = inlined_call_operand.vmem [shape: f32[1,16], index: 4, kind: input, shape index: {}]
  %s5 = inlined_call_operand.vmem [shape: f32[2,78,4], index: 5, kind: output, shape index: {}]
  %s6 = sld [smem:[#allocation0]]
  $region53: #{unet_forward.16} parent=0
    _
  %s8 = ssub.s32 1, %s6
  %s9 = scalar_select 0, %s8, %s6
  %v10 = vstv %s2
  %11 = vst [vmem:[#allocation2] sm:$0x1] %v10
  loop: start=0, step=1, limit=4
  $region2: #{unet_forward.16} parent=0 // loop_pre_header
    _
  $region3: #{unet_forward.16} parent=0 // loop_header
    %s13 = sphi 0, %s17
    %p14 = scmp.ge.s32.totalorder %s13, 4
    %s23 = sphi 0, %s25
    %s26 = sphi 0, %s23
    %s27 = sphi 0, %s26
    %s43 = sphi 0, %s27
    %s47 = sphi 0, %s47
    %s49 = sphi 0, %s47
    %s50 = sphi 0, %s49
    %s64 = sphi 0, %s50
    %s68 = sphi 0, %s68
    %s70 = sphi 0, %s68
    %s71 = sphi 0, %s70
    %s85 = sphi 0, %s71
    %s89 = sphi 0, %s89
    %s91 = sphi 0, %s89
    %s92 = sphi 0, %s91
    %s106 = sphi 0, %s92
    %s110 = sphi 0, %s110
    %s112 = sphi 0, %s110
    %s113 = sphi 0, %s112
    %s127 = sphi 0, %s113
    %s133 = sphi 0, %s135
    %s136 = sphi 0, %s133
    %s137 = sphi 0, %s136
    %s153 = sphi 0, %s137
  $region4: #{unet_forward.16} parent=0 // loop_header_branch
    %16 = sbr.rel (%p14) target = $region8
  $region5: #{unet_forward.16} parent=0 // loop_body
    %s18 = ssub.s32 %s13, 1
    %s19 = ssub.s32 %s13, 2
    %s20 = sadd.s32 %s13, 1
    %s21 = ssub.s32 %s13, %s20
    %p22 = scmp.eq.s32.totalorder %s21, 0
    %s24 = sadd.s32 %s23, 1
    %s25 = scalar_select %p22, %s23, %s24
    %p28 = pneg %p22
    %p29 = scmp.eq.s32.totalorder %s13, 1
    %p30 = por %p28, %p29
    %p31 = scmp.ne.s32.totalorder %s23, %s26
    %p32 = scmp.eq.s32.totalorder %s13, 0
    %p33 = por %p31, %p32
    %p34 = scmp.ne.s32.totalorder %s23, %s26
    %p35 = scmp.eq.s32.totalorder %s18, 1
    %p36 = por %p34, %p35
    %p37 = scmp.ne.s32.totalorder %s26, %s27
    %p38 = scmp.eq.s32.totalorder %s18, 0
    %p39 = por %p37, %p38
    %p40 = scmp.ne.s32.totalorder %s26, %s27
    %p41 = scmp.eq.s32.totalorder %s19, 1
    %p42 = por %p40, %p41
    %p44 = scmp.ne.s32.totalorder %s27, %s43
    %p45 = scmp.eq.s32.totalorder %s19, 0
    %p46 = por %p44, %p45
    %s48 = sadd.s32 %s47, 1
    %p51 = scmp.eq.s32.totalorder %s13, 1
    %p52 = scmp.ne.s32.totalorder %s47, %s49
    %p53 = scmp.eq.s32.totalorder %s13, 0
    %p54 = por %p52, %p53
    %p55 = scmp.ne.s32.totalorder %s47, %s49
    %p56 = scmp.eq.s32.totalorder %s18, 1
    %p57 = por %p55, %p56
    %p58 = scmp.ne.s32.totalorder %s49, %s50
    %p59 = scmp.eq.s32.totalorder %s18, 0
    %p60 = por %p58, %p59
    %p61 = scmp.ne.s32.totalorder %s49, %s50
    %p62 = scmp.eq.s32.totalorder %s19, 1
    %p63 = por %p61, %p62
    %p65 = scmp.ne.s32.totalorder %s50, %s64
    %p66 = scmp.eq.s32.totalorder %s19, 0
    %p67 = por %p65, %p66
    %s69 = sadd.s32 %s68, 1
    %p72 = scmp.eq.s32.totalorder %s13, 1
    %p73 = scmp.ne.s32.totalorder %s68, %s70
    %p74 = scmp.eq.s32.totalorder %s13, 0
    %p75 = por %p73, %p74
    %p76 = scmp.ne.s32.totalorder %s68, %s70
    %p77 = scmp.eq.s32.totalorder %s18, 1
    %p78 = por %p76, %p77
    %p79 = scmp.ne.s32.totalorder %s70, %s71
    %p80 = scmp.eq.s32.totalorder %s18, 0
    %p81 = por %p79, %p80
    %p82 = scmp.ne.s32.totalorder %s70, %s71
    %p83 = scmp.eq.s32.totalorder %s19, 1
    %p84 = por %p82, %p83
    %p86 = scmp.ne.s32.totalorder %s71, %s85
    %p87 = scmp.eq.s32.totalorder %s19, 0
    %p88 = por %p86, %p87
    %s90 = sadd.s32 %s89, 1
    %p93 = scmp.eq.s32.totalorder %s13, 1
    %p94 = scmp.ne.s32.totalorder %s89, %s91
    %p95 = scmp.eq.s32.totalorder %s13, 0
    %p96 = por %p94, %p95
    %p97 = scmp.ne.s32.totalorder %s89, %s91
    %p98 = scmp.eq.s32.totalorder %s18, 1
    %p99 = por %p97, %p98
    %p100 = scmp.ne.s32.totalorder %s91, %s92
    %p101 = scmp.eq.s32.totalorder %s18, 0
    %p102 = por %p100, %p101
    %p103 = scmp.ne.s32.totalorder %s91, %s92
    %p104 = scmp.eq.s32.totalorder %s19, 1
    %p105 = por %p103, %p104
    %p107 = scmp.ne.s32.totalorder %s92, %s106
    %p108 = scmp.eq.s32.totalorder %s19, 0
    %p109 = por %p107, %p108
    %s111 = sadd.s32 %s110, 1
    %p114 = scmp.eq.s32.totalorder %s13, 1
    %p115 = scmp.ne.s32.totalorder %s110, %s112
    %p116 = scmp.eq.s32.totalorder %s13, 0
    %p117 = por %p115, %p116
    %p118 = scmp.ne.s32.totalorder %s110, %s112
    %p119 = scmp.eq.s32.totalorder %s18, 1
    %p120 = por %p118, %p119
    %p121 = scmp.ne.s32.totalorder %s112, %s113
    %p122 = scmp.eq.s32.totalorder %s18, 0
    %p123 = por %p121, %p122
    %p124 = scmp.ne.s32.totalorder %s112, %s113
    %p125 = scmp.eq.s32.totalorder %s19, 1
    %p126 = por %p124, %p125
    %p128 = scmp.ne.s32.totalorder %s113, %s127
    %p129 = scmp.eq.s32.totalorder %s19, 0
    %p130 = por %p128, %p129
    %s131 = ssub.s32 %s13, %s20
    %p132 = scmp.eq.s32.totalorder %s131, 0
    %s134 = sadd.s32 %s133, 1
    %s135 = scalar_select %p132, %s133, %s134
    %p138 = pneg %p132
    %p139 = scmp.eq.s32.totalorder %s13, 1
    %p140 = por %p138, %p139
    %p141 = scmp.ne.s32.totalorder %s133, %s136
    %p142 = scmp.eq.s32.totalorder %s13, 0
    %p143 = por %p141, %p142
    %p144 = scmp.ne.s32.totalorder %s133, %s136
    %p145 = scmp.eq.s32.totalorder %s18, 1
    %p146 = por %p144, %p145
    %p147 = scmp.ne.s32.totalorder %s136, %s137
    %p148 = scmp.eq.s32.totalorder %s18, 0
    %p149 = por %p147, %p148
    %p150 = scmp.ne.s32.totalorder %s136, %s137
    %p151 = scmp.eq.s32.totalorder %s19, 1
    %p152 = por %p150, %p151
    %p154 = scmp.ne.s32.totalorder %s137, %s153
    %p155 = scmp.eq.s32.totalorder %s19, 0
    %p156 = por %p154, %p155
    %p157 = scmp.le.s32.totalorder 1, %s13
    %p158 = scmp.lt.s32.totalorder %s13, 3
    %p159 = pnand %p157, %p158
    %p160 = pneg %p159
    // Predicated region
    $region9: #{unet_forward.16} parent=5 // pred_check
      _
    $region10: #{unet_forward.16} parent=5 // pred_check_branch
      %162 = sbr.rel (%p159) target = $region12
    $region11: #{unet_forward.16} parent=5 // pred_region
      %s163 = ssub.s32 %s13, 1
      // Predicated region
      $region13: #{unet_forward.16} parent=11 // pred_check
        %p164 = pneg %p60
      $region14: #{unet_forward.16} parent=11 // pred_check_branch
        %166 = sbr.rel (%p164) target = $region16
      $region15: #{unet_forward.16} parent=11 // pred_region
        _
      $region16: #{unet_forward.16} parent=11 // pred_fallthru
        _
      // Predicated region
      $region17: #{unet_forward.16} parent=11 // pred_check
        %p167 = pneg %p81
      $region18: #{unet_forward.16} parent=11 // pred_check_branch
        %169 = sbr.rel (%p167) target = $region20
      $region19: #{unet_forward.16} parent=11 // pred_region
        _
      $region20: #{unet_forward.16} parent=11 // pred_fallthru
        _
      // Predicated region
      $region21: #{unet_forward.16} parent=11 // pred_check
        %p170 = pneg %p102
      $region22: #{unet_forward.16} parent=11 // pred_check_branch
        %172 = sbr.rel (%p170) target = $region24
      $region23: #{unet_forward.16} parent=11 // pred_region
        _
      $region24: #{unet_forward.16} parent=11 // pred_fallthru
        _
      // Predicated region
      $region25: #{unet_forward.16} parent=11 // pred_check
        %p173 = pneg %p123
      $region26: #{unet_forward.16} parent=11 // pred_check_branch
        %175 = sbr.rel (%p173) target = $region28
      $region27: #{unet_forward.16} parent=11 // pred_region
        _
      $region28: #{unet_forward.16} parent=11 // pred_fallthru
        _
    $region12: #{unet_forward.16} parent=5 // pred_fallthru
      _
    %p176 = scmp.lt.s32.totalorder %s13, 2
    // Predicated region
    $region29: #{unet_forward.16} parent=5 // pred_check
      %p177 = pneg %p176
    $region30: #{unet_forward.16} parent=5 // pred_check_branch
      %179 = sbr.rel (%p177) target = $region32
    $region31: #{unet_forward.16} parent=5 // pred_region
      // Predicated region
      $region33: #{unet_forward.16} parent=31 // pred_check
        %p180 = pneg %p33
      $region34: #{unet_forward.16} parent=31 // pred_check_branch
        %182 = sbr.rel (%p180) target = $region36
      $region35: #{unet_forward.16} parent=31 // pred_region
        %p183 = scmp.lt.s32.totalorder %s13, 1
        %s184 = scalar_select %p183, %s13, 1
        %s185 = smul.addr %s184, 13
        %s186 = smul.addr %s185, 4
        %s187 = scalar_lea.vmem %s0, %s186
      $region36: #{unet_forward.16} parent=31 // pred_fallthru
        _
    $region32: #{unet_forward.16} parent=5 // pred_fallthru
      _
    %p188 = scmp.le.s32.totalorder 1, %s13
    %p189 = scmp.lt.s32.totalorder %s13, 3
    %p190 = pnand %p188, %p189
    %p191 = pneg %p190
    // Predicated region
    $region37: #{unet_forward.16} parent=5 // pred_check
      _
    $region38: #{unet_forward.16} parent=5 // pred_check_branch
      %193 = sbr.rel (%p190) target = $region40
    $region39: #{unet_forward.16} parent=5 // pred_region
      %s194 = ssub.s32 %s13, 1
      %p195 = scmp.lt.s32.totalorder %s18, 1
      %s196 = scalar_select %p195, %s18, 1
      %s197 = smul.addr %s196, 13
      %s198 = smul.addr %s197, 4
      %s199 = scalar_lea.vmem %s0, %s198
      %p200 = pneg %p39
      %p201 = pneg %p36
      %p202 = pneg %p60
      %p203 = pneg %p57
      %p204 = pneg %p81
      %p205 = pneg %p78
      %p206 = pneg %p102
      %p207 = pneg %p99
      %p208 = pneg %p123
      %p209 = pneg %p120
      %p210 = pneg %p149
      %p211 = pneg %p146
      %p212 = scmp.lt.s32.totalorder %s18, 1
      %s213 = scalar_select %p212, %s18, 1
      %s214 = smul.addr %s213, 10
      %s215 = smul.addr %s214, 8
      %s216 = scalar_lea.vmem %s5, %s215
      %p217 = scmp.lt.s32.totalorder %s18, 1
      %s218 = scalar_select %p217, %s18, 1
      %s219 = smul.addr %s218, 13
      %s220 = smul.addr %s219, 4
      %s221 = scalar_lea.vmem %s0, %s220
      %p222 = scmp.lt.s32.totalorder %s18, 1
      %s223 = scalar_select %p222, %s18, 1
      %s224 = smul.addr %s223, 10
      %s225 = smul.addr %s224, 8
      %s226 = scalar_lea.vmem %s5, %s225
      %v228 = vld [vmem:[%s221] sm:$0xf]
      %v229 = vld [vmem:[%s221 + $0x4] sm:$0xf]
      %v230 = vld [vmem:[%s221 + $0x8] sm:$0xf]
      %v231 = vld [vmem:[%s221 + $0xc] sm:$0xf]
      %v232 = vld [vmem:[%s221 + $0x10] sm:$0xf]
      %v233 = vld [vmem:[%s221 + $0x14] sm:$0xf]
      %v234 = vld [vmem:[%s221 + $0x18] sm:$0xf]
      %v235 = vld [vmem:[%s221 + $0x1c] sm:$0xf]
      %v236 = vld [vmem:[%s221 + $0x20] sm:$0xf]
      %v237 = vld [vmem:[%s221 + $0x24] sm:$0xf]
      %v238 = vld [vmem:[%s221 + $0x28] sm:$0xf]
      %v239 = vld [vmem:[%s221 + $0x2c] sm:$0xf]
      %v240 = vld [vmem:[%s221 + $0x30] sm:$0x3]
      %v241 = vunpack.c.l.bf16 %v228
      %v242 = vunpack.c.l.bf16 %v229
      %v243 = vunpack.c.l.bf16 %v230
      %v244 = vunpack.c.l.bf16 %v231
      %v245 = vunpack.c.l.bf16 %v232
      %v246 = vunpack.c.l.bf16 %v233
      %v247 = vunpack.c.l.bf16 %v234
      %v248 = vunpack.c.l.bf16 %v235
      %v249 = vunpack.c.l.bf16 %v236
      %v250 = vunpack.c.l.bf16 %v237
      %v251 = vunpack.c.l.bf16 %v238
      %v252 = vunpack.c.l.bf16 %v239
      %v253 = vunpack.c.l.bf16 %v240
      %v254 = vld [vmem:[%s3] sm:$0x1]
      %v256 = vperm.slane %v254, 0
      %v258 = vmul.f32 %v241, %v256
      %v259 = vmul.f32 %v242, %v256
      %v260 = vmul.f32 %v243, %v256
      %v261 = vmul.f32 %v244, %v256
      %v262 = vmul.f32 %v245, %v256
      %v263 = vmul.f32 %v246, %v256
      %v264 = vmul.f32 %v247, %v256
      %v265 = vmul.f32 %v248, %v256
      %v266 = vmul.f32 %v249, %v256
      %v267 = vmul.f32 %v250, %v256
      %v268 = vmul.f32 %v251, %v256
      %v269 = vmul.f32 %v252, %v256
      %v270 = vmul.f32 %v253, %v256
      %v271 = vld [vmem:[%s4] sm:$0x1]
      %v273 = vperm.slane %v271, 0
      %v275 = vadd.f32 %v258, %v273
      %v276 = vadd.f32 %v259, %v273
      %v277 = vadd.f32 %v260, %v273
      %v278 = vadd.f32 %v261, %v273
      %v279 = vadd.f32 %v262, %v273
      %v280 = vadd.f32 %v263, %v273
      %v281 = vadd.f32 %v264, %v273
      %v282 = vadd.f32 %v265, %v273
      %v283 = vadd.f32 %v266, %v273
      %v284 = vadd.f32 %v267, %v273
      %v285 = vadd.f32 %v268, %v273
      %v286 = vadd.f32 %v269, %v273
      %v287 = vadd.f32 %v270, %v273
      %v288 = vmax.f32 %v275, 0.0
      %v289 = vmax.f32 %v276, 0.0
      %v290 = vmax.f32 %v277, 0.0
      %v291 = vmax.f32 %v278, 0.0
      %v292 = vmax.f32 %v279, 0.0
      %v293 = vmax.f32 %v280, 0.0
      %v294 = vmax.f32 %v281, 0.0
      %v295 = vmax.f32 %v282, 0.0
      %v296 = vmax.f32 %v283, 0.0
      %v297 = vmax.f32 %v284, 0.0
      %v298 = vmax.f32 %v285, 0.0
      %v299 = vmax.f32 %v286, 0.0
      %v300 = vmax.f32 %v287, 0.0
      %v301 = vpack.c.bf16 %v288, %v288
      %v302 = vpack.c.bf16 %v289, %v289
      %v303 = vpack.c.bf16 %v290, %v290
      %v304 = vpack.c.bf16 %v291, %v291
      %v305 = vpack.c.bf16 %v292, %v292
      %v306 = vpack.c.bf16 %v293, %v293
      %v307 = vpack.c.bf16 %v294, %v294
      %v308 = vpack.c.bf16 %v295, %v295
      %v309 = vpack.c.bf16 %v296, %v296
      %v310 = vpack.c.bf16 %v297, %v297
      %v311 = vpack.c.bf16 %v298, %v298
      %v312 = vpack.c.bf16 %v299, %v299
      %v313 = vpack.c.bf16 %v300, %v300
      %v314 = vld [vmem:[#allocation2] sm:$0x1]
      %v315 = vld [vmem:[%s1] sm:$0xf]
      %v316 = vld [vmem:[%s1 + $0x4] sm:$0xf]
      %s317 = scalar_lea.vmem %s1, 8
      %v318 = vld [vmem:[%s317] sm:$0xf]
      %v319 = vld [vmem:[%s317 + $0x4] sm:$0xf]
      %v330 = vunpack.c.l.b16 %v301
      %v331 = vunpack.c.l.b16 %v302
      %v332 = vunpack.c.l.b16 %v303
      %v333 = vunpack.c.l.b16 %v304
      %v334 = vunpack.c.l.b16 %v305
      %v335 = vunpack.c.l.b16 %v306
      %v336 = vunpack.c.l.b16 %v307
      %v337 = vunpack.c.l.b16 %v308
      %v338 = vunpack.c.l.b16 %v309
      %v339 = vunpack.c.l.b16 %v310
      %v340 = vpack.c.b16 %v331, %v330
      %v341 = vpack.c.b16 %v333, %v332
      %v342 = vpack.c.b16 %v335, %v334
      %v343 = vpack.c.b16 %v337, %v336
      %v344 = vpack.c.b16 %v339, %v338
      %vm345 = vsmask.f32 7424
      %v347 = vshrl.u32 %v340, 16
      %v349 = vshll.u32 %v340, 16
      %v351 = vrot.slane %v349, 1
      %v352 = vor.u32 %v347, %v351
      %v354 = vshll.u32 %v341, 16
      %v356 = vrot.slane %v354, 1
      %v357 = vsel %vm345, %v352, %v356
      %v358 = vshrl.u32 %v341, 16
      %v360 = vor.u32 %v358, %v356
      %v362 = vshll.u32 %v342, 16
      %v364 = vrot.slane %v362, 1
      %v365 = vsel %vm345, %v360, %v364
      %v366 = vshrl.u32 %v342, 16
      %v368 = vor.u32 %v366, %v364
      %v370 = vshll.u32 %v343, 16
      %v372 = vrot.slane %v370, 1
      %v373 = vsel %vm345, %v368, %v372
      %v374 = vshrl.u32 %v343, 16
      %v376 = vor.u32 %v374, %v372
      %v378 = vshll.u32 %v344, 16
      %v380 = vrot.slane %v378, 1
      %v381 = vsel %vm345, %v376, %v380
      %v382 = vshrl.u32 %v344, 16
      %v384 = vor.u32 %v382, %v380
      %v387 = vunpack.c.l.b16 %v318
      %v388 = vunpack.c.l.b16 %v319
      %v389 = vpack.c.b16 %v388, %v387
      %vm391 = vcmask 130048
      %v393 = vsel %vm391, %v357, 0
      %v396 = vsel %vm391, %v365, 0
      %v399 = vsel %vm391, %v373, 0
      %v402 = vsel %vm391, %v381, 0
      %v405 = vsel %vm391, %v384, 0
      %407 = vmatpush.bf16.msra.mxu0 0
      %408 = vmatpush.bf16.msra.mxu0 0
      %409 = vmatpush.bf16.msra.mxu0 0
      %410 = vmatpush.bf16.msra.mxu0 0
      %411 = vmatpush.bf16.msra.mxu0 0
      %412 = vmatpush.bf16.msra.mxu0 0
      %413 = vmatpush.bf16.msra.mxu0 0
      %414 = vmatpush.bf16.msra.mxu0 %v389
      %415 = vmatmul.bf16.gmra.mxu0 %v393
      %v416 = vpop.f32.mrf.mxu0
      %v417 = vadd.f32 0.0, %v416
      %v418 = vpop.f32.mrf.mxu0
      %v419 = vadd.f32 0.0, %v418
      %420 = vmatmul.bf16.gmra.mxu0 %v396
      %v421 = vpop.f32.mrf.mxu0
      %v422 = vadd.f32 0.0, %v421
      %v423 = vpop.f32.mrf.mxu0
      %v424 = vadd.f32 0.0, %v423
      %425 = vmatmul.bf16.gmra.mxu0 %v399
      %v426 = vpop.f32.mrf.mxu0
      %v427 = vadd.f32 0.0, %v426
      %v428 = vpop.f32.mrf.mxu0
      %v429 = vadd.f32 0.0, %v428
      %430 = vmatmul.bf16.gmra.mxu0 %v402
      %v431 = vpop.f32.mrf.mxu0
      %v432 = vadd.f32 0.0, %v431
      %v433 = vpop.f32.mrf.mxu0
      %v434 = vadd.f32 0.0, %v433
      %435 = vmatmul.bf16.gmra.mxu0 %v405
      %v436 = vpop.f32.mrf.mxu0
      %v437 = vadd.f32 0.0, %v436
      %v438 = vpop.f32.mrf.mxu0
      %v439 = vadd.f32 0.0, %v438
      %440 = vdwg.mxu0
      %v443 = vunpack.c.l.b16 %v315
      %v444 = vunpack.c.l.b16 %v316
      %v445 = vpack.c.b16 %v444, %v443
      %v447 = vsel %vm391, %v340, 0
      %v449 = vsel %vm391, %v341, 0
      %v451 = vsel %vm391, %v342, 0
      %v453 = vsel %vm391, %v343, 0
      %v455 = vsel %vm391, %v344, 0
      %457 = vmatpush.bf16.msra.mxu0 0
      %458 = vmatpush.bf16.msra.mxu0 0
      %459 = vmatpush.bf16.msra.mxu0 0
      %460 = vmatpush.bf16.msra.mxu0 0
      %461 = vmatpush.bf16.msra.mxu0 0
      %462 = vmatpush.bf16.msra.mxu0 0
      %463 = vmatpush.bf16.msra.mxu0 0
      %464 = vmatpush.bf16.msra.mxu0 %v445
      %465 = vmatmul.bf16.gmra.mxu0 %v447
      %v466 = vpop.f32.mrf.mxu0
      %v467 = vadd.f32 %v417, %v466
      %v468 = vpop.f32.mrf.mxu0
      %v469 = vadd.f32 %v419, %v468
      %470 = vmatmul.bf16.gmra.mxu0 %v449
      %v471 = vpop.f32.mrf.mxu0
      %v472 = vadd.f32 %v422, %v471
      %v473 = vpop.f32.mrf.mxu0
      %v474 = vadd.f32 %v424, %v473
      %475 = vmatmul.bf16.gmra.mxu0 %v451
      %v476 = vpop.f32.mrf.mxu0
      %v477 = vadd.f32 %v427, %v476
      %v478 = vpop.f32.mrf.mxu0
      %v479 = vadd.f32 %v429, %v478
      %480 = vmatmul.bf16.gmra.mxu0 %v453
      %v481 = vpop.f32.mrf.mxu0
      %v482 = vadd.f32 %v432, %v481
      %v483 = vpop.f32.mrf.mxu0
      %v484 = vadd.f32 %v434, %v483
      %485 = vmatmul.bf16.gmra.mxu0 %v455
      %v486 = vpop.f32.mrf.mxu0
      %v487 = vadd.f32 %v437, %v486
      %v488 = vpop.f32.mrf.mxu0
      %v489 = vadd.f32 %v439, %v488
      %490 = vdwg.mxu0
      %s491 = scalar_lea.vmem %s1, 16
      %v492 = vld [vmem:[%s491] sm:$0xf]
      %v493 = vld [vmem:[%s491 + $0x4] sm:$0xf]
      %v495 = vunpack.c.l.b16 %v311
      %v496 = vpack.c.b16 %v332, %v331
      %v497 = vpack.c.b16 %v334, %v333
      %v498 = vpack.c.b16 %v336, %v335
      %v499 = vpack.c.b16 %v338, %v337
      %v500 = vpack.c.b16 %v495, %v339
      %vm501 = vcmask 1046528
      %v502 = vrot.slane %v496, 1
      %v503 = vrot.slane %v497, 1
      %v504 = vsel %vm501, %v502, %v503
      %v505 = vrot.slane %v498, 1
      %v506 = vsel %vm501, %v503, %v505
      %v507 = vrot.slane %v499, 1
      %v508 = vsel %vm501, %v505, %v507
      %v509 = vrot.slane %v500, 1
      %v510 = vsel %vm501, %v507, %v509
      %v513 = vunpack.c.l.b16 %v492
      %v514 = vunpack.c.l.b16 %v493
      %v515 = vpack.c.b16 %v514, %v513
      %v518 = vsel %vm391, %v504, 0
      %v521 = vsel %vm391, %v506, 0
      %v524 = vsel %vm391, %v508, 0
      %v527 = vsel %vm391, %v510, 0
      %v530 = vsel %vm391, %v509, 0
      %532 = vmatpush.bf16.msra.mxu0 0
      %533 = vmatpush.bf16.msra.mxu0 0
      %534 = vmatpush.bf16.msra.mxu0 0
      %535 = vmatpush.bf16.msra.mxu0 0
      %536 = vmatpush.bf16.msra.mxu0 0
      %537 = vmatpush.bf16.msra.mxu0 0
      %538 = vmatpush.bf16.msra.mxu0 0
      %539 = vmatpush.bf16.msra.mxu0 %v515
      %540 = vmatmul.bf16.gmra.mxu0 %v518
      %v541 = vpop.f32.mrf.mxu0
      %v542 = vadd.f32 0.0, %v541
      %v543 = vpop.f32.mrf.mxu0
      %v544 = vadd.f32 0.0, %v543
      %545 = vmatmul.bf16.gmra.mxu0 %v521
      %v546 = vpop.f32.mrf.mxu0
      %v547 = vadd.f32 0.0, %v546
      %v548 = vpop.f32.mrf.mxu0
      %v549 = vadd.f32 0.0, %v548
      %550 = vmatmul.bf16.gmra.mxu0 %v524
      %v551 = vpop.f32.mrf.mxu0
      %v552 = vadd.f32 0.0, %v551
      %v553 = vpop.f32.mrf.mxu0
      %v554 = vadd.f32 0.0, %v553
      %555 = vmatmul.bf16.gmra.mxu0 %v527
      %v556 = vpop.f32.mrf.mxu0
      %v557 = vadd.f32 0.0, %v556
      %v558 = vpop.f32.mrf.mxu0
      %v559 = vadd.f32 0.0, %v558
      %560 = vmatmul.bf16.gmra.mxu0 %v530
      %v561 = vpop.f32.mrf.mxu0
      %v562 = vadd.f32 0.0, %v561
      %v563 = vpop.f32.mrf.mxu0
      %v564 = vadd.f32 0.0, %v563
      %565 = vdwg.mxu0
      %v566 = vadd.f32 %v467, %v542
      %v567 = vadd.f32 %v469, %v544
      %v568 = vadd.f32 %v472, %v547
      %v569 = vadd.f32 %v474, %v549
      %v570 = vadd.f32 %v477, %v552
      %v571 = vadd.f32 %v479, %v554
      %v572 = vadd.f32 %v482, %v557
      %v573 = vadd.f32 %v484, %v559
      %v574 = vadd.f32 %v487, %v562
      %v575 = vadd.f32 %v489, %v564
      %s576 = scalar_lea.vmem %s1, 24
      %v577 = vld [vmem:[%s576] sm:$0xf]
      %v578 = vld [vmem:[%s576 + $0x4] sm:$0xf]
      %v580 = vunpack.c.l.b16 %v312
      %v581 = vpack.c.b16 %v580, %v580
      %vm582 = vsmask.f32 6400
      %v584 = vshrl.u32 %v496, 16
      %v586 = vrot.slane %v584, 1
      %v587 = vshll.u32 %v496, 16
      %v589 = vrot.slane %v587, 2
      %v590 = vor.u32 %v586, %v589
      %v592 = vshrl.u32 %v497, 16
      %v594 = vrot.slane %v592, 1
      %v595 = vshll.u32 %v497, 16
      %v597 = vrot.slane %v595, 2
      %v598 = vor.u32 %v594, %v597
      %v599 = vsel %vm582, %v590, %v598
      %v601 = vshrl.u32 %v498, 16
      %v603 = vrot.slane %v601, 1
      %v604 = vshll.u32 %v498, 16
      %v606 = vrot.slane %v604, 2
      %v607 = vor.u32 %v603, %v606
      %v608 = vsel %vm582, %v598, %v607
      %v610 = vshrl.u32 %v499, 16
      %v612 = vrot.slane %v610, 1
      %v613 = vshll.u32 %v499, 16
      %v615 = vrot.slane %v613, 2
      %v616 = vor.u32 %v612, %v615
      %v617 = vsel %vm582, %v607, %v616
      %v619 = vshrl.u32 %v500, 16
      %v621 = vrot.slane %v619, 1
      %v622 = vshll.u32 %v500, 16
      %v624 = vrot.slane %v622, 2
      %v625 = vor.u32 %v621, %v624
      %v626 = vsel %vm582, %v616, %v625
      %v628 = vshll.u32 %v581, 16
      %v630 = vrot.slane %v628, 2
      %v631 = vsel %vm582, %v625, %v630
      %v634 = vunpack.c.l.b16 %v577
      %v635 = vunpack.c.l.b16 %v578
      %v636 = vpack.c.b16 %v635, %v634
      %v639 = vsel %vm391, %v599, 0
      %v642 = vsel %vm391, %v608, 0
      %v645 = vsel %vm391, %v617, 0
      %v648 = vsel %vm391, %v626, 0
      %v651 = vsel %vm391, %v631, 0
      %653 = vmatpush.bf16.msra.mxu0 0
      %654 = vmatpush.bf16.msra.mxu0 0
      %655 = vmatpush.bf16.msra.mxu0 0
      %656 = vmatpush.bf16.msra.mxu0 0
      %657 = vmatpush.bf16.msra.mxu0 0
      %658 = vmatpush.bf16.msra.mxu0 0
      %659 = vmatpush.bf16.msra.mxu0 0
      %660 = vmatpush.bf16.msra.mxu0 %v636
      %661 = vmatmul.bf16.gmra.mxu0 %v639
      %v662 = vpop.f32.mrf.mxu0
      %v663 = vadd.f32 0.0, %v662
      %v664 = vpop.f32.mrf.mxu0
      %v665 = vadd.f32 0.0, %v664
      %666 = vmatmul.bf16.gmra.mxu0 %v642
      %v667 = vpop.f32.mrf.mxu0
      %v668 = vadd.f32 0.0, %v667
      %v669 = vpop.f32.mrf.mxu0
      %v670 = vadd.f32 0.0, %v669
      %671 = vmatmul.bf16.gmra.mxu0 %v645
      %v672 = vpop.f32.mrf.mxu0
      %v673 = vadd.f32 0.0, %v672
      %v674 = vpop.f32.mrf.mxu0
      %v675 = vadd.f32 0.0, %v674
      %676 = vmatmul.bf16.gmra.mxu0 %v648
      %v677 = vpop.f32.mrf.mxu0
      %v678 = vadd.f32 0.0, %v677
      %v679 = vpop.f32.mrf.mxu0
      %v680 = vadd.f32 0.0, %v679
      %681 = vmatmul.bf16.gmra.mxu0 %v651
      %v682 = vpop.f32.mrf.mxu0
      %v683 = vadd.f32 0.0, %v682
      %v684 = vpop.f32.mrf.mxu0
      %v685 = vadd.f32 0.0, %v684
      %686 = vdwg.mxu0
      %v687 = vadd.f32 %v566, %v663
      %v688 = vadd.f32 %v567, %v665
      %v689 = vadd.f32 %v568, %v668
      %v690 = vadd.f32 %v569, %v670
      %v691 = vadd.f32 %v570, %v673
      %v692 = vadd.f32 %v571, %v675
      %v693 = vadd.f32 %v572, %v678
      %v694 = vadd.f32 %v573, %v680
      %v695 = vadd.f32 %v574, %v683
      %v696 = vadd.f32 %v575, %v685
      %v698 = vperm.slane %v314, 0
      %v700 = vadd.f32 %v687, %v698
      %v701 = vadd.f32 %v688, %v698
      %v702 = vadd.f32 %v689, %v698
      %v703 = vadd.f32 %v690, %v698
      %v704 = vadd.f32 %v691, %v698
      %v705 = vadd.f32 %v692, %v698
      %v706 = vadd.f32 %v693, %v698
      %v707 = vadd.f32 %v694, %v698
      %v708 = vadd.f32 %v695, %v698
      %v709 = vadd.f32 %v696, %v698
      %v710 = vtanh.pop %v700
      %v711 = vtanh.pop %v701
      %v712 = vtanh.pop %v702
      %v713 = vtanh.pop %v703
      %v714 = vtanh.pop %v704
      %v715 = vtanh.pop %v705
      %v716 = vtanh.pop %v706
      %v717 = vtanh.pop %v707
      %v718 = vtanh.pop %v708
      %v719 = vtanh.pop %v709
      %vm720 = vcmask 7168
      %721 = vst.msk [vmem:[%s226] sm:$0xff] %vm720, %v710
      %722 = vst.msk [vmem:[%s226 + $0x8] sm:$0xff] %vm720, %v711
      %723 = vst.msk [vmem:[%s226 + $0x10] sm:$0xff] %vm720, %v712
      %724 = vst.msk [vmem:[%s226 + $0x18] sm:$0xff] %vm720, %v713
      %725 = vst.msk [vmem:[%s226 + $0x20] sm:$0xff] %vm720, %v714
      %726 = vst.msk [vmem:[%s226 + $0x28] sm:$0xff] %vm720, %v715
      %727 = vst.msk [vmem:[%s226 + $0x30] sm:$0xff] %vm720, %v716
      %728 = vst.msk [vmem:[%s226 + $0x38] sm:$0xff] %vm720, %v717
      %729 = vst.msk [vmem:[%s226 + $0x40] sm:$0xff] %vm720, %v718
      %vm730 = vcmask 5120
      %731 = vst.msk [vmem:[%s226 + $0x48] sm:$0x3f] %vm730, %v719
      %s732 = scalar_lea.vmem %s1, 32
      %v733 = vld [vmem:[%s732] sm:$0xf]
      %v734 = vld [vmem:[%s732 + $0x4] sm:$0xf]
      %s735 = scalar_lea.vmem %s1, 40
      %v736 = vld [vmem:[%s735] sm:$0xf]
      %v737 = vld [vmem:[%s735 + $0x4] sm:$0xf]
      %v738 = vrot.slane %v340, 1
      %v739 = vrot.slane %v341, 1
      %v740 = vsel %vm501, %v738, %v739
      %v741 = vrot.slane %v342, 1
      %v742 = vsel %vm501, %v739, %v741
      %v743 = vrot.slane %v343, 1
      %v744 = vsel %vm501, %v741, %v743
      %v745 = vrot.slane %v344, 1
      %v746 = vsel %vm501, %v743, %v745
      %v749 = vunpack.c.l.b16 %v736
      %v750 = vunpack.c.l.b16 %v737
      %v751 = vpack.c.b16 %v750, %v749
      %v754 = vsel %vm391, %v740, 0
      %v757 = vsel %vm391, %v742, 0
      %v760 = vsel %vm391, %v744, 0
      %v763 = vsel %vm391, %v746, 0
      %v766 = vsel %vm391, %v745, 0
      %768 = vmatpush.bf16.msra.mxu0 0
      %769 = vmatpush.bf16.msra.mxu0 0
      %770 = vmatpush.bf16.msra.mxu0 0
      %771 = vmatpush.bf16.msra.mxu0 0
      %772 = vmatpush.bf16.msra.mxu0 0
      %773 = vmatpush.bf16.msra.mxu0 0
      %774 = vmatpush.bf16.msra.mxu0 0
      %775 = vmatpush.bf16.msra.mxu0 %v751
      %776 = vmatmul.bf16.gmra.mxu0 %v754
      %v777 = vpop.f32.mrf.mxu0
      %v778 = vadd.f32 0.0, %v777
      %v779 = vpop.f32.mrf.mxu0
      %v780 = vadd.f32 0.0, %v779
      %781 = vmatmul.bf16.gmra.mxu0 %v757
      %v782 = vpop.f32.mrf.mxu0
      %v783 = vadd.f32 0.0, %v782
      %v784 = vpop.f32.mrf.mxu0
      %v785 = vadd.f32 0.0, %v784
      %786 = vmatmul.bf16.gmra.mxu0 %v760
      %v787 = vpop.f32.mrf.mxu0
      %v788 = vadd.f32 0.0, %v787
      %v789 = vpop.f32.mrf.mxu0
      %v790 = vadd.f32 0.0, %v789
      %791 = vmatmul.bf16.gmra.mxu0 %v763
      %v792 = vpop.f32.mrf.mxu0
      %v793 = vadd.f32 0.0, %v792
      %v794 = vpop.f32.mrf.mxu0
      %v795 = vadd.f32 0.0, %v794
      %796 = vmatmul.bf16.gmra.mxu0 %v766
      %v797 = vpop.f32.mrf.mxu0
      %v798 = vadd.f32 0.0, %v797
      %v799 = vpop.f32.mrf.mxu0
      %v800 = vadd.f32 0.0, %v799
      %801 = vdwg.mxu0
      %v804 = vunpack.c.l.b16 %v733
      %v805 = vunpack.c.l.b16 %v734
      %v806 = vpack.c.b16 %v805, %v804
      %808 = vmatpush.bf16.msra.mxu0 0
      %809 = vmatpush.bf16.msra.mxu0 0
      %810 = vmatpush.bf16.msra.mxu0 0
      %811 = vmatpush.bf16.msra.mxu0 0
      %812 = vmatpush.bf16.msra.mxu0 0
      %813 = vmatpush.bf16.msra.mxu0 0
      %814 = vmatpush.bf16.msra.mxu0 0
      %815 = vmatpush.bf16.msra.mxu0 %v806
      %816 = vmatmul.bf16.gmra.mxu0 %v393
      %v817 = vpop.f32.mrf.mxu0
      %v818 = vadd.f32 %v778, %v817
      %v819 = vpop.f32.mrf.mxu0
      %v820 = vadd.f32 %v780, %v819
      %821 = vmatmul.bf16.gmra.mxu0 %v396
      %v822 = vpop.f32.mrf.mxu0
      %v823 = vadd.f32 %v783, %v822
      %v824 = vpop.f32.mrf.mxu0
      %v825 = vadd.f32 %v785, %v824
      %826 = vmatmul.bf16.gmra.mxu0 %v399
      %v827 = vpop.f32.mrf.mxu0
      %v828 = vadd.f32 %v788, %v827
      %v829 = vpop.f32.mrf.mxu0
      %v830 = vadd.f32 %v790, %v829
      %831 = vmatmul.bf16.gmra.mxu0 %v402
      %v832 = vpop.f32.mrf.mxu0
      %v833 = vadd.f32 %v793, %v832
      %v834 = vpop.f32.mrf.mxu0
      %v835 = vadd.f32 %v795, %v834
      %836 = vmatmul.bf16.gmra.mxu0 %v405
      %v837 = vpop.f32.mrf.mxu0
      %v838 = vadd.f32 %v798, %v837
      %v839 = vpop.f32.mrf.mxu0
      %v840 = vadd.f32 %v800, %v839
      %841 = vdwg.mxu0
      %s842 = scalar_lea.vmem %s1, 48
      %v843 = vld [vmem:[%s842] sm:$0xf]
      %v844 = vld [vmem:[%s842 + $0x4] sm:$0xf]
      %v847 = vunpack.c.l.b16 %v843
      %v848 = vunpack.c.l.b16 %v844
      %v849 = vpack.c.b16 %v848, %v847
      %851 = vmatpush.bf16.msra.mxu0 0
      %852 = vmatpush.bf16.msra.mxu0 0
      %853 = vmatpush.bf16.msra.mxu0 0
      %854 = vmatpush.bf16.msra.mxu0 0
      %855 = vmatpush.bf16.msra.mxu0 0
      %856 = vmatpush.bf16.msra.mxu0 0
      %857 = vmatpush.bf16.msra.mxu0 0
      %858 = vmatpush.bf16.msra.mxu0 %v849
      %859 = vmatmul.bf16.gmra.mxu0 %v639
      %v860 = vpop.f32.mrf.mxu0
      %v861 = vadd.f32 0.0, %v860
      %v862 = vpop.f32.mrf.mxu0
      %v863 = vadd.f32 0.0, %v862
      %864 = vmatmul.bf16.gmra.mxu0 %v642
      %v865 = vpop.f32.mrf.mxu0
      %v866 = vadd.f32 0.0, %v865
      %v867 = vpop.f32.mrf.mxu0
      %v868 = vadd.f32 0.0, %v867
      %869 = vmatmul.bf16.gmra.mxu0 %v645
      %v870 = vpop.f32.mrf.mxu0
      %v871 = vadd.f32 0.0, %v870
      %v872 = vpop.f32.mrf.mxu0
      %v873 = vadd.f32 0.0, %v872
      %874 = vmatmul.bf16.gmra.mxu0 %v648
      %v875 = vpop.f32.mrf.mxu0
      %v876 = vadd.f32 0.0, %v875
      %v877 = vpop.f32.mrf.mxu0
      %v878 = vadd.f32 0.0, %v877
      %879 = vmatmul.bf16.gmra.mxu0 %v651
      %v880 = vpop.f32.mrf.mxu0
      %v881 = vadd.f32 0.0, %v880
      %v882 = vpop.f32.mrf.mxu0
      %v883 = vadd.f32 0.0, %v882
      %884 = vdwg.mxu0
      %v885 = vadd.f32 %v818, %v861
      %v886 = vadd.f32 %v820, %v863
      %v887 = vadd.f32 %v823, %v866
      %v888 = vadd.f32 %v825, %v868
      %v889 = vadd.f32 %v828, %v871
      %v890 = vadd.f32 %v830, %v873
      %v891 = vadd.f32 %v833, %v876
      %v892 = vadd.f32 %v835, %v878
      %v893 = vadd.f32 %v838, %v881
      %v894 = vadd.f32 %v840, %v883
      %s895 = scalar_lea.vmem %s1, 56
      %v896 = vld [vmem:[%s895] sm:$0xf]
      %v897 = vld [vmem:[%s895 + $0x4] sm:$0xf]
      %vm898 = vcmask 1045504
      %v899 = vrot.slane %v496, 2
      %v900 = vrot.slane %v497, 2
      %v901 = vsel %vm898, %v899, %v900
      %v902 = vrot.slane %v498, 2
      %v903 = vsel %vm898, %v900, %v902
      %v904 = vrot.slane %v499, 2
      %v905 = vsel %vm898, %v902, %v904
      %v906 = vrot.slane %v500, 2
      %v907 = vsel %vm898, %v904, %v906
      %v908 = vrot.slane %v581, 2
      %v909 = vsel %vm898, %v906, %v908
      %v912 = vunpack.c.l.b16 %v896
      %v913 = vunpack.c.l.b16 %v897
      %v914 = vpack.c.b16 %v913, %v912
      %v917 = vsel %vm391, %v901, 0
      %v920 = vsel %vm391, %v903, 0
      %v923 = vsel %vm391, %v905, 0
      %v926 = vsel %vm391, %v907, 0
      %v929 = vsel %vm391, %v909, 0
      %931 = vmatpush.bf16.msra.mxu0 0
      %932 = vmatpush.bf16.msra.mxu0 0
      %933 = vmatpush.bf16.msra.mxu0 0
      %934 = vmatpush.bf16.msra.mxu0 0
      %935 = vmatpush.bf16.msra.mxu0 0
      %936 = vmatpush.bf16.msra.mxu0 0
      %937 = vmatpush.bf16.msra.mxu0 0
      %938 = vmatpush.bf16.msra.mxu0 %v914
      %939 = vmatmul.bf16.gmra.mxu0 %v917
      %v940 = vpop.f32.mrf.mxu0
      %v941 = vadd.f32 0.0, %v940
      %v942 = vpop.f32.mrf.mxu0
      %v943 = vadd.f32 0.0, %v942
      %944 = vmatmul.bf16.gmra.mxu0 %v920
      %v945 = vpop.f32.mrf.mxu0
      %v946 = vadd.f32 0.0, %v945
      %v947 = vpop.f32.mrf.mxu0
      %v948 = vadd.f32 0.0, %v947
      %949 = vmatmul.bf16.gmra.mxu0 %v923
      %v950 = vpop.f32.mrf.mxu0
      %v951 = vadd.f32 0.0, %v950
      %v952 = vpop.f32.mrf.mxu0
      %v953 = vadd.f32 0.0, %v952
      %954 = vmatmul.bf16.gmra.mxu0 %v926
      %v955 = vpop.f32.mrf.mxu0
      %v956 = vadd.f32 0.0, %v955
      %v957 = vpop.f32.mrf.mxu0
      %v958 = vadd.f32 0.0, %v957
      %959 = vmatmul.bf16.gmra.mxu0 %v929
      %v960 = vpop.f32.mrf.mxu0
      %v961 = vadd.f32 0.0, %v960
      %v962 = vpop.f32.mrf.mxu0
      %v963 = vadd.f32 0.0, %v962
      %964 = vdwg.mxu0
      %v965 = vadd.f32 %v885, %v941
      %v966 = vadd.f32 %v886, %v943
      %v967 = vadd.f32 %v887, %v946
      %v968 = vadd.f32 %v888, %v948
      %v969 = vadd.f32 %v889, %v951
      %v970 = vadd.f32 %v890, %v953
      %v971 = vadd.f32 %v891, %v956
      %v972 = vadd.f32 %v892, %v958
      %v973 = vadd.f32 %v893, %v961
      %v974 = vadd.f32 %v894, %v963
      %v975 = vadd.f32 %v965, %v698
      %v976 = vadd.f32 %v966, %v698
      %v977 = vadd.f32 %v967, %v698
      %v978 = vadd.f32 %v968, %v698
      %v979 = vadd.f32 %v969, %v698
      %v980 = vadd.f32 %v970, %v698
      %v981 = vadd.f32 %v971, %v698
      %v982 = vadd.f32 %v972, %v698
      %v983 = vadd.f32 %v973, %v698
      %v984 = vadd.f32 %v974, %v698
      %v985 = vtanh.pop %v975
      %v986 = vtanh.pop %v976
      %v987 = vtanh.pop %v977
      %v988 = vtanh.pop %v978
      %v989 = vtanh.pop %v979
      %v990 = vtanh.pop %v980
      %v991 = vtanh.pop %v981
      %v992 = vtanh.pop %v982
      %v993 = vtanh.pop %v983
      %v994 = vtanh.pop %v984
      %1005 = vrot.lane.b32.xlu0 %v985, 1
      %v1006 = vpop.permute.xlu0 %1005
      %1007 = vrot.lane.b32.xlu0 %v986, 1
      %v1008 = vpop.permute.xlu0 %1007
      %1009 = vrot.lane.b32.xlu0 %v987, 1
      %v1010 = vpop.permute.xlu0 %1009
      %1011 = vrot.lane.b32.xlu0 %v988, 1
      %v1012 = vpop.permute.xlu0 %1011
      %1013 = vrot.lane.b32.xlu0 %v989, 1
      %v1014 = vpop.permute.xlu0 %1013
      %1015 = vrot.lane.b32.xlu0 %v990, 1
      %v1016 = vpop.permute.xlu0 %1015
      %1017 = vrot.lane.b32.xlu0 %v991, 1
      %v1018 = vpop.permute.xlu0 %1017
      %1019 = vrot.lane.b32.xlu0 %v992, 1
      %v1020 = vpop.permute.xlu0 %1019
      %1021 = vrot.lane.b32.xlu0 %v993, 1
      %v1022 = vpop.permute.xlu0 %1021
      %1023 = vrot.lane.b32.xlu0 %v994, 1
      %v1024 = vpop.permute.xlu0 %1023
      %vm1035 = vcmask 15368
      %1036 = vst.msk [vmem:[%s226] sm:$0xff] %vm1035, %v1006
      %1037 = vst.msk [vmem:[%s226 + $0x8] sm:$0xff] %vm1035, %v1008
      %1038 = vst.msk [vmem:[%s226 + $0x10] sm:$0xff] %vm1035, %v1010
      %1039 = vst.msk [vmem:[%s226 + $0x18] sm:$0xff] %vm1035, %v1012
      %1040 = vst.msk [vmem:[%s226 + $0x20] sm:$0xff] %vm1035, %v1014
      %1041 = vst.msk [vmem:[%s226 + $0x28] sm:$0xff] %vm1035, %v1016
      %1042 = vst.msk [vmem:[%s226 + $0x30] sm:$0xff] %vm1035, %v1018
      %1043 = vst.msk [vmem:[%s226 + $0x38] sm:$0xff] %vm1035, %v1020
      %1044 = vst.msk [vmem:[%s226 + $0x40] sm:$0xff] %vm1035, %v1022
      %vm1045 = vcmask 13320
      %1046 = vst.msk [vmem:[%s226 + $0x48] sm:$0x3f] %vm1045, %v1024
      %s1047 = scalar_lea.vmem %s1, 64
      %v1048 = vld [vmem:[%s1047] sm:$0xf]
      %v1049 = vld [vmem:[%s1047 + $0x4] sm:$0xf]
      %s1050 = scalar_lea.vmem %s1, 72
      %v1051 = vld [vmem:[%s1050] sm:$0xf]
      %v1052 = vld [vmem:[%s1050 + $0x4] sm:$0xf]
      %v1055 = vunpack.c.l.b16 %v1051
      %v1056 = vunpack.c.l.b16 %v1052
      %v1057 = vpack.c.b16 %v1056, %v1055
      %1059 = vmatpush.bf16.msra.mxu0 0
      %1060 = vmatpush.bf16.msra.mxu0 0
      %1061 = vmatpush.bf16.msra.mxu0 0
      %1062 = vmatpush.bf16.msra.mxu0 0
      %1063 = vmatpush.bf16.msra.mxu0 0
      %1064 = vmatpush.bf16.msra.mxu0 0
      %1065 = vmatpush.bf16.msra.mxu0 0
      %1066 = vmatpush.bf16.msra.mxu0 %v1057
      %1067 = vmatmul.bf16.gmra.mxu0 %v639
      %v1068 = vpop.f32.mrf.mxu0
      %v1069 = vadd.f32 0.0, %v1068
      %v1070 = vpop.f32.mrf.mxu0
      %v1071 = vadd.f32 0.0, %v1070
      %1072 = vmatmul.bf16.gmra.mxu0 %v642
      %v1073 = vpop.f32.mrf.mxu0
      %v1074 = vadd.f32 0.0, %v1073
      %v1075 = vpop.f32.mrf.mxu0
      %v1076 = vadd.f32 0.0, %v1075
      %1077 = vmatmul.bf16.gmra.mxu0 %v645
      %v1078 = vpop.f32.mrf.mxu0
      %v1079 = vadd.f32 0.0, %v1078
      %v1080 = vpop.f32.mrf.mxu0
      %v1081 = vadd.f32 0.0, %v1080
      %1082 = vmatmul.bf16.gmra.mxu0 %v648
      %v1083 = vpop.f32.mrf.mxu0
      %v1084 = vadd.f32 0.0, %v1083
      %v1085 = vpop.f32.mrf.mxu0
      %v1086 = vadd.f32 0.0, %v1085
      %1087 = vmatmul.bf16.gmra.mxu0 %v651
      %v1088 = vpop.f32.mrf.mxu0
      %v1089 = vadd.f32 0.0, %v1088
      %v1090 = vpop.f32.mrf.mxu0
      %v1091 = vadd.f32 0.0, %v1090
      %1092 = vdwg.mxu0
      %v1095 = vunpack.c.l.b16 %v1048
      %v1096 = vunpack.c.l.b16 %v1049
      %v1097 = vpack.c.b16 %v1096, %v1095
      %1099 = vmatpush.bf16.msra.mxu0 0
      %1100 = vmatpush.bf16.msra.mxu0 0
      %1101 = vmatpush.bf16.msra.mxu0 0
      %1102 = vmatpush.bf16.msra.mxu0 0
      %1103 = vmatpush.bf16.msra.mxu0 0
      %1104 = vmatpush.bf16.msra.mxu0 0
      %1105 = vmatpush.bf16.msra.mxu0 0
      %1106 = vmatpush.bf16.msra.mxu0 %v1097
      %1107 = vmatmul.bf16.gmra.mxu0 %v518
      %v1108 = vpop.f32.mrf.mxu0
      %v1109 = vadd.f32 %v1069, %v1108
      %v1110 = vpop.f32.mrf.mxu0
      %v1111 = vadd.f32 %v1071, %v1110
      %1112 = vmatmul.bf16.gmra.mxu0 %v521
      %v1113 = vpop.f32.mrf.mxu0
      %v1114 = vadd.f32 %v1074, %v1113
      %v1115 = vpop.f32.mrf.mxu0
      %v1116 = vadd.f32 %v1076, %v1115
      %1117 = vmatmul.bf16.gmra.mxu0 %v524
      %v1118 = vpop.f32.mrf.mxu0
      %v1119 = vadd.f32 %v1079, %v1118
      %v1120 = vpop.f32.mrf.mxu0
      %v1121 = vadd.f32 %v1081, %v1120
      %1122 = vmatmul.bf16.gmra.mxu0 %v527
      %v1123 = vpop.f32.mrf.mxu0
      %v1124 = vadd.f32 %v1084, %v1123
      %v1125 = vpop.f32.mrf.mxu0
      %v1126 = vadd.f32 %v1086, %v1125
      %1127 = vmatmul.bf16.gmra.mxu0 %v530
      %v1128 = vpop.f32.mrf.mxu0
      %v1129 = vadd.f32 %v1089, %v1128
      %v1130 = vpop.f32.mrf.mxu0
      %v1131 = vadd.f32 %v1091, %v1130
      %1132 = vdwg.mxu0
      %s1133 = scalar_lea.vmem %s1, 80
      %v1134 = vld [vmem:[%s1133] sm:$0xf]
      %v1135 = vld [vmem:[%s1133 + $0x4] sm:$0xf]
      %v1137 = vunpack.c.l.b16 %v313
      %v1138 = vpack.c.b16 %v580, %v495
      %v1139 = vpack.c.b16 %v1137, %v1137
      %v1140 = vrot.slane %v341, 2
      %v1141 = vrot.slane %v342, 2
      %v1142 = vsel %vm898, %v1140, %v1141
      %v1143 = vrot.slane %v343, 2
      %v1144 = vsel %vm898, %v1141, %v1143
      %v1145 = vrot.slane %v344, 2
      %v1146 = vsel %vm898, %v1143, %v1145
      %v1147 = vrot.slane %v1138, 2
      %v1148 = vsel %vm898, %v1145, %v1147
      %v1149 = vrot.slane %v1139, 2
      %v1150 = vsel %vm898, %v1147, %v1149
      %v1153 = vunpack.c.l.b16 %v1134
      %v1154 = vunpack.c.l.b16 %v1135
      %v1155 = vpack.c.b16 %v1154, %v1153
      %v1158 = vsel %vm391, %v1142, 0
      %v1161 = vsel %vm391, %v1144, 0
      %v1164 = vsel %vm391, %v1146, 0
      %v1167 = vsel %vm391, %v1148, 0
      %v1170 = vsel %vm391, %v1150, 0
      %1172 = vmatpush.bf16.msra.mxu0 0
      %1173 = vmatpush.bf16.msra.mxu0 0
      %1174 = vmatpush.bf16.msra.mxu0 0
      %1175 = vmatpush.bf16.msra.mxu0 0
      %1176 = vmatpush.bf16.msra.mxu0 0
      %1177 = vmatpush.bf16.msra.mxu0 0
      %1178 = vmatpush.bf16.msra.mxu0 0
      %1179 = vmatpush.bf16.msra.mxu0 %v1155
      %1180 = vmatmul.bf16.gmra.mxu0 %v1158
      %v1181 = vpop.f32.mrf.mxu0
      %v1182 = vadd.f32 0.0, %v1181
      %v1183 = vpop.f32.mrf.mxu0
      %v1184 = vadd.f32 0.0, %v1183
      %1185 = vmatmul.bf16.gmra.mxu0 %v1161
      %v1186 = vpop.f32.mrf.mxu0
      %v1187 = vadd.f32 0.0, %v1186
      %v1188 = vpop.f32.mrf.mxu0
      %v1189 = vadd.f32 0.0, %v1188
      %1190 = vmatmul.bf16.gmra.mxu0 %v1164
      %v1191 = vpop.f32.mrf.mxu0
      %v1192 = vadd.f32 0.0, %v1191
      %v1193 = vpop.f32.mrf.mxu0
      %v1194 = vadd.f32 0.0, %v1193
      %1195 = vmatmul.bf16.gmra.mxu0 %v1167
      %v1196 = vpop.f32.mrf.mxu0
      %v1197 = vadd.f32 0.0, %v1196
      %v1198 = vpop.f32.mrf.mxu0
      %v1199 = vadd.f32 0.0, %v1198
      %1200 = vmatmul.bf16.gmra.mxu0 %v1170
      %v1201 = vpop.f32.mrf.mxu0
      %v1202 = vadd.f32 0.0, %v1201
      %v1203 = vpop.f32.mrf.mxu0
      %v1204 = vadd.f32 0.0, %v1203
      %1205 = vdwg.mxu0
      %v1206 = vadd.f32 %v1109, %v1182
      %v1207 = vadd.f32 %v1111, %v1184
      %v1208 = vadd.f32 %v1114, %v1187
      %v1209 = vadd.f32 %v1116, %v1189
      %v1210 = vadd.f32 %v1119, %v1192
      %v1211 = vadd.f32 %v1121, %v1194
      %v1212 = vadd.f32 %v1124, %v1197
      %v1213 = vadd.f32 %v1126, %v1199
      %v1214 = vadd.f32 %v1129, %v1202
      %v1215 = vadd.f32 %v1131, %v1204
      %s1216 = scalar_lea.vmem %s1, 88
      %v1217 = vld [vmem:[%s1216] sm:$0xf]
      %v1218 = vld [vmem:[%s1216 + $0x4] sm:$0xf]
      %vm1219 = vsmask.f32 5376
      %v1220 = vrot.slane %v358, 2
      %v1221 = vrot.slane %v354, 3
      %v1222 = vor.u32 %v1220, %v1221
      %v1223 = vrot.slane %v366, 2
      %v1224 = vrot.slane %v362, 3
      %v1225 = vor.u32 %v1223, %v1224
      %v1226 = vsel %vm1219, %v1222, %v1225
      %v1227 = vrot.slane %v374, 2
      %v1228 = vrot.slane %v370, 3
      %v1229 = vor.u32 %v1227, %v1228
      %v1230 = vsel %vm1219, %v1225, %v1229
      %v1231 = vrot.slane %v382, 2
      %v1232 = vrot.slane %v378, 3
      %v1233 = vor.u32 %v1231, %v1232
      %v1234 = vsel %vm1219, %v1229, %v1233
      %v1236 = vshrl.u32 %v1138, 16
      %v1238 = vrot.slane %v1236, 2
      %v1239 = vshll.u32 %v1138, 16
      %v1241 = vrot.slane %v1239, 3
      %v1242 = vor.u32 %v1238, %v1241
      %v1243 = vsel %vm1219, %v1233, %v1242
      %v1245 = vshrl.u32 %v1139, 16
      %v1247 = vrot.slane %v1245, 2
      %v1248 = vshll.u32 %v1139, 16
      %v1250 = vrot.slane %v1248, 3
      %v1251 = vor.u32 %v1247, %v1250
      %v1252 = vsel %vm1219, %v1242, %v1251
      %v1255 = vunpack.c.l.b16 %v1217
      %v1256 = vunpack.c.l.b16 %v1218
      %v1257 = vpack.c.b16 %v1256, %v1255
      %v1260 = vsel %vm391, %v1226, 0
      %v1263 = vsel %vm391, %v1230, 0
      %v1266 = vsel %vm391, %v1234, 0
      %v1269 = vsel %vm391, %v1243, 0
      %v1272 = vsel %vm391, %v1252, 0
      %1274 = vmatpush.bf16.msra.mxu0 0
      %1275 = vmatpush.bf16.msra.mxu0 0
      %1276 = vmatpush.bf16.msra.mxu0 0
      %1277 = vmatpush.bf16.msra.mxu0 0
      %1278 = vmatpush.bf16.msra.mxu0 0
      %1279 = vmatpush.bf16.msra.mxu0 0
      %1280 = vmatpush.bf16.msra.mxu0 0
      %1281 = vmatpush.bf16.msra.mxu0 %v1257
      %1282 = vmatmul.bf16.gmra.mxu0 %v1260
      %v1283 = vpop.f32.mrf.mxu0
      %v1284 = vadd.f32 0.0, %v1283
      %v1285 = vpop.f32.mrf.mxu0
      %v1286 = vadd.f32 0.0, %v1285
      %1287 = vmatmul.bf16.gmra.mxu0 %v1263
      %v1288 = vpop.f32.mrf.mxu0
      %v1289 = vadd.f32 0.0, %v1288
      %v1290 = vpop.f32.mrf.mxu0
      %v1291 = vadd.f32 0.0, %v1290
      %1292 = vmatmul.bf16.gmra.mxu0 %v1266
      %v1293 = vpop.f32.mrf.mxu0
      %v1294 = vadd.f32 0.0, %v1293
      %v1295 = vpop.f32.mrf.mxu0
      %v1296 = vadd.f32 0.0, %v1295
      %1297 = vmatmul.bf16.gmra.mxu0 %v1269
      %v1298 = vpop.f32.mrf.mxu0
      %v1299 = vadd.f32 0.0, %v1298
      %v1300 = vpop.f32.mrf.mxu0
      %v1301 = vadd.f32 0.0, %v1300
      %1302 = vmatmul.bf16.gmra.mxu0 %v1272
      %v1303 = vpop.f32.mrf.mxu0
      %v1304 = vadd.f32 0.0, %v1303
      %v1305 = vpop.f32.mrf.mxu0
      %v1306 = vadd.f32 0.0, %v1305
      %1307 = vdwg.mxu0
      %v1308 = vadd.f32 %v1206, %v1284
      %v1309 = vadd.f32 %v1207, %v1286
      %v1310 = vadd.f32 %v1208, %v1289
      %v1311 = vadd.f32 %v1209, %v1291
      %v1312 = vadd.f32 %v1210, %v1294
      %v1313 = vadd.f32 %v1211, %v1296
      %v1314 = vadd.f32 %v1212, %v1299
      %v1315 = vadd.f32 %v1213, %v1301
      %v1316 = vadd.f32 %v1214, %v1304
      %v1317 = vadd.f32 %v1215, %v1306
      %v1318 = vadd.f32 %v1308, %v698
      %v1319 = vadd.f32 %v1309, %v698
      %v1320 = vadd.f32 %v1310, %v698
      %v1321 = vadd.f32 %v1311, %v698
      %v1322 = vadd.f32 %v1312, %v698
      %v1323 = vadd.f32 %v1313, %v698
      %v1324 = vadd.f32 %v1314, %v698
      %v1325 = vadd.f32 %v1315, %v698
      %v1326 = vadd.f32 %v1316, %v698
      %v1327 = vadd.f32 %v1317, %v698
      %v1328 = vtanh.pop %v1318
      %v1329 = vtanh.pop %v1319
      %v1330 = vtanh.pop %v1320
      %v1331 = vtanh.pop %v1321
      %v1332 = vtanh.pop %v1322
      %v1333 = vtanh.pop %v1323
      %v1334 = vtanh.pop %v1324
      %v1335 = vtanh.pop %v1325
      %v1336 = vtanh.pop %v1326
      %v1337 = vtanh.pop %v1327
      %1348 = vrot.lane.b32.xlu0 %v1328, 2
      %v1349 = vpop.permute.xlu0 %1348
      %1350 = vrot.lane.b32.xlu0 %v1329, 2
      %v1351 = vpop.permute.xlu0 %1350
      %1352 = vrot.lane.b32.xlu0 %v1330, 2
      %v1353 = vpop.permute.xlu0 %1352
      %1354 = vrot.lane.b32.xlu0 %v1331, 2
      %v1355 = vpop.permute.xlu0 %1354
      %1356 = vrot.lane.b32.xlu0 %v1332, 2
      %v1357 = vpop.permute.xlu0 %1356
      %1358 = vrot.lane.b32.xlu0 %v1333, 2
      %v1359 = vpop.permute.xlu0 %1358
      %1360 = vrot.lane.b32.xlu0 %v1334, 2
      %v1361 = vpop.permute.xlu0 %1360
      %1362 = vrot.lane.b32.xlu0 %v1335, 2
      %v1363 = vpop.permute.xlu0 %1362
      %1364 = vrot.lane.b32.xlu0 %v1336, 2
      %v1365 = vpop.permute.xlu0 %1364
      %1366 = vrot.lane.b32.xlu0 %v1337, 2
      %v1367 = vpop.permute.xlu0 %1366
      %vm1378 = vcmask 23568
      %1379 = vst.msk [vmem:[%s226] sm:$0xff] %vm1378, %v1349
      %1380 = vst.msk [vmem:[%s226 + $0x8] sm:$0xff] %vm1378, %v1351
      %1381 = vst.msk [vmem:[%s226 + $0x10] sm:$0xff] %vm1378, %v1353
      %1382 = vst.msk [vmem:[%s226 + $0x18] sm:$0xff] %vm1378, %v1355
      %1383 = vst.msk [vmem:[%s226 + $0x20] sm:$0xff] %vm1378, %v1357
      %1384 = vst.msk [vmem:[%s226 + $0x28] sm:$0xff] %vm1378, %v1359
      %1385 = vst.msk [vmem:[%s226 + $0x30] sm:$0xff] %vm1378, %v1361
      %1386 = vst.msk [vmem:[%s226 + $0x38] sm:$0xff] %vm1378, %v1363
      %1387 = vst.msk [vmem:[%s226 + $0x40] sm:$0xff] %vm1378, %v1365
      %vm1388 = vcmask 21520
      %1389 = vst.msk [vmem:[%s226 + $0x48] sm:$0x3f] %vm1388, %v1367
      %s1390 = scalar_lea.vmem %s1, 96
      %v1391 = vld [vmem:[%s1390] sm:$0xf]
      %v1392 = vld [vmem:[%s1390 + $0x4] sm:$0xf]
      %s1393 = scalar_lea.vmem %s1, 104
      %v1394 = vld [vmem:[%s1393] sm:$0xf]
      %v1395 = vld [vmem:[%s1393 + $0x4] sm:$0xf]
      %v1398 = vunpack.c.l.b16 %v1394
      %v1399 = vunpack.c.l.b16 %v1395
      %v1400 = vpack.c.b16 %v1399, %v1398
      %1402 = vmatpush.bf16.msra.mxu0 0
      %1403 = vmatpush.bf16.msra.mxu0 0
      %1404 = vmatpush.bf16.msra.mxu0 0
      %1405 = vmatpush.bf16.msra.mxu0 0
      %1406 = vmatpush.bf16.msra.mxu0 0
      %1407 = vmatpush.bf16.msra.mxu0 0
      %1408 = vmatpush.bf16.msra.mxu0 0
      %1409 = vmatpush.bf16.msra.mxu0 %v1400
      %1410 = vmatmul.bf16.gmra.mxu0 %v917
      %v1411 = vpop.f32.mrf.mxu0
      %v1412 = vadd.f32 0.0, %v1411
      %v1413 = vpop.f32.mrf.mxu0
      %v1414 = vadd.f32 0.0, %v1413
      %1415 = vmatmul.bf16.gmra.mxu0 %v920
      %v1416 = vpop.f32.mrf.mxu0
      %v1417 = vadd.f32 0.0, %v1416
      %v1418 = vpop.f32.mrf.mxu0
      %v1419 = vadd.f32 0.0, %v1418
      %1420 = vmatmul.bf16.gmra.mxu0 %v923
      %v1421 = vpop.f32.mrf.mxu0
      %v1422 = vadd.f32 0.0, %v1421
      %v1423 = vpop.f32.mrf.mxu0
      %v1424 = vadd.f32 0.0, %v1423
      %1425 = vmatmul.bf16.gmra.mxu0 %v926
      %v1426 = vpop.f32.mrf.mxu0
      %v1427 = vadd.f32 0.0, %v1426
      %v1428 = vpop.f32.mrf.mxu0
      %v1429 = vadd.f32 0.0, %v1428
      %1430 = vmatmul.bf16.gmra.mxu0 %v929
      %v1431 = vpop.f32.mrf.mxu0
      %v1432 = vadd.f32 0.0, %v1431
      %v1433 = vpop.f32.mrf.mxu0
      %v1434 = vadd.f32 0.0, %v1433
      %1435 = vdwg.mxu0
      %v1438 = vunpack.c.l.b16 %v1391
      %v1439 = vunpack.c.l.b16 %v1392
      %v1440 = vpack.c.b16 %v1439, %v1438
      %1442 = vmatpush.bf16.msra.mxu0 0
      %1443 = vmatpush.bf16.msra.mxu0 0
      %1444 = vmatpush.bf16.msra.mxu0 0
      %1445 = vmatpush.bf16.msra.mxu0 0
      %1446 = vmatpush.bf16.msra.mxu0 0
      %1447 = vmatpush.bf16.msra.mxu0 0
      %1448 = vmatpush.bf16.msra.mxu0 0
      %1449 = vmatpush.bf16.msra.mxu0 %v1440
      %1450 = vmatmul.bf16.gmra.mxu0 %v639
      %v1451 = vpop.f32.mrf.mxu0
      %v1452 = vadd.f32 %v1412, %v1451
      %v1453 = vpop.f32.mrf.mxu0
      %v1454 = vadd.f32 %v1414, %v1453
      %1455 = vmatmul.bf16.gmra.mxu0 %v642
      %v1456 = vpop.f32.mrf.mxu0
      %v1457 = vadd.f32 %v1417, %v1456
      %v1458 = vpop.f32.mrf.mxu0
      %v1459 = vadd.f32 %v1419, %v1458
      %1460 = vmatmul.bf16.gmra.mxu0 %v645
      %v1461 = vpop.f32.mrf.mxu0
      %v1462 = vadd.f32 %v1422, %v1461
      %v1463 = vpop.f32.mrf.mxu0
      %v1464 = vadd.f32 %v1424, %v1463
      %1465 = vmatmul.bf16.gmra.mxu0 %v648
      %v1466 = vpop.f32.mrf.mxu0
      %v1467 = vadd.f32 %v1427, %v1466
      %v1468 = vpop.f32.mrf.mxu0
      %v1469 = vadd.f32 %v1429, %v1468
      %1470 = vmatmul.bf16.gmra.mxu0 %v651
      %v1471 = vpop.f32.mrf.mxu0
      %v1472 = vadd.f32 %v1432, %v1471
      %v1473 = vpop.f32.mrf.mxu0
      %v1474 = vadd.f32 %v1434, %v1473
      %1475 = vdwg.mxu0
      %s1476 = scalar_lea.vmem %s1, 112
      %v1477 = vld [vmem:[%s1476] sm:$0xf]
      %v1478 = vld [vmem:[%s1476 + $0x4] sm:$0xf]
      %v1481 = vunpack.c.l.b16 %v1477
      %v1482 = vunpack.c.l.b16 %v1478
      %v1483 = vpack.c.b16 %v1482, %v1481
      %1485 = vmatpush.bf16.msra.mxu0 0
      %1486 = vmatpush.bf16.msra.mxu0 0
      %1487 = vmatpush.bf16.msra.mxu0 0
      %1488 = vmatpush.bf16.msra.mxu0 0
      %1489 = vmatpush.bf16.msra.mxu0 0
      %1490 = vmatpush.bf16.msra.mxu0 0
      %1491 = vmatpush.bf16.msra.mxu0 0
      %1492 = vmatpush.bf16.msra.mxu0 %v1483
      %1493 = vmatmul.bf16.gmra.mxu0 %v1260
      %v1494 = vpop.f32.mrf.mxu0
      %v1495 = vadd.f32 0.0, %v1494
      %v1496 = vpop.f32.mrf.mxu0
      %v1497 = vadd.f32 0.0, %v1496
      %1498 = vmatmul.bf16.gmra.mxu0 %v1263
      %v1499 = vpop.f32.mrf.mxu0
      %v1500 = vadd.f32 0.0, %v1499
      %v1501 = vpop.f32.mrf.mxu0
      %v1502 = vadd.f32 0.0, %v1501
      %1503 = vmatmul.bf16.gmra.mxu0 %v1266
      %v1504 = vpop.f32.mrf.mxu0
      %v1505 = vadd.f32 0.0, %v1504
      %v1506 = vpop.f32.mrf.mxu0
      %v1507 = vadd.f32 0.0, %v1506
      %1508 = vmatmul.bf16.gmra.mxu0 %v1269
      %v1509 = vpop.f32.mrf.mxu0
      %v1510 = vadd.f32 0.0, %v1509
      %v1511 = vpop.f32.mrf.mxu0
      %v1512 = vadd.f32 0.0, %v1511
      %1513 = vmatmul.bf16.gmra.mxu0 %v1272
      %v1514 = vpop.f32.mrf.mxu0
      %v1515 = vadd.f32 0.0, %v1514
      %v1516 = vpop.f32.mrf.mxu0
      %v1517 = vadd.f32 0.0, %v1516
      %1518 = vdwg.mxu0
      %v1519 = vadd.f32 %v1452, %v1495
      %v1520 = vadd.f32 %v1454, %v1497
      %v1521 = vadd.f32 %v1457, %v1500
      %v1522 = vadd.f32 %v1459, %v1502
      %v1523 = vadd.f32 %v1462, %v1505
      %v1524 = vadd.f32 %v1464, %v1507
      %v1525 = vadd.f32 %v1467, %v1510
      %v1526 = vadd.f32 %v1469, %v1512
      %v1527 = vadd.f32 %v1472, %v1515
      %v1528 = vadd.f32 %v1474, %v1517
      %s1529 = scalar_lea.vmem %s1, 120
      %v1530 = vld [vmem:[%s1529] sm:$0xf]
      %v1531 = vld [vmem:[%s1529 + $0x4] sm:$0xf]
      %vm1532 = vcmask 1044480
      %v1533 = vrot.slane %v341, 3
      %v1534 = vrot.slane %v342, 3
      %v1535 = vsel %vm1532, %v1533, %v1534
      %v1536 = vrot.slane %v343, 3
      %v1537 = vsel %vm1532, %v1534, %v1536
      %v1538 = vrot.slane %v344, 3
      %v1539 = vsel %vm1532, %v1536, %v1538
      %v1540 = vrot.slane %v1138, 3
      %v1541 = vsel %vm1532, %v1538, %v1540
      %v1542 = vrot.slane %v1139, 3
      %v1543 = vsel %vm1532, %v1540, %v1542
      %v1546 = vunpack.c.l.b16 %v1530
      %v1547 = vunpack.c.l.b16 %v1531
      %v1548 = vpack.c.b16 %v1547, %v1546
      %v1551 = vsel %vm391, %v1535, 0
      %v1554 = vsel %vm391, %v1537, 0
      %v1557 = vsel %vm391, %v1539, 0
      %v1560 = vsel %vm391, %v1541, 0
      %v1563 = vsel %vm391, %v1543, 0
      %1565 = vmatpush.bf16.msra.mxu0 0
      %1566 = vmatpush.bf16.msra.mxu0 0
      %1567 = vmatpush.bf16.msra.mxu0 0
      %1568 = vmatpush.bf16.msra.mxu0 0
      %1569 = vmatpush.bf16.msra.mxu0 0
      %1570 = vmatpush.bf16.msra.mxu0 0
      %1571 = vmatpush.bf16.msra.mxu0 0
      %1572 = vmatpush.bf16.msra.mxu0 %v1548
      %1573 = vmatmul.bf16.gmra.mxu0 %v1551
      %v1574 = vpop.f32.mrf.mxu0
      %v1575 = vadd.f32 0.0, %v1574
      %v1576 = vpop.f32.mrf.mxu0
      %v1577 = vadd.f32 0.0, %v1576
      %1578 = vmatmul.bf16.gmra.mxu0 %v1554
      %v1579 = vpop.f32.mrf.mxu0
      %v1580 = vadd.f32 0.0, %v1579
      %v1581 = vpop.f32.mrf.mxu0
      %v1582 = vadd.f32 0.0, %v1581
      %1583 = vmatmul.bf16.gmra.mxu0 %v1557
      %v1584 = vpop.f32.mrf.mxu0
      %v1585 = vadd.f32 0.0, %v1584
      %v1586 = vpop.f32.mrf.mxu0
      %v1587 = vadd.f32 0.0, %v1586
      %1588 = vmatmul.bf16.gmra.mxu0 %v1560
      %v1589 = vpop.f32.mrf.mxu0
      %v1590 = vadd.f32 0.0, %v1589
      %v1591 = vpop.f32.mrf.mxu0
      %v1592 = vadd.f32 0.0, %v1591
      %1593 = vmatmul.bf16.gmra.mxu0 %v1563
      %v1594 = vpop.f32.mrf.mxu0
      %v1595 = vadd.f32 0.0, %v1594
      %v1596 = vpop.f32.mrf.mxu0
      %v1597 = vadd.f32 0.0, %v1596
      %1598 = vdwg.mxu0
      %v1599 = vadd.f32 %v1519, %v1575
      %v1600 = vadd.f32 %v1520, %v1577
      %v1601 = vadd.f32 %v1521, %v1580
      %v1602 = vadd.f32 %v1522, %v1582
      %v1603 = vadd.f32 %v1523, %v1585
      %v1604 = vadd.f32 %v1524, %v1587
      %v1605 = vadd.f32 %v1525, %v1590
      %v1606 = vadd.f32 %v1526, %v1592
      %v1607 = vadd.f32 %v1527, %v1595
      %v1608 = vadd.f32 %v1528, %v1597
      %v1609 = vadd.f32 %v1599, %v698
      %v1610 = vadd.f32 %v1600, %v698
      %v1611 = vadd.f32 %v1601, %v698
      %v1612 = vadd.f32 %v1602, %v698
      %v1613 = vadd.f32 %v1603, %v698
      %v1614 = vadd.f32 %v1604, %v698
      %v1615 = vadd.f32 %v1605, %v698
      %v1616 = vadd.f32 %v1606, %v698
      %v1617 = vadd.f32 %v1607, %v698
      %v1618 = vadd.f32 %v1608, %v698
      %v1619 = vtanh.pop %v1609
      %v1620 = vtanh.pop %v1610
      %v1621 = vtanh.pop %v1611
      %v1622 = vtanh.pop %v1612
      %v1623 = vtanh.pop %v1613
      %v1624 = vtanh.pop %v1614
      %v1625 = vtanh.pop %v1615
      %v1626 = vtanh.pop %v1616
      %v1627 = vtanh.pop %v1617
      %v1628 = vtanh.pop %v1618
      %1639 = vrot.lane.b32.xlu0 %v1619, 3
      %v1640 = vpop.permute.xlu0 %1639
      %1641 = vrot.lane.b32.xlu0 %v1620, 3
      %v1642 = vpop.permute.xlu0 %1641
      %1643 = vrot.lane.b32.xlu0 %v1621, 3
      %v1644 = vpop.permute.xlu0 %1643
      %1645 = vrot.lane.b32.xlu0 %v1622, 3
      %v1646 = vpop.permute.xlu0 %1645
      %1647 = vrot.lane.b32.xlu0 %v1623, 3
      %v1648 = vpop.permute.xlu0 %1647
      %1649 = vrot.lane.b32.xlu0 %v1624, 3
      %v1650 = vpop.permute.xlu0 %1649
      %1651 = vrot.lane.b32.xlu0 %v1625, 3
      %v1652 = vpop.permute.xlu0 %1651
      %1653 = vrot.lane.b32.xlu0 %v1626, 3
      %v1654 = vpop.permute.xlu0 %1653
      %1655 = vrot.lane.b32.xlu0 %v1627, 3
      %v1656 = vpop.permute.xlu0 %1655
      %1657 = vrot.lane.b32.xlu0 %v1628, 3
      %v1658 = vpop.permute.xlu0 %1657
      %vm1669 = vcmask 31768
      %1670 = vst.msk [vmem:[%s226] sm:$0xff] %vm1669, %v1640
      %1671 = vst.msk [vmem:[%s226 + $0x8] sm:$0xff] %vm1669, %v1642
      %1672 = vst.msk [vmem:[%s226 + $0x10] sm:$0xff] %vm1669, %v1644
      %1673 = vst.msk [vmem:[%s226 + $0x18] sm:$0xff] %vm1669, %v1646
      %1674 = vst.msk [vmem:[%s226 + $0x20] sm:$0xff] %vm1669, %v1648
      %1675 = vst.msk [vmem:[%s226 + $0x28] sm:$0xff] %vm1669, %v1650
      %1676 = vst.msk [vmem:[%s226 + $0x30] sm:$0xff] %vm1669, %v1652
      %1677 = vst.msk [vmem:[%s226 + $0x38] sm:$0xff] %vm1669, %v1654
      %1678 = vst.msk [vmem:[%s226 + $0x40] sm:$0xff] %vm1669, %v1656
      %vm1679 = vcmask 29720
      %1680 = vst.msk [vmem:[%s226 + $0x48] sm:$0x3f] %vm1679, %v1658
      %p1681 = scmp.lt.s32.totalorder %s18, 1
      %s1682 = scalar_select %p1681, %s18, 1
      %s1683 = smul.addr %s1682, 10
      %s1684 = smul.addr %s1683, 8
      %s1685 = scalar_lea.vmem %s5, %s1684
      // Predicated region
      $region41: #{unet_forward.16} parent=39 // pred_check
        %p1686 = pneg %p146
      $region42: #{unet_forward.16} parent=39 // pred_check_branch
        %1688 = sbr.rel (%p1686) target = $region44
      $region43: #{unet_forward.16} parent=39 // pred_region
        _
      $region44: #{unet_forward.16} parent=39 // pred_fallthru
        _
    $region40: #{unet_forward.16} parent=5 // pred_fallthru
      _
    %p1689 = scmp.le.s32.totalorder 2, %s13
    // Predicated region
    $region45: #{unet_forward.16} parent=5 // pred_check
      %p1690 = pneg %p1689
    $region46: #{unet_forward.16} parent=5 // pred_check_branch
      %1692 = sbr.rel (%p1690) target = $region48
    $region47: #{unet_forward.16} parent=5 // pred_region
      %s1693 = ssub.s32 %s13, 2
      // Predicated region
      $region49: #{unet_forward.16} parent=47 // pred_check
        %p1694 = pneg %p152
      $region50: #{unet_forward.16} parent=47 // pred_check_branch
        %1696 = sbr.rel (%p1694) target = $region52
      $region51: #{unet_forward.16} parent=47 // pred_region
        %p1697 = scmp.lt.s32.totalorder %s19, 1
        %s1698 = scalar_select %p1697, %s19, 1
        %s1699 = smul.addr %s1698, 10
        %s1700 = smul.addr %s1699, 8
        %s1701 = scalar_lea.vmem %s5, %s1700
      $region52: #{unet_forward.16} parent=47 // pred_fallthru
        _
    $region48: #{unet_forward.16} parent=5 // pred_fallthru
      _
  $region6: #{unet_forward.16} parent=0 // loop_footer
    %s17 = sadd.s32 1, %s13
  $region7: #{unet_forward.16} parent=0 // loop_footer_branch
    %12 = sbr.rel target = $region3
  $region8: #{unet_forward.16} parent=0 // loop_exit
    _

</llo_original>
